<compile_context>
chip_gen: v5e
topology: v5e:2x2
jax: 0.10.0
libtpu: 0.0.40
codegen_flags: <defaults>
</compile_context>

<pallas_src>
import functools

import jax
import jax.numpy as jnp
from jax.experimental import pallas as pl
from jax.experimental.pallas import tpu as pltpu

NUM_BLOCKS = 4
CLAMP = 2.0
LEAKY_SLOPE = 0.01  # PyTorch nn.LeakyReLU default negative_slope


def _device_kind():
    try:
        return jax.devices()[0].device_kind.lower()
    except Exception:
        return ""


def _has_wide_mxu(kind):
    # v6e / v7x: 256-wide MXU + bf16 VPU path.  <=v5e: 128x128 MXU, no bf16 VPU.
    return any(tag in kind for tag in ("v6", "v7", "7x"))


def _round_up(n, m):
    return ((n + m - 1) // m) * m


def _mlp_kernel(x_ref, p_ref, w1_ref, b1_ref, w2_ref, b2_ref, o_ref, *,
                rev: bool, dense_w2: bool, bf16_act: bool):
    """Fused 4-block password-conditioned affine coupling on one (TB, D) batch tile."""
    D = x_ref.shape[1]
    n_blocks = NUM_BLOCKS
    H = w1_ref.shape[1] // (2 * n_blocks)
    two_h = 2 * H

    x = x_ref[...].astype(jnp.float32)            # [TB, D]  (x path stays f32)
    p = p_ref[...].astype(jnp.bfloat16)           # [TB, D]  bf16 MXU operand

    # Fused first layer: one wide matmul over all blocks x {scale, shift}.  [TB, D] @ [D, 8H]
    h = jnp.dot(p, w1_ref[...], preferred_element_type=jnp.float32)
    if bf16_act:
        # v6e/v7x: bias-add + LeakyReLU in bf16 (halves VALU pressure, no extra f32 copy alive)
        h = h.astype(jnp.bfloat16) + b1_ref[...].astype(jnp.bfloat16)
    else:
        h = h + b1_ref[...]
    h = jnp.maximum(h, LEAKY_SLOPE * h)           # LeakyReLU: mul+max (2 VALU ops)

    # Second layer per block + fold the 4 affine maps into a single x*A + T.
    comp_a = None   # composed scale
    comp_t = None   # composed shift
    order = range(n_blocks - 1, -1, -1) if rev else range(n_blocks)
    for i in order:  # static unroll (4 iterations)
        base = i * two_h
        b2_base = i * 2 * D
        if dense_w2:
            # v5e path: two dense [H, D] = 128x128 matmuls per block (no zero MACs).
            h_s = h[:, base:base + H].astype(jnp.bfloat16)
            h_t = h[:, base + H:base + two_h].astype(jnp.bfloat16)
            s_i = jnp.dot(h_s, w2_ref[2 * i], preferred_element_type=jnp.float32)
            s_i = s_i + b2_ref[:, b2_base:b2_base + D]
            t_i = jnp.dot(h_t, w2_ref[2 * i + 1], preferred_element_type=jnp.float32)
            t_i = t_i + b2_ref[:, b2_base + D:b2_base + 2 * D]
        else:
            # v6e/v7x path: one 2x2 block-diagonal [2H, 2D] matmul per block (256-wide MXU).
            h_pair = h[:, base:base + two_h].astype(jnp.bfloat16)
            st = jnp.dot(h_pair, w2_ref[i], preferred_element_type=jnp.float32)
            st = st + b2_ref[:, b2_base:b2_base + 2 * D]
            s_i = st[:, :D]
            t_i = st[:, D:]

        # CLAMP * 2 * (sigmoid(s) - 0.5) == CLAMP * tanh(s / 2)   (single EUP op)
        log_scale = CLAMP * jnp.tanh(0.5 * s_i)
        if not rev:
            a_i = jnp.exp(log_scale)
            if comp_a is None:
                comp_a, comp_t = a_i, t_i
            else:
                comp_t = comp_t * a_i + t_i
                comp_a = comp_a * a_i
        else:
            inv_a_i = jnp.exp(-log_scale)
            if comp_a is None:
                comp_a, comp_t = inv_a_i, -t_i * inv_a_i
            else:
                comp_t = (comp_t - t_i) * inv_a_i
                comp_a = comp_a * inv_a_i

    o_ref[...] = (x * comp_a + comp_t).astype(o_ref.dtype)


def mlp_apply(x, password, packed_params, rev=False, block_b=512):
    """Wrapper: 1-D batch grid, x/password/out tiled (TB, D), weights resident across the grid."""
    w1, b1, w2, b2 = packed_params
    B, D = x.shape
    dense_w2 = (w2.shape[0] == 2 * NUM_BLOCKS)   # dense [NB*2,H,D] vs block-diag [NB,2H,2D]

    kind = _device_kind()
    bf16_act = _has_wide_mxu(kind)               # bf16 elementwise only where a bf16 VPU exists

    # Batch tiling: pad B up to a tile multiple so any B keeps the pipelined (TB, D) tiling.
    tb = max(8, min(block_b, _round_up(B, 8)))
    Bp = _round_up(B, tb)
    if Bp != B:
        pad = Bp - B
        x_in = jnp.pad(x, ((0, pad), (0, 0)))
        p_in = jnp.pad(password, ((0, pad), (0, 0)))
    else:
        x_in, p_in = x, password
    grid = (Bp // tb,)

    batch_spec = pl.BlockSpec((tb, D), lambda i: (i, 0))

    def resident(arr):
        nd = arr.ndim
        return pl.BlockSpec(arr.shape, lambda i, _nd=nd: (0,) * _nd)

    # CORE_PARALLEL actually shards the batch grid across v7x's 2 TensorCores.
    batch_sem = pltpu.CORE_PARALLEL if ("v7" in kind or "7x" in kind) else pltpu.PARALLEL

    out = pl.pallas_call(
        functools.partial(_mlp_kernel, rev=rev, dense_w2=dense_w2, bf16_act=bf16_act),
        out_shape=jax.ShapeDtypeStruct((Bp, D), x.dtype),
        grid=grid,
        in_specs=[
            batch_spec,        # x
            batch_spec,        # password
            resident(w1),      # [D, 8H]                       bf16
            resident(b1),      # [1, 8H]                       f32
            resident(w2),      # [NB,2H,2D] or [NB*2,H,D]      bf16
            resident(b2),      # [1, 8D]                       f32
        ],
        out_specs=batch_spec,
        compiler_params=pltpu.CompilerParams(
            dimension_semantics=(batch_sem,),
            vmem_limit_bytes=32 * 1024 * 1024),
    )(x_in, p_in, w1, b1, w2, b2)
    return out[:B] if Bp != B else out


def init_params(key, dim, hidden):
    """Raw per-block f32 params, PyTorch-Linear-style init. Weights are [block, in, out]."""
    keys = jax.random.split(key, 8)

    def u(k, shape, fan_in):
        bound = 1.0 / jnp.sqrt(fan_in)
        return jax.random.uniform(k, shape, jnp.float32, -bound, bound)

    w1s = u(keys[0], (NUM_BLOCKS, dim, hidden), dim)
    b1s = u(keys[1], (NUM_BLOCKS, hidden), dim)
    w2s = u(keys[2], (NUM_BLOCKS, hidden, dim), hidden)
    b2s = u(keys[3], (NUM_BLOCKS, dim), hidden)
    w1t = u(keys[4], (NUM_BLOCKS, dim, hidden), dim)
    b1t = u(keys[5], (NUM_BLOCKS, hidden), dim)
    w2t = u(keys[6], (NUM_BLOCKS, hidden, dim), hidden)
    b2t = u(keys[7], (NUM_BLOCKS, dim), hidden)
    return (w1s, b1s, w2s, b2s, w1t, b1t, w2t, b2t)


def pack_params(raw_params, dense_second=None):
    """Pack raw params into the fused layout used by the kernel (weights cast to bf16)."""
    if dense_second is None:
        dense_second = not _has_wide_mxu(_device_kind())
    w1s, b1s, w2s, b2s, w1t, b1t, w2t, b2t = raw_params
    nb, d, h = w1s.shape

    # First layer: column order per block i is [scale_i (H) | shift_i (H)] -> [D, NB*2H].
    w1_cols, b1_cols = [], []
    for i in range(nb):
        w1_cols += [w1s[i], w1t[i]]
        b1_cols += [b1s[i], b1t[i]]
    w1 = jnp.concatenate(w1_cols, axis=1).astype(jnp.bfloat16)        # [D, NB*2H]
    b1 = jnp.concatenate(b1_cols, axis=0).reshape(1, -1)              # [1, NB*2H] f32

    # Second-layer bias: per-block [s_i (D) | t_i (D)].
    b2_cols = []
    for i in range(nb):
        b2_cols += [b2s[i], b2t[i]]
    b2 = jnp.concatenate(b2_cols, axis=0).reshape(1, -1)              # [1, NB*2D] f32

    if dense_second:
        # v5e layout: dense [NB*2, H, D]; even index = scale weight, odd = shift weight.
        w2 = jnp.stack([w for i in range(nb) for w in (w2s[i], w2t[i])],
                       axis=0).astype(jnp.bfloat16)
    else:
        # v6e/v7x layout: per-block 2x2 block-diagonal [2H, 2D] mapping [hs|ht] -> [s|t].
        zhd = jnp.zeros((h, d), jnp.float32)
        blocks = []
        for i in range(nb):
            top = jnp.concatenate([w2s[i], zhd], axis=1)              # [H, 2D]
            bot = jnp.concatenate([zhd, w2t[i]], axis=1)              # [H, 2D]
            blocks.append(jnp.concatenate([top, bot], axis=0))        # [2H, 2D]
        w2 = jnp.stack(blocks, axis=0).astype(jnp.bfloat16)           # [NB, 2H, 2D]
    return (w1, b1, w2, b2)


def mlp_reference(x, password, raw_params, rev=False, bf16_act=False):
    """Pure-JAX per-block reference (module semantics), mirroring the kernel's matmul dtypes."""
    w1s, b1s, w2s, b2s, w1t, b1t, w2t, b2t = raw_params
    p = password.astype(jnp.bfloat16)
    out = x.astype(jnp.float32)

    def first_layer(w, b):
        hh = jnp.dot(p, w.astype(jnp.bfloat16), preferred_element_type=jnp.float32)
        if bf16_act:
            hh = hh.astype(jnp.bfloat16) + b.astype(jnp.bfloat16)
        else:
            hh = hh + b
        hh = jnp.where(hh >= 0, hh, LEAKY_SLOPE * hh)
        return hh.astype(jnp.bfloat16)

    order = range(NUM_BLOCKS - 1, -1, -1) if rev else range(NUM_BLOCKS)
    for i in order:
        hs = first_layer(w1s[i], b1s[i])
        s = jnp.dot(hs, w2s[i].astype(jnp.bfloat16),
                    preferred_element_type=jnp.float32) + b2s[i]
        ht = first_layer(w1t[i], b1t[i])
        t = jnp.dot(ht, w2t[i].astype(jnp.bfloat16),
                    preferred_element_type=jnp.float32) + b2t[i]
        log_scale = CLAMP * 2.0 * (jax.nn.sigmoid(s) - 0.5)
        out = out * jnp.exp(log_scale) + t if not rev else (out - t) * jnp.exp(-log_scale)
    return out


if __name__ == "__main__":
    # B=640 with block_b=512 exercises both the batch grid (2 tiles) and the padding path.
    B, D, H = 640, 128, 128

    key = jax.random.PRNGKey(0)
    k_x, k_p, k_w = jax.random.split(key, 3)
    x = jax.random.normal(k_x, (B, D), jnp.float32)
    password = jax.random.normal(k_p, (B, D), jnp.float32)
    raw_params = init_params(k_w, D, H)
    packed = pack_params(raw_params)   # chip-aware: dense w2 on <=v5e, block-diag on v6e/v7x

    # forward pass
    y = jax.block_until_ready(mlp_apply(x, password, packed, rev=False))

    # check against pure-JAX per-block reference (mirrors the kernel's activation precision)
    bf16_act = _has_wide_mxu(_device_kind())
    y_ref = mlp_reference(x, password, raw_params, rev=False, bf16_act=bf16_act)
    assert jnp.allclose(y, y_ref, atol=3e-3, rtol=3e-3), "forward mismatch vs reference"

    # reverse pass should invert the forward pass
    x_rec = jax.block_until_ready(mlp_apply(y, password, packed, rev=True))
    assert jnp.allclose(x_rec, x, atol=3e-3, rtol=3e-3), "inverse round-trip failed"

    print("KERNEL_OK")
</pallas_src>

<mosaic_0001>
module attributes {stable_mosaic.version = 11 : i64} {
  func.func @_mlp_kernel(%arg0: i32, %arg1: memref<512x128xf32, #tpu.memory_space<vmem>>, %arg2: memref<512x128xf32, #tpu.memory_space<vmem>>, %arg3: memref<128x1024xbf16, #tpu.memory_space<vmem>>, %arg4: memref<1x1024xf32, #tpu.memory_space<vmem>>, %arg5: memref<8x128x128xbf16, #tpu.memory_space<vmem>>, %arg6: memref<1x1024xf32, #tpu.memory_space<vmem>>, %arg7: memref<512x128xf32, #tpu.memory_space<vmem>>) attributes {dimension_semantics = [#tpu.dimension_semantics<parallel>], iteration_bounds = array<i64: 2>, scalar_prefetch = 0 : i64, scratch_operands = 0 : i64, tpu.core_type = #tpu.core_type<tc>, window_params = [{transform_indices = @transform_0, window_bounds = array<i64: 512, 128>}, {transform_indices = @transform_1, window_bounds = array<i64: 512, 128>}, {pipeline_mode = #tpu.pipeline_mode<synchronous>, transform_indices = @transform_2, window_bounds = array<i64: 128, 1024>}, {pipeline_mode = #tpu.pipeline_mode<synchronous>, transform_indices = @transform_3, window_bounds = array<i64: 1, 1024>}, {pipeline_mode = #tpu.pipeline_mode<synchronous>, transform_indices = @transform_4, window_bounds = array<i64: 8, 128, 128>}, {pipeline_mode = #tpu.pipeline_mode<synchronous>, transform_indices = @transform_5, window_bounds = array<i64: 1, 1024>}, {transform_indices = @transform_6, window_bounds = array<i64: 512, 128>}]} {
    %c0 = arith.constant 0 : index
    %c0_0 = arith.constant 0 : index
    %0 = vector.load %arg1[%c0, %c0_0] : memref<512x128xf32, #tpu.memory_space<vmem>>, vector<512x128xf32>
    %c0_1 = arith.constant 0 : index
    %c0_2 = arith.constant 0 : index
    %1 = vector.load %arg2[%c0_1, %c0_2] : memref<512x128xf32, #tpu.memory_space<vmem>>, vector<512x128xf32>
    %2 = arith.truncf %1 : vector<512x128xf32> to vector<512x128xbf16>
    %c0_3 = arith.constant 0 : index
    %c0_4 = arith.constant 0 : index
    %3 = vector.load %arg3[%c0_3, %c0_4] : memref<128x1024xbf16, #tpu.memory_space<vmem>>, vector<128x1024xbf16>
    %cst = arith.constant dense<0.000000e+00> : vector<512x1024xf32>
    %4 = tpu.matmul %2, %3, %cst {dimension_numbers = #tpu.dot_dimension_numbers<[1], [0], [0], [1], [0, 0, 1, 1], [], []>} : vector<512x128xbf16>, vector<128x1024xbf16>, vector<512x1024xf32> -> vector<512x1024xf32>
    %c0_5 = arith.constant 0 : index
    %c0_6 = arith.constant 0 : index
    %5 = vector.load %arg4[%c0_5, %c0_6] : memref<1x1024xf32, #tpu.memory_space<vmem>>, vector<1x1024xf32>
    %6 = vector.broadcast %5 : vector<1x1024xf32> to vector<512x1024xf32>
    %7 = arith.addf %4, %6 : vector<512x1024xf32>
    %cst_7 = arith.constant 0.00999999977 : f32
    %8 = vector.broadcast %cst_7 : f32 to vector<512x1024xf32>
    %9 = arith.mulf %8, %7 : vector<512x1024xf32>
    %10 = arith.maximumf %7, %9 : vector<512x1024xf32>
    %11 = vector.extract_strided_slice %10 {offsets = [0, 0], sizes = [512, 128], strides = [1, 1]} : vector<512x1024xf32> to vector<512x128xf32>
    %12 = arith.truncf %11 : vector<512x128xf32> to vector<512x128xbf16>
    %13 = vector.extract_strided_slice %10 {offsets = [0, 128], sizes = [512, 128], strides = [1, 1]} : vector<512x1024xf32> to vector<512x128xf32>
    %14 = arith.truncf %13 : vector<512x128xf32> to vector<512x128xbf16>
    %c0_8 = arith.constant 0 : index
    %c0_9 = arith.constant 0 : index
    %c0_10 = arith.constant 0 : index
    %15 = vector.load %arg5[%c0_8, %c0_9, %c0_10] : memref<8x128x128xbf16, #tpu.memory_space<vmem>>, vector<1x128x128xbf16>
    %16 = vector.shape_cast %15 : vector<1x128x128xbf16> to vector<128x128xbf16>
    %cst_11 = arith.constant dense<0.000000e+00> : vector<512x128xf32>
    %17 = tpu.matmul %12, %16, %cst_11 {dimension_numbers = #tpu.dot_dimension_numbers<[1], [0], [0], [1], [0, 0, 1, 1], [], []>} : vector<512x128xbf16>, vector<128x128xbf16>, vector<512x128xf32> -> vector<512x128xf32>
    %c0_12 = arith.constant 0 : index
    %c0_13 = arith.constant 0 : index
    %18 = vector.load %arg6[%c0_12, %c0_13] : memref<1x1024xf32, #tpu.memory_space<vmem>>, vector<1x128xf32>
    %19 = vector.broadcast %18 : vector<1x128xf32> to vector<512x128xf32>
    %20 = arith.addf %17, %19 : vector<512x128xf32>
    %c1 = arith.constant 1 : index
    %c0_14 = arith.constant 0 : index
    %c0_15 = arith.constant 0 : index
    %21 = vector.load %arg5[%c1, %c0_14, %c0_15] : memref<8x128x128xbf16, #tpu.memory_space<vmem>>, vector<1x128x128xbf16>
    %22 = vector.shape_cast %21 : vector<1x128x128xbf16> to vector<128x128xbf16>
    %cst_16 = arith.constant dense<0.000000e+00> : vector<512x128xf32>
    %23 = tpu.matmul %14, %22, %cst_16 {dimension_numbers = #tpu.dot_dimension_numbers<[1], [0], [0], [1], [0, 0, 1, 1], [], []>} : vector<512x128xbf16>, vector<128x128xbf16>, vector<512x128xf32> -> vector<512x128xf32>
    %c0_17 = arith.constant 0 : index
    %c128 = arith.constant 128 : index
    %24 = vector.load %arg6[%c0_17, %c128] : memref<1x1024xf32, #tpu.memory_space<vmem>>, vector<1x128xf32>
    %25 = vector.broadcast %24 : vector<1x128xf32> to vector<512x128xf32>
    %26 = arith.addf %23, %25 : vector<512x128xf32>
    %cst_18 = arith.constant 5.000000e-01 : f32
    %27 = vector.broadcast %cst_18 : f32 to vector<512x128xf32>
    %28 = arith.mulf %27, %20 : vector<512x128xf32>
    %29 = math.tanh %28 : vector<512x128xf32>
    %cst_19 = arith.constant 2.000000e+00 : f32
    %30 = vector.broadcast %cst_19 : f32 to vector<512x128xf32>
    %31 = arith.mulf %30, %29 : vector<512x128xf32>
    %32 = math.exp %31 : vector<512x128xf32>
    %33 = vector.extract_strided_slice %10 {offsets = [0, 256], sizes = [512, 128], strides = [1, 1]} : vector<512x1024xf32> to vector<512x128xf32>
    %34 = arith.truncf %33 : vector<512x128xf32> to vector<512x128xbf16>
    %35 = vector.extract_strided_slice %10 {offsets = [0, 384], sizes = [512, 128], strides = [1, 1]} : vector<512x1024xf32> to vector<512x128xf32>
    %36 = arith.truncf %35 : vector<512x128xf32> to vector<512x128xbf16>
    %c2 = arith.constant 2 : index
    %c0_20 = arith.constant 0 : index
    %c0_21 = arith.constant 0 : index
    %37 = vector.load %arg5[%c2, %c0_20, %c0_21] : memref<8x128x128xbf16, #tpu.memory_space<vmem>>, vector<1x128x128xbf16>
    %38 = vector.shape_cast %37 : vector<1x128x128xbf16> to vector<128x128xbf16>
    %cst_22 = arith.constant dense<0.000000e+00> : vector<512x128xf32>
    %39 = tpu.matmul %34, %38, %cst_22 {dimension_numbers = #tpu.dot_dimension_numbers<[1], [0], [0], [1], [0, 0, 1, 1], [], []>} : vector<512x128xbf16>, vector<128x128xbf16>, vector<512x128xf32> -> vector<512x128xf32>
    %c0_23 = arith.constant 0 : index
    %c256 = arith.constant 256 : index
    %40 = vector.load %arg6[%c0_23, %c256] : memref<1x1024xf32, #tpu.memory_space<vmem>>, vector<1x128xf32>
    %41 = vector.broadcast %40 : vector<1x128xf32> to vector<512x128xf32>
    %42 = arith.addf %39, %41 : vector<512x128xf32>
    %c3 = arith.constant 3 : index
    %c0_24 = arith.constant 0 : index
    %c0_25 = arith.constant 0 : index
    %43 = vector.load %arg5[%c3, %c0_24, %c0_25] : memref<8x128x128xbf16, #tpu.memory_space<vmem>>, vector<1x128x128xbf16>
    %44 = vector.shape_cast %43 : vector<1x128x128xbf16> to vector<128x128xbf16>
    %cst_26 = arith.constant dense<0.000000e+00> : vector<512x128xf32>
    %45 = tpu.matmul %36, %44, %cst_26 {dimension_numbers = #tpu.dot_dimension_numbers<[1], [0], [0], [1], [0, 0, 1, 1], [], []>} : vector<512x128xbf16>, vector<128x128xbf16>, vector<512x128xf32> -> vector<512x128xf32>
    %c0_27 = arith.constant 0 : index
    %c384 = arith.constant 384 : index
    %46 = vector.load %arg6[%c0_27, %c384] : memref<1x1024xf32, #tpu.memory_space<vmem>>, vector<1x128xf32>
    %47 = vector.broadcast %46 : vector<1x128xf32> to vector<512x128xf32>
    %48 = arith.addf %45, %47 : vector<512x128xf32>
    %cst_28 = arith.constant 5.000000e-01 : f32
    %49 = vector.broadcast %cst_28 : f32 to vector<512x128xf32>
    %50 = arith.mulf %49, %42 : vector<512x128xf32>
    %51 = math.tanh %50 : vector<512x128xf32>
    %cst_29 = arith.constant 2.000000e+00 : f32
    %52 = vector.broadcast %cst_29 : f32 to vector<512x128xf32>
    %53 = arith.mulf %52, %51 : vector<512x128xf32>
    %54 = math.exp %53 : vector<512x128xf32>
    %55 = arith.mulf %26, %54 : vector<512x128xf32>
    %56 = arith.addf %55, %48 : vector<512x128xf32>
    %57 = arith.mulf %32, %54 : vector<512x128xf32>
    %58 = vector.extract_strided_slice %10 {offsets = [0, 512], sizes = [512, 128], strides = [1, 1]} : vector<512x1024xf32> to vector<512x128xf32>
    %59 = arith.truncf %58 : vector<512x128xf32> to vector<512x128xbf16>
    %60 = vector.extract_strided_slice %10 {offsets = [0, 640], sizes = [512, 128], strides = [1, 1]} : vector<512x1024xf32> to vector<512x128xf32>
    %61 = arith.truncf %60 : vector<512x128xf32> to vector<512x128xbf16>
    %c4 = arith.constant 4 : index
    %c0_30 = arith.constant 0 : index
    %c0_31 = arith.constant 0 : index
    %62 = vector.load %arg5[%c4, %c0_30, %c0_31] : memref<8x128x128xbf16, #tpu.memory_space<vmem>>, vector<1x128x128xbf16>
    %63 = vector.shape_cast %62 : vector<1x128x128xbf16> to vector<128x128xbf16>
    %cst_32 = arith.constant dense<0.000000e+00> : vector<512x128xf32>
    %64 = tpu.matmul %59, %63, %cst_32 {dimension_numbers = #tpu.dot_dimension_numbers<[1], [0], [0], [1], [0, 0, 1, 1], [], []>} : vector<512x128xbf16>, vector<128x128xbf16>, vector<512x128xf32> -> vector<512x128xf32>
    %c0_33 = arith.constant 0 : index
    %c512 = arith.constant 512 : index
    %65 = vector.load %arg6[%c0_33, %c512] : memref<1x1024xf32, #tpu.memory_space<vmem>>, vector<1x128xf32>
    %66 = vector.broadcast %65 : vector<1x128xf32> to vector<512x128xf32>
    %67 = arith.addf %64, %66 : vector<512x128xf32>
    %c5 = arith.constant 5 : index
    %c0_34 = arith.constant 0 : index
    %c0_35 = arith.constant 0 : index
    %68 = vector.load %arg5[%c5, %c0_34, %c0_35] : memref<8x128x128xbf16, #tpu.memory_space<vmem>>, vector<1x128x128xbf16>
    %69 = vector.shape_cast %68 : vector<1x128x128xbf16> to vector<128x128xbf16>
    %cst_36 = arith.constant dense<0.000000e+00> : vector<512x128xf32>
    %70 = tpu.matmul %61, %69, %cst_36 {dimension_numbers = #tpu.dot_dimension_numbers<[1], [0], [0], [1], [0, 0, 1, 1], [], []>} : vector<512x128xbf16>, vector<128x128xbf16>, vector<512x128xf32> -> vector<512x128xf32>
    %c0_37 = arith.constant 0 : index
    %c640 = arith.constant 640 : index
    %71 = vector.load %arg6[%c0_37, %c640] : memref<1x1024xf32, #tpu.memory_space<vmem>>, vector<1x128xf32>
    %72 = vector.broadcast %71 : vector<1x128xf32> to vector<512x128xf32>
    %73 = arith.addf %70, %72 : vector<512x128xf32>
    %cst_38 = arith.constant 5.000000e-01 : f32
    %74 = vector.broadcast %cst_38 : f32 to vector<512x128xf32>
    %75 = arith.mulf %74, %67 : vector<512x128xf32>
    %76 = math.tanh %75 : vector<512x128xf32>
    %cst_39 = arith.constant 2.000000e+00 : f32
    %77 = vector.broadcast %cst_39 : f32 to vector<512x128xf32>
    %78 = arith.mulf %77, %76 : vector<512x128xf32>
    %79 = math.exp %78 : vector<512x128xf32>
    %80 = arith.mulf %56, %79 : vector<512x128xf32>
    %81 = arith.addf %80, %73 : vector<512x128xf32>
    %82 = arith.mulf %57, %79 : vector<512x128xf32>
    %83 = vector.extract_strided_slice %10 {offsets = [0, 768], sizes = [512, 128], strides = [1, 1]} : vector<512x1024xf32> to vector<512x128xf32>
    %84 = arith.truncf %83 : vector<512x128xf32> to vector<512x128xbf16>
    %85 = vector.extract_strided_slice %10 {offsets = [0, 896], sizes = [512, 128], strides = [1, 1]} : vector<512x1024xf32> to vector<512x128xf32>
    %86 = arith.truncf %85 : vector<512x128xf32> to vector<512x128xbf16>
    %c6 = arith.constant 6 : index
    %c0_40 = arith.constant 0 : index
    %c0_41 = arith.constant 0 : index
    %87 = vector.load %arg5[%c6, %c0_40, %c0_41] : memref<8x128x128xbf16, #tpu.memory_space<vmem>>, vector<1x128x128xbf16>
    %88 = vector.shape_cast %87 : vector<1x128x128xbf16> to vector<128x128xbf16>
    %cst_42 = arith.constant dense<0.000000e+00> : vector<512x128xf32>
    %89 = tpu.matmul %84, %88, %cst_42 {dimension_numbers = #tpu.dot_dimension_numbers<[1], [0], [0], [1], [0, 0, 1, 1], [], []>} : vector<512x128xbf16>, vector<128x128xbf16>, vector<512x128xf32> -> vector<512x128xf32>
    %c0_43 = arith.constant 0 : index
    %c768 = arith.constant 768 : index
    %90 = vector.load %arg6[%c0_43, %c768] : memref<1x1024xf32, #tpu.memory_space<vmem>>, vector<1x128xf32>
    %91 = vector.broadcast %90 : vector<1x128xf32> to vector<512x128xf32>
    %92 = arith.addf %89, %91 : vector<512x128xf32>
    %c7 = arith.constant 7 : index
    %c0_44 = arith.constant 0 : index
    %c0_45 = arith.constant 0 : index
    %93 = vector.load %arg5[%c7, %c0_44, %c0_45] : memref<8x128x128xbf16, #tpu.memory_space<vmem>>, vector<1x128x128xbf16>
    %94 = vector.shape_cast %93 : vector<1x128x128xbf16> to vector<128x128xbf16>
    %cst_46 = arith.constant dense<0.000000e+00> : vector<512x128xf32>
    %95 = tpu.matmul %86, %94, %cst_46 {dimension_numbers = #tpu.dot_dimension_numbers<[1], [0], [0], [1], [0, 0, 1, 1], [], []>} : vector<512x128xbf16>, vector<128x128xbf16>, vector<512x128xf32> -> vector<512x128xf32>
    %c0_47 = arith.constant 0 : index
    %c896 = arith.constant 896 : index
    %96 = vector.load %arg6[%c0_47, %c896] : memref<1x1024xf32, #tpu.memory_space<vmem>>, vector<1x128xf32>
    %97 = vector.broadcast %96 : vector<1x128xf32> to vector<512x128xf32>
    %98 = arith.addf %95, %97 : vector<512x128xf32>
    %cst_48 = arith.constant 5.000000e-01 : f32
    %99 = vector.broadcast %cst_48 : f32 to vector<512x128xf32>
    %100 = arith.mulf %99, %92 : vector<512x128xf32>
    %101 = math.tanh %100 : vector<512x128xf32>
    %cst_49 = arith.constant 2.000000e+00 : f32
    %102 = vector.broadcast %cst_49 : f32 to vector<512x128xf32>
    %103 = arith.mulf %102, %101 : vector<512x128xf32>
    %104 = math.exp %103 : vector<512x128xf32>
    %105 = arith.mulf %81, %104 : vector<512x128xf32>
    %106 = arith.addf %105, %98 : vector<512x128xf32>
    %107 = arith.mulf %82, %104 : vector<512x128xf32>
    %108 = arith.mulf %0, %107 : vector<512x128xf32>
    %109 = arith.addf %108, %106 : vector<512x128xf32>
    %c0_50 = arith.constant 0 : index
    %c0_51 = arith.constant 0 : index
    %110 = vector.load %arg7[%c0_50, %c0_51] : memref<512x128xf32, #tpu.memory_space<vmem>>, vector<512x128xf32>
    tpu.vector_store %arg7[%c0_50, %c0_51], %109 {strides = array<i32>} : memref<512x128xf32, #tpu.memory_space<vmem>>, vector<512x128xf32>,
    return
  }
  func.func @transform_0(%arg0: i32) -> (i32, i32) {
    %c0_i32 = arith.constant 0 : i32
    %c0_i32_0 = arith.constant 0 : i32
    return %arg0, %c0_i32 : i32, i32
  }
  func.func @transform_1(%arg0: i32) -> (i32, i32) {
    %c0_i32 = arith.constant 0 : i32
    %c0_i32_0 = arith.constant 0 : i32
    return %arg0, %c0_i32 : i32, i32
  }
  func.func @transform_2(%arg0: i32) -> (i32, i32) {
    %c0_i32 = arith.constant 0 : i32
    %c0_i32_0 = arith.constant 0 : i32
    %c0_i32_1 = arith.constant 0 : i32
    return %c0_i32, %c0_i32_0 : i32, i32
  }
  func.func @transform_3(%arg0: i32) -> (i32, i32) {
    %c0_i32 = arith.constant 0 : i32
    %c0_i32_0 = arith.constant 0 : i32
    %c0_i32_1 = arith.constant 0 : i32
    return %c0_i32, %c0_i32_0 : i32, i32
  }
  func.func @transform_4(%arg0: i32) -> (i32, i32, i32) {
    %c0_i32 = arith.constant 0 : i32
    %c0_i32_0 = arith.constant 0 : i32
    %c0_i32_1 = arith.constant 0 : i32
    %c0_i32_2 = arith.constant 0 : i32
    return %c0_i32, %c0_i32_0, %c0_i32_1 : i32, i32, i32
  }
  func.func @transform_5(%arg0: i32) -> (i32, i32) {
    %c0_i32 = arith.constant 0 : i32
    %c0_i32_0 = arith.constant 0 : i32
    %c0_i32_1 = arith.constant 0 : i32
    return %c0_i32, %c0_i32_0 : i32, i32
  }
  func.func @transform_6(%arg0: i32) -> (i32, i32) {
    %c0_i32 = arith.constant 0 : i32
    %c0_i32_0 = arith.constant 0 : i32
    return %arg0, %c0_i32 : i32, i32
  }
}

</mosaic_0001>

<llo_original>
// kernel: tpu_custom_call.1
$region0: #{tpu_custom_call.1}
  #allocation0 [shape = 'u32[]', space=smem, size = 0x4, offset = 0x4, fixed_abs, tag = 'smem constant byte address 0x4 - core index']
  #allocation1 [shape = 'u32[72,128]{1,0:T(1,128)}', space=vmem, size = 0x9000, scoped, tag = 'internal scratch']
  %s0 = inlined_call_operand.hbm [shape: f32[1024,128], index: 0, kind: input, shape index: {}]
  %s1 = inlined_call_operand.hbm [shape: f32[1024,128], index: 1, kind: input, shape index: {}]
  %s2 = inlined_call_operand.hbm [shape: bf16[128,1024], index: 2, kind: input, shape index: {}]
  %s3 = inlined_call_operand.hbm [shape: f32[1,1024], index: 3, kind: input, shape index: {}]
  %s4 = inlined_call_operand.hbm [shape: bf16[8,128,128], index: 4, kind: input, shape index: {}]
  %s5 = inlined_call_operand.hbm [shape: f32[1,1024], index: 5, kind: input, shape index: {}]
  %s6 = inlined_call_operand.hbm [shape: f32[1024,128], index: 6, kind: output, shape index: {}]
  %s7 = sld [smem:[#allocation0]]
  $region81: #{tpu_custom_call.1} parent=0
    _
  %s9 = ssub.s32 1, %s7
  %s10 = scalar_select 0, %s9, %s7
  $region1: #{tpu_custom_call.1} parent=0
    #allocation2 [shape = 'u8[524288]{0}', space=vmem, size = 0x80000, scoped, tag = 'input window, operand 0']
    #allocation3 [shape = 's32[2]{0}', space=sflag, size = 0x8, scoped, tag = 'scoped memory for tpu_custom_call.1']
    #allocation4 [shape = 's32[2]{0}', space=sflag, size = 0x8, scoped, tag = 'scoped memory for tpu_custom_call.1']
    #allocation5 [shape = 'u8[524288]{0}', space=vmem, size = 0x80000, scoped, tag = 'input window, operand 1']
    #allocation6 [shape = 's32[2]{0}', space=sflag, size = 0x8, scoped, tag = 'scoped memory for tpu_custom_call.1']
    #allocation7 [shape = 'u8[262144]{0}', space=vmem, size = 0x40000, scoped, tag = 'input window, operand 2, single buffered']
    #allocation8 [shape = 'u8[4096]{0}', space=vmem, size = 0x1000, scoped, tag = 'input window, operand 3, single buffered']
    #allocation9 [shape = 's32[1]{0}', space=sflag, size = 0x4, scoped, tag = 'scoped memory for tpu_custom_call.1']
    #allocation10 [shape = 'u8[262144]{0}', space=vmem, size = 0x40000, scoped, tag = 'input window, operand 4, single buffered']
    #allocation11 [shape = 'u8[4096]{0}', space=vmem, size = 0x1000, scoped, tag = 'input window, operand 5, single buffered']
    #allocation12 [shape = 's32[1]{0}', space=sflag, size = 0x4, scoped, tag = 'scoped memory for tpu_custom_call.1']
    #allocation13 [shape = 'u8[524288]{0}', space=vmem, size = 0x80000, scoped, tag = 'output window, operand 0']
    %11 = vsyncpa [#allocation3], 0
    %s12 = scalar_lea.sflag [#allocation3], 1
    %13 = vsyncpa %s12, 0
    %14 = vsyncpa [#allocation6], 0
    %s15 = scalar_lea.sflag [#allocation6], 1
    %16 = vsyncpa %s15, 0
    %17 = vsyncpa [#allocation9], 0
    %18 = vsyncpa [#allocation12], 0
    %19 = vsyncpa [#allocation4], 0
    %s20 = scalar_lea.sflag [#allocation4], 1
    %21 = vsyncpa %s20, 0
    loop: start=0, step=1, limit=4
    $region2: #{tpu_custom_call.1} parent=1 // loop_pre_header
      _
    $region3: #{tpu_custom_call.1} parent=1 // loop_header
      %s23 = sphi 0, %s27
      %p24 = scmp.ge.s32.totalorder %s23, 4
      %s33 = sphi 0, %s35
      %s36 = sphi 0, %s33
      %s37 = sphi 0, %s36
      %s53 = sphi 0, %s37
      %s59 = sphi 0, %s61
      %s62 = sphi 0, %s59
      %s63 = sphi 0, %s62
      %s79 = sphi 0, %s63
      %s83 = sphi 0, %s83
      %s85 = sphi 0, %s83
      %s86 = sphi 0, %s85
      %s100 = sphi 0, %s86
      %s104 = sphi 0, %s104
      %s106 = sphi 0, %s104
      %s107 = sphi 0, %s106
      %s121 = sphi 0, %s107
      %s125 = sphi 0, %s125
      %s127 = sphi 0, %s125
      %s128 = sphi 0, %s127
      %s142 = sphi 0, %s128
      %s146 = sphi 0, %s146
      %s148 = sphi 0, %s146
      %s149 = sphi 0, %s148
      %s163 = sphi 0, %s149
      %s169 = sphi 0, %s171
      %s172 = sphi 0, %s169
      %s173 = sphi 0, %s172
      %s189 = sphi 0, %s173
    $region4: #{tpu_custom_call.1} parent=1 // loop_header_branch
      %26 = sbr.rel (%p24) target = $region8
    $region5: #{tpu_custom_call.1} parent=1 // loop_body
      %s28 = ssub.s32 %s23, 1
      %s29 = ssub.s32 %s23, 2
      %s30 = sadd.s32 %s23, 1
      %s31 = ssub.s32 %s23, %s30
      %p32 = scmp.eq.s32.totalorder %s31, 0
      %s34 = sadd.s32 %s33, 1
      %s35 = scalar_select %p32, %s33, %s34
      %p38 = pneg %p32
      %p39 = scmp.eq.s32.totalorder %s23, 1
      %p40 = por %p38, %p39
      %p41 = scmp.ne.s32.totalorder %s33, %s36
      %p42 = scmp.eq.s32.totalorder %s23, 0
      %p43 = por %p41, %p42
      %p44 = scmp.ne.s32.totalorder %s33, %s36
      %p45 = scmp.eq.s32.totalorder %s28, 1
      %p46 = por %p44, %p45
      %p47 = scmp.ne.s32.totalorder %s36, %s37
      %p48 = scmp.eq.s32.totalorder %s28, 0
      %p49 = por %p47, %p48
      %p50 = scmp.ne.s32.totalorder %s36, %s37
      %p51 = scmp.eq.s32.totalorder %s29, 1
      %p52 = por %p50, %p51
      %p54 = scmp.ne.s32.totalorder %s37, %s53
      %p55 = scmp.eq.s32.totalorder %s29, 0
      %p56 = por %p54, %p55
      %s57 = ssub.s32 %s23, %s30
      %p58 = scmp.eq.s32.totalorder %s57, 0
      %s60 = sadd.s32 %s59, 1
      %s61 = scalar_select %p58, %s59, %s60
      %p64 = pneg %p58
      %p65 = scmp.eq.s32.totalorder %s23, 1
      %p66 = por %p64, %p65
      %p67 = scmp.ne.s32.totalorder %s59, %s62
      %p68 = scmp.eq.s32.totalorder %s23, 0
      %p69 = por %p67, %p68
      %p70 = scmp.ne.s32.totalorder %s59, %s62
      %p71 = scmp.eq.s32.totalorder %s28, 1
      %p72 = por %p70, %p71
      %p73 = scmp.ne.s32.totalorder %s62, %s63
      %p74 = scmp.eq.s32.totalorder %s28, 0
      %p75 = por %p73, %p74
      %p76 = scmp.ne.s32.totalorder %s62, %s63
      %p77 = scmp.eq.s32.totalorder %s29, 1
      %p78 = por %p76, %p77
      %p80 = scmp.ne.s32.totalorder %s63, %s79
      %p81 = scmp.eq.s32.totalorder %s29, 0
      %p82 = por %p80, %p81
      %s84 = sadd.s32 %s83, 1
      %p87 = scmp.eq.s32.totalorder %s23, 1
      %p88 = scmp.ne.s32.totalorder %s83, %s85
      %p89 = scmp.eq.s32.totalorder %s23, 0
      %p90 = por %p88, %p89
      %p91 = scmp.ne.s32.totalorder %s83, %s85
      %p92 = scmp.eq.s32.totalorder %s28, 1
      %p93 = por %p91, %p92
      %p94 = scmp.ne.s32.totalorder %s85, %s86
      %p95 = scmp.eq.s32.totalorder %s28, 0
      %p96 = por %p94, %p95
      %p97 = scmp.ne.s32.totalorder %s85, %s86
      %p98 = scmp.eq.s32.totalorder %s29, 1
      %p99 = por %p97, %p98
      %p101 = scmp.ne.s32.totalorder %s86, %s100
      %p102 = scmp.eq.s32.totalorder %s29, 0
      %p103 = por %p101, %p102
      %s105 = sadd.s32 %s104, 1
      %p108 = scmp.eq.s32.totalorder %s23, 1
      %p109 = scmp.ne.s32.totalorder %s104, %s106
      %p110 = scmp.eq.s32.totalorder %s23, 0
      %p111 = por %p109, %p110
      %p112 = scmp.ne.s32.totalorder %s104, %s106
      %p113 = scmp.eq.s32.totalorder %s28, 1
      %p114 = por %p112, %p113
      %p115 = scmp.ne.s32.totalorder %s106, %s107
      %p116 = scmp.eq.s32.totalorder %s28, 0
      %p117 = por %p115, %p116
      %p118 = scmp.ne.s32.totalorder %s106, %s107
      %p119 = scmp.eq.s32.totalorder %s29, 1
      %p120 = por %p118, %p119
      %p122 = scmp.ne.s32.totalorder %s107, %s121
      %p123 = scmp.eq.s32.totalorder %s29, 0
      %p124 = por %p122, %p123
      %s126 = sadd.s32 %s125, 1
      %p129 = scmp.eq.s32.totalorder %s23, 1
      %p130 = scmp.ne.s32.totalorder %s125, %s127
      %p131 = scmp.eq.s32.totalorder %s23, 0
      %p132 = por %p130, %p131
      %p133 = scmp.ne.s32.totalorder %s125, %s127
      %p134 = scmp.eq.s32.totalorder %s28, 1
      %p135 = por %p133, %p134
      %p136 = scmp.ne.s32.totalorder %s127, %s128
      %p137 = scmp.eq.s32.totalorder %s28, 0
      %p138 = por %p136, %p137
      %p139 = scmp.ne.s32.totalorder %s127, %s128
      %p140 = scmp.eq.s32.totalorder %s29, 1
      %p141 = por %p139, %p140
      %p143 = scmp.ne.s32.totalorder %s128, %s142
      %p144 = scmp.eq.s32.totalorder %s29, 0
      %p145 = por %p143, %p144
      %s147 = sadd.s32 %s146, 1
      %p150 = scmp.eq.s32.totalorder %s23, 1
      %p151 = scmp.ne.s32.totalorder %s146, %s148
      %p152 = scmp.eq.s32.totalorder %s23, 0
      %p153 = por %p151, %p152
      %p154 = scmp.ne.s32.totalorder %s146, %s148
      %p155 = scmp.eq.s32.totalorder %s28, 1
      %p156 = por %p154, %p155
      %p157 = scmp.ne.s32.totalorder %s148, %s149
      %p158 = scmp.eq.s32.totalorder %s28, 0
      %p159 = por %p157, %p158
      %p160 = scmp.ne.s32.totalorder %s148, %s149
      %p161 = scmp.eq.s32.totalorder %s29, 1
      %p162 = por %p160, %p161
      %p164 = scmp.ne.s32.totalorder %s149, %s163
      %p165 = scmp.eq.s32.totalorder %s29, 0
      %p166 = por %p164, %p165
      %s167 = ssub.s32 %s23, %s30
      %p168 = scmp.eq.s32.totalorder %s167, 0
      %s170 = sadd.s32 %s169, 1
      %s171 = scalar_select %p168, %s169, %s170
      %p174 = pneg %p168
      %p175 = scmp.eq.s32.totalorder %s23, 1
      %p176 = por %p174, %p175
      %p177 = scmp.ne.s32.totalorder %s169, %s172
      %p178 = scmp.eq.s32.totalorder %s23, 0
      %p179 = por %p177, %p178
      %p180 = scmp.ne.s32.totalorder %s169, %s172
      %p181 = scmp.eq.s32.totalorder %s28, 1
      %p182 = por %p180, %p181
      %p183 = scmp.ne.s32.totalorder %s172, %s173
      %p184 = scmp.eq.s32.totalorder %s28, 0
      %p185 = por %p183, %p184
      %p186 = scmp.ne.s32.totalorder %s172, %s173
      %p187 = scmp.eq.s32.totalorder %s29, 1
      %p188 = por %p186, %p187
      %p190 = scmp.ne.s32.totalorder %s173, %s189
      %p191 = scmp.eq.s32.totalorder %s29, 0
      %p192 = por %p190, %p191
      %p193 = scmp.le.s32.totalorder 1, %s23
      %p194 = scmp.lt.s32.totalorder %s23, 3
      %p195 = pnand %p193, %p194
      %p196 = pneg %p195
      // Predicated region
      $region9: #{tpu_custom_call.1} parent=5 // pred_check
        _
      $region10: #{tpu_custom_call.1} parent=5 // pred_check_branch
        %198 = sbr.rel (%p195) target = $region12
      $region11: #{tpu_custom_call.1} parent=5 // pred_region
        %s199 = ssub.s32 %s23, 1
        // Predicated region
        $region13: #{tpu_custom_call.1} parent=11 // pred_check
          %p200 = pneg %p96
        $region14: #{tpu_custom_call.1} parent=11 // pred_check_branch
          %202 = sbr.rel (%p200) target = $region16
        $region15: #{tpu_custom_call.1} parent=11 // pred_region
          %204 = vsyncadd [#allocation6], 0
          %s205 = sshll.u32 %s2, 4
          %s206 = int_to_ptr.hbm [resolvable:$true] %s205
          %s207 = sshll.u32 [#allocation7], 4
          %s208 = int_to_ptr.vmem [resolvable:$true] %s207
          %213 = dma.hbm_to_vmem [thread:$0]  %s206, 8192, %s208, [#allocation6], 512, 512, 32
        $region16: #{tpu_custom_call.1} parent=11 // pred_fallthru
          _
        // Predicated region
        $region17: #{tpu_custom_call.1} parent=11 // pred_check
          %p214 = pneg %p117
        $region18: #{tpu_custom_call.1} parent=11 // pred_check_branch
          %216 = sbr.rel (%p214) target = $region20
        $region19: #{tpu_custom_call.1} parent=11 // pred_region
          %218 = vsyncadd [#allocation9], 0
          %s220 = sshll.u32 %s3, 4
          %s221 = int_to_ptr.hbm [resolvable:$true] %s220
          %s222 = sshll.u32 [#allocation8], 4
          %s223 = int_to_ptr.vmem [resolvable:$true] %s222
          %225 = dma.hbm_to_vmem [thread:$0]  %s221, 128, %s223, [#allocation9]
        $region20: #{tpu_custom_call.1} parent=11 // pred_fallthru
          _
        // Predicated region
        $region21: #{tpu_custom_call.1} parent=11 // pred_check
          %p226 = pneg %p138
        $region22: #{tpu_custom_call.1} parent=11 // pred_check_branch
          %228 = sbr.rel (%p226) target = $region24
        $region23: #{tpu_custom_call.1} parent=11 // pred_region
          %230 = vsyncadd [#allocation9], 0
          %s231 = sshll.u32 %s4, 4
          %s232 = int_to_ptr.hbm [resolvable:$true] %s231
          %s233 = sshll.u32 [#allocation10], 4
          %s234 = int_to_ptr.vmem [resolvable:$true] %s233
          %239 = dma.hbm_to_vmem [thread:$0]  %s232, 8192, %s234, [#allocation9], 64, 64, 4
        $region24: #{tpu_custom_call.1} parent=11 // pred_fallthru
          _
        // Predicated region
        $region25: #{tpu_custom_call.1} parent=11 // pred_check
          %p240 = pneg %p159
        $region26: #{tpu_custom_call.1} parent=11 // pred_check_branch
          %242 = sbr.rel (%p240) target = $region28
        $region27: #{tpu_custom_call.1} parent=11 // pred_region
          %244 = vsyncadd [#allocation12], 0
          %s246 = sshll.u32 %s5, 4
          %s247 = int_to_ptr.hbm [resolvable:$true] %s246
          %s248 = sshll.u32 [#allocation11], 4
          %s249 = int_to_ptr.vmem [resolvable:$true] %s248
          %251 = dma.hbm_to_vmem [thread:$0]  %s247, 128, %s249, [#allocation12]
        $region28: #{tpu_custom_call.1} parent=11 // pred_fallthru
          _
      $region12: #{tpu_custom_call.1} parent=5 // pred_fallthru
        _
      %p252 = scmp.lt.s32.totalorder %s23, 2
      // Predicated region
      $region29: #{tpu_custom_call.1} parent=5 // pred_check
        %p253 = pneg %p252
      $region30: #{tpu_custom_call.1} parent=5 // pred_check_branch
        %255 = sbr.rel (%p253) target = $region32
      $region31: #{tpu_custom_call.1} parent=5 // pred_region
        // Predicated region
        $region33: #{tpu_custom_call.1} parent=31 // pred_check
          %p256 = pneg %p43
        $region34: #{tpu_custom_call.1} parent=31 // pred_check_branch
          %258 = sbr.rel (%p256) target = $region36
        $region35: #{tpu_custom_call.1} parent=31 // pred_region
          %s259 = sand.u32 %s33, 1
          %s260 = scalar_lea.sflag [#allocation3], %s259
          %s261 = sand.u32 %s33, 1
          %s262 = smul.addr %s261, 512
          %s263 = scalar_lea.vmem [#allocation2], %s262
          %s264 = smul.u32 64, %s23
          %266 = vsyncadd %s260, 0
          %s267 = smul.addr %s264, 8
          %s268 = scalar_lea.hbm %s0, %s267
          %s269 = sshll.u32 %s268, 4
          %s270 = int_to_ptr.hbm [resolvable:$true] %s269
          %s271 = sshll.u32 %s263, 4
          %s272 = int_to_ptr.vmem [resolvable:$true] %s271
          %277 = dma.hbm_to_vmem [thread:$0]  %s270, 8192, %s272, %s260, 128, 128, 8
        $region36: #{tpu_custom_call.1} parent=31 // pred_fallthru
          _
        // Predicated region
        $region37: #{tpu_custom_call.1} parent=31 // pred_check
          %p278 = pneg %p69
        $region38: #{tpu_custom_call.1} parent=31 // pred_check_branch
          %280 = sbr.rel (%p278) target = $region40
        $region39: #{tpu_custom_call.1} parent=31 // pred_region
          %s281 = sand.u32 %s23, 1
          %s282 = scalar_lea.sflag [#allocation6], %s281
          %s283 = sand.u32 %s59, 1
          %s284 = smul.addr %s283, 512
          %s285 = scalar_lea.vmem [#allocation5], %s284
          %s286 = smul.u32 64, %s23
          %288 = vsyncadd %s282, 0
          %s289 = smul.addr %s286, 8
          %s290 = scalar_lea.hbm %s1, %s289
          %s291 = sshll.u32 %s290, 4
          %s292 = int_to_ptr.hbm [resolvable:$true] %s291
          %s293 = sshll.u32 %s285, 4
          %s294 = int_to_ptr.vmem [resolvable:$true] %s293
          %299 = dma.hbm_to_vmem [thread:$0]  %s292, 8192, %s294, %s282, 128, 128, 8
        $region40: #{tpu_custom_call.1} parent=31 // pred_fallthru
          _
      $region32: #{tpu_custom_call.1} parent=5 // pred_fallthru
        _
      %p300 = scmp.le.s32.totalorder 1, %s23
      %p301 = scmp.lt.s32.totalorder %s23, 3
      %p302 = pnand %p300, %p301
      %p303 = pneg %p302
      // Predicated region
      $region41: #{tpu_custom_call.1} parent=5 // pred_check
        _
      $region42: #{tpu_custom_call.1} parent=5 // pred_check_branch
        %305 = sbr.rel (%p302) target = $region44
      $region43: #{tpu_custom_call.1} parent=5 // pred_region
        %s306 = ssub.s32 %s23, 1
        %s307 = sand.u32 %s36, 1
        %s308 = scalar_lea.sflag [#allocation3], %s307
        %s309 = sand.u32 %s36, 1
        %s310 = smul.addr %s309, 512
        %s311 = scalar_lea.vmem [#allocation2], %s310
        // Predicated region
        $region45: #{tpu_custom_call.1} parent=43 // pred_check
          %p312 = pneg %p49
        $region46: #{tpu_custom_call.1} parent=43 // pred_check_branch
          %314 = sbr.rel (%p312) target = $region48
        $region47: #{tpu_custom_call.1} parent=43 // pred_region
          %316 = dma.done %s308, 8192
        $region48: #{tpu_custom_call.1} parent=43 // pred_fallthru
          _
        %s317 = sand.u32 %s28, 1
        %s318 = scalar_lea.sflag [#allocation6], %s317
        %s319 = sand.u32 %s62, 1
        %s320 = smul.addr %s319, 512
        %s321 = scalar_lea.vmem [#allocation5], %s320
        // Predicated region
        $region49: #{tpu_custom_call.1} parent=43 // pred_check
          %p322 = pneg %p75
        $region50: #{tpu_custom_call.1} parent=43 // pred_check_branch
          %324 = sbr.rel (%p322) target = $region52
        $region51: #{tpu_custom_call.1} parent=43 // pred_region
          %326 = dma.done %s318, 8192
        $region52: #{tpu_custom_call.1} parent=43 // pred_fallthru
          _
        // Predicated region
        $region53: #{tpu_custom_call.1} parent=43 // pred_check
          %p327 = pneg %p96
        $region54: #{tpu_custom_call.1} parent=43 // pred_check_branch
          %329 = sbr.rel (%p327) target = $region56
        $region55: #{tpu_custom_call.1} parent=43 // pred_region
          %331 = dma.done [#allocation6], 8192
        $region56: #{tpu_custom_call.1} parent=43 // pred_fallthru
          _
        // Predicated region
        $region57: #{tpu_custom_call.1} parent=43 // pred_check
          %p332 = pneg %p117
        $region58: #{tpu_custom_call.1} parent=43 // pred_check_branch
          %334 = sbr.rel (%p332) target = $region60
        $region59: #{tpu_custom_call.1} parent=43 // pred_region
          %336 = dma.done [#allocation9], 128
        $region60: #{tpu_custom_call.1} parent=43 // pred_fallthru
          _
        // Predicated region
        $region61: #{tpu_custom_call.1} parent=43 // pred_check
          %p337 = pneg %p138
        $region62: #{tpu_custom_call.1} parent=43 // pred_check_branch
          %339 = sbr.rel (%p337) target = $region64
        $region63: #{tpu_custom_call.1} parent=43 // pred_region
          %341 = dma.done [#allocation9], 8192
        $region64: #{tpu_custom_call.1} parent=43 // pred_fallthru
          _
        // Predicated region
        $region65: #{tpu_custom_call.1} parent=43 // pred_check
          %p342 = pneg %p159
        $region66: #{tpu_custom_call.1} parent=43 // pred_check_branch
          %344 = sbr.rel (%p342) target = $region68
        $region67: #{tpu_custom_call.1} parent=43 // pred_region
          %346 = dma.done [#allocation12], 128
        $region68: #{tpu_custom_call.1} parent=43 // pred_fallthru
          _
        %s347 = sand.u32 %s36, 1
        %s348 = scalar_lea.sflag [#allocation3], %s347
        %s349 = sand.u32 %s36, 1
        %s350 = smul.addr %s349, 512
        %s351 = scalar_lea.vmem [#allocation2], %s350
        %p352 = pneg %p49
        %p353 = pneg %p46
        %s354 = sand.u32 %s28, 1
        %s355 = scalar_lea.sflag [#allocation6], %s354
        %s356 = sand.u32 %s62, 1
        %s357 = smul.addr %s356, 512
        %s358 = scalar_lea.vmem [#allocation5], %s357
        %p359 = pneg %p75
        %p360 = pneg %p72
        %p361 = pneg %p96
        %p362 = pneg %p93
        %p363 = pneg %p117
        %p364 = pneg %p114
        %p365 = pneg %p138
        %p366 = pneg %p135
        %p367 = pneg %p159
        %p368 = pneg %p156
        %p369 = pneg %p185
        %p370 = pneg %p182
        %s371 = sand.u32 %s172, 1
        %s372 = scalar_lea.sflag [#allocation4], %s371
        %s373 = sand.u32 %s172, 1
        %s374 = smul.addr %s373, 512
        %s375 = scalar_lea.vmem [#allocation13], %s374
        %s376 = smul.u32 64, %s28
        %s377 = smul.u32 64, %s28
        %s378 = smul.u32 64, %s28
        %v379 = vld [vmem:[%s311] sm:$0xff]
        %v380 = vld [vmem:[%s311 + $0x8] sm:$0xff]
        %v381 = vld [vmem:[%s311 + $0x10] sm:$0xff]
        %v382 = vld [vmem:[%s311 + $0x18] sm:$0xff]
        %v383 = vld [vmem:[%s311 + $0x20] sm:$0xff]
        %v384 = vld [vmem:[%s311 + $0x28] sm:$0xff]
        %v385 = vld [vmem:[%s311 + $0x30] sm:$0xff]
        %v386 = vld [vmem:[%s311 + $0x38] sm:$0xff]
        %v387 = vld [vmem:[%s311 + $0x40] sm:$0xff]
        %v388 = vld [vmem:[%s311 + $0x48] sm:$0xff]
        %v389 = vld [vmem:[%s311 + $0x50] sm:$0xff]
        %v390 = vld [vmem:[%s311 + $0x58] sm:$0xff]
        %v391 = vld [vmem:[%s311 + $0x60] sm:$0xff]
        %v392 = vld [vmem:[%s311 + $0x68] sm:$0xff]
        %v393 = vld [vmem:[%s311 + $0x70] sm:$0xff]
        %v394 = vld [vmem:[%s311 + $0x78] sm:$0xff]
        %v395 = vld [vmem:[%s311 + $0x80] sm:$0xff]
        %v396 = vld [vmem:[%s311 + $0x88] sm:$0xff]
        %v397 = vld [vmem:[%s311 + $0x90] sm:$0xff]
        %v398 = vld [vmem:[%s311 + $0x98] sm:$0xff]
        %v399 = vld [vmem:[%s311 + $0xa0] sm:$0xff]
        %v400 = vld [vmem:[%s311 + $0xa8] sm:$0xff]
        %v401 = vld [vmem:[%s311 + $0xb0] sm:$0xff]
        %v402 = vld [vmem:[%s311 + $0xb8] sm:$0xff]
        %v403 = vld [vmem:[%s311 + $0xc0] sm:$0xff]
        %v404 = vld [vmem:[%s311 + $0xc8] sm:$0xff]
        %v405 = vld [vmem:[%s311 + $0xd0] sm:$0xff]
        %v406 = vld [vmem:[%s311 + $0xd8] sm:$0xff]
        %v407 = vld [vmem:[%s311 + $0xe0] sm:$0xff]
        %v408 = vld [vmem:[%s311 + $0xe8] sm:$0xff]
        %v409 = vld [vmem:[%s311 + $0xf0] sm:$0xff]
        %v410 = vld [vmem:[%s311 + $0xf8] sm:$0xff]
        %v411 = vld [vmem:[%s311 + $0x100] sm:$0xff]
        %v412 = vld [vmem:[%s311 + $0x108] sm:$0xff]
        %v413 = vld [vmem:[%s311 + $0x110] sm:$0xff]
        %v414 = vld [vmem:[%s311 + $0x118] sm:$0xff]
        %v415 = vld [vmem:[%s311 + $0x120] sm:$0xff]
        %v416 = vld [vmem:[%s311 + $0x128] sm:$0xff]
        %v417 = vld [vmem:[%s311 + $0x130] sm:$0xff]
        %v418 = vld [vmem:[%s311 + $0x138] sm:$0xff]
        %v419 = vld [vmem:[%s311 + $0x140] sm:$0xff]
        %v420 = vld [vmem:[%s311 + $0x148] sm:$0xff]
        %v421 = vld [vmem:[%s311 + $0x150] sm:$0xff]
        %v422 = vld [vmem:[%s311 + $0x158] sm:$0xff]
        %v423 = vld [vmem:[%s311 + $0x160] sm:$0xff]
        %v424 = vld [vmem:[%s311 + $0x168] sm:$0xff]
        %v425 = vld [vmem:[%s311 + $0x170] sm:$0xff]
        %v426 = vld [vmem:[%s311 + $0x178] sm:$0xff]
        %v427 = vld [vmem:[%s311 + $0x180] sm:$0xff]
        %v428 = vld [vmem:[%s311 + $0x188] sm:$0xff]
        %v429 = vld [vmem:[%s311 + $0x190] sm:$0xff]
        %v430 = vld [vmem:[%s311 + $0x198] sm:$0xff]
        %v431 = vld [vmem:[%s311 + $0x1a0] sm:$0xff]
        %v432 = vld [vmem:[%s311 + $0x1a8] sm:$0xff]
        %v433 = vld [vmem:[%s311 + $0x1b0] sm:$0xff]
        %v434 = vld [vmem:[%s311 + $0x1b8] sm:$0xff]
        %v435 = vld [vmem:[%s311 + $0x1c0] sm:$0xff]
        %v436 = vld [vmem:[%s311 + $0x1c8] sm:$0xff]
        %v437 = vld [vmem:[%s311 + $0x1d0] sm:$0xff]
        %v438 = vld [vmem:[%s311 + $0x1d8] sm:$0xff]
        %v439 = vld [vmem:[%s311 + $0x1e0] sm:$0xff]
        %v440 = vld [vmem:[%s311 + $0x1e8] sm:$0xff]
        %v441 = vld [vmem:[%s311 + $0x1f0] sm:$0xff]
        %v442 = vld [vmem:[%s311 + $0x1f8] sm:$0xff]
        %v443 = vld [vmem:[%s321] sm:$0xff]
        %v444 = vld [vmem:[%s321 + $0x8] sm:$0xff]
        %v445 = vld [vmem:[%s321 + $0x10] sm:$0xff]
        %v446 = vld [vmem:[%s321 + $0x18] sm:$0xff]
        %v447 = vld [vmem:[%s321 + $0x20] sm:$0xff]
        %v448 = vld [vmem:[%s321 + $0x28] sm:$0xff]
        %v449 = vld [vmem:[%s321 + $0x30] sm:$0xff]
        %v450 = vld [vmem:[%s321 + $0x38] sm:$0xff]
        %v451 = vld [vmem:[%s321 + $0x40] sm:$0xff]
        %v452 = vld [vmem:[%s321 + $0x48] sm:$0xff]
        %v453 = vld [vmem:[%s321 + $0x50] sm:$0xff]
        %v454 = vld [vmem:[%s321 + $0x58] sm:$0xff]
        %v455 = vld [vmem:[%s321 + $0x60] sm:$0xff]
        %v456 = vld [vmem:[%s321 + $0x68] sm:$0xff]
        %v457 = vld [vmem:[%s321 + $0x70] sm:$0xff]
        %v458 = vld [vmem:[%s321 + $0x78] sm:$0xff]
        %v459 = vld [vmem:[%s321 + $0x80] sm:$0xff]
        %v460 = vld [vmem:[%s321 + $0x88] sm:$0xff]
        %v461 = vld [vmem:[%s321 + $0x90] sm:$0xff]
        %v462 = vld [vmem:[%s321 + $0x98] sm:$0xff]
        %v463 = vld [vmem:[%s321 + $0xa0] sm:$0xff]
        %v464 = vld [vmem:[%s321 + $0xa8] sm:$0xff]
        %v465 = vld [vmem:[%s321 + $0xb0] sm:$0xff]
        %v466 = vld [vmem:[%s321 + $0xb8] sm:$0xff]
        %v467 = vld [vmem:[%s321 + $0xc0] sm:$0xff]
        %v468 = vld [vmem:[%s321 + $0xc8] sm:$0xff]
        %v469 = vld [vmem:[%s321 + $0xd0] sm:$0xff]
        %v470 = vld [vmem:[%s321 + $0xd8] sm:$0xff]
        %v471 = vld [vmem:[%s321 + $0xe0] sm:$0xff]
        %v472 = vld [vmem:[%s321 + $0xe8] sm:$0xff]
        %v473 = vld [vmem:[%s321 + $0xf0] sm:$0xff]
        %v474 = vld [vmem:[%s321 + $0xf8] sm:$0xff]
        %v475 = vld [vmem:[%s321 + $0x100] sm:$0xff]
        %v476 = vld [vmem:[%s321 + $0x108] sm:$0xff]
        %v477 = vld [vmem:[%s321 + $0x110] sm:$0xff]
        %v478 = vld [vmem:[%s321 + $0x118] sm:$0xff]
        %v479 = vld [vmem:[%s321 + $0x120] sm:$0xff]
        %v480 = vld [vmem:[%s321 + $0x128] sm:$0xff]
        %v481 = vld [vmem:[%s321 + $0x130] sm:$0xff]
        %v482 = vld [vmem:[%s321 + $0x138] sm:$0xff]
        %v483 = vld [vmem:[%s321 + $0x140] sm:$0xff]
        %v484 = vld [vmem:[%s321 + $0x148] sm:$0xff]
        %v485 = vld [vmem:[%s321 + $0x150] sm:$0xff]
        %v486 = vld [vmem:[%s321 + $0x158] sm:$0xff]
        %v487 = vld [vmem:[%s321 + $0x160] sm:$0xff]
        %v488 = vld [vmem:[%s321 + $0x168] sm:$0xff]
        %v489 = vld [vmem:[%s321 + $0x170] sm:$0xff]
        %v490 = vld [vmem:[%s321 + $0x178] sm:$0xff]
        %v491 = vld [vmem:[%s321 + $0x180] sm:$0xff]
        %v492 = vld [vmem:[%s321 + $0x188] sm:$0xff]
        %v493 = vld [vmem:[%s321 + $0x190] sm:$0xff]
        %v494 = vld [vmem:[%s321 + $0x198] sm:$0xff]
        %v495 = vld [vmem:[%s321 + $0x1a0] sm:$0xff]
        %v496 = vld [vmem:[%s321 + $0x1a8] sm:$0xff]
        %v497 = vld [vmem:[%s321 + $0x1b0] sm:$0xff]
        %v498 = vld [vmem:[%s321 + $0x1b8] sm:$0xff]
        %v499 = vld [vmem:[%s321 + $0x1c0] sm:$0xff]
        %v500 = vld [vmem:[%s321 + $0x1c8] sm:$0xff]
        %v501 = vld [vmem:[%s321 + $0x1d0] sm:$0xff]
        %v502 = vld [vmem:[%s321 + $0x1d8] sm:$0xff]
        %v503 = vld [vmem:[%s321 + $0x1e0] sm:$0xff]
        %v504 = vld [vmem:[%s321 + $0x1e8] sm:$0xff]
        %v505 = vld [vmem:[%s321 + $0x1f0] sm:$0xff]
        %v506 = vld [vmem:[%s321 + $0x1f8] sm:$0xff]
        %v507 = vpack.c.bf16 %v444, %v443
        %v508 = vpack.c.bf16 %v446, %v445
        %v509 = vpack.c.bf16 %v448, %v447
        %v510 = vpack.c.bf16 %v450, %v449
        %v511 = vpack.c.bf16 %v452, %v451
        %v512 = vpack.c.bf16 %v454, %v453
        %v513 = vpack.c.bf16 %v456, %v455
        %v514 = vpack.c.bf16 %v458, %v457
        %v515 = vpack.c.bf16 %v460, %v459
        %v516 = vpack.c.bf16 %v462, %v461
        %v517 = vpack.c.bf16 %v464, %v463
        %v518 = vpack.c.bf16 %v466, %v465
        %v519 = vpack.c.bf16 %v468, %v467
        %v520 = vpack.c.bf16 %v470, %v469
        %v521 = vpack.c.bf16 %v472, %v471
        %v522 = vpack.c.bf16 %v474, %v473
        %v523 = vpack.c.bf16 %v476, %v475
        %v524 = vpack.c.bf16 %v478, %v477
        %v525 = vpack.c.bf16 %v480, %v479
        %v526 = vpack.c.bf16 %v482, %v481
        %v527 = vpack.c.bf16 %v484, %v483
        %v528 = vpack.c.bf16 %v486, %v485
        %v529 = vpack.c.bf16 %v488, %v487
        %v530 = vpack.c.bf16 %v490, %v489
        %v531 = vpack.c.bf16 %v492, %v491
        %v532 = vpack.c.bf16 %v494, %v493
        %v533 = vpack.c.bf16 %v496, %v495
        %v534 = vpack.c.bf16 %v498, %v497
        %v535 = vpack.c.bf16 %v500, %v499
        %v536 = vpack.c.bf16 %v502, %v501
        %v537 = vpack.c.bf16 %v504, %v503
        %v538 = vpack.c.bf16 %v506, %v505
        %v539 = vld [vmem:[#allocation7] sm:$0xff]
        %v540 = vld [vmem:[#allocation7 + $0x8] sm:$0xff]
        %v541 = vld [vmem:[#allocation7 + $0x10] sm:$0xff]
        %v542 = vld [vmem:[#allocation7 + $0x18] sm:$0xff]
        %v543 = vld [vmem:[#allocation7 + $0x20] sm:$0xff]
        %v544 = vld [vmem:[#allocation7 + $0x28] sm:$0xff]
        %v545 = vld [vmem:[#allocation7 + $0x30] sm:$0xff]
        %v546 = vld [vmem:[#allocation7 + $0x38] sm:$0xff]
        %v547 = vld [vmem:[#allocation7 + $0x40] sm:$0xff]
        %v548 = vld [vmem:[#allocation7 + $0x48] sm:$0xff]
        %v549 = vld [vmem:[#allocation7 + $0x50] sm:$0xff]
        %v550 = vld [vmem:[#allocation7 + $0x58] sm:$0xff]
        %v551 = vld [vmem:[#allocation7 + $0x60] sm:$0xff]
        %v552 = vld [vmem:[#allocation7 + $0x68] sm:$0xff]
        %v553 = vld [vmem:[#allocation7 + $0x70] sm:$0xff]
        %v554 = vld [vmem:[#allocation7 + $0x78] sm:$0xff]
        %v555 = vld [vmem:[#allocation7 + $0x80] sm:$0xff]
        %v556 = vld [vmem:[#allocation7 + $0x88] sm:$0xff]
        %v557 = vld [vmem:[#allocation7 + $0x90] sm:$0xff]
        %v558 = vld [vmem:[#allocation7 + $0x98] sm:$0xff]
        %v559 = vld [vmem:[#allocation7 + $0xa0] sm:$0xff]
        %v560 = vld [vmem:[#allocation7 + $0xa8] sm:$0xff]
        %v561 = vld [vmem:[#allocation7 + $0xb0] sm:$0xff]
        %v562 = vld [vmem:[#allocation7 + $0xb8] sm:$0xff]
        %v563 = vld [vmem:[#allocation7 + $0xc0] sm:$0xff]
        %v564 = vld [vmem:[#allocation7 + $0xc8] sm:$0xff]
        %v565 = vld [vmem:[#allocation7 + $0xd0] sm:$0xff]
        %v566 = vld [vmem:[#allocation7 + $0xd8] sm:$0xff]
        %v567 = vld [vmem:[#allocation7 + $0xe0] sm:$0xff]
        %v568 = vld [vmem:[#allocation7 + $0xe8] sm:$0xff]
        %v569 = vld [vmem:[#allocation7 + $0xf0] sm:$0xff]
        %v570 = vld [vmem:[#allocation7 + $0xf8] sm:$0xff]
        %v571 = vld [vmem:[#allocation7 + $0x100] sm:$0xff]
        %v572 = vld [vmem:[#allocation7 + $0x108] sm:$0xff]
        %v573 = vld [vmem:[#allocation7 + $0x110] sm:$0xff]
        %v574 = vld [vmem:[#allocation7 + $0x118] sm:$0xff]
        %v575 = vld [vmem:[#allocation7 + $0x120] sm:$0xff]
        %v576 = vld [vmem:[#allocation7 + $0x128] sm:$0xff]
        %v577 = vld [vmem:[#allocation7 + $0x130] sm:$0xff]
        %v578 = vld [vmem:[#allocation7 + $0x138] sm:$0xff]
        %v579 = vld [vmem:[#allocation7 + $0x140] sm:$0xff]
        %v580 = vld [vmem:[#allocation7 + $0x148] sm:$0xff]
        %v581 = vld [vmem:[#allocation7 + $0x150] sm:$0xff]
        %v582 = vld [vmem:[#allocation7 + $0x158] sm:$0xff]
        %v583 = vld [vmem:[#allocation7 + $0x160] sm:$0xff]
        %v584 = vld [vmem:[#allocation7 + $0x168] sm:$0xff]
        %v585 = vld [vmem:[#allocation7 + $0x170] sm:$0xff]
        %v586 = vld [vmem:[#allocation7 + $0x178] sm:$0xff]
        %v587 = vld [vmem:[#allocation7 + $0x180] sm:$0xff]
        %v588 = vld [vmem:[#allocation7 + $0x188] sm:$0xff]
        %v589 = vld [vmem:[#allocation7 + $0x190] sm:$0xff]
        %v590 = vld [vmem:[#allocation7 + $0x198] sm:$0xff]
        %v591 = vld [vmem:[#allocation7 + $0x1a0] sm:$0xff]
        %v592 = vld [vmem:[#allocation7 + $0x1a8] sm:$0xff]
        %v593 = vld [vmem:[#allocation7 + $0x1b0] sm:$0xff]
        %v594 = vld [vmem:[#allocation7 + $0x1b8] sm:$0xff]
        %v595 = vld [vmem:[#allocation7 + $0x1c0] sm:$0xff]
        %v596 = vld [vmem:[#allocation7 + $0x1c8] sm:$0xff]
        %v597 = vld [vmem:[#allocation7 + $0x1d0] sm:$0xff]
        %v598 = vld [vmem:[#allocation7 + $0x1d8] sm:$0xff]
        %v599 = vld [vmem:[#allocation7 + $0x1e0] sm:$0xff]
        %v600 = vld [vmem:[#allocation7 + $0x1e8] sm:$0xff]
        %v601 = vld [vmem:[#allocation7 + $0x1f0] sm:$0xff]
        %v602 = vld [vmem:[#allocation7 + $0x1f8] sm:$0xff]
        %v603 = vld [vmem:[#allocation8] sm:$0xff]
        %v605 = vperm.slane %v603, 0
        %v606 = vperm.slane %v603, 1
        %v607 = vperm.slane %v603, 2
        %v608 = vperm.slane %v603, 3
        %v609 = vperm.slane %v603, 4
        %v610 = vperm.slane %v603, 5
        %v611 = vperm.slane %v603, 6
        %v612 = vperm.slane %v603, 7
        %v685 = vunpack.c.l.b16 %v539
        %v686 = vunpack.c.h.b16 %v539
        %v687 = vunpack.c.l.b16 %v540
        %v688 = vunpack.c.h.b16 %v540
        %v689 = vunpack.c.l.b16 %v541
        %v690 = vunpack.c.h.b16 %v541
        %v691 = vunpack.c.l.b16 %v542
        %v692 = vunpack.c.h.b16 %v542
        %v693 = vunpack.c.l.b16 %v543
        %v694 = vunpack.c.h.b16 %v543
        %v695 = vunpack.c.l.b16 %v544
        %v696 = vunpack.c.h.b16 %v544
        %v697 = vunpack.c.l.b16 %v545
        %v698 = vunpack.c.h.b16 %v545
        %v699 = vunpack.c.l.b16 %v546
        %v700 = vunpack.c.h.b16 %v546
        %v701 = vunpack.c.l.b16 %v547
        %v702 = vunpack.c.h.b16 %v547
        %v703 = vunpack.c.l.b16 %v548
        %v704 = vunpack.c.h.b16 %v548
        %v705 = vunpack.c.l.b16 %v549
        %v706 = vunpack.c.h.b16 %v549
        %v707 = vunpack.c.l.b16 %v550
        %v708 = vunpack.c.h.b16 %v550
        %v709 = vunpack.c.l.b16 %v551
        %v710 = vunpack.c.h.b16 %v551
        %v711 = vunpack.c.l.b16 %v552
        %v712 = vunpack.c.h.b16 %v552
        %v713 = vunpack.c.l.b16 %v553
        %v714 = vunpack.c.h.b16 %v553
        %v715 = vunpack.c.l.b16 %v554
        %v716 = vunpack.c.h.b16 %v554
        %v717 = vunpack.c.l.b16 %v555
        %v718 = vunpack.c.h.b16 %v555
        %v719 = vunpack.c.l.b16 %v556
        %v720 = vunpack.c.h.b16 %v556
        %v721 = vunpack.c.l.b16 %v557
        %v722 = vunpack.c.h.b16 %v557
        %v723 = vunpack.c.l.b16 %v558
        %v724 = vunpack.c.h.b16 %v558
        %v725 = vunpack.c.l.b16 %v559
        %v726 = vunpack.c.h.b16 %v559
        %v727 = vunpack.c.l.b16 %v560
        %v728 = vunpack.c.h.b16 %v560
        %v729 = vunpack.c.l.b16 %v561
        %v730 = vunpack.c.h.b16 %v561
        %v731 = vunpack.c.l.b16 %v562
        %v732 = vunpack.c.h.b16 %v562
        %v733 = vunpack.c.l.b16 %v563
        %v734 = vunpack.c.h.b16 %v563
        %v735 = vunpack.c.l.b16 %v564
        %v736 = vunpack.c.h.b16 %v564
        %v737 = vunpack.c.l.b16 %v565
        %v738 = vunpack.c.h.b16 %v565
        %v739 = vunpack.c.l.b16 %v566
        %v740 = vunpack.c.h.b16 %v566
        %v741 = vunpack.c.l.b16 %v567
        %v742 = vunpack.c.h.b16 %v567
        %v743 = vunpack.c.l.b16 %v568
        %v744 = vunpack.c.h.b16 %v568
        %v745 = vunpack.c.l.b16 %v569
        %v746 = vunpack.c.h.b16 %v569
        %v747 = vunpack.c.l.b16 %v570
        %v748 = vunpack.c.h.b16 %v570
        %v749 = vunpack.c.l.b16 %v571
        %v750 = vunpack.c.h.b16 %v571
        %v751 = vunpack.c.l.b16 %v572
        %v752 = vunpack.c.h.b16 %v572
        %v753 = vunpack.c.l.b16 %v573
        %v754 = vunpack.c.h.b16 %v573
        %v755 = vunpack.c.l.b16 %v574
        %v756 = vunpack.c.h.b16 %v574
        %v757 = vunpack.c.l.b16 %v575
        %v758 = vunpack.c.h.b16 %v575
        %v759 = vunpack.c.l.b16 %v576
        %v760 = vunpack.c.h.b16 %v576
        %v761 = vunpack.c.l.b16 %v577
        %v762 = vunpack.c.h.b16 %v577
        %v763 = vunpack.c.l.b16 %v578
        %v764 = vunpack.c.h.b16 %v578
        %v765 = vunpack.c.l.b16 %v579
        %v766 = vunpack.c.h.b16 %v579
        %v767 = vunpack.c.l.b16 %v580
        %v768 = vunpack.c.h.b16 %v580
        %v769 = vunpack.c.l.b16 %v581
        %v770 = vunpack.c.h.b16 %v581
        %v771 = vunpack.c.l.b16 %v582
        %v772 = vunpack.c.h.b16 %v582
        %v773 = vunpack.c.l.b16 %v583
        %v774 = vunpack.c.h.b16 %v583
        %v775 = vunpack.c.l.b16 %v584
        %v776 = vunpack.c.h.b16 %v584
        %v777 = vunpack.c.l.b16 %v585
        %v778 = vunpack.c.h.b16 %v585
        %v779 = vunpack.c.l.b16 %v586
        %v780 = vunpack.c.h.b16 %v586
        %v781 = vunpack.c.l.b16 %v587
        %v782 = vunpack.c.h.b16 %v587
        %v783 = vunpack.c.l.b16 %v588
        %v784 = vunpack.c.h.b16 %v588
        %v785 = vunpack.c.l.b16 %v589
        %v786 = vunpack.c.h.b16 %v589
        %v787 = vunpack.c.l.b16 %v590
        %v788 = vunpack.c.h.b16 %v590
        %v789 = vunpack.c.l.b16 %v591
        %v790 = vunpack.c.h.b16 %v591
        %v791 = vunpack.c.l.b16 %v592
        %v792 = vunpack.c.h.b16 %v592
        %v793 = vunpack.c.l.b16 %v593
        %v794 = vunpack.c.h.b16 %v593
        %v795 = vunpack.c.l.b16 %v594
        %v796 = vunpack.c.h.b16 %v594
        %v797 = vunpack.c.l.b16 %v595
        %v798 = vunpack.c.h.b16 %v595
        %v799 = vunpack.c.l.b16 %v596
        %v800 = vunpack.c.h.b16 %v596
        %v801 = vunpack.c.l.b16 %v597
        %v802 = vunpack.c.h.b16 %v597
        %v803 = vunpack.c.l.b16 %v598
        %v804 = vunpack.c.h.b16 %v598
        %v805 = vunpack.c.l.b16 %v599
        %v806 = vunpack.c.h.b16 %v599
        %v807 = vunpack.c.l.b16 %v600
        %v808 = vunpack.c.h.b16 %v600
        %v809 = vunpack.c.l.b16 %v601
        %v810 = vunpack.c.h.b16 %v601
        %v811 = vunpack.c.l.b16 %v602
        %v812 = vunpack.c.h.b16 %v602
        %v813 = vpack.c.b16 %v693, %v685
        %v814 = vpack.c.b16 %v694, %v686
        %v815 = vpack.c.b16 %v695, %v687
        %v816 = vpack.c.b16 %v696, %v688
        %v817 = vpack.c.b16 %v697, %v689
        %v818 = vpack.c.b16 %v698, %v690
        %v819 = vpack.c.b16 %v699, %v691
        %v820 = vpack.c.b16 %v700, %v692
        %v821 = vpack.c.b16 %v709, %v701
        %v822 = vpack.c.b16 %v710, %v702
        %v823 = vpack.c.b16 %v711, %v703
        %v824 = vpack.c.b16 %v712, %v704
        %v825 = vpack.c.b16 %v713, %v705
        %v826 = vpack.c.b16 %v714, %v706
        %v827 = vpack.c.b16 %v715, %v707
        %v828 = vpack.c.b16 %v716, %v708
        %v829 = vpack.c.b16 %v725, %v717
        %v830 = vpack.c.b16 %v726, %v718
        %v831 = vpack.c.b16 %v727, %v719
        %v832 = vpack.c.b16 %v728, %v720
        %v833 = vpack.c.b16 %v729, %v721
        %v834 = vpack.c.b16 %v730, %v722
        %v835 = vpack.c.b16 %v731, %v723
        %v836 = vpack.c.b16 %v732, %v724
        %v837 = vpack.c.b16 %v741, %v733
        %v838 = vpack.c.b16 %v742, %v734
        %v839 = vpack.c.b16 %v743, %v735
        %v840 = vpack.c.b16 %v744, %v736
        %v841 = vpack.c.b16 %v745, %v737
        %v842 = vpack.c.b16 %v746, %v738
        %v843 = vpack.c.b16 %v747, %v739
        %v844 = vpack.c.b16 %v748, %v740
        %v845 = vpack.c.b16 %v757, %v749
        %v846 = vpack.c.b16 %v758, %v750
        %v847 = vpack.c.b16 %v759, %v751
        %v848 = vpack.c.b16 %v760, %v752
        %v849 = vpack.c.b16 %v761, %v753
        %v850 = vpack.c.b16 %v762, %v754
        %v851 = vpack.c.b16 %v763, %v755
        %v852 = vpack.c.b16 %v764, %v756
        %v853 = vpack.c.b16 %v773, %v765
        %v854 = vpack.c.b16 %v774, %v766
        %v855 = vpack.c.b16 %v775, %v767
        %v856 = vpack.c.b16 %v776, %v768
        %v857 = vpack.c.b16 %v777, %v769
        %v858 = vpack.c.b16 %v778, %v770
        %v859 = vpack.c.b16 %v779, %v771
        %v860 = vpack.c.b16 %v780, %v772
        %v861 = vpack.c.b16 %v789, %v781
        %v862 = vpack.c.b16 %v790, %v782
        %v863 = vpack.c.b16 %v791, %v783
        %v864 = vpack.c.b16 %v792, %v784
        %v865 = vpack.c.b16 %v793, %v785
        %v866 = vpack.c.b16 %v794, %v786
        %v867 = vpack.c.b16 %v795, %v787
        %v868 = vpack.c.b16 %v796, %v788
        %v869 = vpack.c.b16 %v805, %v797
        %v870 = vpack.c.b16 %v806, %v798
        %v871 = vpack.c.b16 %v807, %v799
        %v872 = vpack.c.b16 %v808, %v800
        %v873 = vpack.c.b16 %v809, %v801
        %v874 = vpack.c.b16 %v810, %v802
        %v875 = vpack.c.b16 %v811, %v803
        %v876 = vpack.c.b16 %v812, %v804
        %941 = vmatpush.bf16.msra.mxu0 %v869
        %942 = vmatpush.bf16.msra.mxu0 %v861
        %943 = vmatpush.bf16.msra.mxu0 %v853
        %944 = vmatpush.bf16.msra.mxu0 %v845
        %945 = vmatpush.bf16.msra.mxu0 %v837
        %946 = vmatpush.bf16.msra.mxu0 %v829
        %947 = vmatpush.bf16.msra.mxu0 %v821
        %948 = vmatpush.bf16.msra.mxu0 %v813
        %949 = vmatmul.bf16.gmra.mxu0 %v507
        %v950 = vpop.f32.mrf.mxu0
        %v951 = vadd.f32 %v605, %v950
        %v952 = vpop.f32.mrf.mxu0
        %v953 = vadd.f32 %v605, %v952
        %954 = vmatmul.bf16.gmra.mxu0 %v508
        %v955 = vpop.f32.mrf.mxu0
        %v956 = vadd.f32 %v605, %v955
        %v957 = vpop.f32.mrf.mxu0
        %v958 = vadd.f32 %v605, %v957
        %959 = vmatmul.bf16.gmra.mxu0 %v509
        %v960 = vpop.f32.mrf.mxu0
        %v961 = vadd.f32 %v605, %v960
        %v962 = vpop.f32.mrf.mxu0
        %v963 = vadd.f32 %v605, %v962
        %964 = vmatmul.bf16.gmra.mxu0 %v510
        %v965 = vpop.f32.mrf.mxu0
        %v966 = vadd.f32 %v605, %v965
        %v967 = vpop.f32.mrf.mxu0
        %v968 = vadd.f32 %v605, %v967
        %969 = vmatmul.bf16.gmra.mxu0 %v511
        %v970 = vpop.f32.mrf.mxu0
        %v971 = vadd.f32 %v605, %v970
        %v972 = vpop.f32.mrf.mxu0
        %v973 = vadd.f32 %v605, %v972
        %974 = vmatmul.bf16.gmra.mxu0 %v512
        %v975 = vpop.f32.mrf.mxu0
        %v976 = vadd.f32 %v605, %v975
        %v977 = vpop.f32.mrf.mxu0
        %v978 = vadd.f32 %v605, %v977
        %979 = vmatmul.bf16.gmra.mxu0 %v513
        %v980 = vpop.f32.mrf.mxu0
        %v981 = vadd.f32 %v605, %v980
        %v982 = vpop.f32.mrf.mxu0
        %v983 = vadd.f32 %v605, %v982
        %984 = vmatmul.bf16.gmra.mxu0 %v514
        %v985 = vpop.f32.mrf.mxu0
        %v986 = vadd.f32 %v605, %v985
        %v987 = vpop.f32.mrf.mxu0
        %v988 = vadd.f32 %v605, %v987
        %989 = vmatmul.bf16.gmra.mxu0 %v515
        %v990 = vpop.f32.mrf.mxu0
        %v991 = vadd.f32 %v605, %v990
        %v992 = vpop.f32.mrf.mxu0
        %v993 = vadd.f32 %v605, %v992
        %994 = vmatmul.bf16.gmra.mxu0 %v516
        %v995 = vpop.f32.mrf.mxu0
        %v996 = vadd.f32 %v605, %v995
        %v997 = vpop.f32.mrf.mxu0
        %v998 = vadd.f32 %v605, %v997
        %999 = vmatmul.bf16.gmra.mxu0 %v517
        %v1000 = vpop.f32.mrf.mxu0
        %v1001 = vadd.f32 %v605, %v1000
        %v1002 = vpop.f32.mrf.mxu0
        %v1003 = vadd.f32 %v605, %v1002
        %1004 = vmatmul.bf16.gmra.mxu0 %v518
        %v1005 = vpop.f32.mrf.mxu0
        %v1006 = vadd.f32 %v605, %v1005
        %v1007 = vpop.f32.mrf.mxu0
        %v1008 = vadd.f32 %v605, %v1007
        %1009 = vmatmul.bf16.gmra.mxu0 %v519
        %v1010 = vpop.f32.mrf.mxu0
        %v1011 = vadd.f32 %v605, %v1010
        %v1012 = vpop.f32.mrf.mxu0
        %v1013 = vadd.f32 %v605, %v1012
        %1014 = vmatmul.bf16.gmra.mxu0 %v520
        %v1015 = vpop.f32.mrf.mxu0
        %v1016 = vadd.f32 %v605, %v1015
        %v1017 = vpop.f32.mrf.mxu0
        %v1018 = vadd.f32 %v605, %v1017
        %1019 = vmatmul.bf16.gmra.mxu0 %v521
        %v1020 = vpop.f32.mrf.mxu0
        %v1021 = vadd.f32 %v605, %v1020
        %v1022 = vpop.f32.mrf.mxu0
        %v1023 = vadd.f32 %v605, %v1022
        %1024 = vmatmul.bf16.gmra.mxu0 %v522
        %v1025 = vpop.f32.mrf.mxu0
        %v1026 = vadd.f32 %v605, %v1025
        %v1027 = vpop.f32.mrf.mxu0
        %v1028 = vadd.f32 %v605, %v1027
        %1029 = vmatmul.bf16.gmra.mxu0 %v523
        %v1030 = vpop.f32.mrf.mxu0
        %v1031 = vadd.f32 %v605, %v1030
        %v1032 = vpop.f32.mrf.mxu0
        %v1033 = vadd.f32 %v605, %v1032
        %1034 = vmatmul.bf16.gmra.mxu0 %v524
        %v1035 = vpop.f32.mrf.mxu0
        %v1036 = vadd.f32 %v605, %v1035
        %v1037 = vpop.f32.mrf.mxu0
        %v1038 = vadd.f32 %v605, %v1037
        %1039 = vmatmul.bf16.gmra.mxu0 %v525
        %v1040 = vpop.f32.mrf.mxu0
        %v1041 = vadd.f32 %v605, %v1040
        %v1042 = vpop.f32.mrf.mxu0
        %v1043 = vadd.f32 %v605, %v1042
        %1044 = vmatmul.bf16.gmra.mxu0 %v526
        %v1045 = vpop.f32.mrf.mxu0
        %v1046 = vadd.f32 %v605, %v1045
        %v1047 = vpop.f32.mrf.mxu0
        %v1048 = vadd.f32 %v605, %v1047
        %1049 = vmatmul.bf16.gmra.mxu0 %v527
        %v1050 = vpop.f32.mrf.mxu0
        %v1051 = vadd.f32 %v605, %v1050
        %v1052 = vpop.f32.mrf.mxu0
        %v1053 = vadd.f32 %v605, %v1052
        %1054 = vmatmul.bf16.gmra.mxu0 %v528
        %v1055 = vpop.f32.mrf.mxu0
        %v1056 = vadd.f32 %v605, %v1055
        %v1057 = vpop.f32.mrf.mxu0
        %v1058 = vadd.f32 %v605, %v1057
        %1059 = vmatmul.bf16.gmra.mxu0 %v529
        %v1060 = vpop.f32.mrf.mxu0
        %v1061 = vadd.f32 %v605, %v1060
        %v1062 = vpop.f32.mrf.mxu0
        %v1063 = vadd.f32 %v605, %v1062
        %1064 = vmatmul.bf16.gmra.mxu0 %v530
        %v1065 = vpop.f32.mrf.mxu0
        %v1066 = vadd.f32 %v605, %v1065
        %v1067 = vpop.f32.mrf.mxu0
        %v1068 = vadd.f32 %v605, %v1067
        %1069 = vmatmul.bf16.gmra.mxu0 %v531
        %v1070 = vpop.f32.mrf.mxu0
        %v1071 = vadd.f32 %v605, %v1070
        %v1072 = vpop.f32.mrf.mxu0
        %v1073 = vadd.f32 %v605, %v1072
        %1074 = vmatmul.bf16.gmra.mxu0 %v532
        %v1075 = vpop.f32.mrf.mxu0
        %v1076 = vadd.f32 %v605, %v1075
        %v1077 = vpop.f32.mrf.mxu0
        %v1078 = vadd.f32 %v605, %v1077
        %1079 = vmatmul.bf16.gmra.mxu0 %v533
        %v1080 = vpop.f32.mrf.mxu0
        %v1081 = vadd.f32 %v605, %v1080
        %v1082 = vpop.f32.mrf.mxu0
        %v1083 = vadd.f32 %v605, %v1082
        %1084 = vmatmul.bf16.gmra.mxu0 %v534
        %v1085 = vpop.f32.mrf.mxu0
        %v1086 = vadd.f32 %v605, %v1085
        %v1087 = vpop.f32.mrf.mxu0
        %v1088 = vadd.f32 %v605, %v1087
        %1089 = vmatmul.bf16.gmra.mxu0 %v535
        %v1090 = vpop.f32.mrf.mxu0
        %v1091 = vadd.f32 %v605, %v1090
        %v1092 = vpop.f32.mrf.mxu0
        %v1093 = vadd.f32 %v605, %v1092
        %1094 = vmatmul.bf16.gmra.mxu0 %v536
        %v1095 = vpop.f32.mrf.mxu0
        %v1096 = vadd.f32 %v605, %v1095
        %v1097 = vpop.f32.mrf.mxu0
        %v1098 = vadd.f32 %v605, %v1097
        %1099 = vmatmul.bf16.gmra.mxu0 %v537
        %v1100 = vpop.f32.mrf.mxu0
        %v1101 = vadd.f32 %v605, %v1100
        %v1102 = vpop.f32.mrf.mxu0
        %v1103 = vadd.f32 %v605, %v1102
        %1104 = vmatmul.bf16.gmra.mxu0 %v538
        %v1105 = vpop.f32.mrf.mxu0
        %v1106 = vadd.f32 %v605, %v1105
        %v1107 = vpop.f32.mrf.mxu0
        %v1108 = vadd.f32 %v605, %v1107
        %1109 = vdwg.mxu0
        %1110 = vmatpush.bf16.msra.mxu0 %v870
        %1111 = vmatpush.bf16.msra.mxu0 %v862
        %1112 = vmatpush.bf16.msra.mxu0 %v854
        %1113 = vmatpush.bf16.msra.mxu0 %v846
        %1114 = vmatpush.bf16.msra.mxu0 %v838
        %1115 = vmatpush.bf16.msra.mxu0 %v830
        %1116 = vmatpush.bf16.msra.mxu0 %v822
        %1117 = vmatpush.bf16.msra.mxu0 %v814
        %1118 = vmatmul.bf16.gmra.mxu0 %v507
        %v1119 = vpop.f32.mrf.mxu0
        %v1120 = vadd.f32 %v606, %v1119
        %v1121 = vpop.f32.mrf.mxu0
        %v1122 = vadd.f32 %v606, %v1121
        %1123 = vmatmul.bf16.gmra.mxu0 %v508
        %v1124 = vpop.f32.mrf.mxu0
        %v1125 = vadd.f32 %v606, %v1124
        %v1126 = vpop.f32.mrf.mxu0
        %v1127 = vadd.f32 %v606, %v1126
        %1128 = vmatmul.bf16.gmra.mxu0 %v509
        %v1129 = vpop.f32.mrf.mxu0
        %v1130 = vadd.f32 %v606, %v1129
        %v1131 = vpop.f32.mrf.mxu0
        %v1132 = vadd.f32 %v606, %v1131
        %1133 = vmatmul.bf16.gmra.mxu0 %v510
        %v1134 = vpop.f32.mrf.mxu0
        %v1135 = vadd.f32 %v606, %v1134
        %v1136 = vpop.f32.mrf.mxu0
        %v1137 = vadd.f32 %v606, %v1136
        %1138 = vmatmul.bf16.gmra.mxu0 %v511
        %v1139 = vpop.f32.mrf.mxu0
        %v1140 = vadd.f32 %v606, %v1139
        %v1141 = vpop.f32.mrf.mxu0
        %v1142 = vadd.f32 %v606, %v1141
        %1143 = vmatmul.bf16.gmra.mxu0 %v512
        %v1144 = vpop.f32.mrf.mxu0
        %v1145 = vadd.f32 %v606, %v1144
        %v1146 = vpop.f32.mrf.mxu0
        %v1147 = vadd.f32 %v606, %v1146
        %1148 = vmatmul.bf16.gmra.mxu0 %v513
        %v1149 = vpop.f32.mrf.mxu0
        %v1150 = vadd.f32 %v606, %v1149
        %v1151 = vpop.f32.mrf.mxu0
        %v1152 = vadd.f32 %v606, %v1151
        %1153 = vmatmul.bf16.gmra.mxu0 %v514
        %v1154 = vpop.f32.mrf.mxu0
        %v1155 = vadd.f32 %v606, %v1154
        %v1156 = vpop.f32.mrf.mxu0
        %v1157 = vadd.f32 %v606, %v1156
        %1158 = vmatmul.bf16.gmra.mxu0 %v515
        %v1159 = vpop.f32.mrf.mxu0
        %v1160 = vadd.f32 %v606, %v1159
        %v1161 = vpop.f32.mrf.mxu0
        %v1162 = vadd.f32 %v606, %v1161
        %1163 = vmatmul.bf16.gmra.mxu0 %v516
        %v1164 = vpop.f32.mrf.mxu0
        %v1165 = vadd.f32 %v606, %v1164
        %v1166 = vpop.f32.mrf.mxu0
        %v1167 = vadd.f32 %v606, %v1166
        %1168 = vmatmul.bf16.gmra.mxu0 %v517
        %v1169 = vpop.f32.mrf.mxu0
        %v1170 = vadd.f32 %v606, %v1169
        %v1171 = vpop.f32.mrf.mxu0
        %v1172 = vadd.f32 %v606, %v1171
        %1173 = vmatmul.bf16.gmra.mxu0 %v518
        %v1174 = vpop.f32.mrf.mxu0
        %v1175 = vadd.f32 %v606, %v1174
        %v1176 = vpop.f32.mrf.mxu0
        %v1177 = vadd.f32 %v606, %v1176
        %1178 = vmatmul.bf16.gmra.mxu0 %v519
        %v1179 = vpop.f32.mrf.mxu0
        %v1180 = vadd.f32 %v606, %v1179
        %v1181 = vpop.f32.mrf.mxu0
        %v1182 = vadd.f32 %v606, %v1181
        %1183 = vmatmul.bf16.gmra.mxu0 %v520
        %v1184 = vpop.f32.mrf.mxu0
        %v1185 = vadd.f32 %v606, %v1184
        %v1186 = vpop.f32.mrf.mxu0
        %v1187 = vadd.f32 %v606, %v1186
        %1188 = vmatmul.bf16.gmra.mxu0 %v521
        %v1189 = vpop.f32.mrf.mxu0
        %v1190 = vadd.f32 %v606, %v1189
        %v1191 = vpop.f32.mrf.mxu0
        %v1192 = vadd.f32 %v606, %v1191
        %1193 = vmatmul.bf16.gmra.mxu0 %v522
        %v1194 = vpop.f32.mrf.mxu0
        %v1195 = vadd.f32 %v606, %v1194
        %v1196 = vpop.f32.mrf.mxu0
        %v1197 = vadd.f32 %v606, %v1196
        %1198 = vmatmul.bf16.gmra.mxu0 %v523
        %v1199 = vpop.f32.mrf.mxu0
        %v1200 = vadd.f32 %v606, %v1199
        %v1201 = vpop.f32.mrf.mxu0
        %v1202 = vadd.f32 %v606, %v1201
        %1203 = vmatmul.bf16.gmra.mxu0 %v524
        %v1204 = vpop.f32.mrf.mxu0
        %v1205 = vadd.f32 %v606, %v1204
        %v1206 = vpop.f32.mrf.mxu0
        %v1207 = vadd.f32 %v606, %v1206
        %1208 = vmatmul.bf16.gmra.mxu0 %v525
        %v1209 = vpop.f32.mrf.mxu0
        %v1210 = vadd.f32 %v606, %v1209
        %v1211 = vpop.f32.mrf.mxu0
        %v1212 = vadd.f32 %v606, %v1211
        %1213 = vmatmul.bf16.gmra.mxu0 %v526
        %v1214 = vpop.f32.mrf.mxu0
        %v1215 = vadd.f32 %v606, %v1214
        %v1216 = vpop.f32.mrf.mxu0
        %v1217 = vadd.f32 %v606, %v1216
        %1218 = vmatmul.bf16.gmra.mxu0 %v527
        %v1219 = vpop.f32.mrf.mxu0
        %v1220 = vadd.f32 %v606, %v1219
        %v1221 = vpop.f32.mrf.mxu0
        %v1222 = vadd.f32 %v606, %v1221
        %1223 = vmatmul.bf16.gmra.mxu0 %v528
        %v1224 = vpop.f32.mrf.mxu0
        %v1225 = vadd.f32 %v606, %v1224
        %v1226 = vpop.f32.mrf.mxu0
        %v1227 = vadd.f32 %v606, %v1226
        %1228 = vmatmul.bf16.gmra.mxu0 %v529
        %v1229 = vpop.f32.mrf.mxu0
        %v1230 = vadd.f32 %v606, %v1229
        %v1231 = vpop.f32.mrf.mxu0
        %v1232 = vadd.f32 %v606, %v1231
        %1233 = vmatmul.bf16.gmra.mxu0 %v530
        %v1234 = vpop.f32.mrf.mxu0
        %v1235 = vadd.f32 %v606, %v1234
        %v1236 = vpop.f32.mrf.mxu0
        %v1237 = vadd.f32 %v606, %v1236
        %1238 = vmatmul.bf16.gmra.mxu0 %v531
        %v1239 = vpop.f32.mrf.mxu0
        %v1240 = vadd.f32 %v606, %v1239
        %v1241 = vpop.f32.mrf.mxu0
        %v1242 = vadd.f32 %v606, %v1241
        %1243 = vmatmul.bf16.gmra.mxu0 %v532
        %v1244 = vpop.f32.mrf.mxu0
        %v1245 = vadd.f32 %v606, %v1244
        %v1246 = vpop.f32.mrf.mxu0
        %v1247 = vadd.f32 %v606, %v1246
        %1248 = vmatmul.bf16.gmra.mxu0 %v533
        %v1249 = vpop.f32.mrf.mxu0
        %v1250 = vadd.f32 %v606, %v1249
        %v1251 = vpop.f32.mrf.mxu0
        %v1252 = vadd.f32 %v606, %v1251
        %1253 = vmatmul.bf16.gmra.mxu0 %v534
        %v1254 = vpop.f32.mrf.mxu0
        %v1255 = vadd.f32 %v606, %v1254
        %v1256 = vpop.f32.mrf.mxu0
        %v1257 = vadd.f32 %v606, %v1256
        %1258 = vmatmul.bf16.gmra.mxu0 %v535
        %v1259 = vpop.f32.mrf.mxu0
        %v1260 = vadd.f32 %v606, %v1259
        %v1261 = vpop.f32.mrf.mxu0
        %v1262 = vadd.f32 %v606, %v1261
        %1263 = vmatmul.bf16.gmra.mxu0 %v536
        %v1264 = vpop.f32.mrf.mxu0
        %v1265 = vadd.f32 %v606, %v1264
        %v1266 = vpop.f32.mrf.mxu0
        %v1267 = vadd.f32 %v606, %v1266
        %1268 = vmatmul.bf16.gmra.mxu0 %v537
        %v1269 = vpop.f32.mrf.mxu0
        %v1270 = vadd.f32 %v606, %v1269
        %v1271 = vpop.f32.mrf.mxu0
        %v1272 = vadd.f32 %v606, %v1271
        %1273 = vmatmul.bf16.gmra.mxu0 %v538
        %v1274 = vpop.f32.mrf.mxu0
        %v1275 = vadd.f32 %v606, %v1274
        %v1276 = vpop.f32.mrf.mxu0
        %v1277 = vadd.f32 %v606, %v1276
        %1278 = vdwg.mxu0
        %1279 = vmatpush.bf16.msra.mxu0 %v871
        %1280 = vmatpush.bf16.msra.mxu0 %v863
        %1281 = vmatpush.bf16.msra.mxu0 %v855
        %1282 = vmatpush.bf16.msra.mxu0 %v847
        %1283 = vmatpush.bf16.msra.mxu0 %v839
        %1284 = vmatpush.bf16.msra.mxu0 %v831
        %1285 = vmatpush.bf16.msra.mxu0 %v823
        %1286 = vmatpush.bf16.msra.mxu0 %v815
        %1287 = vmatmul.bf16.gmra.mxu0 %v507
        %v1288 = vpop.f32.mrf.mxu0
        %v1289 = vadd.f32 %v607, %v1288
        %v1290 = vpop.f32.mrf.mxu0
        %v1291 = vadd.f32 %v607, %v1290
        %1292 = vmatmul.bf16.gmra.mxu0 %v508
        %v1293 = vpop.f32.mrf.mxu0
        %v1294 = vadd.f32 %v607, %v1293
        %v1295 = vpop.f32.mrf.mxu0
        %v1296 = vadd.f32 %v607, %v1295
        %1297 = vmatmul.bf16.gmra.mxu0 %v509
        %v1298 = vpop.f32.mrf.mxu0
        %v1299 = vadd.f32 %v607, %v1298
        %v1300 = vpop.f32.mrf.mxu0
        %v1301 = vadd.f32 %v607, %v1300
        %1302 = vmatmul.bf16.gmra.mxu0 %v510
        %v1303 = vpop.f32.mrf.mxu0
        %v1304 = vadd.f32 %v607, %v1303
        %v1305 = vpop.f32.mrf.mxu0
        %v1306 = vadd.f32 %v607, %v1305
        %1307 = vmatmul.bf16.gmra.mxu0 %v511
        %v1308 = vpop.f32.mrf.mxu0
        %v1309 = vadd.f32 %v607, %v1308
        %v1310 = vpop.f32.mrf.mxu0
        %v1311 = vadd.f32 %v607, %v1310
        %1312 = vmatmul.bf16.gmra.mxu0 %v512
        %v1313 = vpop.f32.mrf.mxu0
        %v1314 = vadd.f32 %v607, %v1313
        %v1315 = vpop.f32.mrf.mxu0
        %v1316 = vadd.f32 %v607, %v1315
        %1317 = vmatmul.bf16.gmra.mxu0 %v513
        %v1318 = vpop.f32.mrf.mxu0
        %v1319 = vadd.f32 %v607, %v1318
        %v1320 = vpop.f32.mrf.mxu0
        %v1321 = vadd.f32 %v607, %v1320
        %1322 = vmatmul.bf16.gmra.mxu0 %v514
        %v1323 = vpop.f32.mrf.mxu0
        %v1324 = vadd.f32 %v607, %v1323
        %v1325 = vpop.f32.mrf.mxu0
        %v1326 = vadd.f32 %v607, %v1325
        %1327 = vmatmul.bf16.gmra.mxu0 %v515
        %v1328 = vpop.f32.mrf.mxu0
        %v1329 = vadd.f32 %v607, %v1328
        %v1330 = vpop.f32.mrf.mxu0
        %v1331 = vadd.f32 %v607, %v1330
        %1332 = vmatmul.bf16.gmra.mxu0 %v516
        %v1333 = vpop.f32.mrf.mxu0
        %v1334 = vadd.f32 %v607, %v1333
        %v1335 = vpop.f32.mrf.mxu0
        %v1336 = vadd.f32 %v607, %v1335
        %1337 = vmatmul.bf16.gmra.mxu0 %v517
        %v1338 = vpop.f32.mrf.mxu0
        %v1339 = vadd.f32 %v607, %v1338
        %v1340 = vpop.f32.mrf.mxu0
        %v1341 = vadd.f32 %v607, %v1340
        %1342 = vmatmul.bf16.gmra.mxu0 %v518
        %v1343 = vpop.f32.mrf.mxu0
        %v1344 = vadd.f32 %v607, %v1343
        %v1345 = vpop.f32.mrf.mxu0
        %v1346 = vadd.f32 %v607, %v1345
        %1347 = vmatmul.bf16.gmra.mxu0 %v519
        %v1348 = vpop.f32.mrf.mxu0
        %v1349 = vadd.f32 %v607, %v1348
        %v1350 = vpop.f32.mrf.mxu0
        %v1351 = vadd.f32 %v607, %v1350
        %1352 = vmatmul.bf16.gmra.mxu0 %v520
        %v1353 = vpop.f32.mrf.mxu0
        %v1354 = vadd.f32 %v607, %v1353
        %v1355 = vpop.f32.mrf.mxu0
        %v1356 = vadd.f32 %v607, %v1355
        %1357 = vmatmul.bf16.gmra.mxu0 %v521
        %v1358 = vpop.f32.mrf.mxu0
        %v1359 = vadd.f32 %v607, %v1358
        %v1360 = vpop.f32.mrf.mxu0
        %v1361 = vadd.f32 %v607, %v1360
        %1362 = vmatmul.bf16.gmra.mxu0 %v522
        %v1363 = vpop.f32.mrf.mxu0
        %v1364 = vadd.f32 %v607, %v1363
        %v1365 = vpop.f32.mrf.mxu0
        %v1366 = vadd.f32 %v607, %v1365
        %1367 = vmatmul.bf16.gmra.mxu0 %v523
        %v1368 = vpop.f32.mrf.mxu0
        %v1369 = vadd.f32 %v607, %v1368
        %v1370 = vpop.f32.mrf.mxu0
        %v1371 = vadd.f32 %v607, %v1370
        %1372 = vmatmul.bf16.gmra.mxu0 %v524
        %v1373 = vpop.f32.mrf.mxu0
        %v1374 = vadd.f32 %v607, %v1373
        %v1375 = vpop.f32.mrf.mxu0
        %v1376 = vadd.f32 %v607, %v1375
        %1377 = vmatmul.bf16.gmra.mxu0 %v525
        %v1378 = vpop.f32.mrf.mxu0
        %v1379 = vadd.f32 %v607, %v1378
        %v1380 = vpop.f32.mrf.mxu0
        %v1381 = vadd.f32 %v607, %v1380
        %1382 = vmatmul.bf16.gmra.mxu0 %v526
        %v1383 = vpop.f32.mrf.mxu0
        %v1384 = vadd.f32 %v607, %v1383
        %v1385 = vpop.f32.mrf.mxu0
        %v1386 = vadd.f32 %v607, %v1385
        %1387 = vmatmul.bf16.gmra.mxu0 %v527
        %v1388 = vpop.f32.mrf.mxu0
        %v1389 = vadd.f32 %v607, %v1388
        %v1390 = vpop.f32.mrf.mxu0
        %v1391 = vadd.f32 %v607, %v1390
        %1392 = vmatmul.bf16.gmra.mxu0 %v528
        %v1393 = vpop.f32.mrf.mxu0
        %v1394 = vadd.f32 %v607, %v1393
        %v1395 = vpop.f32.mrf.mxu0
        %v1396 = vadd.f32 %v607, %v1395
        %1397 = vmatmul.bf16.gmra.mxu0 %v529
        %v1398 = vpop.f32.mrf.mxu0
        %v1399 = vadd.f32 %v607, %v1398
        %v1400 = vpop.f32.mrf.mxu0
        %v1401 = vadd.f32 %v607, %v1400
        %1402 = vmatmul.bf16.gmra.mxu0 %v530
        %v1403 = vpop.f32.mrf.mxu0
        %v1404 = vadd.f32 %v607, %v1403
        %v1405 = vpop.f32.mrf.mxu0
        %v1406 = vadd.f32 %v607, %v1405
        %1407 = vmatmul.bf16.gmra.mxu0 %v531
        %v1408 = vpop.f32.mrf.mxu0
        %v1409 = vadd.f32 %v607, %v1408
        %v1410 = vpop.f32.mrf.mxu0
        %v1411 = vadd.f32 %v607, %v1410
        %1412 = vmatmul.bf16.gmra.mxu0 %v532
        %v1413 = vpop.f32.mrf.mxu0
        %v1414 = vadd.f32 %v607, %v1413
        %v1415 = vpop.f32.mrf.mxu0
        %v1416 = vadd.f32 %v607, %v1415
        %1417 = vmatmul.bf16.gmra.mxu0 %v533
        %v1418 = vpop.f32.mrf.mxu0
        %v1419 = vadd.f32 %v607, %v1418
        %v1420 = vpop.f32.mrf.mxu0
        %v1421 = vadd.f32 %v607, %v1420
        %1422 = vmatmul.bf16.gmra.mxu0 %v534
        %v1423 = vpop.f32.mrf.mxu0
        %v1424 = vadd.f32 %v607, %v1423
        %v1425 = vpop.f32.mrf.mxu0
        %v1426 = vadd.f32 %v607, %v1425
        %1427 = vmatmul.bf16.gmra.mxu0 %v535
        %v1428 = vpop.f32.mrf.mxu0
        %v1429 = vadd.f32 %v607, %v1428
        %v1430 = vpop.f32.mrf.mxu0
        %v1431 = vadd.f32 %v607, %v1430
        %1432 = vmatmul.bf16.gmra.mxu0 %v536
        %v1433 = vpop.f32.mrf.mxu0
        %v1434 = vadd.f32 %v607, %v1433
        %v1435 = vpop.f32.mrf.mxu0
        %v1436 = vadd.f32 %v607, %v1435
        %1437 = vmatmul.bf16.gmra.mxu0 %v537
        %v1438 = vpop.f32.mrf.mxu0
        %v1439 = vadd.f32 %v607, %v1438
        %v1440 = vpop.f32.mrf.mxu0
        %v1441 = vadd.f32 %v607, %v1440
        %1442 = vmatmul.bf16.gmra.mxu0 %v538
        %v1443 = vpop.f32.mrf.mxu0
        %v1444 = vadd.f32 %v607, %v1443
        %v1445 = vpop.f32.mrf.mxu0
        %v1446 = vadd.f32 %v607, %v1445
        %1447 = vdwg.mxu0
        %1448 = vmatpush.bf16.msra.mxu0 %v872
        %1449 = vmatpush.bf16.msra.mxu0 %v864
        %1450 = vmatpush.bf16.msra.mxu0 %v856
        %1451 = vmatpush.bf16.msra.mxu0 %v848
        %1452 = vmatpush.bf16.msra.mxu0 %v840
        %1453 = vmatpush.bf16.msra.mxu0 %v832
        %1454 = vmatpush.bf16.msra.mxu0 %v824
        %1455 = vmatpush.bf16.msra.mxu0 %v816
        %1456 = vmatmul.bf16.gmra.mxu0 %v507
        %v1457 = vpop.f32.mrf.mxu0
        %v1458 = vadd.f32 %v608, %v1457
        %v1459 = vpop.f32.mrf.mxu0
        %v1460 = vadd.f32 %v608, %v1459
        %1461 = vmatmul.bf16.gmra.mxu0 %v508
        %v1462 = vpop.f32.mrf.mxu0
        %v1463 = vadd.f32 %v608, %v1462
        %v1464 = vpop.f32.mrf.mxu0
        %v1465 = vadd.f32 %v608, %v1464
        %1466 = vmatmul.bf16.gmra.mxu0 %v509
        %v1467 = vpop.f32.mrf.mxu0
        %v1468 = vadd.f32 %v608, %v1467
        %v1469 = vpop.f32.mrf.mxu0
        %v1470 = vadd.f32 %v608, %v1469
        %1471 = vmatmul.bf16.gmra.mxu0 %v510
        %v1472 = vpop.f32.mrf.mxu0
        %v1473 = vadd.f32 %v608, %v1472
        %v1474 = vpop.f32.mrf.mxu0
        %v1475 = vadd.f32 %v608, %v1474
        %1476 = vmatmul.bf16.gmra.mxu0 %v511
        %v1477 = vpop.f32.mrf.mxu0
        %v1478 = vadd.f32 %v608, %v1477
        %v1479 = vpop.f32.mrf.mxu0
        %v1480 = vadd.f32 %v608, %v1479
        %1481 = vmatmul.bf16.gmra.mxu0 %v512
        %v1482 = vpop.f32.mrf.mxu0
        %v1483 = vadd.f32 %v608, %v1482
        %v1484 = vpop.f32.mrf.mxu0
        %v1485 = vadd.f32 %v608, %v1484
        %1486 = vmatmul.bf16.gmra.mxu0 %v513
        %v1487 = vpop.f32.mrf.mxu0
        %v1488 = vadd.f32 %v608, %v1487
        %v1489 = vpop.f32.mrf.mxu0
        %v1490 = vadd.f32 %v608, %v1489
        %1491 = vmatmul.bf16.gmra.mxu0 %v514
        %v1492 = vpop.f32.mrf.mxu0
        %v1493 = vadd.f32 %v608, %v1492
        %v1494 = vpop.f32.mrf.mxu0
        %v1495 = vadd.f32 %v608, %v1494
        %1496 = vmatmul.bf16.gmra.mxu0 %v515
        %v1497 = vpop.f32.mrf.mxu0
        %v1498 = vadd.f32 %v608, %v1497
        %v1499 = vpop.f32.mrf.mxu0
        %v1500 = vadd.f32 %v608, %v1499
        %1501 = vmatmul.bf16.gmra.mxu0 %v516
        %v1502 = vpop.f32.mrf.mxu0
        %v1503 = vadd.f32 %v608, %v1502
        %v1504 = vpop.f32.mrf.mxu0
        %v1505 = vadd.f32 %v608, %v1504
        %1506 = vmatmul.bf16.gmra.mxu0 %v517
        %v1507 = vpop.f32.mrf.mxu0
        %v1508 = vadd.f32 %v608, %v1507
        %v1509 = vpop.f32.mrf.mxu0
        %v1510 = vadd.f32 %v608, %v1509
        %1511 = vmatmul.bf16.gmra.mxu0 %v518
        %v1512 = vpop.f32.mrf.mxu0
        %v1513 = vadd.f32 %v608, %v1512
        %v1514 = vpop.f32.mrf.mxu0
        %v1515 = vadd.f32 %v608, %v1514
        %1516 = vmatmul.bf16.gmra.mxu0 %v519
        %v1517 = vpop.f32.mrf.mxu0
        %v1518 = vadd.f32 %v608, %v1517
        %v1519 = vpop.f32.mrf.mxu0
        %v1520 = vadd.f32 %v608, %v1519
        %1521 = vmatmul.bf16.gmra.mxu0 %v520
        %v1522 = vpop.f32.mrf.mxu0
        %v1523 = vadd.f32 %v608, %v1522
        %v1524 = vpop.f32.mrf.mxu0
        %v1525 = vadd.f32 %v608, %v1524
        %1526 = vmatmul.bf16.gmra.mxu0 %v521
        %v1527 = vpop.f32.mrf.mxu0
        %v1528 = vadd.f32 %v608, %v1527
        %v1529 = vpop.f32.mrf.mxu0
        %v1530 = vadd.f32 %v608, %v1529
        %1531 = vmatmul.bf16.gmra.mxu0 %v522
        %v1532 = vpop.f32.mrf.mxu0
        %v1533 = vadd.f32 %v608, %v1532
        %v1534 = vpop.f32.mrf.mxu0
        %v1535 = vadd.f32 %v608, %v1534
        %1536 = vmatmul.bf16.gmra.mxu0 %v523
        %v1537 = vpop.f32.mrf.mxu0
        %v1538 = vadd.f32 %v608, %v1537
        %v1539 = vpop.f32.mrf.mxu0
        %v1540 = vadd.f32 %v608, %v1539
        %1541 = vmatmul.bf16.gmra.mxu0 %v524
        %v1542 = vpop.f32.mrf.mxu0
        %v1543 = vadd.f32 %v608, %v1542
        %v1544 = vpop.f32.mrf.mxu0
        %v1545 = vadd.f32 %v608, %v1544
        %1546 = vmatmul.bf16.gmra.mxu0 %v525
        %v1547 = vpop.f32.mrf.mxu0
        %v1548 = vadd.f32 %v608, %v1547
        %v1549 = vpop.f32.mrf.mxu0
        %v1550 = vadd.f32 %v608, %v1549
        %1551 = vmatmul.bf16.gmra.mxu0 %v526
        %v1552 = vpop.f32.mrf.mxu0
        %v1553 = vadd.f32 %v608, %v1552
        %v1554 = vpop.f32.mrf.mxu0
        %v1555 = vadd.f32 %v608, %v1554
        %1556 = vmatmul.bf16.gmra.mxu0 %v527
        %v1557 = vpop.f32.mrf.mxu0
        %v1558 = vadd.f32 %v608, %v1557
        %v1559 = vpop.f32.mrf.mxu0
        %v1560 = vadd.f32 %v608, %v1559
        %1561 = vmatmul.bf16.gmra.mxu0 %v528
        %v1562 = vpop.f32.mrf.mxu0
        %v1563 = vadd.f32 %v608, %v1562
        %v1564 = vpop.f32.mrf.mxu0
        %v1565 = vadd.f32 %v608, %v1564
        %1566 = vmatmul.bf16.gmra.mxu0 %v529
        %v1567 = vpop.f32.mrf.mxu0
        %v1568 = vadd.f32 %v608, %v1567
        %v1569 = vpop.f32.mrf.mxu0
        %v1570 = vadd.f32 %v608, %v1569
        %1571 = vmatmul.bf16.gmra.mxu0 %v530
        %v1572 = vpop.f32.mrf.mxu0
        %v1573 = vadd.f32 %v608, %v1572
        %v1574 = vpop.f32.mrf.mxu0
        %v1575 = vadd.f32 %v608, %v1574
        %1576 = vmatmul.bf16.gmra.mxu0 %v531
        %v1577 = vpop.f32.mrf.mxu0
        %v1578 = vadd.f32 %v608, %v1577
        %v1579 = vpop.f32.mrf.mxu0
        %v1580 = vadd.f32 %v608, %v1579
        %1581 = vmatmul.bf16.gmra.mxu0 %v532
        %v1582 = vpop.f32.mrf.mxu0
        %v1583 = vadd.f32 %v608, %v1582
        %v1584 = vpop.f32.mrf.mxu0
        %v1585 = vadd.f32 %v608, %v1584
        %1586 = vmatmul.bf16.gmra.mxu0 %v533
        %v1587 = vpop.f32.mrf.mxu0
        %v1588 = vadd.f32 %v608, %v1587
        %v1589 = vpop.f32.mrf.mxu0
        %v1590 = vadd.f32 %v608, %v1589
        %1591 = vmatmul.bf16.gmra.mxu0 %v534
        %v1592 = vpop.f32.mrf.mxu0
        %v1593 = vadd.f32 %v608, %v1592
        %v1594 = vpop.f32.mrf.mxu0
        %v1595 = vadd.f32 %v608, %v1594
        %1596 = vmatmul.bf16.gmra.mxu0 %v535
        %v1597 = vpop.f32.mrf.mxu0
        %v1598 = vadd.f32 %v608, %v1597
        %v1599 = vpop.f32.mrf.mxu0
        %v1600 = vadd.f32 %v608, %v1599
        %1601 = vmatmul.bf16.gmra.mxu0 %v536
        %v1602 = vpop.f32.mrf.mxu0
        %v1603 = vadd.f32 %v608, %v1602
        %v1604 = vpop.f32.mrf.mxu0
        %v1605 = vadd.f32 %v608, %v1604
        %1606 = vmatmul.bf16.gmra.mxu0 %v537
        %v1607 = vpop.f32.mrf.mxu0
        %v1608 = vadd.f32 %v608, %v1607
        %v1609 = vpop.f32.mrf.mxu0
        %v1610 = vadd.f32 %v608, %v1609
        %1611 = vmatmul.bf16.gmra.mxu0 %v538
        %v1612 = vpop.f32.mrf.mxu0
        %v1613 = vadd.f32 %v608, %v1612
        %v1614 = vpop.f32.mrf.mxu0
        %v1615 = vadd.f32 %v608, %v1614
        %1616 = vdwg.mxu0
        %1617 = vmatpush.bf16.msra.mxu0 %v873
        %1618 = vmatpush.bf16.msra.mxu0 %v865
        %1619 = vmatpush.bf16.msra.mxu0 %v857
        %1620 = vmatpush.bf16.msra.mxu0 %v849
        %1621 = vmatpush.bf16.msra.mxu0 %v841
        %1622 = vmatpush.bf16.msra.mxu0 %v833
        %1623 = vmatpush.bf16.msra.mxu0 %v825
        %1624 = vmatpush.bf16.msra.mxu0 %v817
        %1625 = vmatmul.bf16.gmra.mxu0 %v507
        %v1626 = vpop.f32.mrf.mxu0
        %v1627 = vadd.f32 %v609, %v1626
        %v1628 = vpop.f32.mrf.mxu0
        %v1629 = vadd.f32 %v609, %v1628
        %1630 = vmatmul.bf16.gmra.mxu0 %v508
        %v1631 = vpop.f32.mrf.mxu0
        %v1632 = vadd.f32 %v609, %v1631
        %v1633 = vpop.f32.mrf.mxu0
        %v1634 = vadd.f32 %v609, %v1633
        %1635 = vmatmul.bf16.gmra.mxu0 %v509
        %v1636 = vpop.f32.mrf.mxu0
        %v1637 = vadd.f32 %v609, %v1636
        %v1638 = vpop.f32.mrf.mxu0
        %v1639 = vadd.f32 %v609, %v1638
        %1640 = vmatmul.bf16.gmra.mxu0 %v510
        %v1641 = vpop.f32.mrf.mxu0
        %v1642 = vadd.f32 %v609, %v1641
        %v1643 = vpop.f32.mrf.mxu0
        %v1644 = vadd.f32 %v609, %v1643
        %1645 = vmatmul.bf16.gmra.mxu0 %v511
        %v1646 = vpop.f32.mrf.mxu0
        %v1647 = vadd.f32 %v609, %v1646
        %v1648 = vpop.f32.mrf.mxu0
        %v1649 = vadd.f32 %v609, %v1648
        %1650 = vmatmul.bf16.gmra.mxu0 %v512
        %v1651 = vpop.f32.mrf.mxu0
        %v1652 = vadd.f32 %v609, %v1651
        %v1653 = vpop.f32.mrf.mxu0
        %v1654 = vadd.f32 %v609, %v1653
        %1655 = vmatmul.bf16.gmra.mxu0 %v513
        %v1656 = vpop.f32.mrf.mxu0
        %v1657 = vadd.f32 %v609, %v1656
        %v1658 = vpop.f32.mrf.mxu0
        %v1659 = vadd.f32 %v609, %v1658
        %1660 = vmatmul.bf16.gmra.mxu0 %v514
        %v1661 = vpop.f32.mrf.mxu0
        %v1662 = vadd.f32 %v609, %v1661
        %v1663 = vpop.f32.mrf.mxu0
        %v1664 = vadd.f32 %v609, %v1663
        %1665 = vmatmul.bf16.gmra.mxu0 %v515
        %v1666 = vpop.f32.mrf.mxu0
        %v1667 = vadd.f32 %v609, %v1666
        %v1668 = vpop.f32.mrf.mxu0
        %v1669 = vadd.f32 %v609, %v1668
        %1670 = vmatmul.bf16.gmra.mxu0 %v516
        %v1671 = vpop.f32.mrf.mxu0
        %v1672 = vadd.f32 %v609, %v1671
        %v1673 = vpop.f32.mrf.mxu0
        %v1674 = vadd.f32 %v609, %v1673
        %1675 = vmatmul.bf16.gmra.mxu0 %v517
        %v1676 = vpop.f32.mrf.mxu0
        %v1677 = vadd.f32 %v609, %v1676
        %v1678 = vpop.f32.mrf.mxu0
        %v1679 = vadd.f32 %v609, %v1678
        %1680 = vmatmul.bf16.gmra.mxu0 %v518
        %v1681 = vpop.f32.mrf.mxu0
        %v1682 = vadd.f32 %v609, %v1681
        %v1683 = vpop.f32.mrf.mxu0
        %v1684 = vadd.f32 %v609, %v1683
        %1685 = vmatmul.bf16.gmra.mxu0 %v519
        %v1686 = vpop.f32.mrf.mxu0
        %v1687 = vadd.f32 %v609, %v1686
        %v1688 = vpop.f32.mrf.mxu0
        %v1689 = vadd.f32 %v609, %v1688
        %1690 = vmatmul.bf16.gmra.mxu0 %v520
        %v1691 = vpop.f32.mrf.mxu0
        %v1692 = vadd.f32 %v609, %v1691
        %v1693 = vpop.f32.mrf.mxu0
        %v1694 = vadd.f32 %v609, %v1693
        %1695 = vmatmul.bf16.gmra.mxu0 %v521
        %v1696 = vpop.f32.mrf.mxu0
        %v1697 = vadd.f32 %v609, %v1696
        %v1698 = vpop.f32.mrf.mxu0
        %v1699 = vadd.f32 %v609, %v1698
        %1700 = vmatmul.bf16.gmra.mxu0 %v522
        %v1701 = vpop.f32.mrf.mxu0
        %v1702 = vadd.f32 %v609, %v1701
        %v1703 = vpop.f32.mrf.mxu0
        %v1704 = vadd.f32 %v609, %v1703
        %1705 = vmatmul.bf16.gmra.mxu0 %v523
        %v1706 = vpop.f32.mrf.mxu0
        %v1707 = vadd.f32 %v609, %v1706
        %v1708 = vpop.f32.mrf.mxu0
        %v1709 = vadd.f32 %v609, %v1708
        %1710 = vmatmul.bf16.gmra.mxu0 %v524
        %v1711 = vpop.f32.mrf.mxu0
        %v1712 = vadd.f32 %v609, %v1711
        %v1713 = vpop.f32.mrf.mxu0
        %v1714 = vadd.f32 %v609, %v1713
        %1715 = vmatmul.bf16.gmra.mxu0 %v525
        %v1716 = vpop.f32.mrf.mxu0
        %v1717 = vadd.f32 %v609, %v1716
        %v1718 = vpop.f32.mrf.mxu0
        %v1719 = vadd.f32 %v609, %v1718
        %1720 = vmatmul.bf16.gmra.mxu0 %v526
        %v1721 = vpop.f32.mrf.mxu0
        %v1722 = vadd.f32 %v609, %v1721
        %v1723 = vpop.f32.mrf.mxu0
        %v1724 = vadd.f32 %v609, %v1723
        %1725 = vmatmul.bf16.gmra.mxu0 %v527
        %v1726 = vpop.f32.mrf.mxu0
        %v1727 = vadd.f32 %v609, %v1726
        %v1728 = vpop.f32.mrf.mxu0
        %v1729 = vadd.f32 %v609, %v1728
        %1730 = vmatmul.bf16.gmra.mxu0 %v528
        %v1731 = vpop.f32.mrf.mxu0
        %v1732 = vadd.f32 %v609, %v1731
        %v1733 = vpop.f32.mrf.mxu0
        %v1734 = vadd.f32 %v609, %v1733
        %1735 = vmatmul.bf16.gmra.mxu0 %v529
        %v1736 = vpop.f32.mrf.mxu0
        %v1737 = vadd.f32 %v609, %v1736
        %v1738 = vpop.f32.mrf.mxu0
        %v1739 = vadd.f32 %v609, %v1738
        %1740 = vmatmul.bf16.gmra.mxu0 %v530
        %v1741 = vpop.f32.mrf.mxu0
        %v1742 = vadd.f32 %v609, %v1741
        %v1743 = vpop.f32.mrf.mxu0
        %v1744 = vadd.f32 %v609, %v1743
        %1745 = vmatmul.bf16.gmra.mxu0 %v531
        %v1746 = vpop.f32.mrf.mxu0
        %v1747 = vadd.f32 %v609, %v1746
        %v1748 = vpop.f32.mrf.mxu0
        %v1749 = vadd.f32 %v609, %v1748
        %1750 = vmatmul.bf16.gmra.mxu0 %v532
        %v1751 = vpop.f32.mrf.mxu0
        %v1752 = vadd.f32 %v609, %v1751
        %v1753 = vpop.f32.mrf.mxu0
        %v1754 = vadd.f32 %v609, %v1753
        %1755 = vmatmul.bf16.gmra.mxu0 %v533
        %v1756 = vpop.f32.mrf.mxu0
        %v1757 = vadd.f32 %v609, %v1756
        %v1758 = vpop.f32.mrf.mxu0
        %v1759 = vadd.f32 %v609, %v1758
        %1760 = vmatmul.bf16.gmra.mxu0 %v534
        %v1761 = vpop.f32.mrf.mxu0
        %v1762 = vadd.f32 %v609, %v1761
        %v1763 = vpop.f32.mrf.mxu0
        %v1764 = vadd.f32 %v609, %v1763
        %1765 = vmatmul.bf16.gmra.mxu0 %v535
        %v1766 = vpop.f32.mrf.mxu0
        %v1767 = vadd.f32 %v609, %v1766
        %v1768 = vpop.f32.mrf.mxu0
        %v1769 = vadd.f32 %v609, %v1768
        %1770 = vmatmul.bf16.gmra.mxu0 %v536
        %v1771 = vpop.f32.mrf.mxu0
        %v1772 = vadd.f32 %v609, %v1771
        %v1773 = vpop.f32.mrf.mxu0
        %v1774 = vadd.f32 %v609, %v1773
        %1775 = vmatmul.bf16.gmra.mxu0 %v537
        %v1776 = vpop.f32.mrf.mxu0
        %v1777 = vadd.f32 %v609, %v1776
        %v1778 = vpop.f32.mrf.mxu0
        %v1779 = vadd.f32 %v609, %v1778
        %1780 = vmatmul.bf16.gmra.mxu0 %v538
        %v1781 = vpop.f32.mrf.mxu0
        %v1782 = vadd.f32 %v609, %v1781
        %v1783 = vpop.f32.mrf.mxu0
        %v1784 = vadd.f32 %v609, %v1783
        %1785 = vdwg.mxu0
        %1786 = vmatpush.bf16.msra.mxu0 %v874
        %1787 = vmatpush.bf16.msra.mxu0 %v866
        %1788 = vmatpush.bf16.msra.mxu0 %v858
        %1789 = vmatpush.bf16.msra.mxu0 %v850
        %1790 = vmatpush.bf16.msra.mxu0 %v842
        %1791 = vmatpush.bf16.msra.mxu0 %v834
        %1792 = vmatpush.bf16.msra.mxu0 %v826
        %1793 = vmatpush.bf16.msra.mxu0 %v818
        %1794 = vmatmul.bf16.gmra.mxu0 %v507
        %v1795 = vpop.f32.mrf.mxu0
        %v1796 = vadd.f32 %v610, %v1795
        %v1797 = vpop.f32.mrf.mxu0
        %v1798 = vadd.f32 %v610, %v1797
        %1799 = vmatmul.bf16.gmra.mxu0 %v508
        %v1800 = vpop.f32.mrf.mxu0
        %v1801 = vadd.f32 %v610, %v1800
        %v1802 = vpop.f32.mrf.mxu0
        %v1803 = vadd.f32 %v610, %v1802
        %1804 = vmatmul.bf16.gmra.mxu0 %v509
        %v1805 = vpop.f32.mrf.mxu0
        %v1806 = vadd.f32 %v610, %v1805
        %v1807 = vpop.f32.mrf.mxu0
        %v1808 = vadd.f32 %v610, %v1807
        %1809 = vmatmul.bf16.gmra.mxu0 %v510
        %v1810 = vpop.f32.mrf.mxu0
        %v1811 = vadd.f32 %v610, %v1810
        %v1812 = vpop.f32.mrf.mxu0
        %v1813 = vadd.f32 %v610, %v1812
        %1814 = vmatmul.bf16.gmra.mxu0 %v511
        %v1815 = vpop.f32.mrf.mxu0
        %v1816 = vadd.f32 %v610, %v1815
        %v1817 = vpop.f32.mrf.mxu0
        %v1818 = vadd.f32 %v610, %v1817
        %1819 = vmatmul.bf16.gmra.mxu0 %v512
        %v1820 = vpop.f32.mrf.mxu0
        %v1821 = vadd.f32 %v610, %v1820
        %v1822 = vpop.f32.mrf.mxu0
        %v1823 = vadd.f32 %v610, %v1822
        %1824 = vmatmul.bf16.gmra.mxu0 %v513
        %v1825 = vpop.f32.mrf.mxu0
        %v1826 = vadd.f32 %v610, %v1825
        %v1827 = vpop.f32.mrf.mxu0
        %v1828 = vadd.f32 %v610, %v1827
        %1829 = vmatmul.bf16.gmra.mxu0 %v514
        %v1830 = vpop.f32.mrf.mxu0
        %v1831 = vadd.f32 %v610, %v1830
        %v1832 = vpop.f32.mrf.mxu0
        %v1833 = vadd.f32 %v610, %v1832
        %1834 = vmatmul.bf16.gmra.mxu0 %v515
        %v1835 = vpop.f32.mrf.mxu0
        %v1836 = vadd.f32 %v610, %v1835
        %v1837 = vpop.f32.mrf.mxu0
        %v1838 = vadd.f32 %v610, %v1837
        %1839 = vmatmul.bf16.gmra.mxu0 %v516
        %v1840 = vpop.f32.mrf.mxu0
        %v1841 = vadd.f32 %v610, %v1840
        %v1842 = vpop.f32.mrf.mxu0
        %v1843 = vadd.f32 %v610, %v1842
        %1844 = vmatmul.bf16.gmra.mxu0 %v517
        %v1845 = vpop.f32.mrf.mxu0
        %v1846 = vadd.f32 %v610, %v1845
        %v1847 = vpop.f32.mrf.mxu0
        %v1848 = vadd.f32 %v610, %v1847
        %1849 = vmatmul.bf16.gmra.mxu0 %v518
        %v1850 = vpop.f32.mrf.mxu0
        %v1851 = vadd.f32 %v610, %v1850
        %v1852 = vpop.f32.mrf.mxu0
        %v1853 = vadd.f32 %v610, %v1852
        %1854 = vmatmul.bf16.gmra.mxu0 %v519
        %v1855 = vpop.f32.mrf.mxu0
        %v1856 = vadd.f32 %v610, %v1855
        %v1857 = vpop.f32.mrf.mxu0
        %v1858 = vadd.f32 %v610, %v1857
        %1859 = vmatmul.bf16.gmra.mxu0 %v520
        %v1860 = vpop.f32.mrf.mxu0
        %v1861 = vadd.f32 %v610, %v1860
        %v1862 = vpop.f32.mrf.mxu0
        %v1863 = vadd.f32 %v610, %v1862
        %1864 = vmatmul.bf16.gmra.mxu0 %v521
        %v1865 = vpop.f32.mrf.mxu0
        %v1866 = vadd.f32 %v610, %v1865
        %v1867 = vpop.f32.mrf.mxu0
        %v1868 = vadd.f32 %v610, %v1867
        %1869 = vmatmul.bf16.gmra.mxu0 %v522
        %v1870 = vpop.f32.mrf.mxu0
        %v1871 = vadd.f32 %v610, %v1870
        %v1872 = vpop.f32.mrf.mxu0
        %v1873 = vadd.f32 %v610, %v1872
        %1874 = vmatmul.bf16.gmra.mxu0 %v523
        %v1875 = vpop.f32.mrf.mxu0
        %v1876 = vadd.f32 %v610, %v1875
        %v1877 = vpop.f32.mrf.mxu0
        %v1878 = vadd.f32 %v610, %v1877
        %1879 = vmatmul.bf16.gmra.mxu0 %v524
        %v1880 = vpop.f32.mrf.mxu0
        %v1881 = vadd.f32 %v610, %v1880
        %v1882 = vpop.f32.mrf.mxu0
        %v1883 = vadd.f32 %v610, %v1882
        %1884 = vmatmul.bf16.gmra.mxu0 %v525
        %v1885 = vpop.f32.mrf.mxu0
        %v1886 = vadd.f32 %v610, %v1885
        %v1887 = vpop.f32.mrf.mxu0
        %v1888 = vadd.f32 %v610, %v1887
        %1889 = vmatmul.bf16.gmra.mxu0 %v526
        %v1890 = vpop.f32.mrf.mxu0
        %v1891 = vadd.f32 %v610, %v1890
        %v1892 = vpop.f32.mrf.mxu0
        %v1893 = vadd.f32 %v610, %v1892
        %1894 = vmatmul.bf16.gmra.mxu0 %v527
        %v1895 = vpop.f32.mrf.mxu0
        %v1896 = vadd.f32 %v610, %v1895
        %v1897 = vpop.f32.mrf.mxu0
        %v1898 = vadd.f32 %v610, %v1897
        %1899 = vmatmul.bf16.gmra.mxu0 %v528
        %v1900 = vpop.f32.mrf.mxu0
        %v1901 = vadd.f32 %v610, %v1900
        %v1902 = vpop.f32.mrf.mxu0
        %v1903 = vadd.f32 %v610, %v1902
        %1904 = vmatmul.bf16.gmra.mxu0 %v529
        %v1905 = vpop.f32.mrf.mxu0
        %v1906 = vadd.f32 %v610, %v1905
        %v1907 = vpop.f32.mrf.mxu0
        %v1908 = vadd.f32 %v610, %v1907
        %1909 = vmatmul.bf16.gmra.mxu0 %v530
        %v1910 = vpop.f32.mrf.mxu0
        %v1911 = vadd.f32 %v610, %v1910
        %v1912 = vpop.f32.mrf.mxu0
        %v1913 = vadd.f32 %v610, %v1912
        %1914 = vmatmul.bf16.gmra.mxu0 %v531
        %v1915 = vpop.f32.mrf.mxu0
        %v1916 = vadd.f32 %v610, %v1915
        %v1917 = vpop.f32.mrf.mxu0
        %v1918 = vadd.f32 %v610, %v1917
        %1919 = vmatmul.bf16.gmra.mxu0 %v532
        %v1920 = vpop.f32.mrf.mxu0
        %v1921 = vadd.f32 %v610, %v1920
        %v1922 = vpop.f32.mrf.mxu0
        %v1923 = vadd.f32 %v610, %v1922
        %1924 = vmatmul.bf16.gmra.mxu0 %v533
        %v1925 = vpop.f32.mrf.mxu0
        %v1926 = vadd.f32 %v610, %v1925
        %v1927 = vpop.f32.mrf.mxu0
        %v1928 = vadd.f32 %v610, %v1927
        %1929 = vmatmul.bf16.gmra.mxu0 %v534
        %v1930 = vpop.f32.mrf.mxu0
        %v1931 = vadd.f32 %v610, %v1930
        %v1932 = vpop.f32.mrf.mxu0
        %v1933 = vadd.f32 %v610, %v1932
        %1934 = vmatmul.bf16.gmra.mxu0 %v535
        %v1935 = vpop.f32.mrf.mxu0
        %v1936 = vadd.f32 %v610, %v1935
        %v1937 = vpop.f32.mrf.mxu0
        %v1938 = vadd.f32 %v610, %v1937
        %1939 = vmatmul.bf16.gmra.mxu0 %v536
        %v1940 = vpop.f32.mrf.mxu0
        %v1941 = vadd.f32 %v610, %v1940
        %v1942 = vpop.f32.mrf.mxu0
        %v1943 = vadd.f32 %v610, %v1942
        %1944 = vmatmul.bf16.gmra.mxu0 %v537
        %v1945 = vpop.f32.mrf.mxu0
        %v1946 = vadd.f32 %v610, %v1945
        %v1947 = vpop.f32.mrf.mxu0
        %v1948 = vadd.f32 %v610, %v1947
        %1949 = vmatmul.bf16.gmra.mxu0 %v538
        %v1950 = vpop.f32.mrf.mxu0
        %v1951 = vadd.f32 %v610, %v1950
        %v1952 = vpop.f32.mrf.mxu0
        %v1953 = vadd.f32 %v610, %v1952
        %1954 = vdwg.mxu0
        %1955 = vmatpush.bf16.msra.mxu0 %v875
        %1956 = vmatpush.bf16.msra.mxu0 %v867
        %1957 = vmatpush.bf16.msra.mxu0 %v859
        %1958 = vmatpush.bf16.msra.mxu0 %v851
        %1959 = vmatpush.bf16.msra.mxu0 %v843
        %1960 = vmatpush.bf16.msra.mxu0 %v835
        %1961 = vmatpush.bf16.msra.mxu0 %v827
        %1962 = vmatpush.bf16.msra.mxu0 %v819
        %1963 = vmatmul.bf16.gmra.mxu0 %v507
        %v1964 = vpop.f32.mrf.mxu0
        %v1965 = vadd.f32 %v611, %v1964
        %v1966 = vpop.f32.mrf.mxu0
        %v1967 = vadd.f32 %v611, %v1966
        %1968 = vmatmul.bf16.gmra.mxu0 %v508
        %v1969 = vpop.f32.mrf.mxu0
        %v1970 = vadd.f32 %v611, %v1969
        %v1971 = vpop.f32.mrf.mxu0
        %v1972 = vadd.f32 %v611, %v1971
        %1973 = vmatmul.bf16.gmra.mxu0 %v509
        %v1974 = vpop.f32.mrf.mxu0
        %v1975 = vadd.f32 %v611, %v1974
        %v1976 = vpop.f32.mrf.mxu0
        %v1977 = vadd.f32 %v611, %v1976
        %1978 = vmatmul.bf16.gmra.mxu0 %v510
        %v1979 = vpop.f32.mrf.mxu0
        %v1980 = vadd.f32 %v611, %v1979
        %v1981 = vpop.f32.mrf.mxu0
        %v1982 = vadd.f32 %v611, %v1981
        %1983 = vmatmul.bf16.gmra.mxu0 %v511
        %v1984 = vpop.f32.mrf.mxu0
        %v1985 = vadd.f32 %v611, %v1984
        %v1986 = vpop.f32.mrf.mxu0
        %v1987 = vadd.f32 %v611, %v1986
        %1988 = vmatmul.bf16.gmra.mxu0 %v512
        %v1989 = vpop.f32.mrf.mxu0
        %v1990 = vadd.f32 %v611, %v1989
        %v1991 = vpop.f32.mrf.mxu0
        %v1992 = vadd.f32 %v611, %v1991
        %1993 = vmatmul.bf16.gmra.mxu0 %v513
        %v1994 = vpop.f32.mrf.mxu0
        %v1995 = vadd.f32 %v611, %v1994
        %v1996 = vpop.f32.mrf.mxu0
        %v1997 = vadd.f32 %v611, %v1996
        %1998 = vmatmul.bf16.gmra.mxu0 %v514
        %v1999 = vpop.f32.mrf.mxu0
        %v2000 = vadd.f32 %v611, %v1999
        %v2001 = vpop.f32.mrf.mxu0
        %v2002 = vadd.f32 %v611, %v2001
        %2003 = vmatmul.bf16.gmra.mxu0 %v515
        %v2004 = vpop.f32.mrf.mxu0
        %v2005 = vadd.f32 %v611, %v2004
        %v2006 = vpop.f32.mrf.mxu0
        %v2007 = vadd.f32 %v611, %v2006
        %2008 = vmatmul.bf16.gmra.mxu0 %v516
        %v2009 = vpop.f32.mrf.mxu0
        %v2010 = vadd.f32 %v611, %v2009
        %v2011 = vpop.f32.mrf.mxu0
        %v2012 = vadd.f32 %v611, %v2011
        %2013 = vmatmul.bf16.gmra.mxu0 %v517
        %v2014 = vpop.f32.mrf.mxu0
        %v2015 = vadd.f32 %v611, %v2014
        %v2016 = vpop.f32.mrf.mxu0
        %v2017 = vadd.f32 %v611, %v2016
        %2018 = vmatmul.bf16.gmra.mxu0 %v518
        %v2019 = vpop.f32.mrf.mxu0
        %v2020 = vadd.f32 %v611, %v2019
        %v2021 = vpop.f32.mrf.mxu0
        %v2022 = vadd.f32 %v611, %v2021
        %2023 = vmatmul.bf16.gmra.mxu0 %v519
        %v2024 = vpop.f32.mrf.mxu0
        %v2025 = vadd.f32 %v611, %v2024
        %v2026 = vpop.f32.mrf.mxu0
        %v2027 = vadd.f32 %v611, %v2026
        %2028 = vmatmul.bf16.gmra.mxu0 %v520
        %v2029 = vpop.f32.mrf.mxu0
        %v2030 = vadd.f32 %v611, %v2029
        %v2031 = vpop.f32.mrf.mxu0
        %v2032 = vadd.f32 %v611, %v2031
        %2033 = vmatmul.bf16.gmra.mxu0 %v521
        %v2034 = vpop.f32.mrf.mxu0
        %v2035 = vadd.f32 %v611, %v2034
        %v2036 = vpop.f32.mrf.mxu0
        %v2037 = vadd.f32 %v611, %v2036
        %2038 = vmatmul.bf16.gmra.mxu0 %v522
        %v2039 = vpop.f32.mrf.mxu0
        %v2040 = vadd.f32 %v611, %v2039
        %v2041 = vpop.f32.mrf.mxu0
        %v2042 = vadd.f32 %v611, %v2041
        %2043 = vmatmul.bf16.gmra.mxu0 %v523
        %v2044 = vpop.f32.mrf.mxu0
        %v2045 = vadd.f32 %v611, %v2044
        %v2046 = vpop.f32.mrf.mxu0
        %v2047 = vadd.f32 %v611, %v2046
        %2048 = vmatmul.bf16.gmra.mxu0 %v524
        %v2049 = vpop.f32.mrf.mxu0
        %v2050 = vadd.f32 %v611, %v2049
        %v2051 = vpop.f32.mrf.mxu0
        %v2052 = vadd.f32 %v611, %v2051
        %2053 = vmatmul.bf16.gmra.mxu0 %v525
        %v2054 = vpop.f32.mrf.mxu0
        %v2055 = vadd.f32 %v611, %v2054
        %v2056 = vpop.f32.mrf.mxu0
        %v2057 = vadd.f32 %v611, %v2056
        %2058 = vmatmul.bf16.gmra.mxu0 %v526
        %v2059 = vpop.f32.mrf.mxu0
        %v2060 = vadd.f32 %v611, %v2059
        %v2061 = vpop.f32.mrf.mxu0
        %v2062 = vadd.f32 %v611, %v2061
        %2063 = vmatmul.bf16.gmra.mxu0 %v527
        %v2064 = vpop.f32.mrf.mxu0
        %v2065 = vadd.f32 %v611, %v2064
        %v2066 = vpop.f32.mrf.mxu0
        %v2067 = vadd.f32 %v611, %v2066
        %2068 = vmatmul.bf16.gmra.mxu0 %v528
        %v2069 = vpop.f32.mrf.mxu0
        %v2070 = vadd.f32 %v611, %v2069
        %v2071 = vpop.f32.mrf.mxu0
        %v2072 = vadd.f32 %v611, %v2071
        %2073 = vmatmul.bf16.gmra.mxu0 %v529
        %v2074 = vpop.f32.mrf.mxu0
        %v2075 = vadd.f32 %v611, %v2074
        %v2076 = vpop.f32.mrf.mxu0
        %v2077 = vadd.f32 %v611, %v2076
        %2078 = vmatmul.bf16.gmra.mxu0 %v530
        %v2079 = vpop.f32.mrf.mxu0
        %v2080 = vadd.f32 %v611, %v2079
        %v2081 = vpop.f32.mrf.mxu0
        %v2082 = vadd.f32 %v611, %v2081
        %2083 = vmatmul.bf16.gmra.mxu0 %v531
        %v2084 = vpop.f32.mrf.mxu0
        %v2085 = vadd.f32 %v611, %v2084
        %v2086 = vpop.f32.mrf.mxu0
        %v2087 = vadd.f32 %v611, %v2086
        %2088 = vmatmul.bf16.gmra.mxu0 %v532
        %v2089 = vpop.f32.mrf.mxu0
        %v2090 = vadd.f32 %v611, %v2089
        %v2091 = vpop.f32.mrf.mxu0
        %v2092 = vadd.f32 %v611, %v2091
        %2093 = vmatmul.bf16.gmra.mxu0 %v533
        %v2094 = vpop.f32.mrf.mxu0
        %v2095 = vadd.f32 %v611, %v2094
        %v2096 = vpop.f32.mrf.mxu0
        %v2097 = vadd.f32 %v611, %v2096
        %2098 = vmatmul.bf16.gmra.mxu0 %v534
        %v2099 = vpop.f32.mrf.mxu0
        %v2100 = vadd.f32 %v611, %v2099
        %v2101 = vpop.f32.mrf.mxu0
        %v2102 = vadd.f32 %v611, %v2101
        %2103 = vmatmul.bf16.gmra.mxu0 %v535
        %v2104 = vpop.f32.mrf.mxu0
        %v2105 = vadd.f32 %v611, %v2104
        %v2106 = vpop.f32.mrf.mxu0
        %v2107 = vadd.f32 %v611, %v2106
        %2108 = vmatmul.bf16.gmra.mxu0 %v536
        %v2109 = vpop.f32.mrf.mxu0
        %v2110 = vadd.f32 %v611, %v2109
        %v2111 = vpop.f32.mrf.mxu0
        %v2112 = vadd.f32 %v611, %v2111
        %2113 = vmatmul.bf16.gmra.mxu0 %v537
        %v2114 = vpop.f32.mrf.mxu0
        %v2115 = vadd.f32 %v611, %v2114
        %v2116 = vpop.f32.mrf.mxu0
        %v2117 = vadd.f32 %v611, %v2116
        %2118 = vmatmul.bf16.gmra.mxu0 %v538
        %v2119 = vpop.f32.mrf.mxu0
        %v2120 = vadd.f32 %v611, %v2119
        %v2121 = vpop.f32.mrf.mxu0
        %v2122 = vadd.f32 %v611, %v2121
        %2123 = vdwg.mxu0
        %2124 = vmatpush.bf16.msra.mxu0 %v876
        %2125 = vmatpush.bf16.msra.mxu0 %v868
        %2126 = vmatpush.bf16.msra.mxu0 %v860
        %2127 = vmatpush.bf16.msra.mxu0 %v852
        %2128 = vmatpush.bf16.msra.mxu0 %v844
        %2129 = vmatpush.bf16.msra.mxu0 %v836
        %2130 = vmatpush.bf16.msra.mxu0 %v828
        %2131 = vmatpush.bf16.msra.mxu0 %v820
        %2132 = vmatmul.bf16.gmra.mxu0 %v507
        %v2133 = vpop.f32.mrf.mxu0
        %v2134 = vadd.f32 %v612, %v2133
        %v2135 = vpop.f32.mrf.mxu0
        %v2136 = vadd.f32 %v612, %v2135
        %2137 = vmatmul.bf16.gmra.mxu0 %v508
        %v2138 = vpop.f32.mrf.mxu0
        %v2139 = vadd.f32 %v612, %v2138
        %v2140 = vpop.f32.mrf.mxu0
        %v2141 = vadd.f32 %v612, %v2140
        %2142 = vmatmul.bf16.gmra.mxu0 %v509
        %v2143 = vpop.f32.mrf.mxu0
        %v2144 = vadd.f32 %v612, %v2143
        %v2145 = vpop.f32.mrf.mxu0
        %v2146 = vadd.f32 %v612, %v2145
        %2147 = vmatmul.bf16.gmra.mxu0 %v510
        %v2148 = vpop.f32.mrf.mxu0
        %v2149 = vadd.f32 %v612, %v2148
        %v2150 = vpop.f32.mrf.mxu0
        %v2151 = vadd.f32 %v612, %v2150
        %2152 = vmatmul.bf16.gmra.mxu0 %v511
        %v2153 = vpop.f32.mrf.mxu0
        %v2154 = vadd.f32 %v612, %v2153
        %v2155 = vpop.f32.mrf.mxu0
        %v2156 = vadd.f32 %v612, %v2155
        %2157 = vmatmul.bf16.gmra.mxu0 %v512
        %v2158 = vpop.f32.mrf.mxu0
        %v2159 = vadd.f32 %v612, %v2158
        %v2160 = vpop.f32.mrf.mxu0
        %v2161 = vadd.f32 %v612, %v2160
        %2162 = vmatmul.bf16.gmra.mxu0 %v513
        %v2163 = vpop.f32.mrf.mxu0
        %v2164 = vadd.f32 %v612, %v2163
        %v2165 = vpop.f32.mrf.mxu0
        %v2166 = vadd.f32 %v612, %v2165
        %2167 = vmatmul.bf16.gmra.mxu0 %v514
        %v2168 = vpop.f32.mrf.mxu0
        %v2169 = vadd.f32 %v612, %v2168
        %v2170 = vpop.f32.mrf.mxu0
        %v2171 = vadd.f32 %v612, %v2170
        %2172 = vmatmul.bf16.gmra.mxu0 %v515
        %v2173 = vpop.f32.mrf.mxu0
        %v2174 = vadd.f32 %v612, %v2173
        %v2175 = vpop.f32.mrf.mxu0
        %v2176 = vadd.f32 %v612, %v2175
        %2177 = vmatmul.bf16.gmra.mxu0 %v516
        %v2178 = vpop.f32.mrf.mxu0
        %v2179 = vadd.f32 %v612, %v2178
        %v2180 = vpop.f32.mrf.mxu0
        %v2181 = vadd.f32 %v612, %v2180
        %2182 = vmatmul.bf16.gmra.mxu0 %v517
        %v2183 = vpop.f32.mrf.mxu0
        %v2184 = vadd.f32 %v612, %v2183
        %v2185 = vpop.f32.mrf.mxu0
        %v2186 = vadd.f32 %v612, %v2185
        %2187 = vmatmul.bf16.gmra.mxu0 %v518
        %v2188 = vpop.f32.mrf.mxu0
        %v2189 = vadd.f32 %v612, %v2188
        %v2190 = vpop.f32.mrf.mxu0
        %v2191 = vadd.f32 %v612, %v2190
        %2192 = vmatmul.bf16.gmra.mxu0 %v519
        %v2193 = vpop.f32.mrf.mxu0
        %v2194 = vadd.f32 %v612, %v2193
        %v2195 = vpop.f32.mrf.mxu0
        %v2196 = vadd.f32 %v612, %v2195
        %2197 = vmatmul.bf16.gmra.mxu0 %v520
        %v2198 = vpop.f32.mrf.mxu0
        %v2199 = vadd.f32 %v612, %v2198
        %v2200 = vpop.f32.mrf.mxu0
        %v2201 = vadd.f32 %v612, %v2200
        %2202 = vmatmul.bf16.gmra.mxu0 %v521
        %v2203 = vpop.f32.mrf.mxu0
        %v2204 = vadd.f32 %v612, %v2203
        %v2205 = vpop.f32.mrf.mxu0
        %v2206 = vadd.f32 %v612, %v2205
        %2207 = vmatmul.bf16.gmra.mxu0 %v522
        %v2208 = vpop.f32.mrf.mxu0
        %v2209 = vadd.f32 %v612, %v2208
        %v2210 = vpop.f32.mrf.mxu0
        %v2211 = vadd.f32 %v612, %v2210
        %2212 = vmatmul.bf16.gmra.mxu0 %v523
        %v2213 = vpop.f32.mrf.mxu0
        %v2214 = vadd.f32 %v612, %v2213
        %v2215 = vpop.f32.mrf.mxu0
        %v2216 = vadd.f32 %v612, %v2215
        %2217 = vmatmul.bf16.gmra.mxu0 %v524
        %v2218 = vpop.f32.mrf.mxu0
        %v2219 = vadd.f32 %v612, %v2218
        %v2220 = vpop.f32.mrf.mxu0
        %v2221 = vadd.f32 %v612, %v2220
        %2222 = vmatmul.bf16.gmra.mxu0 %v525
        %v2223 = vpop.f32.mrf.mxu0
        %v2224 = vadd.f32 %v612, %v2223
        %v2225 = vpop.f32.mrf.mxu0
        %v2226 = vadd.f32 %v612, %v2225
        %2227 = vmatmul.bf16.gmra.mxu0 %v526
        %v2228 = vpop.f32.mrf.mxu0
        %v2229 = vadd.f32 %v612, %v2228
        %v2230 = vpop.f32.mrf.mxu0
        %v2231 = vadd.f32 %v612, %v2230
        %2232 = vmatmul.bf16.gmra.mxu0 %v527
        %v2233 = vpop.f32.mrf.mxu0
        %v2234 = vadd.f32 %v612, %v2233
        %v2235 = vpop.f32.mrf.mxu0
        %v2236 = vadd.f32 %v612, %v2235
        %2237 = vmatmul.bf16.gmra.mxu0 %v528
        %v2238 = vpop.f32.mrf.mxu0
        %v2239 = vadd.f32 %v612, %v2238
        %v2240 = vpop.f32.mrf.mxu0
        %v2241 = vadd.f32 %v612, %v2240
        %2242 = vmatmul.bf16.gmra.mxu0 %v529
        %v2243 = vpop.f32.mrf.mxu0
        %v2244 = vadd.f32 %v612, %v2243
        %v2245 = vpop.f32.mrf.mxu0
        %v2246 = vadd.f32 %v612, %v2245
        %2247 = vmatmul.bf16.gmra.mxu0 %v530
        %v2248 = vpop.f32.mrf.mxu0
        %v2249 = vadd.f32 %v612, %v2248
        %v2250 = vpop.f32.mrf.mxu0
        %v2251 = vadd.f32 %v612, %v2250
        %2252 = vmatmul.bf16.gmra.mxu0 %v531
        %v2253 = vpop.f32.mrf.mxu0
        %v2254 = vadd.f32 %v612, %v2253
        %v2255 = vpop.f32.mrf.mxu0
        %v2256 = vadd.f32 %v612, %v2255
        %2257 = vmatmul.bf16.gmra.mxu0 %v532
        %v2258 = vpop.f32.mrf.mxu0
        %v2259 = vadd.f32 %v612, %v2258
        %v2260 = vpop.f32.mrf.mxu0
        %v2261 = vadd.f32 %v612, %v2260
        %2262 = vmatmul.bf16.gmra.mxu0 %v533
        %v2263 = vpop.f32.mrf.mxu0
        %v2264 = vadd.f32 %v612, %v2263
        %v2265 = vpop.f32.mrf.mxu0
        %v2266 = vadd.f32 %v612, %v2265
        %2267 = vmatmul.bf16.gmra.mxu0 %v534
        %v2268 = vpop.f32.mrf.mxu0
        %v2269 = vadd.f32 %v612, %v2268
        %v2270 = vpop.f32.mrf.mxu0
        %v2271 = vadd.f32 %v612, %v2270
        %2272 = vmatmul.bf16.gmra.mxu0 %v535
        %v2273 = vpop.f32.mrf.mxu0
        %v2274 = vadd.f32 %v612, %v2273
        %v2275 = vpop.f32.mrf.mxu0
        %v2276 = vadd.f32 %v612, %v2275
        %2277 = vmatmul.bf16.gmra.mxu0 %v536
        %v2278 = vpop.f32.mrf.mxu0
        %v2279 = vadd.f32 %v612, %v2278
        %v2280 = vpop.f32.mrf.mxu0
        %v2281 = vadd.f32 %v612, %v2280
        %2282 = vmatmul.bf16.gmra.mxu0 %v537
        %v2283 = vpop.f32.mrf.mxu0
        %v2284 = vadd.f32 %v612, %v2283
        %v2285 = vpop.f32.mrf.mxu0
        %v2286 = vadd.f32 %v612, %v2285
        %2287 = vmatmul.bf16.gmra.mxu0 %v538
        %v2288 = vpop.f32.mrf.mxu0
        %v2289 = vadd.f32 %v612, %v2288
        %v2290 = vpop.f32.mrf.mxu0
        %v2291 = vadd.f32 %v612, %v2290
        %2292 = vdwg.mxu0
        %v2293 = vmul.f32 %v951, 0.01
        %v2294 = vmul.f32 %v1120, 0.01
        %v2295 = vmul.f32 %v1289, 0.01
        %v2296 = vmul.f32 %v1458, 0.01
        %v2297 = vmul.f32 %v1627, 0.01
        %v2298 = vmul.f32 %v1796, 0.01
        %v2299 = vmul.f32 %v1965, 0.01
        %v2300 = vmul.f32 %v2134, 0.01
        %v2301 = vmul.f32 %v953, 0.01
        %v2302 = vmul.f32 %v1122, 0.01
        %v2303 = vmul.f32 %v1291, 0.01
        %v2304 = vmul.f32 %v1460, 0.01
        %v2305 = vmul.f32 %v1629, 0.01
        %v2306 = vmul.f32 %v1798, 0.01
        %v2307 = vmul.f32 %v1967, 0.01
        %v2308 = vmul.f32 %v2136, 0.01
        %v2309 = vmul.f32 %v956, 0.01
        %v2310 = vmul.f32 %v1125, 0.01
        %v2311 = vmul.f32 %v1294, 0.01
        %v2312 = vmul.f32 %v1463, 0.01
        %v2313 = vmul.f32 %v1632, 0.01
        %v2314 = vmul.f32 %v1801, 0.01
        %v2315 = vmul.f32 %v1970, 0.01
        %v2316 = vmul.f32 %v2139, 0.01
        %v2317 = vmul.f32 %v958, 0.01
        %v2318 = vmul.f32 %v1127, 0.01
        %v2319 = vmul.f32 %v1296, 0.01
        %v2320 = vmul.f32 %v1465, 0.01
        %v2321 = vmul.f32 %v1634, 0.01
        %v2322 = vmul.f32 %v1803, 0.01
        %v2323 = vmul.f32 %v1972, 0.01
        %v2324 = vmul.f32 %v2141, 0.01
        %v2325 = vmul.f32 %v961, 0.01
        %v2326 = vmul.f32 %v1130, 0.01
        %v2327 = vmul.f32 %v1299, 0.01
        %v2328 = vmul.f32 %v1468, 0.01
        %v2329 = vmul.f32 %v1637, 0.01
        %v2330 = vmul.f32 %v1806, 0.01
        %v2331 = vmul.f32 %v1975, 0.01
        %v2332 = vmul.f32 %v2144, 0.01
        %v2333 = vmul.f32 %v963, 0.01
        %v2334 = vmul.f32 %v1132, 0.01
        %v2335 = vmul.f32 %v1301, 0.01
        %v2336 = vmul.f32 %v1470, 0.01
        %v2337 = vmul.f32 %v1639, 0.01
        %v2338 = vmul.f32 %v1808, 0.01
        %v2339 = vmul.f32 %v1977, 0.01
        %v2340 = vmul.f32 %v2146, 0.01
        %v2341 = vmul.f32 %v966, 0.01
        %v2342 = vmul.f32 %v1135, 0.01
        %v2343 = vmul.f32 %v1304, 0.01
        %v2344 = vmul.f32 %v1473, 0.01
        %v2345 = vmul.f32 %v1642, 0.01
        %v2346 = vmul.f32 %v1811, 0.01
        %v2347 = vmul.f32 %v1980, 0.01
        %v2348 = vmul.f32 %v2149, 0.01
        %v2349 = vmul.f32 %v968, 0.01
        %v2350 = vmul.f32 %v1137, 0.01
        %v2351 = vmul.f32 %v1306, 0.01
        %v2352 = vmul.f32 %v1475, 0.01
        %v2353 = vmul.f32 %v1644, 0.01
        %v2354 = vmul.f32 %v1813, 0.01
        %v2355 = vmul.f32 %v1982, 0.01
        %v2356 = vmul.f32 %v2151, 0.01
        %v2357 = vmul.f32 %v971, 0.01
        %v2358 = vmul.f32 %v1140, 0.01
        %v2359 = vmul.f32 %v1309, 0.01
        %v2360 = vmul.f32 %v1478, 0.01
        %v2361 = vmul.f32 %v1647, 0.01
        %v2362 = vmul.f32 %v1816, 0.01
        %v2363 = vmul.f32 %v1985, 0.01
        %v2364 = vmul.f32 %v2154, 0.01
        %v2365 = vmul.f32 %v973, 0.01
        %v2366 = vmul.f32 %v1142, 0.01
        %v2367 = vmul.f32 %v1311, 0.01
        %v2368 = vmul.f32 %v1480, 0.01
        %v2369 = vmul.f32 %v1649, 0.01
        %v2370 = vmul.f32 %v1818, 0.01
        %v2371 = vmul.f32 %v1987, 0.01
        %v2372 = vmul.f32 %v2156, 0.01
        %v2373 = vmul.f32 %v976, 0.01
        %v2374 = vmul.f32 %v1145, 0.01
        %v2375 = vmul.f32 %v1314, 0.01
        %v2376 = vmul.f32 %v1483, 0.01
        %v2377 = vmul.f32 %v1652, 0.01
        %v2378 = vmul.f32 %v1821, 0.01
        %v2379 = vmul.f32 %v1990, 0.01
        %v2380 = vmul.f32 %v2159, 0.01
        %v2381 = vmul.f32 %v978, 0.01
        %v2382 = vmul.f32 %v1147, 0.01
        %v2383 = vmul.f32 %v1316, 0.01
        %v2384 = vmul.f32 %v1485, 0.01
        %v2385 = vmul.f32 %v1654, 0.01
        %v2386 = vmul.f32 %v1823, 0.01
        %v2387 = vmul.f32 %v1992, 0.01
        %v2388 = vmul.f32 %v2161, 0.01
        %v2389 = vmul.f32 %v981, 0.01
        %v2390 = vmul.f32 %v1150, 0.01
        %v2391 = vmul.f32 %v1319, 0.01
        %v2392 = vmul.f32 %v1488, 0.01
        %v2393 = vmul.f32 %v1657, 0.01
        %v2394 = vmul.f32 %v1826, 0.01
        %v2395 = vmul.f32 %v1995, 0.01
        %v2396 = vmul.f32 %v2164, 0.01
        %v2397 = vmul.f32 %v983, 0.01
        %v2398 = vmul.f32 %v1152, 0.01
        %v2399 = vmul.f32 %v1321, 0.01
        %v2400 = vmul.f32 %v1490, 0.01
        %v2401 = vmul.f32 %v1659, 0.01
        %v2402 = vmul.f32 %v1828, 0.01
        %v2403 = vmul.f32 %v1997, 0.01
        %v2404 = vmul.f32 %v2166, 0.01
        %v2405 = vmul.f32 %v986, 0.01
        %v2406 = vmul.f32 %v1155, 0.01
        %v2407 = vmul.f32 %v1324, 0.01
        %v2408 = vmul.f32 %v1493, 0.01
        %v2409 = vmul.f32 %v1662, 0.01
        %v2410 = vmul.f32 %v1831, 0.01
        %v2411 = vmul.f32 %v2000, 0.01
        %v2412 = vmul.f32 %v2169, 0.01
        %v2413 = vmul.f32 %v988, 0.01
        %v2414 = vmul.f32 %v1157, 0.01
        %v2415 = vmul.f32 %v1326, 0.01
        %v2416 = vmul.f32 %v1495, 0.01
        %v2417 = vmul.f32 %v1664, 0.01
        %v2418 = vmul.f32 %v1833, 0.01
        %v2419 = vmul.f32 %v2002, 0.01
        %v2420 = vmul.f32 %v2171, 0.01
        %v2421 = vmul.f32 %v991, 0.01
        %v2422 = vmul.f32 %v1160, 0.01
        %v2423 = vmul.f32 %v1329, 0.01
        %v2424 = vmul.f32 %v1498, 0.01
        %v2425 = vmul.f32 %v1667, 0.01
        %v2426 = vmul.f32 %v1836, 0.01
        %v2427 = vmul.f32 %v2005, 0.01
        %v2428 = vmul.f32 %v2174, 0.01
        %v2429 = vmul.f32 %v993, 0.01
        %v2430 = vmul.f32 %v1162, 0.01
        %v2431 = vmul.f32 %v1331, 0.01
        %v2432 = vmul.f32 %v1500, 0.01
        %v2433 = vmul.f32 %v1669, 0.01
        %v2434 = vmul.f32 %v1838, 0.01
        %v2435 = vmul.f32 %v2007, 0.01
        %v2436 = vmul.f32 %v2176, 0.01
        %v2437 = vmul.f32 %v996, 0.01
        %v2438 = vmul.f32 %v1165, 0.01
        %v2439 = vmul.f32 %v1334, 0.01
        %v2440 = vmul.f32 %v1503, 0.01
        %v2441 = vmul.f32 %v1672, 0.01
        %v2442 = vmul.f32 %v1841, 0.01
        %v2443 = vmul.f32 %v2010, 0.01
        %v2444 = vmul.f32 %v2179, 0.01
        %v2445 = vmul.f32 %v998, 0.01
        %v2446 = vmul.f32 %v1167, 0.01
        %v2447 = vmul.f32 %v1336, 0.01
        %v2448 = vmul.f32 %v1505, 0.01
        %v2449 = vmul.f32 %v1674, 0.01
        %v2450 = vmul.f32 %v1843, 0.01
        %v2451 = vmul.f32 %v2012, 0.01
        %v2452 = vmul.f32 %v2181, 0.01
        %v2453 = vmul.f32 %v1001, 0.01
        %v2454 = vmul.f32 %v1170, 0.01
        %v2455 = vmul.f32 %v1339, 0.01
        %v2456 = vmul.f32 %v1508, 0.01
        %v2457 = vmul.f32 %v1677, 0.01
        %v2458 = vmul.f32 %v1846, 0.01
        %v2459 = vmul.f32 %v2015, 0.01
        %v2460 = vmul.f32 %v2184, 0.01
        %v2461 = vmul.f32 %v1003, 0.01
        %v2462 = vmul.f32 %v1172, 0.01
        %v2463 = vmul.f32 %v1341, 0.01
        %v2464 = vmul.f32 %v1510, 0.01
        %v2465 = vmul.f32 %v1679, 0.01
        %v2466 = vmul.f32 %v1848, 0.01
        %v2467 = vmul.f32 %v2017, 0.01
        %v2468 = vmul.f32 %v2186, 0.01
        %v2469 = vmul.f32 %v1006, 0.01
        %v2470 = vmul.f32 %v1175, 0.01
        %v2471 = vmul.f32 %v1344, 0.01
        %v2472 = vmul.f32 %v1513, 0.01
        %v2473 = vmul.f32 %v1682, 0.01
        %v2474 = vmul.f32 %v1851, 0.01
        %v2475 = vmul.f32 %v2020, 0.01
        %v2476 = vmul.f32 %v2189, 0.01
        %v2477 = vmul.f32 %v1008, 0.01
        %v2478 = vmul.f32 %v1177, 0.01
        %v2479 = vmul.f32 %v1346, 0.01
        %v2480 = vmul.f32 %v1515, 0.01
        %v2481 = vmul.f32 %v1684, 0.01
        %v2482 = vmul.f32 %v1853, 0.01
        %v2483 = vmul.f32 %v2022, 0.01
        %v2484 = vmul.f32 %v2191, 0.01
        %v2485 = vmul.f32 %v1011, 0.01
        %v2486 = vmul.f32 %v1180, 0.01
        %v2487 = vmul.f32 %v1349, 0.01
        %v2488 = vmul.f32 %v1518, 0.01
        %v2489 = vmul.f32 %v1687, 0.01
        %v2490 = vmul.f32 %v1856, 0.01
        %v2491 = vmul.f32 %v2025, 0.01
        %v2492 = vmul.f32 %v2194, 0.01
        %v2493 = vmul.f32 %v1013, 0.01
        %v2494 = vmul.f32 %v1182, 0.01
        %v2495 = vmul.f32 %v1351, 0.01
        %v2496 = vmul.f32 %v1520, 0.01
        %v2497 = vmul.f32 %v1689, 0.01
        %v2498 = vmul.f32 %v1858, 0.01
        %v2499 = vmul.f32 %v2027, 0.01
        %v2500 = vmul.f32 %v2196, 0.01
        %v2501 = vmul.f32 %v1016, 0.01
        %v2502 = vmul.f32 %v1185, 0.01
        %v2503 = vmul.f32 %v1354, 0.01
        %v2504 = vmul.f32 %v1523, 0.01
        %v2505 = vmul.f32 %v1692, 0.01
        %v2506 = vmul.f32 %v1861, 0.01
        %v2507 = vmul.f32 %v2030, 0.01
        %v2508 = vmul.f32 %v2199, 0.01
        %v2509 = vmul.f32 %v1018, 0.01
        %v2510 = vmul.f32 %v1187, 0.01
        %v2511 = vmul.f32 %v1356, 0.01
        %v2512 = vmul.f32 %v1525, 0.01
        %v2513 = vmul.f32 %v1694, 0.01
        %v2514 = vmul.f32 %v1863, 0.01
        %v2515 = vmul.f32 %v2032, 0.01
        %v2516 = vmul.f32 %v2201, 0.01
        %v2517 = vmul.f32 %v1021, 0.01
        %v2518 = vmul.f32 %v1190, 0.01
        %v2519 = vmul.f32 %v1359, 0.01
        %v2520 = vmul.f32 %v1528, 0.01
        %v2521 = vmul.f32 %v1697, 0.01
        %v2522 = vmul.f32 %v1866, 0.01
        %v2523 = vmul.f32 %v2035, 0.01
        %v2524 = vmul.f32 %v2204, 0.01
        %v2525 = vmul.f32 %v1023, 0.01
        %v2526 = vmul.f32 %v1192, 0.01
        %v2527 = vmul.f32 %v1361, 0.01
        %v2528 = vmul.f32 %v1530, 0.01
        %v2529 = vmul.f32 %v1699, 0.01
        %v2530 = vmul.f32 %v1868, 0.01
        %v2531 = vmul.f32 %v2037, 0.01
        %v2532 = vmul.f32 %v2206, 0.01
        %v2533 = vmul.f32 %v1026, 0.01
        %v2534 = vmul.f32 %v1195, 0.01
        %v2535 = vmul.f32 %v1364, 0.01
        %v2536 = vmul.f32 %v1533, 0.01
        %v2537 = vmul.f32 %v1702, 0.01
        %v2538 = vmul.f32 %v1871, 0.01
        %v2539 = vmul.f32 %v2040, 0.01
        %v2540 = vmul.f32 %v2209, 0.01
        %v2541 = vmul.f32 %v1028, 0.01
        %v2542 = vmul.f32 %v1197, 0.01
        %v2543 = vmul.f32 %v1366, 0.01
        %v2544 = vmul.f32 %v1535, 0.01
        %v2545 = vmul.f32 %v1704, 0.01
        %v2546 = vmul.f32 %v1873, 0.01
        %v2547 = vmul.f32 %v2042, 0.01
        %v2548 = vmul.f32 %v2211, 0.01
        %v2549 = vmul.f32 %v1031, 0.01
        %v2550 = vmul.f32 %v1200, 0.01
        %v2551 = vmul.f32 %v1369, 0.01
        %v2552 = vmul.f32 %v1538, 0.01
        %v2553 = vmul.f32 %v1707, 0.01
        %v2554 = vmul.f32 %v1876, 0.01
        %v2555 = vmul.f32 %v2045, 0.01
        %v2556 = vmul.f32 %v2214, 0.01
        %v2557 = vmul.f32 %v1033, 0.01
        %v2558 = vmul.f32 %v1202, 0.01
        %v2559 = vmul.f32 %v1371, 0.01
        %v2560 = vmul.f32 %v1540, 0.01
        %v2561 = vmul.f32 %v1709, 0.01
        %v2562 = vmul.f32 %v1878, 0.01
        %v2563 = vmul.f32 %v2047, 0.01
        %v2564 = vmul.f32 %v2216, 0.01
        %v2565 = vmul.f32 %v1036, 0.01
        %v2566 = vmul.f32 %v1205, 0.01
        %v2567 = vmul.f32 %v1374, 0.01
        %v2568 = vmul.f32 %v1543, 0.01
        %v2569 = vmul.f32 %v1712, 0.01
        %v2570 = vmul.f32 %v1881, 0.01
        %v2571 = vmul.f32 %v2050, 0.01
        %v2572 = vmul.f32 %v2219, 0.01
        %v2573 = vmul.f32 %v1038, 0.01
        %v2574 = vmul.f32 %v1207, 0.01
        %v2575 = vmul.f32 %v1376, 0.01
        %v2576 = vmul.f32 %v1545, 0.01
        %v2577 = vmul.f32 %v1714, 0.01
        %v2578 = vmul.f32 %v1883, 0.01
        %v2579 = vmul.f32 %v2052, 0.01
        %v2580 = vmul.f32 %v2221, 0.01
        %v2581 = vmul.f32 %v1041, 0.01
        %v2582 = vmul.f32 %v1210, 0.01
        %v2583 = vmul.f32 %v1379, 0.01
        %v2584 = vmul.f32 %v1548, 0.01
        %v2585 = vmul.f32 %v1717, 0.01
        %v2586 = vmul.f32 %v1886, 0.01
        %v2587 = vmul.f32 %v2055, 0.01
        %v2588 = vmul.f32 %v2224, 0.01
        %v2589 = vmul.f32 %v1043, 0.01
        %v2590 = vmul.f32 %v1212, 0.01
        %v2591 = vmul.f32 %v1381, 0.01
        %v2592 = vmul.f32 %v1550, 0.01
        %v2593 = vmul.f32 %v1719, 0.01
        %v2594 = vmul.f32 %v1888, 0.01
        %v2595 = vmul.f32 %v2057, 0.01
        %v2596 = vmul.f32 %v2226, 0.01
        %v2597 = vmul.f32 %v1046, 0.01
        %v2598 = vmul.f32 %v1215, 0.01
        %v2599 = vmul.f32 %v1384, 0.01
        %v2600 = vmul.f32 %v1553, 0.01
        %v2601 = vmul.f32 %v1722, 0.01
        %v2602 = vmul.f32 %v1891, 0.01
        %v2603 = vmul.f32 %v2060, 0.01
        %v2604 = vmul.f32 %v2229, 0.01
        %v2605 = vmul.f32 %v1048, 0.01
        %v2606 = vmul.f32 %v1217, 0.01
        %v2607 = vmul.f32 %v1386, 0.01
        %v2608 = vmul.f32 %v1555, 0.01
        %v2609 = vmul.f32 %v1724, 0.01
        %v2610 = vmul.f32 %v1893, 0.01
        %v2611 = vmul.f32 %v2062, 0.01
        %v2612 = vmul.f32 %v2231, 0.01
        %v2613 = vmul.f32 %v1051, 0.01
        %v2614 = vmul.f32 %v1220, 0.01
        %v2615 = vmul.f32 %v1389, 0.01
        %v2616 = vmul.f32 %v1558, 0.01
        %v2617 = vmul.f32 %v1727, 0.01
        %v2618 = vmul.f32 %v1896, 0.01
        %v2619 = vmul.f32 %v2065, 0.01
        %v2620 = vmul.f32 %v2234, 0.01
        %v2621 = vmul.f32 %v1053, 0.01
        %v2622 = vmul.f32 %v1222, 0.01
        %v2623 = vmul.f32 %v1391, 0.01
        %v2624 = vmul.f32 %v1560, 0.01
        %v2625 = vmul.f32 %v1729, 0.01
        %v2626 = vmul.f32 %v1898, 0.01
        %v2627 = vmul.f32 %v2067, 0.01
        %v2628 = vmul.f32 %v2236, 0.01
        %v2629 = vmul.f32 %v1056, 0.01
        %v2630 = vmul.f32 %v1225, 0.01
        %v2631 = vmul.f32 %v1394, 0.01
        %v2632 = vmul.f32 %v1563, 0.01
        %v2633 = vmul.f32 %v1732, 0.01
        %v2634 = vmul.f32 %v1901, 0.01
        %v2635 = vmul.f32 %v2070, 0.01
        %v2636 = vmul.f32 %v2239, 0.01
        %v2637 = vmul.f32 %v1058, 0.01
        %v2638 = vmul.f32 %v1227, 0.01
        %v2639 = vmul.f32 %v1396, 0.01
        %v2640 = vmul.f32 %v1565, 0.01
        %v2641 = vmul.f32 %v1734, 0.01
        %v2642 = vmul.f32 %v1903, 0.01
        %v2643 = vmul.f32 %v2072, 0.01
        %v2644 = vmul.f32 %v2241, 0.01
        %v2645 = vmul.f32 %v1061, 0.01
        %v2646 = vmul.f32 %v1230, 0.01
        %v2647 = vmul.f32 %v1399, 0.01
        %v2648 = vmul.f32 %v1568, 0.01
        %v2649 = vmul.f32 %v1737, 0.01
        %v2650 = vmul.f32 %v1906, 0.01
        %v2651 = vmul.f32 %v2075, 0.01
        %v2652 = vmul.f32 %v2244, 0.01
        %v2653 = vmul.f32 %v1063, 0.01
        %v2654 = vmul.f32 %v1232, 0.01
        %v2655 = vmul.f32 %v1401, 0.01
        %v2656 = vmul.f32 %v1570, 0.01
        %v2657 = vmul.f32 %v1739, 0.01
        %v2658 = vmul.f32 %v1908, 0.01
        %v2659 = vmul.f32 %v2077, 0.01
        %v2660 = vmul.f32 %v2246, 0.01
        %v2661 = vmul.f32 %v1066, 0.01
        %v2662 = vmul.f32 %v1235, 0.01
        %v2663 = vmul.f32 %v1404, 0.01
        %v2664 = vmul.f32 %v1573, 0.01
        %v2665 = vmul.f32 %v1742, 0.01
        %v2666 = vmul.f32 %v1911, 0.01
        %v2667 = vmul.f32 %v2080, 0.01
        %v2668 = vmul.f32 %v2249, 0.01
        %v2669 = vmul.f32 %v1068, 0.01
        %v2670 = vmul.f32 %v1237, 0.01
        %v2671 = vmul.f32 %v1406, 0.01
        %v2672 = vmul.f32 %v1575, 0.01
        %v2673 = vmul.f32 %v1744, 0.01
        %v2674 = vmul.f32 %v1913, 0.01
        %v2675 = vmul.f32 %v2082, 0.01
        %v2676 = vmul.f32 %v2251, 0.01
        %v2677 = vmul.f32 %v1071, 0.01
        %v2678 = vmul.f32 %v1240, 0.01
        %v2679 = vmul.f32 %v1409, 0.01
        %v2680 = vmul.f32 %v1578, 0.01
        %v2681 = vmul.f32 %v1747, 0.01
        %v2682 = vmul.f32 %v1916, 0.01
        %v2683 = vmul.f32 %v2085, 0.01
        %v2684 = vmul.f32 %v2254, 0.01
        %v2685 = vmul.f32 %v1073, 0.01
        %v2686 = vmul.f32 %v1242, 0.01
        %v2687 = vmul.f32 %v1411, 0.01
        %v2688 = vmul.f32 %v1580, 0.01
        %v2689 = vmul.f32 %v1749, 0.01
        %v2690 = vmul.f32 %v1918, 0.01
        %v2691 = vmul.f32 %v2087, 0.01
        %v2692 = vmul.f32 %v2256, 0.01
        %v2693 = vmul.f32 %v1076, 0.01
        %v2694 = vmul.f32 %v1245, 0.01
        %v2695 = vmul.f32 %v1414, 0.01
        %v2696 = vmul.f32 %v1583, 0.01
        %v2697 = vmul.f32 %v1752, 0.01
        %v2698 = vmul.f32 %v1921, 0.01
        %v2699 = vmul.f32 %v2090, 0.01
        %v2700 = vmul.f32 %v2259, 0.01
        %v2701 = vmul.f32 %v1078, 0.01
        %v2702 = vmul.f32 %v1247, 0.01
        %v2703 = vmul.f32 %v1416, 0.01
        %v2704 = vmul.f32 %v1585, 0.01
        %v2705 = vmul.f32 %v1754, 0.01
        %v2706 = vmul.f32 %v1923, 0.01
        %v2707 = vmul.f32 %v2092, 0.01
        %v2708 = vmul.f32 %v2261, 0.01
        %v2709 = vmul.f32 %v1081, 0.01
        %v2710 = vmul.f32 %v1250, 0.01
        %v2711 = vmul.f32 %v1419, 0.01
        %v2712 = vmul.f32 %v1588, 0.01
        %v2713 = vmul.f32 %v1757, 0.01
        %v2714 = vmul.f32 %v1926, 0.01
        %v2715 = vmul.f32 %v2095, 0.01
        %v2716 = vmul.f32 %v2264, 0.01
        %v2717 = vmul.f32 %v1083, 0.01
        %v2718 = vmul.f32 %v1252, 0.01
        %v2719 = vmul.f32 %v1421, 0.01
        %v2720 = vmul.f32 %v1590, 0.01
        %v2721 = vmul.f32 %v1759, 0.01
        %v2722 = vmul.f32 %v1928, 0.01
        %v2723 = vmul.f32 %v2097, 0.01
        %v2724 = vmul.f32 %v2266, 0.01
        %v2725 = vmul.f32 %v1086, 0.01
        %v2726 = vmul.f32 %v1255, 0.01
        %v2727 = vmul.f32 %v1424, 0.01
        %v2728 = vmul.f32 %v1593, 0.01
        %v2729 = vmul.f32 %v1762, 0.01
        %v2730 = vmul.f32 %v1931, 0.01
        %v2731 = vmul.f32 %v2100, 0.01
        %v2732 = vmul.f32 %v2269, 0.01
        %v2733 = vmul.f32 %v1088, 0.01
        %v2734 = vmul.f32 %v1257, 0.01
        %v2735 = vmul.f32 %v1426, 0.01
        %v2736 = vmul.f32 %v1595, 0.01
        %v2737 = vmul.f32 %v1764, 0.01
        %v2738 = vmul.f32 %v1933, 0.01
        %v2739 = vmul.f32 %v2102, 0.01
        %v2740 = vmul.f32 %v2271, 0.01
        %v2741 = vmul.f32 %v1091, 0.01
        %v2742 = vmul.f32 %v1260, 0.01
        %v2743 = vmul.f32 %v1429, 0.01
        %v2744 = vmul.f32 %v1598, 0.01
        %v2745 = vmul.f32 %v1767, 0.01
        %v2746 = vmul.f32 %v1936, 0.01
        %v2747 = vmul.f32 %v2105, 0.01
        %v2748 = vmul.f32 %v2274, 0.01
        %v2749 = vmul.f32 %v1093, 0.01
        %v2750 = vmul.f32 %v1262, 0.01
        %v2751 = vmul.f32 %v1431, 0.01
        %v2752 = vmul.f32 %v1600, 0.01
        %v2753 = vmul.f32 %v1769, 0.01
        %v2754 = vmul.f32 %v1938, 0.01
        %v2755 = vmul.f32 %v2107, 0.01
        %v2756 = vmul.f32 %v2276, 0.01
        %v2757 = vmul.f32 %v1096, 0.01
        %v2758 = vmul.f32 %v1265, 0.01
        %v2759 = vmul.f32 %v1434, 0.01
        %v2760 = vmul.f32 %v1603, 0.01
        %v2761 = vmul.f32 %v1772, 0.01
        %v2762 = vmul.f32 %v1941, 0.01
        %v2763 = vmul.f32 %v2110, 0.01
        %v2764 = vmul.f32 %v2279, 0.01
        %v2765 = vmul.f32 %v1098, 0.01
        %v2766 = vmul.f32 %v1267, 0.01
        %v2767 = vmul.f32 %v1436, 0.01
        %v2768 = vmul.f32 %v1605, 0.01
        %v2769 = vmul.f32 %v1774, 0.01
        %v2770 = vmul.f32 %v1943, 0.01
        %v2771 = vmul.f32 %v2112, 0.01
        %v2772 = vmul.f32 %v2281, 0.01
        %v2773 = vmul.f32 %v1101, 0.01
        %v2774 = vmul.f32 %v1270, 0.01
        %v2775 = vmul.f32 %v1439, 0.01
        %v2776 = vmul.f32 %v1608, 0.01
        %v2777 = vmul.f32 %v1777, 0.01
        %v2778 = vmul.f32 %v1946, 0.01
        %v2779 = vmul.f32 %v2115, 0.01
        %v2780 = vmul.f32 %v2284, 0.01
        %v2781 = vmul.f32 %v1103, 0.01
        %v2782 = vmul.f32 %v1272, 0.01
        %v2783 = vmul.f32 %v1441, 0.01
        %v2784 = vmul.f32 %v1610, 0.01
        %v2785 = vmul.f32 %v1779, 0.01
        %v2786 = vmul.f32 %v1948, 0.01
        %v2787 = vmul.f32 %v2117, 0.01
        %v2788 = vmul.f32 %v2286, 0.01
        %v2789 = vmul.f32 %v1106, 0.01
        %v2790 = vmul.f32 %v1275, 0.01
        %v2791 = vmul.f32 %v1444, 0.01
        %v2792 = vmul.f32 %v1613, 0.01
        %v2793 = vmul.f32 %v1782, 0.01
        %v2794 = vmul.f32 %v1951, 0.01
        %v2795 = vmul.f32 %v2120, 0.01
        %v2796 = vmul.f32 %v2289, 0.01
        %v2797 = vmul.f32 %v1108, 0.01
        %v2798 = vmul.f32 %v1277, 0.01
        %v2799 = vmul.f32 %v1446, 0.01
        %v2800 = vmul.f32 %v1615, 0.01
        %v2801 = vmul.f32 %v1784, 0.01
        %v2802 = vmul.f32 %v1953, 0.01
        %v2803 = vmul.f32 %v2122, 0.01
        %v2804 = vmul.f32 %v2291, 0.01
        %v2805 = vmax.f32 %v951, %v2293
        %v2806 = vmax.f32 %v1120, %v2294
        %v2807 = vmax.f32 %v1289, %v2295
        %v2808 = vmax.f32 %v1458, %v2296
        %v2809 = vmax.f32 %v1627, %v2297
        %v2810 = vmax.f32 %v1796, %v2298
        %v2811 = vmax.f32 %v1965, %v2299
        %v2812 = vmax.f32 %v2134, %v2300
        %v2813 = vmax.f32 %v953, %v2301
        %v2814 = vmax.f32 %v1122, %v2302
        %v2815 = vmax.f32 %v1291, %v2303
        %v2816 = vmax.f32 %v1460, %v2304
        %v2817 = vmax.f32 %v1629, %v2305
        %v2818 = vmax.f32 %v1798, %v2306
        %v2819 = vmax.f32 %v1967, %v2307
        %v2820 = vmax.f32 %v2136, %v2308
        %v2821 = vmax.f32 %v956, %v2309
        %v2822 = vmax.f32 %v1125, %v2310
        %v2823 = vmax.f32 %v1294, %v2311
        %v2824 = vmax.f32 %v1463, %v2312
        %v2825 = vmax.f32 %v1632, %v2313
        %v2826 = vmax.f32 %v1801, %v2314
        %v2827 = vmax.f32 %v1970, %v2315
        %v2828 = vmax.f32 %v2139, %v2316
        %v2829 = vmax.f32 %v958, %v2317
        %v2830 = vmax.f32 %v1127, %v2318
        %v2831 = vmax.f32 %v1296, %v2319
        %v2832 = vmax.f32 %v1465, %v2320
        %v2833 = vmax.f32 %v1634, %v2321
        %v2834 = vmax.f32 %v1803, %v2322
        %v2835 = vmax.f32 %v1972, %v2323
        %v2836 = vmax.f32 %v2141, %v2324
        %v2837 = vmax.f32 %v961, %v2325
        %v2838 = vmax.f32 %v1130, %v2326
        %v2839 = vmax.f32 %v1299, %v2327
        %v2840 = vmax.f32 %v1468, %v2328
        %v2841 = vmax.f32 %v1637, %v2329
        %v2842 = vmax.f32 %v1806, %v2330
        %v2843 = vmax.f32 %v1975, %v2331
        %v2844 = vmax.f32 %v2144, %v2332
        %v2845 = vmax.f32 %v963, %v2333
        %v2846 = vmax.f32 %v1132, %v2334
        %v2847 = vmax.f32 %v1301, %v2335
        %v2848 = vmax.f32 %v1470, %v2336
        %v2849 = vmax.f32 %v1639, %v2337
        %v2850 = vmax.f32 %v1808, %v2338
        %v2851 = vmax.f32 %v1977, %v2339
        %v2852 = vmax.f32 %v2146, %v2340
        %v2853 = vmax.f32 %v966, %v2341
        %v2854 = vmax.f32 %v1135, %v2342
        %v2855 = vmax.f32 %v1304, %v2343
        %v2856 = vmax.f32 %v1473, %v2344
        %v2857 = vmax.f32 %v1642, %v2345
        %v2858 = vmax.f32 %v1811, %v2346
        %v2859 = vmax.f32 %v1980, %v2347
        %v2860 = vmax.f32 %v2149, %v2348
        %v2861 = vmax.f32 %v968, %v2349
        %v2862 = vmax.f32 %v1137, %v2350
        %v2863 = vmax.f32 %v1306, %v2351
        %v2864 = vmax.f32 %v1475, %v2352
        %v2865 = vmax.f32 %v1644, %v2353
        %v2866 = vmax.f32 %v1813, %v2354
        %v2867 = vmax.f32 %v1982, %v2355
        %v2868 = vmax.f32 %v2151, %v2356
        %v2869 = vmax.f32 %v971, %v2357
        %v2870 = vmax.f32 %v1140, %v2358
        %v2871 = vmax.f32 %v1309, %v2359
        %v2872 = vmax.f32 %v1478, %v2360
        %v2873 = vmax.f32 %v1647, %v2361
        %v2874 = vmax.f32 %v1816, %v2362
        %v2875 = vmax.f32 %v1985, %v2363
        %v2876 = vmax.f32 %v2154, %v2364
        %v2877 = vmax.f32 %v973, %v2365
        %v2878 = vmax.f32 %v1142, %v2366
        %v2879 = vmax.f32 %v1311, %v2367
        %v2880 = vmax.f32 %v1480, %v2368
        %v2881 = vmax.f32 %v1649, %v2369
        %v2882 = vmax.f32 %v1818, %v2370
        %v2883 = vmax.f32 %v1987, %v2371
        %v2884 = vmax.f32 %v2156, %v2372
        %v2885 = vmax.f32 %v976, %v2373
        %v2886 = vmax.f32 %v1145, %v2374
        %v2887 = vmax.f32 %v1314, %v2375
        %v2888 = vmax.f32 %v1483, %v2376
        %v2889 = vmax.f32 %v1652, %v2377
        %v2890 = vmax.f32 %v1821, %v2378
        %v2891 = vmax.f32 %v1990, %v2379
        %v2892 = vmax.f32 %v2159, %v2380
        %v2893 = vmax.f32 %v978, %v2381
        %v2894 = vmax.f32 %v1147, %v2382
        %v2895 = vmax.f32 %v1316, %v2383
        %v2896 = vmax.f32 %v1485, %v2384
        %v2897 = vmax.f32 %v1654, %v2385
        %v2898 = vmax.f32 %v1823, %v2386
        %v2899 = vmax.f32 %v1992, %v2387
        %v2900 = vmax.f32 %v2161, %v2388
        %v2901 = vmax.f32 %v981, %v2389
        %v2902 = vmax.f32 %v1150, %v2390
        %v2903 = vmax.f32 %v1319, %v2391
        %v2904 = vmax.f32 %v1488, %v2392
        %v2905 = vmax.f32 %v1657, %v2393
        %v2906 = vmax.f32 %v1826, %v2394
        %v2907 = vmax.f32 %v1995, %v2395
        %v2908 = vmax.f32 %v2164, %v2396
        %v2909 = vmax.f32 %v983, %v2397
        %v2910 = vmax.f32 %v1152, %v2398
        %v2911 = vmax.f32 %v1321, %v2399
        %v2912 = vmax.f32 %v1490, %v2400
        %v2913 = vmax.f32 %v1659, %v2401
        %v2914 = vmax.f32 %v1828, %v2402
        %v2915 = vmax.f32 %v1997, %v2403
        %v2916 = vmax.f32 %v2166, %v2404
        %v2917 = vmax.f32 %v986, %v2405
        %v2918 = vmax.f32 %v1155, %v2406
        %v2919 = vmax.f32 %v1324, %v2407
        %v2920 = vmax.f32 %v1493, %v2408
        %v2921 = vmax.f32 %v1662, %v2409
        %v2922 = vmax.f32 %v1831, %v2410
        %v2923 = vmax.f32 %v2000, %v2411
        %v2924 = vmax.f32 %v2169, %v2412
        %v2925 = vmax.f32 %v988, %v2413
        %v2926 = vmax.f32 %v1157, %v2414
        %v2927 = vmax.f32 %v1326, %v2415
        %v2928 = vmax.f32 %v1495, %v2416
        %v2929 = vmax.f32 %v1664, %v2417
        %v2930 = vmax.f32 %v1833, %v2418
        %v2931 = vmax.f32 %v2002, %v2419
        %v2932 = vmax.f32 %v2171, %v2420
        %v2933 = vmax.f32 %v991, %v2421
        %v2934 = vmax.f32 %v1160, %v2422
        %v2935 = vmax.f32 %v1329, %v2423
        %v2936 = vmax.f32 %v1498, %v2424
        %v2937 = vmax.f32 %v1667, %v2425
        %v2938 = vmax.f32 %v1836, %v2426
        %v2939 = vmax.f32 %v2005, %v2427
        %v2940 = vmax.f32 %v2174, %v2428
        %v2941 = vmax.f32 %v993, %v2429
        %v2942 = vmax.f32 %v1162, %v2430
        %v2943 = vmax.f32 %v1331, %v2431
        %v2944 = vmax.f32 %v1500, %v2432
        %v2945 = vmax.f32 %v1669, %v2433
        %v2946 = vmax.f32 %v1838, %v2434
        %v2947 = vmax.f32 %v2007, %v2435
        %v2948 = vmax.f32 %v2176, %v2436
        %v2949 = vmax.f32 %v996, %v2437
        %v2950 = vmax.f32 %v1165, %v2438
        %v2951 = vmax.f32 %v1334, %v2439
        %v2952 = vmax.f32 %v1503, %v2440
        %v2953 = vmax.f32 %v1672, %v2441
        %v2954 = vmax.f32 %v1841, %v2442
        %v2955 = vmax.f32 %v2010, %v2443
        %v2956 = vmax.f32 %v2179, %v2444
        %v2957 = vmax.f32 %v998, %v2445
        %v2958 = vmax.f32 %v1167, %v2446
        %v2959 = vmax.f32 %v1336, %v2447
        %v2960 = vmax.f32 %v1505, %v2448
        %v2961 = vmax.f32 %v1674, %v2449
        %v2962 = vmax.f32 %v1843, %v2450
        %v2963 = vmax.f32 %v2012, %v2451
        %v2964 = vmax.f32 %v2181, %v2452
        %v2965 = vmax.f32 %v1001, %v2453
        %v2966 = vmax.f32 %v1170, %v2454
        %v2967 = vmax.f32 %v1339, %v2455
        %v2968 = vmax.f32 %v1508, %v2456
        %v2969 = vmax.f32 %v1677, %v2457
        %v2970 = vmax.f32 %v1846, %v2458
        %v2971 = vmax.f32 %v2015, %v2459
        %v2972 = vmax.f32 %v2184, %v2460
        %v2973 = vmax.f32 %v1003, %v2461
        %v2974 = vmax.f32 %v1172, %v2462
        %v2975 = vmax.f32 %v1341, %v2463
        %v2976 = vmax.f32 %v1510, %v2464
        %v2977 = vmax.f32 %v1679, %v2465
        %v2978 = vmax.f32 %v1848, %v2466
        %v2979 = vmax.f32 %v2017, %v2467
        %v2980 = vmax.f32 %v2186, %v2468
        %v2981 = vmax.f32 %v1006, %v2469
        %v2982 = vmax.f32 %v1175, %v2470
        %v2983 = vmax.f32 %v1344, %v2471
        %v2984 = vmax.f32 %v1513, %v2472
        %v2985 = vmax.f32 %v1682, %v2473
        %v2986 = vmax.f32 %v1851, %v2474
        %v2987 = vmax.f32 %v2020, %v2475
        %v2988 = vmax.f32 %v2189, %v2476
        %v2989 = vmax.f32 %v1008, %v2477
        %v2990 = vmax.f32 %v1177, %v2478
        %v2991 = vmax.f32 %v1346, %v2479
        %v2992 = vmax.f32 %v1515, %v2480
        %v2993 = vmax.f32 %v1684, %v2481
        %v2994 = vmax.f32 %v1853, %v2482
        %v2995 = vmax.f32 %v2022, %v2483
        %v2996 = vmax.f32 %v2191, %v2484
        %v2997 = vmax.f32 %v1011, %v2485
        %v2998 = vmax.f32 %v1180, %v2486
        %v2999 = vmax.f32 %v1349, %v2487
        %v3000 = vmax.f32 %v1518, %v2488
        %v3001 = vmax.f32 %v1687, %v2489
        %v3002 = vmax.f32 %v1856, %v2490
        %v3003 = vmax.f32 %v2025, %v2491
        %v3004 = vmax.f32 %v2194, %v2492
        %v3005 = vmax.f32 %v1013, %v2493
        %v3006 = vmax.f32 %v1182, %v2494
        %v3007 = vmax.f32 %v1351, %v2495
        %v3008 = vmax.f32 %v1520, %v2496
        %v3009 = vmax.f32 %v1689, %v2497
        %v3010 = vmax.f32 %v1858, %v2498
        %v3011 = vmax.f32 %v2027, %v2499
        %v3012 = vmax.f32 %v2196, %v2500
        %v3013 = vmax.f32 %v1016, %v2501
        %v3014 = vmax.f32 %v1185, %v2502
        %v3015 = vmax.f32 %v1354, %v2503
        %v3016 = vmax.f32 %v1523, %v2504
        %v3017 = vmax.f32 %v1692, %v2505
        %v3018 = vmax.f32 %v1861, %v2506
        %v3019 = vmax.f32 %v2030, %v2507
        %v3020 = vmax.f32 %v2199, %v2508
        %v3021 = vmax.f32 %v1018, %v2509
        %v3022 = vmax.f32 %v1187, %v2510
        %v3023 = vmax.f32 %v1356, %v2511
        %v3024 = vmax.f32 %v1525, %v2512
        %v3025 = vmax.f32 %v1694, %v2513
        %v3026 = vmax.f32 %v1863, %v2514
        %v3027 = vmax.f32 %v2032, %v2515
        %v3028 = vmax.f32 %v2201, %v2516
        %v3029 = vmax.f32 %v1021, %v2517
        %v3030 = vmax.f32 %v1190, %v2518
        %v3031 = vmax.f32 %v1359, %v2519
        %v3032 = vmax.f32 %v1528, %v2520
        %v3033 = vmax.f32 %v1697, %v2521
        %v3034 = vmax.f32 %v1866, %v2522
        %v3035 = vmax.f32 %v2035, %v2523
        %v3036 = vmax.f32 %v2204, %v2524
        %v3037 = vmax.f32 %v1023, %v2525
        %v3038 = vmax.f32 %v1192, %v2526
        %v3039 = vmax.f32 %v1361, %v2527
        %v3040 = vmax.f32 %v1530, %v2528
        %v3041 = vmax.f32 %v1699, %v2529
        %v3042 = vmax.f32 %v1868, %v2530
        %v3043 = vmax.f32 %v2037, %v2531
        %v3044 = vmax.f32 %v2206, %v2532
        %v3045 = vmax.f32 %v1026, %v2533
        %v3046 = vmax.f32 %v1195, %v2534
        %v3047 = vmax.f32 %v1364, %v2535
        %v3048 = vmax.f32 %v1533, %v2536
        %v3049 = vmax.f32 %v1702, %v2537
        %v3050 = vmax.f32 %v1871, %v2538
        %v3051 = vmax.f32 %v2040, %v2539
        %v3052 = vmax.f32 %v2209, %v2540
        %v3053 = vmax.f32 %v1028, %v2541
        %v3054 = vmax.f32 %v1197, %v2542
        %v3055 = vmax.f32 %v1366, %v2543
        %v3056 = vmax.f32 %v1535, %v2544
        %v3057 = vmax.f32 %v1704, %v2545
        %v3058 = vmax.f32 %v1873, %v2546
        %v3059 = vmax.f32 %v2042, %v2547
        %v3060 = vmax.f32 %v2211, %v2548
        %v3061 = vmax.f32 %v1031, %v2549
        %v3062 = vmax.f32 %v1200, %v2550
        %v3063 = vmax.f32 %v1369, %v2551
        %v3064 = vmax.f32 %v1538, %v2552
        %v3065 = vmax.f32 %v1707, %v2553
        %v3066 = vmax.f32 %v1876, %v2554
        %v3067 = vmax.f32 %v2045, %v2555
        %v3068 = vmax.f32 %v2214, %v2556
        %v3069 = vmax.f32 %v1033, %v2557
        %v3070 = vmax.f32 %v1202, %v2558
        %v3071 = vmax.f32 %v1371, %v2559
        %v3072 = vmax.f32 %v1540, %v2560
        %v3073 = vmax.f32 %v1709, %v2561
        %v3074 = vmax.f32 %v1878, %v2562
        %v3075 = vmax.f32 %v2047, %v2563
        %v3076 = vmax.f32 %v2216, %v2564
        %v3077 = vmax.f32 %v1036, %v2565
        %v3078 = vmax.f32 %v1205, %v2566
        %v3079 = vmax.f32 %v1374, %v2567
        %v3080 = vmax.f32 %v1543, %v2568
        %v3081 = vmax.f32 %v1712, %v2569
        %v3082 = vmax.f32 %v1881, %v2570
        %v3083 = vmax.f32 %v2050, %v2571
        %v3084 = vmax.f32 %v2219, %v2572
        %v3085 = vmax.f32 %v1038, %v2573
        %v3086 = vmax.f32 %v1207, %v2574
        %v3087 = vmax.f32 %v1376, %v2575
        %v3088 = vmax.f32 %v1545, %v2576
        %v3089 = vmax.f32 %v1714, %v2577
        %v3090 = vmax.f32 %v1883, %v2578
        %v3091 = vmax.f32 %v2052, %v2579
        %v3092 = vmax.f32 %v2221, %v2580
        %v3093 = vmax.f32 %v1041, %v2581
        %v3094 = vmax.f32 %v1210, %v2582
        %v3095 = vmax.f32 %v1379, %v2583
        %v3096 = vmax.f32 %v1548, %v2584
        %v3097 = vmax.f32 %v1717, %v2585
        %v3098 = vmax.f32 %v1886, %v2586
        %v3099 = vmax.f32 %v2055, %v2587
        %v3100 = vmax.f32 %v2224, %v2588
        %v3101 = vmax.f32 %v1043, %v2589
        %v3102 = vmax.f32 %v1212, %v2590
        %v3103 = vmax.f32 %v1381, %v2591
        %v3104 = vmax.f32 %v1550, %v2592
        %v3105 = vmax.f32 %v1719, %v2593
        %v3106 = vmax.f32 %v1888, %v2594
        %v3107 = vmax.f32 %v2057, %v2595
        %v3108 = vmax.f32 %v2226, %v2596
        %v3109 = vmax.f32 %v1046, %v2597
        %v3110 = vmax.f32 %v1215, %v2598
        %v3111 = vmax.f32 %v1384, %v2599
        %v3112 = vmax.f32 %v1553, %v2600
        %v3113 = vmax.f32 %v1722, %v2601
        %v3114 = vmax.f32 %v1891, %v2602
        %v3115 = vmax.f32 %v2060, %v2603
        %v3116 = vmax.f32 %v2229, %v2604
        %v3117 = vmax.f32 %v1048, %v2605
        %v3118 = vmax.f32 %v1217, %v2606
        %v3119 = vmax.f32 %v1386, %v2607
        %v3120 = vmax.f32 %v1555, %v2608
        %v3121 = vmax.f32 %v1724, %v2609
        %v3122 = vmax.f32 %v1893, %v2610
        %v3123 = vmax.f32 %v2062, %v2611
        %v3124 = vmax.f32 %v2231, %v2612
        %v3125 = vmax.f32 %v1051, %v2613
        %v3126 = vmax.f32 %v1220, %v2614
        %v3127 = vmax.f32 %v1389, %v2615
        %v3128 = vmax.f32 %v1558, %v2616
        %v3129 = vmax.f32 %v1727, %v2617
        %v3130 = vmax.f32 %v1896, %v2618
        %v3131 = vmax.f32 %v2065, %v2619
        %v3132 = vmax.f32 %v2234, %v2620
        %v3133 = vmax.f32 %v1053, %v2621
        %v3134 = vmax.f32 %v1222, %v2622
        %v3135 = vmax.f32 %v1391, %v2623
        %v3136 = vmax.f32 %v1560, %v2624
        %v3137 = vmax.f32 %v1729, %v2625
        %v3138 = vmax.f32 %v1898, %v2626
        %v3139 = vmax.f32 %v2067, %v2627
        %v3140 = vmax.f32 %v2236, %v2628
        %v3141 = vmax.f32 %v1056, %v2629
        %v3142 = vmax.f32 %v1225, %v2630
        %v3143 = vmax.f32 %v1394, %v2631
        %v3144 = vmax.f32 %v1563, %v2632
        %v3145 = vmax.f32 %v1732, %v2633
        %v3146 = vmax.f32 %v1901, %v2634
        %v3147 = vmax.f32 %v2070, %v2635
        %v3148 = vmax.f32 %v2239, %v2636
        %v3149 = vmax.f32 %v1058, %v2637
        %v3150 = vmax.f32 %v1227, %v2638
        %v3151 = vmax.f32 %v1396, %v2639
        %v3152 = vmax.f32 %v1565, %v2640
        %v3153 = vmax.f32 %v1734, %v2641
        %v3154 = vmax.f32 %v1903, %v2642
        %v3155 = vmax.f32 %v2072, %v2643
        %v3156 = vmax.f32 %v2241, %v2644
        %v3157 = vmax.f32 %v1061, %v2645
        %v3158 = vmax.f32 %v1230, %v2646
        %v3159 = vmax.f32 %v1399, %v2647
        %v3160 = vmax.f32 %v1568, %v2648
        %v3161 = vmax.f32 %v1737, %v2649
        %v3162 = vmax.f32 %v1906, %v2650
        %v3163 = vmax.f32 %v2075, %v2651
        %v3164 = vmax.f32 %v2244, %v2652
        %v3165 = vmax.f32 %v1063, %v2653
        %v3166 = vmax.f32 %v1232, %v2654
        %v3167 = vmax.f32 %v1401, %v2655
        %v3168 = vmax.f32 %v1570, %v2656
        %v3169 = vmax.f32 %v1739, %v2657
        %v3170 = vmax.f32 %v1908, %v2658
        %v3171 = vmax.f32 %v2077, %v2659
        %v3172 = vmax.f32 %v2246, %v2660
        %v3173 = vmax.f32 %v1066, %v2661
        %v3174 = vmax.f32 %v1235, %v2662
        %v3175 = vmax.f32 %v1404, %v2663
        %v3176 = vmax.f32 %v1573, %v2664
        %v3177 = vmax.f32 %v1742, %v2665
        %v3178 = vmax.f32 %v1911, %v2666
        %v3179 = vmax.f32 %v2080, %v2667
        %v3180 = vmax.f32 %v2249, %v2668
        %v3181 = vmax.f32 %v1068, %v2669
        %v3182 = vmax.f32 %v1237, %v2670
        %v3183 = vmax.f32 %v1406, %v2671
        %v3184 = vmax.f32 %v1575, %v2672
        %v3185 = vmax.f32 %v1744, %v2673
        %v3186 = vmax.f32 %v1913, %v2674
        %v3187 = vmax.f32 %v2082, %v2675
        %v3188 = vmax.f32 %v2251, %v2676
        %v3189 = vmax.f32 %v1071, %v2677
        %v3190 = vmax.f32 %v1240, %v2678
        %v3191 = vmax.f32 %v1409, %v2679
        %v3192 = vmax.f32 %v1578, %v2680
        %v3193 = vmax.f32 %v1747, %v2681
        %v3194 = vmax.f32 %v1916, %v2682
        %v3195 = vmax.f32 %v2085, %v2683
        %v3196 = vmax.f32 %v2254, %v2684
        %v3197 = vmax.f32 %v1073, %v2685
        %v3198 = vmax.f32 %v1242, %v2686
        %v3199 = vmax.f32 %v1411, %v2687
        %v3200 = vmax.f32 %v1580, %v2688
        %v3201 = vmax.f32 %v1749, %v2689
        %v3202 = vmax.f32 %v1918, %v2690
        %v3203 = vmax.f32 %v2087, %v2691
        %v3204 = vmax.f32 %v2256, %v2692
        %v3205 = vmax.f32 %v1076, %v2693
        %v3206 = vmax.f32 %v1245, %v2694
        %v3207 = vmax.f32 %v1414, %v2695
        %v3208 = vmax.f32 %v1583, %v2696
        %v3209 = vmax.f32 %v1752, %v2697
        %v3210 = vmax.f32 %v1921, %v2698
        %v3211 = vmax.f32 %v2090, %v2699
        %v3212 = vmax.f32 %v2259, %v2700
        %v3213 = vmax.f32 %v1078, %v2701
        %v3214 = vmax.f32 %v1247, %v2702
        %v3215 = vmax.f32 %v1416, %v2703
        %v3216 = vmax.f32 %v1585, %v2704
        %v3217 = vmax.f32 %v1754, %v2705
        %v3218 = vmax.f32 %v1923, %v2706
        %v3219 = vmax.f32 %v2092, %v2707
        %v3220 = vmax.f32 %v2261, %v2708
        %v3221 = vmax.f32 %v1081, %v2709
        %v3222 = vmax.f32 %v1250, %v2710
        %v3223 = vmax.f32 %v1419, %v2711
        %v3224 = vmax.f32 %v1588, %v2712
        %v3225 = vmax.f32 %v1757, %v2713
        %v3226 = vmax.f32 %v1926, %v2714
        %v3227 = vmax.f32 %v2095, %v2715
        %v3228 = vmax.f32 %v2264, %v2716
        %v3229 = vmax.f32 %v1083, %v2717
        %v3230 = vmax.f32 %v1252, %v2718
        %v3231 = vmax.f32 %v1421, %v2719
        %v3232 = vmax.f32 %v1590, %v2720
        %v3233 = vmax.f32 %v1759, %v2721
        %v3234 = vmax.f32 %v1928, %v2722
        %v3235 = vmax.f32 %v2097, %v2723
        %v3236 = vmax.f32 %v2266, %v2724
        %v3237 = vmax.f32 %v1086, %v2725
        %v3238 = vmax.f32 %v1255, %v2726
        %v3239 = vmax.f32 %v1424, %v2727
        %v3240 = vmax.f32 %v1593, %v2728
        %v3241 = vmax.f32 %v1762, %v2729
        %v3242 = vmax.f32 %v1931, %v2730
        %v3243 = vmax.f32 %v2100, %v2731
        %v3244 = vmax.f32 %v2269, %v2732
        %v3245 = vmax.f32 %v1088, %v2733
        %v3246 = vmax.f32 %v1257, %v2734
        %v3247 = vmax.f32 %v1426, %v2735
        %v3248 = vmax.f32 %v1595, %v2736
        %v3249 = vmax.f32 %v1764, %v2737
        %v3250 = vmax.f32 %v1933, %v2738
        %v3251 = vmax.f32 %v2102, %v2739
        %v3252 = vmax.f32 %v2271, %v2740
        %v3253 = vmax.f32 %v1091, %v2741
        %v3254 = vmax.f32 %v1260, %v2742
        %v3255 = vmax.f32 %v1429, %v2743
        %v3256 = vmax.f32 %v1598, %v2744
        %v3257 = vmax.f32 %v1767, %v2745
        %v3258 = vmax.f32 %v1936, %v2746
        %v3259 = vmax.f32 %v2105, %v2747
        %v3260 = vmax.f32 %v2274, %v2748
        %v3261 = vmax.f32 %v1093, %v2749
        %v3262 = vmax.f32 %v1262, %v2750
        %v3263 = vmax.f32 %v1431, %v2751
        %v3264 = vmax.f32 %v1600, %v2752
        %v3265 = vmax.f32 %v1769, %v2753
        %v3266 = vmax.f32 %v1938, %v2754
        %v3267 = vmax.f32 %v2107, %v2755
        %v3268 = vmax.f32 %v2276, %v2756
        %v3269 = vmax.f32 %v1096, %v2757
        %v3270 = vmax.f32 %v1265, %v2758
        %v3271 = vmax.f32 %v1434, %v2759
        %v3272 = vmax.f32 %v1603, %v2760
        %v3273 = vmax.f32 %v1772, %v2761
        %v3274 = vmax.f32 %v1941, %v2762
        %v3275 = vmax.f32 %v2110, %v2763
        %v3276 = vmax.f32 %v2279, %v2764
        %v3277 = vmax.f32 %v1098, %v2765
        %v3278 = vmax.f32 %v1267, %v2766
        %v3279 = vmax.f32 %v1436, %v2767
        %v3280 = vmax.f32 %v1605, %v2768
        %v3281 = vmax.f32 %v1774, %v2769
        %v3282 = vmax.f32 %v1943, %v2770
        %v3283 = vmax.f32 %v2112, %v2771
        %v3284 = vmax.f32 %v2281, %v2772
        %v3285 = vmax.f32 %v1101, %v2773
        %v3286 = vmax.f32 %v1270, %v2774
        %v3287 = vmax.f32 %v1439, %v2775
        %v3288 = vmax.f32 %v1608, %v2776
        %v3289 = vmax.f32 %v1777, %v2777
        %v3290 = vmax.f32 %v1946, %v2778
        %v3291 = vmax.f32 %v2115, %v2779
        %v3292 = vmax.f32 %v2284, %v2780
        %v3293 = vmax.f32 %v1103, %v2781
        %v3294 = vmax.f32 %v1272, %v2782
        %v3295 = vmax.f32 %v1441, %v2783
        %v3296 = vmax.f32 %v1610, %v2784
        %v3297 = vmax.f32 %v1779, %v2785
        %v3298 = vmax.f32 %v1948, %v2786
        %v3299 = vmax.f32 %v2117, %v2787
        %v3300 = vmax.f32 %v2286, %v2788
        %v3301 = vmax.f32 %v1106, %v2789
        %v3302 = vmax.f32 %v1275, %v2790
        %v3303 = vmax.f32 %v1444, %v2791
        %v3304 = vmax.f32 %v1613, %v2792
        %v3305 = vmax.f32 %v1782, %v2793
        %v3306 = vmax.f32 %v1951, %v2794
        %v3307 = vmax.f32 %v2120, %v2795
        %v3308 = vmax.f32 %v2289, %v2796
        %v3309 = vmax.f32 %v1108, %v2797
        %v3310 = vmax.f32 %v1277, %v2798
        %v3311 = vmax.f32 %v1446, %v2799
        %v3312 = vmax.f32 %v1615, %v2800
        %v3313 = vmax.f32 %v1784, %v2801
        %v3314 = vmax.f32 %v1953, %v2802
        %v3315 = vmax.f32 %v2122, %v2803
        %v3316 = vmax.f32 %v2291, %v2804
        %v3317 = vpack.c.bf16 %v2813, %v2805
        %v3318 = vpack.c.bf16 %v2829, %v2821
        %v3319 = vpack.c.bf16 %v2845, %v2837
        %v3320 = vpack.c.bf16 %v2861, %v2853
        %v3321 = vpack.c.bf16 %v2877, %v2869
        %v3322 = vpack.c.bf16 %v2893, %v2885
        %v3323 = vpack.c.bf16 %v2909, %v2901
        %v3324 = vpack.c.bf16 %v2925, %v2917
        %v3325 = vpack.c.bf16 %v2941, %v2933
        %v3326 = vpack.c.bf16 %v2957, %v2949
        %v3327 = vpack.c.bf16 %v2973, %v2965
        %v3328 = vpack.c.bf16 %v2989, %v2981
        %v3329 = vpack.c.bf16 %v3005, %v2997
        %v3330 = vpack.c.bf16 %v3021, %v3013
        %v3331 = vpack.c.bf16 %v3037, %v3029
        %v3332 = vpack.c.bf16 %v3053, %v3045
        %v3333 = vpack.c.bf16 %v3069, %v3061
        %v3334 = vpack.c.bf16 %v3085, %v3077
        %v3335 = vpack.c.bf16 %v3101, %v3093
        %v3336 = vpack.c.bf16 %v3117, %v3109
        %v3337 = vpack.c.bf16 %v3133, %v3125
        %v3338 = vpack.c.bf16 %v3149, %v3141
        %v3339 = vpack.c.bf16 %v3165, %v3157
        %v3340 = vpack.c.bf16 %v3181, %v3173
        %v3341 = vpack.c.bf16 %v3197, %v3189
        %v3342 = vpack.c.bf16 %v3213, %v3205
        %v3343 = vpack.c.bf16 %v3229, %v3221
        %v3344 = vpack.c.bf16 %v3245, %v3237
        %v3345 = vpack.c.bf16 %v3261, %v3253
        %v3346 = vpack.c.bf16 %v3277, %v3269
        %v3347 = vpack.c.bf16 %v3293, %v3285
        %v3348 = vpack.c.bf16 %v3309, %v3301
        %v3349 = vpack.c.bf16 %v2814, %v2806
        %v3350 = vpack.c.bf16 %v2830, %v2822
        %v3351 = vpack.c.bf16 %v2846, %v2838
        %v3352 = vpack.c.bf16 %v2862, %v2854
        %v3353 = vpack.c.bf16 %v2878, %v2870
        %v3354 = vpack.c.bf16 %v2894, %v2886
        %v3355 = vpack.c.bf16 %v2910, %v2902
        %v3356 = vpack.c.bf16 %v2926, %v2918
        %v3357 = vpack.c.bf16 %v2942, %v2934
        %v3358 = vpack.c.bf16 %v2958, %v2950
        %v3359 = vpack.c.bf16 %v2974, %v2966
        %v3360 = vpack.c.bf16 %v2990, %v2982
        %v3361 = vpack.c.bf16 %v3006, %v2998
        %v3362 = vpack.c.bf16 %v3022, %v3014
        %v3363 = vpack.c.bf16 %v3038, %v3030
        %v3364 = vpack.c.bf16 %v3054, %v3046
        %v3365 = vpack.c.bf16 %v3070, %v3062
        %v3366 = vpack.c.bf16 %v3086, %v3078
        %v3367 = vpack.c.bf16 %v3102, %v3094
        %v3368 = vpack.c.bf16 %v3118, %v3110
        %v3369 = vpack.c.bf16 %v3134, %v3126
        %v3370 = vpack.c.bf16 %v3150, %v3142
        %v3371 = vpack.c.bf16 %v3166, %v3158
        %v3372 = vpack.c.bf16 %v3182, %v3174
        %v3373 = vpack.c.bf16 %v3198, %v3190
        %v3374 = vpack.c.bf16 %v3214, %v3206
        %v3375 = vpack.c.bf16 %v3230, %v3222
        %v3376 = vpack.c.bf16 %v3246, %v3238
        %v3377 = vpack.c.bf16 %v3262, %v3254
        %v3378 = vpack.c.bf16 %v3278, %v3270
        %v3379 = vpack.c.bf16 %v3294, %v3286
        %v3380 = vpack.c.bf16 %v3310, %v3302
        %v3381 = vld [vmem:[#allocation10] sm:$0xf]
        %v3382 = vld [vmem:[#allocation10 + $0x4] sm:$0xf]
        %v3383 = vld [vmem:[#allocation10 + $0x8] sm:$0xf]
        %v3384 = vld [vmem:[#allocation10 + $0xc] sm:$0xf]
        %v3385 = vld [vmem:[#allocation10 + $0x10] sm:$0xf]
        %v3386 = vld [vmem:[#allocation10 + $0x14] sm:$0xf]
        %v3387 = vld [vmem:[#allocation10 + $0x18] sm:$0xf]
        %v3388 = vld [vmem:[#allocation10 + $0x1c] sm:$0xf]
        %v3389 = vld [vmem:[#allocation10 + $0x20] sm:$0xf]
        %v3390 = vld [vmem:[#allocation10 + $0x24] sm:$0xf]
        %v3391 = vld [vmem:[#allocation10 + $0x28] sm:$0xf]
        %v3392 = vld [vmem:[#allocation10 + $0x2c] sm:$0xf]
        %v3393 = vld [vmem:[#allocation10 + $0x30] sm:$0xf]
        %v3394 = vld [vmem:[#allocation10 + $0x34] sm:$0xf]
        %v3395 = vld [vmem:[#allocation10 + $0x38] sm:$0xf]
        %v3396 = vld [vmem:[#allocation10 + $0x3c] sm:$0xf]
        %v3397 = vld [vmem:[#allocation11] sm:$0x1]
        %v3399 = vperm.slane %v3397, 0
        %v3417 = vunpack.c.l.b16 %v3381
        %v3418 = vunpack.c.l.b16 %v3382
        %v3419 = vunpack.c.l.b16 %v3383
        %v3420 = vunpack.c.l.b16 %v3384
        %v3421 = vunpack.c.l.b16 %v3385
        %v3422 = vunpack.c.l.b16 %v3386
        %v3423 = vunpack.c.l.b16 %v3387
        %v3424 = vunpack.c.l.b16 %v3388
        %v3425 = vunpack.c.l.b16 %v3389
        %v3426 = vunpack.c.l.b16 %v3390
        %v3427 = vunpack.c.l.b16 %v3391
        %v3428 = vunpack.c.l.b16 %v3392
        %v3429 = vunpack.c.l.b16 %v3393
        %v3430 = vunpack.c.l.b16 %v3394
        %v3431 = vunpack.c.l.b16 %v3395
        %v3432 = vunpack.c.l.b16 %v3396
        %v3433 = vpack.c.b16 %v3418, %v3417
        %v3434 = vpack.c.b16 %v3420, %v3419
        %v3435 = vpack.c.b16 %v3422, %v3421
        %v3436 = vpack.c.b16 %v3424, %v3423
        %v3437 = vpack.c.b16 %v3426, %v3425
        %v3438 = vpack.c.b16 %v3428, %v3427
        %v3439 = vpack.c.b16 %v3430, %v3429
        %v3440 = vpack.c.b16 %v3432, %v3431
        %3449 = vmatpush.bf16.msra.mxu0 %v3440
        %3450 = vmatpush.bf16.msra.mxu0 %v3439
        %3451 = vmatpush.bf16.msra.mxu0 %v3438
        %3452 = vmatpush.bf16.msra.mxu0 %v3437
        %3453 = vmatpush.bf16.msra.mxu0 %v3436
        %3454 = vmatpush.bf16.msra.mxu0 %v3435
        %3455 = vmatpush.bf16.msra.mxu0 %v3434
        %3456 = vmatpush.bf16.msra.mxu0 %v3433
        %3457 = vmatmul.bf16.gmra.mxu0 %v3317
        %v3458 = vpop.f32.mrf.mxu0
        %v3459 = vadd.f32 %v3399, %v3458
        %v3460 = vpop.f32.mrf.mxu0
        %v3461 = vadd.f32 %v3399, %v3460
        %3462 = vmatmul.bf16.gmra.mxu0 %v3318
        %v3463 = vpop.f32.mrf.mxu0
        %v3464 = vadd.f32 %v3399, %v3463
        %v3465 = vpop.f32.mrf.mxu0
        %v3466 = vadd.f32 %v3399, %v3465
        %3467 = vmatmul.bf16.gmra.mxu0 %v3319
        %v3468 = vpop.f32.mrf.mxu0
        %v3469 = vadd.f32 %v3399, %v3468
        %v3470 = vpop.f32.mrf.mxu0
        %v3471 = vadd.f32 %v3399, %v3470
        %3472 = vmatmul.bf16.gmra.mxu0 %v3320
        %v3473 = vpop.f32.mrf.mxu0
        %v3474 = vadd.f32 %v3399, %v3473
        %v3475 = vpop.f32.mrf.mxu0
        %v3476 = vadd.f32 %v3399, %v3475
        %3477 = vmatmul.bf16.gmra.mxu0 %v3321
        %v3478 = vpop.f32.mrf.mxu0
        %v3479 = vadd.f32 %v3399, %v3478
        %v3480 = vpop.f32.mrf.mxu0
        %v3481 = vadd.f32 %v3399, %v3480
        %3482 = vmatmul.bf16.gmra.mxu0 %v3322
        %v3483 = vpop.f32.mrf.mxu0
        %v3484 = vadd.f32 %v3399, %v3483
        %v3485 = vpop.f32.mrf.mxu0
        %v3486 = vadd.f32 %v3399, %v3485
        %3487 = vmatmul.bf16.gmra.mxu0 %v3323
        %v3488 = vpop.f32.mrf.mxu0
        %v3489 = vadd.f32 %v3399, %v3488
        %v3490 = vpop.f32.mrf.mxu0
        %v3491 = vadd.f32 %v3399, %v3490
        %3492 = vmatmul.bf16.gmra.mxu0 %v3324
        %v3493 = vpop.f32.mrf.mxu0
        %v3494 = vadd.f32 %v3399, %v3493
        %v3495 = vpop.f32.mrf.mxu0
        %v3496 = vadd.f32 %v3399, %v3495
        %3497 = vmatmul.bf16.gmra.mxu0 %v3325
        %v3498 = vpop.f32.mrf.mxu0
        %v3499 = vadd.f32 %v3399, %v3498
        %v3500 = vpop.f32.mrf.mxu0
        %v3501 = vadd.f32 %v3399, %v3500
        %3502 = vmatmul.bf16.gmra.mxu0 %v3326
        %v3503 = vpop.f32.mrf.mxu0
        %v3504 = vadd.f32 %v3399, %v3503
        %v3505 = vpop.f32.mrf.mxu0
        %v3506 = vadd.f32 %v3399, %v3505
        %3507 = vmatmul.bf16.gmra.mxu0 %v3327
        %v3508 = vpop.f32.mrf.mxu0
        %v3509 = vadd.f32 %v3399, %v3508
        %v3510 = vpop.f32.mrf.mxu0
        %v3511 = vadd.f32 %v3399, %v3510
        %3512 = vmatmul.bf16.gmra.mxu0 %v3328
        %v3513 = vpop.f32.mrf.mxu0
        %v3514 = vadd.f32 %v3399, %v3513
        %v3515 = vpop.f32.mrf.mxu0
        %v3516 = vadd.f32 %v3399, %v3515
        %3517 = vmatmul.bf16.gmra.mxu0 %v3329
        %v3518 = vpop.f32.mrf.mxu0
        %v3519 = vadd.f32 %v3399, %v3518
        %v3520 = vpop.f32.mrf.mxu0
        %v3521 = vadd.f32 %v3399, %v3520
        %3522 = vmatmul.bf16.gmra.mxu0 %v3330
        %v3523 = vpop.f32.mrf.mxu0
        %v3524 = vadd.f32 %v3399, %v3523
        %v3525 = vpop.f32.mrf.mxu0
        %v3526 = vadd.f32 %v3399, %v3525
        %3527 = vmatmul.bf16.gmra.mxu0 %v3331
        %v3528 = vpop.f32.mrf.mxu0
        %v3529 = vadd.f32 %v3399, %v3528
        %v3530 = vpop.f32.mrf.mxu0
        %v3531 = vadd.f32 %v3399, %v3530
        %3532 = vmatmul.bf16.gmra.mxu0 %v3332
        %v3533 = vpop.f32.mrf.mxu0
        %v3534 = vadd.f32 %v3399, %v3533
        %v3535 = vpop.f32.mrf.mxu0
        %v3536 = vadd.f32 %v3399, %v3535
        %3537 = vmatmul.bf16.gmra.mxu0 %v3333
        %v3538 = vpop.f32.mrf.mxu0
        %v3539 = vadd.f32 %v3399, %v3538
        %v3540 = vpop.f32.mrf.mxu0
        %v3541 = vadd.f32 %v3399, %v3540
        %3542 = vmatmul.bf16.gmra.mxu0 %v3334
        %v3543 = vpop.f32.mrf.mxu0
        %v3544 = vadd.f32 %v3399, %v3543
        %v3545 = vpop.f32.mrf.mxu0
        %v3546 = vadd.f32 %v3399, %v3545
        %3547 = vmatmul.bf16.gmra.mxu0 %v3335
        %v3548 = vpop.f32.mrf.mxu0
        %v3549 = vadd.f32 %v3399, %v3548
        %v3550 = vpop.f32.mrf.mxu0
        %v3551 = vadd.f32 %v3399, %v3550
        %3552 = vmatmul.bf16.gmra.mxu0 %v3336
        %v3553 = vpop.f32.mrf.mxu0
        %v3554 = vadd.f32 %v3399, %v3553
        %v3555 = vpop.f32.mrf.mxu0
        %v3556 = vadd.f32 %v3399, %v3555
        %3557 = vmatmul.bf16.gmra.mxu0 %v3337
        %v3558 = vpop.f32.mrf.mxu0
        %v3559 = vadd.f32 %v3399, %v3558
        %v3560 = vpop.f32.mrf.mxu0
        %v3561 = vadd.f32 %v3399, %v3560
        %3562 = vmatmul.bf16.gmra.mxu0 %v3338
        %v3563 = vpop.f32.mrf.mxu0
        %v3564 = vadd.f32 %v3399, %v3563
        %v3565 = vpop.f32.mrf.mxu0
        %v3566 = vadd.f32 %v3399, %v3565
        %3567 = vmatmul.bf16.gmra.mxu0 %v3339
        %v3568 = vpop.f32.mrf.mxu0
        %v3569 = vadd.f32 %v3399, %v3568
        %v3570 = vpop.f32.mrf.mxu0
        %v3571 = vadd.f32 %v3399, %v3570
        %3572 = vmatmul.bf16.gmra.mxu0 %v3340
        %v3573 = vpop.f32.mrf.mxu0
        %v3574 = vadd.f32 %v3399, %v3573
        %v3575 = vpop.f32.mrf.mxu0
        %v3576 = vadd.f32 %v3399, %v3575
        %3577 = vmatmul.bf16.gmra.mxu0 %v3341
        %v3578 = vpop.f32.mrf.mxu0
        %v3579 = vadd.f32 %v3399, %v3578
        %v3580 = vpop.f32.mrf.mxu0
        %v3581 = vadd.f32 %v3399, %v3580
        %3582 = vmatmul.bf16.gmra.mxu0 %v3342
        %v3583 = vpop.f32.mrf.mxu0
        %v3584 = vadd.f32 %v3399, %v3583
        %v3585 = vpop.f32.mrf.mxu0
        %v3586 = vadd.f32 %v3399, %v3585
        %3587 = vmatmul.bf16.gmra.mxu0 %v3343
        %v3588 = vpop.f32.mrf.mxu0
        %v3589 = vadd.f32 %v3399, %v3588
        %v3590 = vpop.f32.mrf.mxu0
        %v3591 = vadd.f32 %v3399, %v3590
        %3592 = vmatmul.bf16.gmra.mxu0 %v3344
        %v3593 = vpop.f32.mrf.mxu0
        %v3594 = vadd.f32 %v3399, %v3593
        %v3595 = vpop.f32.mrf.mxu0
        %v3596 = vadd.f32 %v3399, %v3595
        %3597 = vmatmul.bf16.gmra.mxu0 %v3345
        %v3598 = vpop.f32.mrf.mxu0
        %v3599 = vadd.f32 %v3399, %v3598
        %v3600 = vpop.f32.mrf.mxu0
        %v3601 = vadd.f32 %v3399, %v3600
        %3602 = vmatmul.bf16.gmra.mxu0 %v3346
        %v3603 = vpop.f32.mrf.mxu0
        %v3604 = vadd.f32 %v3399, %v3603
        %v3605 = vpop.f32.mrf.mxu0
        %v3606 = vadd.f32 %v3399, %v3605
        %3607 = vmatmul.bf16.gmra.mxu0 %v3347
        %v3608 = vpop.f32.mrf.mxu0
        %v3609 = vadd.f32 %v3399, %v3608
        %v3610 = vpop.f32.mrf.mxu0
        %v3611 = vadd.f32 %v3399, %v3610
        %3612 = vmatmul.bf16.gmra.mxu0 %v3348
        %v3613 = vpop.f32.mrf.mxu0
        %v3614 = vadd.f32 %v3399, %v3613
        %v3615 = vpop.f32.mrf.mxu0
        %v3616 = vadd.f32 %v3399, %v3615
        %3617 = vdwg.mxu0
        %s3618 = scalar_lea.vmem [#allocation10], 64
        %v3619 = vld [vmem:[%s3618] sm:$0xf]
        %v3620 = vld [vmem:[%s3618 + $0x4] sm:$0xf]
        %v3621 = vld [vmem:[%s3618 + $0x8] sm:$0xf]
        %v3622 = vld [vmem:[%s3618 + $0xc] sm:$0xf]
        %v3623 = vld [vmem:[%s3618 + $0x10] sm:$0xf]
        %v3624 = vld [vmem:[%s3618 + $0x14] sm:$0xf]
        %v3625 = vld [vmem:[%s3618 + $0x18] sm:$0xf]
        %v3626 = vld [vmem:[%s3618 + $0x1c] sm:$0xf]
        %v3627 = vld [vmem:[%s3618 + $0x20] sm:$0xf]
        %v3628 = vld [vmem:[%s3618 + $0x24] sm:$0xf]
        %v3629 = vld [vmem:[%s3618 + $0x28] sm:$0xf]
        %v3630 = vld [vmem:[%s3618 + $0x2c] sm:$0xf]
        %v3631 = vld [vmem:[%s3618 + $0x30] sm:$0xf]
        %v3632 = vld [vmem:[%s3618 + $0x34] sm:$0xf]
        %v3633 = vld [vmem:[%s3618 + $0x38] sm:$0xf]
        %v3634 = vld [vmem:[%s3618 + $0x3c] sm:$0xf]
        %v3635 = vld [vmem:[#allocation11 + $0x1] sm:$0x1]
        %v3637 = vperm.slane %v3635, 0
        %v3655 = vunpack.c.l.b16 %v3619
        %v3656 = vunpack.c.l.b16 %v3620
        %v3657 = vunpack.c.l.b16 %v3621
        %v3658 = vunpack.c.l.b16 %v3622
        %v3659 = vunpack.c.l.b16 %v3623
        %v3660 = vunpack.c.l.b16 %v3624
        %v3661 = vunpack.c.l.b16 %v3625
        %v3662 = vunpack.c.l.b16 %v3626
        %v3663 = vunpack.c.l.b16 %v3627
        %v3664 = vunpack.c.l.b16 %v3628
        %v3665 = vunpack.c.l.b16 %v3629
        %v3666 = vunpack.c.l.b16 %v3630
        %v3667 = vunpack.c.l.b16 %v3631
        %v3668 = vunpack.c.l.b16 %v3632
        %v3669 = vunpack.c.l.b16 %v3633
        %v3670 = vunpack.c.l.b16 %v3634
        %v3671 = vpack.c.b16 %v3656, %v3655
        %v3672 = vpack.c.b16 %v3658, %v3657
        %v3673 = vpack.c.b16 %v3660, %v3659
        %v3674 = vpack.c.b16 %v3662, %v3661
        %v3675 = vpack.c.b16 %v3664, %v3663
        %v3676 = vpack.c.b16 %v3666, %v3665
        %v3677 = vpack.c.b16 %v3668, %v3667
        %v3678 = vpack.c.b16 %v3670, %v3669
        %3687 = vmatpush.bf16.msra.mxu0 %v3678
        %3688 = vmatpush.bf16.msra.mxu0 %v3677
        %3689 = vmatpush.bf16.msra.mxu0 %v3676
        %3690 = vmatpush.bf16.msra.mxu0 %v3675
        %3691 = vmatpush.bf16.msra.mxu0 %v3674
        %3692 = vmatpush.bf16.msra.mxu0 %v3673
        %3693 = vmatpush.bf16.msra.mxu0 %v3672
        %3694 = vmatpush.bf16.msra.mxu0 %v3671
        %3695 = vmatmul.bf16.gmra.mxu0 %v3349
        %v3696 = vpop.f32.mrf.mxu0
        %v3697 = vadd.f32 %v3637, %v3696
        %v3698 = vpop.f32.mrf.mxu0
        %v3699 = vadd.f32 %v3637, %v3698
        %3700 = vmatmul.bf16.gmra.mxu0 %v3350
        %v3701 = vpop.f32.mrf.mxu0
        %v3702 = vadd.f32 %v3637, %v3701
        %v3703 = vpop.f32.mrf.mxu0
        %v3704 = vadd.f32 %v3637, %v3703
        %3705 = vmatmul.bf16.gmra.mxu0 %v3351
        %v3706 = vpop.f32.mrf.mxu0
        %v3707 = vadd.f32 %v3637, %v3706
        %v3708 = vpop.f32.mrf.mxu0
        %v3709 = vadd.f32 %v3637, %v3708
        %3710 = vmatmul.bf16.gmra.mxu0 %v3352
        %v3711 = vpop.f32.mrf.mxu0
        %v3712 = vadd.f32 %v3637, %v3711
        %v3713 = vpop.f32.mrf.mxu0
        %v3714 = vadd.f32 %v3637, %v3713
        %3715 = vmatmul.bf16.gmra.mxu0 %v3353
        %v3716 = vpop.f32.mrf.mxu0
        %v3717 = vadd.f32 %v3637, %v3716
        %v3718 = vpop.f32.mrf.mxu0
        %v3719 = vadd.f32 %v3637, %v3718
        %3720 = vmatmul.bf16.gmra.mxu0 %v3354
        %v3721 = vpop.f32.mrf.mxu0
        %v3722 = vadd.f32 %v3637, %v3721
        %v3723 = vpop.f32.mrf.mxu0
        %v3724 = vadd.f32 %v3637, %v3723
        %3725 = vmatmul.bf16.gmra.mxu0 %v3355
        %v3726 = vpop.f32.mrf.mxu0
        %v3727 = vadd.f32 %v3637, %v3726
        %v3728 = vpop.f32.mrf.mxu0
        %v3729 = vadd.f32 %v3637, %v3728
        %3730 = vmatmul.bf16.gmra.mxu0 %v3356
        %v3731 = vpop.f32.mrf.mxu0
        %v3732 = vadd.f32 %v3637, %v3731
        %v3733 = vpop.f32.mrf.mxu0
        %v3734 = vadd.f32 %v3637, %v3733
        %3735 = vmatmul.bf16.gmra.mxu0 %v3357
        %v3736 = vpop.f32.mrf.mxu0
        %v3737 = vadd.f32 %v3637, %v3736
        %v3738 = vpop.f32.mrf.mxu0
        %v3739 = vadd.f32 %v3637, %v3738
        %3740 = vmatmul.bf16.gmra.mxu0 %v3358
        %v3741 = vpop.f32.mrf.mxu0
        %v3742 = vadd.f32 %v3637, %v3741
        %v3743 = vpop.f32.mrf.mxu0
        %v3744 = vadd.f32 %v3637, %v3743
        %3745 = vmatmul.bf16.gmra.mxu0 %v3359
        %v3746 = vpop.f32.mrf.mxu0
        %v3747 = vadd.f32 %v3637, %v3746
        %v3748 = vpop.f32.mrf.mxu0
        %v3749 = vadd.f32 %v3637, %v3748
        %3750 = vmatmul.bf16.gmra.mxu0 %v3360
        %v3751 = vpop.f32.mrf.mxu0
        %v3752 = vadd.f32 %v3637, %v3751
        %v3753 = vpop.f32.mrf.mxu0
        %v3754 = vadd.f32 %v3637, %v3753
        %3755 = vmatmul.bf16.gmra.mxu0 %v3361
        %v3756 = vpop.f32.mrf.mxu0
        %v3757 = vadd.f32 %v3637, %v3756
        %v3758 = vpop.f32.mrf.mxu0
        %v3759 = vadd.f32 %v3637, %v3758
        %3760 = vmatmul.bf16.gmra.mxu0 %v3362
        %v3761 = vpop.f32.mrf.mxu0
        %v3762 = vadd.f32 %v3637, %v3761
        %v3763 = vpop.f32.mrf.mxu0
        %v3764 = vadd.f32 %v3637, %v3763
        %3765 = vmatmul.bf16.gmra.mxu0 %v3363
        %v3766 = vpop.f32.mrf.mxu0
        %v3767 = vadd.f32 %v3637, %v3766
        %v3768 = vpop.f32.mrf.mxu0
        %v3769 = vadd.f32 %v3637, %v3768
        %3770 = vmatmul.bf16.gmra.mxu0 %v3364
        %v3771 = vpop.f32.mrf.mxu0
        %v3772 = vadd.f32 %v3637, %v3771
        %v3773 = vpop.f32.mrf.mxu0
        %v3774 = vadd.f32 %v3637, %v3773
        %3775 = vmatmul.bf16.gmra.mxu0 %v3365
        %v3776 = vpop.f32.mrf.mxu0
        %v3777 = vadd.f32 %v3637, %v3776
        %v3778 = vpop.f32.mrf.mxu0
        %v3779 = vadd.f32 %v3637, %v3778
        %3780 = vmatmul.bf16.gmra.mxu0 %v3366
        %v3781 = vpop.f32.mrf.mxu0
        %v3782 = vadd.f32 %v3637, %v3781
        %v3783 = vpop.f32.mrf.mxu0
        %v3784 = vadd.f32 %v3637, %v3783
        %3785 = vmatmul.bf16.gmra.mxu0 %v3367
        %v3786 = vpop.f32.mrf.mxu0
        %v3787 = vadd.f32 %v3637, %v3786
        %v3788 = vpop.f32.mrf.mxu0
        %v3789 = vadd.f32 %v3637, %v3788
        %3790 = vmatmul.bf16.gmra.mxu0 %v3368
        %v3791 = vpop.f32.mrf.mxu0
        %v3792 = vadd.f32 %v3637, %v3791
        %v3793 = vpop.f32.mrf.mxu0
        %v3794 = vadd.f32 %v3637, %v3793
        %3795 = vmatmul.bf16.gmra.mxu0 %v3369
        %v3796 = vpop.f32.mrf.mxu0
        %v3797 = vadd.f32 %v3637, %v3796
        %v3798 = vpop.f32.mrf.mxu0
        %v3799 = vadd.f32 %v3637, %v3798
        %3800 = vmatmul.bf16.gmra.mxu0 %v3370
        %v3801 = vpop.f32.mrf.mxu0
        %v3802 = vadd.f32 %v3637, %v3801
        %v3803 = vpop.f32.mrf.mxu0
        %v3804 = vadd.f32 %v3637, %v3803
        %3805 = vmatmul.bf16.gmra.mxu0 %v3371
        %v3806 = vpop.f32.mrf.mxu0
        %v3807 = vadd.f32 %v3637, %v3806
        %v3808 = vpop.f32.mrf.mxu0
        %v3809 = vadd.f32 %v3637, %v3808
        %3810 = vmatmul.bf16.gmra.mxu0 %v3372
        %v3811 = vpop.f32.mrf.mxu0
        %v3812 = vadd.f32 %v3637, %v3811
        %v3813 = vpop.f32.mrf.mxu0
        %v3814 = vadd.f32 %v3637, %v3813
        %3815 = vmatmul.bf16.gmra.mxu0 %v3373
        %v3816 = vpop.f32.mrf.mxu0
        %v3817 = vadd.f32 %v3637, %v3816
        %v3818 = vpop.f32.mrf.mxu0
        %v3819 = vadd.f32 %v3637, %v3818
        %3820 = vmatmul.bf16.gmra.mxu0 %v3374
        %v3821 = vpop.f32.mrf.mxu0
        %v3822 = vadd.f32 %v3637, %v3821
        %v3823 = vpop.f32.mrf.mxu0
        %v3824 = vadd.f32 %v3637, %v3823
        %3825 = vmatmul.bf16.gmra.mxu0 %v3375
        %v3826 = vpop.f32.mrf.mxu0
        %v3827 = vadd.f32 %v3637, %v3826
        %v3828 = vpop.f32.mrf.mxu0
        %v3829 = vadd.f32 %v3637, %v3828
        %3830 = vmatmul.bf16.gmra.mxu0 %v3376
        %v3831 = vpop.f32.mrf.mxu0
        %v3832 = vadd.f32 %v3637, %v3831
        %v3833 = vpop.f32.mrf.mxu0
        %v3834 = vadd.f32 %v3637, %v3833
        %3835 = vmatmul.bf16.gmra.mxu0 %v3377
        %v3836 = vpop.f32.mrf.mxu0
        %v3837 = vadd.f32 %v3637, %v3836
        %v3838 = vpop.f32.mrf.mxu0
        %v3839 = vadd.f32 %v3637, %v3838
        %3840 = vmatmul.bf16.gmra.mxu0 %v3378
        %v3841 = vpop.f32.mrf.mxu0
        %v3842 = vadd.f32 %v3637, %v3841
        %v3843 = vpop.f32.mrf.mxu0
        %v3844 = vadd.f32 %v3637, %v3843
        %3845 = vmatmul.bf16.gmra.mxu0 %v3379
        %v3846 = vpop.f32.mrf.mxu0
        %v3847 = vadd.f32 %v3637, %v3846
        %v3848 = vpop.f32.mrf.mxu0
        %v3849 = vadd.f32 %v3637, %v3848
        %3850 = vmatmul.bf16.gmra.mxu0 %v3380
        %v3851 = vpop.f32.mrf.mxu0
        %v3852 = vadd.f32 %v3637, %v3851
        %v3853 = vpop.f32.mrf.mxu0
        %v3854 = vadd.f32 %v3637, %v3853
        %3855 = vdwg.mxu0
        %v3856 = vmul.f32 %v3459, 0.5
        %v3857 = vmul.f32 %v3461, 0.5
        %v3858 = vmul.f32 %v3464, 0.5
        %v3859 = vmul.f32 %v3466, 0.5
        %v3860 = vmul.f32 %v3469, 0.5
        %v3861 = vmul.f32 %v3471, 0.5
        %v3862 = vmul.f32 %v3474, 0.5
        %v3863 = vmul.f32 %v3476, 0.5
        %v3864 = vmul.f32 %v3479, 0.5
        %v3865 = vmul.f32 %v3481, 0.5
        %v3866 = vmul.f32 %v3484, 0.5
        %v3867 = vmul.f32 %v3486, 0.5
        %v3868 = vmul.f32 %v3489, 0.5
        %v3869 = vmul.f32 %v3491, 0.5
        %v3870 = vmul.f32 %v3494, 0.5
        %v3871 = vmul.f32 %v3496, 0.5
        %v3872 = vmul.f32 %v3499, 0.5
        %v3873 = vmul.f32 %v3501, 0.5
        %v3874 = vmul.f32 %v3504, 0.5
        %v3875 = vmul.f32 %v3506, 0.5
        %v3876 = vmul.f32 %v3509, 0.5
        %v3877 = vmul.f32 %v3511, 0.5
        %v3878 = vmul.f32 %v3514, 0.5
        %v3879 = vmul.f32 %v3516, 0.5
        %v3880 = vmul.f32 %v3519, 0.5
        %v3881 = vmul.f32 %v3521, 0.5
        %v3882 = vmul.f32 %v3524, 0.5
        %v3883 = vmul.f32 %v3526, 0.5
        %v3884 = vmul.f32 %v3529, 0.5
        %v3885 = vmul.f32 %v3531, 0.5
        %v3886 = vmul.f32 %v3534, 0.5
        %v3887 = vmul.f32 %v3536, 0.5
        %v3888 = vmul.f32 %v3539, 0.5
        %v3889 = vmul.f32 %v3541, 0.5
        %v3890 = vmul.f32 %v3544, 0.5
        %v3891 = vmul.f32 %v3546, 0.5
        %v3892 = vmul.f32 %v3549, 0.5
        %v3893 = vmul.f32 %v3551, 0.5
        %v3894 = vmul.f32 %v3554, 0.5
        %v3895 = vmul.f32 %v3556, 0.5
        %v3896 = vmul.f32 %v3559, 0.5
        %v3897 = vmul.f32 %v3561, 0.5
        %v3898 = vmul.f32 %v3564, 0.5
        %v3899 = vmul.f32 %v3566, 0.5
        %v3900 = vmul.f32 %v3569, 0.5
        %v3901 = vmul.f32 %v3571, 0.5
        %v3902 = vmul.f32 %v3574, 0.5
        %v3903 = vmul.f32 %v3576, 0.5
        %v3904 = vmul.f32 %v3579, 0.5
        %v3905 = vmul.f32 %v3581, 0.5
        %v3906 = vmul.f32 %v3584, 0.5
        %v3907 = vmul.f32 %v3586, 0.5
        %v3908 = vmul.f32 %v3589, 0.5
        %v3909 = vmul.f32 %v3591, 0.5
        %v3910 = vmul.f32 %v3594, 0.5
        %v3911 = vmul.f32 %v3596, 0.5
        %v3912 = vmul.f32 %v3599, 0.5
        %v3913 = vmul.f32 %v3601, 0.5
        %v3914 = vmul.f32 %v3604, 0.5
        %v3915 = vmul.f32 %v3606, 0.5
        %v3916 = vmul.f32 %v3609, 0.5
        %v3917 = vmul.f32 %v3611, 0.5
        %v3918 = vmul.f32 %v3614, 0.5
        %v3919 = vmul.f32 %v3616, 0.5
        %v3920 = vtanh.pop %v3856
        %v3921 = vtanh.pop %v3857
        %v3922 = vtanh.pop %v3858
        %v3923 = vtanh.pop %v3859
        %v3924 = vtanh.pop %v3860
        %v3925 = vtanh.pop %v3861
        %v3926 = vtanh.pop %v3862
        %v3927 = vtanh.pop %v3863
        %v3928 = vtanh.pop %v3864
        %v3929 = vtanh.pop %v3865
        %v3930 = vtanh.pop %v3866
        %v3931 = vtanh.pop %v3867
        %v3932 = vtanh.pop %v3868
        %v3933 = vtanh.pop %v3869
        %v3934 = vtanh.pop %v3870
        %v3935 = vtanh.pop %v3871
        %v3936 = vtanh.pop %v3872
        %v3937 = vtanh.pop %v3873
        %v3938 = vtanh.pop %v3874
        %v3939 = vtanh.pop %v3875
        %v3940 = vtanh.pop %v3876
        %v3941 = vtanh.pop %v3877
        %v3942 = vtanh.pop %v3878
        %v3943 = vtanh.pop %v3879
        %v3944 = vtanh.pop %v3880
        %v3945 = vtanh.pop %v3881
        %v3946 = vtanh.pop %v3882
        %v3947 = vtanh.pop %v3883
        %v3948 = vtanh.pop %v3884
        %v3949 = vtanh.pop %v3885
        %v3950 = vtanh.pop %v3886
        %v3951 = vtanh.pop %v3887
        %v3952 = vtanh.pop %v3888
        %v3953 = vtanh.pop %v3889
        %v3954 = vtanh.pop %v3890
        %v3955 = vtanh.pop %v3891
        %v3956 = vtanh.pop %v3892
        %v3957 = vtanh.pop %v3893
        %v3958 = vtanh.pop %v3894
        %v3959 = vtanh.pop %v3895
        %v3960 = vtanh.pop %v3896
        %v3961 = vtanh.pop %v3897
        %v3962 = vtanh.pop %v3898
        %v3963 = vtanh.pop %v3899
        %v3964 = vtanh.pop %v3900
        %v3965 = vtanh.pop %v3901
        %v3966 = vtanh.pop %v3902
        %v3967 = vtanh.pop %v3903
        %v3968 = vtanh.pop %v3904
        %v3969 = vtanh.pop %v3905
        %v3970 = vtanh.pop %v3906
        %v3971 = vtanh.pop %v3907
        %v3972 = vtanh.pop %v3908
        %v3973 = vtanh.pop %v3909
        %v3974 = vtanh.pop %v3910
        %v3975 = vtanh.pop %v3911
        %v3976 = vtanh.pop %v3912
        %v3977 = vtanh.pop %v3913
        %v3978 = vtanh.pop %v3914
        %v3979 = vtanh.pop %v3915
        %v3980 = vtanh.pop %v3916
        %v3981 = vtanh.pop %v3917
        %v3982 = vtanh.pop %v3918
        %v3983 = vtanh.pop %v3919
        %v3984 = vmul.f32 %v3920, 2.0
        %v3985 = vmul.f32 %v3921, 2.0
        %v3986 = vmul.f32 %v3922, 2.0
        %v3987 = vmul.f32 %v3923, 2.0
        %v3988 = vmul.f32 %v3924, 2.0
        %v3989 = vmul.f32 %v3925, 2.0
        %v3990 = vmul.f32 %v3926, 2.0
        %v3991 = vmul.f32 %v3927, 2.0
        %v3992 = vmul.f32 %v3928, 2.0
        %v3993 = vmul.f32 %v3929, 2.0
        %v3994 = vmul.f32 %v3930, 2.0
        %v3995 = vmul.f32 %v3931, 2.0
        %v3996 = vmul.f32 %v3932, 2.0
        %v3997 = vmul.f32 %v3933, 2.0
        %v3998 = vmul.f32 %v3934, 2.0
        %v3999 = vmul.f32 %v3935, 2.0
        %v4000 = vmul.f32 %v3936, 2.0
        %v4001 = vmul.f32 %v3937, 2.0
        %v4002 = vmul.f32 %v3938, 2.0
        %v4003 = vmul.f32 %v3939, 2.0
        %v4004 = vmul.f32 %v3940, 2.0
        %v4005 = vmul.f32 %v3941, 2.0
        %v4006 = vmul.f32 %v3942, 2.0
        %v4007 = vmul.f32 %v3943, 2.0
        %v4008 = vmul.f32 %v3944, 2.0
        %v4009 = vmul.f32 %v3945, 2.0
        %v4010 = vmul.f32 %v3946, 2.0
        %v4011 = vmul.f32 %v3947, 2.0
        %v4012 = vmul.f32 %v3948, 2.0
        %v4013 = vmul.f32 %v3949, 2.0
        %v4014 = vmul.f32 %v3950, 2.0
        %v4015 = vmul.f32 %v3951, 2.0
        %v4016 = vmul.f32 %v3952, 2.0
        %v4017 = vmul.f32 %v3953, 2.0
        %v4018 = vmul.f32 %v3954, 2.0
        %v4019 = vmul.f32 %v3955, 2.0
        %v4020 = vmul.f32 %v3956, 2.0
        %v4021 = vmul.f32 %v3957, 2.0
        %v4022 = vmul.f32 %v3958, 2.0
        %v4023 = vmul.f32 %v3959, 2.0
        %v4024 = vmul.f32 %v3960, 2.0
        %v4025 = vmul.f32 %v3961, 2.0
        %v4026 = vmul.f32 %v3962, 2.0
        %v4027 = vmul.f32 %v3963, 2.0
        %v4028 = vmul.f32 %v3964, 2.0
        %v4029 = vmul.f32 %v3965, 2.0
        %v4030 = vmul.f32 %v3966, 2.0
        %v4031 = vmul.f32 %v3967, 2.0
        %v4032 = vmul.f32 %v3968, 2.0
        %v4033 = vmul.f32 %v3969, 2.0
        %v4034 = vmul.f32 %v3970, 2.0
        %v4035 = vmul.f32 %v3971, 2.0
        %v4036 = vmul.f32 %v3972, 2.0
        %v4037 = vmul.f32 %v3973, 2.0
        %v4038 = vmul.f32 %v3974, 2.0
        %v4039 = vmul.f32 %v3975, 2.0
        %v4040 = vmul.f32 %v3976, 2.0
        %v4041 = vmul.f32 %v3977, 2.0
        %v4042 = vmul.f32 %v3978, 2.0
        %v4043 = vmul.f32 %v3979, 2.0
        %v4044 = vmul.f32 %v3980, 2.0
        %v4045 = vmul.f32 %v3981, 2.0
        %v4046 = vmul.f32 %v3982, 2.0
        %v4047 = vmul.f32 %v3983, 2.0
        %v4048 = vmul.f32 %v3984, 1.442695
        %v4049 = vpow.pop %v4048
        %v4050 = vmul.f32 %v3985, 1.442695
        %v4051 = vpow.pop %v4050
        %v4052 = vmul.f32 %v3986, 1.442695
        %v4053 = vpow.pop %v4052
        %v4054 = vmul.f32 %v3987, 1.442695
        %v4055 = vpow.pop %v4054
        %v4056 = vmul.f32 %v3988, 1.442695
        %v4057 = vpow.pop %v4056
        %v4058 = vmul.f32 %v3989, 1.442695
        %v4059 = vpow.pop %v4058
        %v4060 = vmul.f32 %v3990, 1.442695
        %v4061 = vpow.pop %v4060
        %v4062 = vmul.f32 %v3991, 1.442695
        %v4063 = vpow.pop %v4062
        %v4064 = vmul.f32 %v3992, 1.442695
        %v4065 = vpow.pop %v4064
        %v4066 = vmul.f32 %v3993, 1.442695
        %v4067 = vpow.pop %v4066
        %v4068 = vmul.f32 %v3994, 1.442695
        %v4069 = vpow.pop %v4068
        %v4070 = vmul.f32 %v3995, 1.442695
        %v4071 = vpow.pop %v4070
        %v4072 = vmul.f32 %v3996, 1.442695
        %v4073 = vpow.pop %v4072
        %v4074 = vmul.f32 %v3997, 1.442695
        %v4075 = vpow.pop %v4074
        %v4076 = vmul.f32 %v3998, 1.442695
        %v4077 = vpow.pop %v4076
        %v4078 = vmul.f32 %v3999, 1.442695
        %v4079 = vpow.pop %v4078
        %v4080 = vmul.f32 %v4000, 1.442695
        %v4081 = vpow.pop %v4080
        %v4082 = vmul.f32 %v4001, 1.442695
        %v4083 = vpow.pop %v4082
        %v4084 = vmul.f32 %v4002, 1.442695
        %v4085 = vpow.pop %v4084
        %v4086 = vmul.f32 %v4003, 1.442695
        %v4087 = vpow.pop %v4086
        %v4088 = vmul.f32 %v4004, 1.442695
        %v4089 = vpow.pop %v4088
        %v4090 = vmul.f32 %v4005, 1.442695
        %v4091 = vpow.pop %v4090
        %v4092 = vmul.f32 %v4006, 1.442695
        %v4093 = vpow.pop %v4092
        %v4094 = vmul.f32 %v4007, 1.442695
        %v4095 = vpow.pop %v4094
        %v4096 = vmul.f32 %v4008, 1.442695
        %v4097 = vpow.pop %v4096
        %v4098 = vmul.f32 %v4009, 1.442695
        %v4099 = vpow.pop %v4098
        %v4100 = vmul.f32 %v4010, 1.442695
        %v4101 = vpow.pop %v4100
        %v4102 = vmul.f32 %v4011, 1.442695
        %v4103 = vpow.pop %v4102
        %v4104 = vmul.f32 %v4012, 1.442695
        %v4105 = vpow.pop %v4104
        %v4106 = vmul.f32 %v4013, 1.442695
        %v4107 = vpow.pop %v4106
        %v4108 = vmul.f32 %v4014, 1.442695
        %v4109 = vpow.pop %v4108
        %v4110 = vmul.f32 %v4015, 1.442695
        %v4111 = vpow.pop %v4110
        %v4112 = vmul.f32 %v4016, 1.442695
        %v4113 = vpow.pop %v4112
        %v4114 = vmul.f32 %v4017, 1.442695
        %v4115 = vpow.pop %v4114
        %v4116 = vmul.f32 %v4018, 1.442695
        %v4117 = vpow.pop %v4116
        %v4118 = vmul.f32 %v4019, 1.442695
        %v4119 = vpow.pop %v4118
        %v4120 = vmul.f32 %v4020, 1.442695
        %v4121 = vpow.pop %v4120
        %v4122 = vmul.f32 %v4021, 1.442695
        %v4123 = vpow.pop %v4122
        %v4124 = vmul.f32 %v4022, 1.442695
        %v4125 = vpow.pop %v4124
        %v4126 = vmul.f32 %v4023, 1.442695
        %v4127 = vpow.pop %v4126
        %v4128 = vmul.f32 %v4024, 1.442695
        %v4129 = vpow.pop %v4128
        %v4130 = vmul.f32 %v4025, 1.442695
        %v4131 = vpow.pop %v4130
        %v4132 = vmul.f32 %v4026, 1.442695
        %v4133 = vpow.pop %v4132
        %v4134 = vmul.f32 %v4027, 1.442695
        %v4135 = vpow.pop %v4134
        %v4136 = vmul.f32 %v4028, 1.442695
        %v4137 = vpow.pop %v4136
        %v4138 = vmul.f32 %v4029, 1.442695
        %v4139 = vpow.pop %v4138
        %v4140 = vmul.f32 %v4030, 1.442695
        %v4141 = vpow.pop %v4140
        %v4142 = vmul.f32 %v4031, 1.442695
        %v4143 = vpow.pop %v4142
        %v4144 = vmul.f32 %v4032, 1.442695
        %v4145 = vpow.pop %v4144
        %v4146 = vmul.f32 %v4033, 1.442695
        %v4147 = vpow.pop %v4146
        %v4148 = vmul.f32 %v4034, 1.442695
        %v4149 = vpow.pop %v4148
        %v4150 = vmul.f32 %v4035, 1.442695
        %v4151 = vpow.pop %v4150
        %v4152 = vmul.f32 %v4036, 1.442695
        %v4153 = vpow.pop %v4152
        %v4154 = vmul.f32 %v4037, 1.442695
        %v4155 = vpow.pop %v4154
        %v4156 = vmul.f32 %v4038, 1.442695
        %v4157 = vpow.pop %v4156
        %v4158 = vmul.f32 %v4039, 1.442695
        %v4159 = vpow.pop %v4158
        %v4160 = vmul.f32 %v4040, 1.442695
        %v4161 = vpow.pop %v4160
        %v4162 = vmul.f32 %v4041, 1.442695
        %v4163 = vpow.pop %v4162
        %v4164 = vmul.f32 %v4042, 1.442695
        %v4165 = vpow.pop %v4164
        %v4166 = vmul.f32 %v4043, 1.442695
        %v4167 = vpow.pop %v4166
        %v4168 = vmul.f32 %v4044, 1.442695
        %v4169 = vpow.pop %v4168
        %v4170 = vmul.f32 %v4045, 1.442695
        %v4171 = vpow.pop %v4170
        %v4172 = vmul.f32 %v4046, 1.442695
        %v4173 = vpow.pop %v4172
        %v4174 = vmul.f32 %v4047, 1.442695
        %v4175 = vpow.pop %v4174
        %v4176 = vpack.c.bf16 %v2815, %v2807
        %v4177 = vpack.c.bf16 %v2831, %v2823
        %v4178 = vpack.c.bf16 %v2847, %v2839
        %v4179 = vpack.c.bf16 %v2863, %v2855
        %v4180 = vpack.c.bf16 %v2879, %v2871
        %v4181 = vpack.c.bf16 %v2895, %v2887
        %v4182 = vpack.c.bf16 %v2911, %v2903
        %v4183 = vpack.c.bf16 %v2927, %v2919
        %v4184 = vpack.c.bf16 %v2943, %v2935
        %v4185 = vpack.c.bf16 %v2959, %v2951
        %v4186 = vpack.c.bf16 %v2975, %v2967
        %v4187 = vpack.c.bf16 %v2991, %v2983
        %v4188 = vpack.c.bf16 %v3007, %v2999
        %v4189 = vpack.c.bf16 %v3023, %v3015
        %v4190 = vpack.c.bf16 %v3039, %v3031
        %v4191 = vpack.c.bf16 %v3055, %v3047
        %v4192 = vpack.c.bf16 %v3071, %v3063
        %v4193 = vpack.c.bf16 %v3087, %v3079
        %v4194 = vpack.c.bf16 %v3103, %v3095
        %v4195 = vpack.c.bf16 %v3119, %v3111
        %v4196 = vpack.c.bf16 %v3135, %v3127
        %v4197 = vpack.c.bf16 %v3151, %v3143
        %v4198 = vpack.c.bf16 %v3167, %v3159
        %v4199 = vpack.c.bf16 %v3183, %v3175
        %v4200 = vpack.c.bf16 %v3199, %v3191
        %v4201 = vpack.c.bf16 %v3215, %v3207
        %v4202 = vpack.c.bf16 %v3231, %v3223
        %v4203 = vpack.c.bf16 %v3247, %v3239
        %v4204 = vpack.c.bf16 %v3263, %v3255
        %v4205 = vpack.c.bf16 %v3279, %v3271
        %v4206 = vpack.c.bf16 %v3295, %v3287
        %v4207 = vpack.c.bf16 %v3311, %v3303
        %v4208 = vpack.c.bf16 %v2816, %v2808
        %v4209 = vpack.c.bf16 %v2832, %v2824
        %v4210 = vpack.c.bf16 %v2848, %v2840
        %v4211 = vpack.c.bf16 %v2864, %v2856
        %v4212 = vpack.c.bf16 %v2880, %v2872
        %v4213 = vpack.c.bf16 %v2896, %v2888
        %v4214 = vpack.c.bf16 %v2912, %v2904
        %v4215 = vpack.c.bf16 %v2928, %v2920
        %v4216 = vpack.c.bf16 %v2944, %v2936
        %v4217 = vpack.c.bf16 %v2960, %v2952
        %v4218 = vpack.c.bf16 %v2976, %v2968
        %v4219 = vpack.c.bf16 %v2992, %v2984
        %v4220 = vpack.c.bf16 %v3008, %v3000
        %v4221 = vpack.c.bf16 %v3024, %v3016
        %v4222 = vpack.c.bf16 %v3040, %v3032
        %v4223 = vpack.c.bf16 %v3056, %v3048
        %v4224 = vpack.c.bf16 %v3072, %v3064
        %v4225 = vpack.c.bf16 %v3088, %v3080
        %v4226 = vpack.c.bf16 %v3104, %v3096
        %v4227 = vpack.c.bf16 %v3120, %v3112
        %v4228 = vpack.c.bf16 %v3136, %v3128
        %v4229 = vpack.c.bf16 %v3152, %v3144
        %v4230 = vpack.c.bf16 %v3168, %v3160
        %v4231 = vpack.c.bf16 %v3184, %v3176
        %v4232 = vpack.c.bf16 %v3200, %v3192
        %v4233 = vpack.c.bf16 %v3216, %v3208
        %v4234 = vpack.c.bf16 %v3232, %v3224
        %v4235 = vpack.c.bf16 %v3248, %v3240
        %v4236 = vpack.c.bf16 %v3264, %v3256
        %v4237 = vpack.c.bf16 %v3280, %v3272
        %v4238 = vpack.c.bf16 %v3296, %v3288
        %v4239 = vpack.c.bf16 %v3312, %v3304
        %s4240 = scalar_lea.vmem [#allocation10], 128
        %v4241 = vld [vmem:[%s4240] sm:$0xf]
        %v4242 = vld [vmem:[%s4240 + $0x4] sm:$0xf]
        %v4243 = vld [vmem:[%s4240 + $0x8] sm:$0xf]
        %v4244 = vld [vmem:[%s4240 + $0xc] sm:$0xf]
        %v4245 = vld [vmem:[%s4240 + $0x10] sm:$0xf]
        %v4246 = vld [vmem:[%s4240 + $0x14] sm:$0xf]
        %v4247 = vld [vmem:[%s4240 + $0x18] sm:$0xf]
        %v4248 = vld [vmem:[%s4240 + $0x1c] sm:$0xf]
        %v4249 = vld [vmem:[%s4240 + $0x20] sm:$0xf]
        %v4250 = vld [vmem:[%s4240 + $0x24] sm:$0xf]
        %v4251 = vld [vmem:[%s4240 + $0x28] sm:$0xf]
        %v4252 = vld [vmem:[%s4240 + $0x2c] sm:$0xf]
        %v4253 = vld [vmem:[%s4240 + $0x30] sm:$0xf]
        %v4254 = vld [vmem:[%s4240 + $0x34] sm:$0xf]
        %v4255 = vld [vmem:[%s4240 + $0x38] sm:$0xf]
        %v4256 = vld [vmem:[%s4240 + $0x3c] sm:$0xf]
        %v4257 = vld [vmem:[#allocation11 + $0x2] sm:$0x1]
        %v4259 = vperm.slane %v4257, 0
        %v4277 = vunpack.c.l.b16 %v4241
        %v4278 = vunpack.c.l.b16 %v4242
        %v4279 = vunpack.c.l.b16 %v4243
        %v4280 = vunpack.c.l.b16 %v4244
        %v4281 = vunpack.c.l.b16 %v4245
        %v4282 = vunpack.c.l.b16 %v4246
        %v4283 = vunpack.c.l.b16 %v4247
        %v4284 = vunpack.c.l.b16 %v4248
        %v4285 = vunpack.c.l.b16 %v4249
        %v4286 = vunpack.c.l.b16 %v4250
        %v4287 = vunpack.c.l.b16 %v4251
        %v4288 = vunpack.c.l.b16 %v4252
        %v4289 = vunpack.c.l.b16 %v4253
        %v4290 = vunpack.c.l.b16 %v4254
        %v4291 = vunpack.c.l.b16 %v4255
        %v4292 = vunpack.c.l.b16 %v4256
        %v4293 = vpack.c.b16 %v4278, %v4277
        %v4294 = vpack.c.b16 %v4280, %v4279
        %v4295 = vpack.c.b16 %v4282, %v4281
        %v4296 = vpack.c.b16 %v4284, %v4283
        %v4297 = vpack.c.b16 %v4286, %v4285
        %v4298 = vpack.c.b16 %v4288, %v4287
        %v4299 = vpack.c.b16 %v4290, %v4289
        %v4300 = vpack.c.b16 %v4292, %v4291
        %4309 = vmatpush.bf16.msra.mxu0 %v4300
        %4310 = vmatpush.bf16.msra.mxu0 %v4299
        %4311 = vmatpush.bf16.msra.mxu0 %v4298
        %4312 = vmatpush.bf16.msra.mxu0 %v4297
        %4313 = vmatpush.bf16.msra.mxu0 %v4296
        %4314 = vmatpush.bf16.msra.mxu0 %v4295
        %4315 = vmatpush.bf16.msra.mxu0 %v4294
        %4316 = vmatpush.bf16.msra.mxu0 %v4293
        %4317 = vmatmul.bf16.gmra.mxu0 %v4176
        %v4318 = vpop.f32.mrf.mxu0
        %v4319 = vadd.f32 %v4259, %v4318
        %v4320 = vpop.f32.mrf.mxu0
        %v4321 = vadd.f32 %v4259, %v4320
        %4322 = vmatmul.bf16.gmra.mxu0 %v4177
        %v4323 = vpop.f32.mrf.mxu0
        %v4324 = vadd.f32 %v4259, %v4323
        %v4325 = vpop.f32.mrf.mxu0
        %v4326 = vadd.f32 %v4259, %v4325
        %4327 = vmatmul.bf16.gmra.mxu0 %v4178
        %v4328 = vpop.f32.mrf.mxu0
        %v4329 = vadd.f32 %v4259, %v4328
        %v4330 = vpop.f32.mrf.mxu0
        %v4331 = vadd.f32 %v4259, %v4330
        %4332 = vmatmul.bf16.gmra.mxu0 %v4179
        %v4333 = vpop.f32.mrf.mxu0
        %v4334 = vadd.f32 %v4259, %v4333
        %v4335 = vpop.f32.mrf.mxu0
        %v4336 = vadd.f32 %v4259, %v4335
        %4337 = vmatmul.bf16.gmra.mxu0 %v4180
        %v4338 = vpop.f32.mrf.mxu0
        %v4339 = vadd.f32 %v4259, %v4338
        %v4340 = vpop.f32.mrf.mxu0
        %v4341 = vadd.f32 %v4259, %v4340
        %4342 = vmatmul.bf16.gmra.mxu0 %v4181
        %v4343 = vpop.f32.mrf.mxu0
        %v4344 = vadd.f32 %v4259, %v4343
        %v4345 = vpop.f32.mrf.mxu0
        %v4346 = vadd.f32 %v4259, %v4345
        %4347 = vmatmul.bf16.gmra.mxu0 %v4182
        %v4348 = vpop.f32.mrf.mxu0
        %v4349 = vadd.f32 %v4259, %v4348
        %v4350 = vpop.f32.mrf.mxu0
        %v4351 = vadd.f32 %v4259, %v4350
        %4352 = vmatmul.bf16.gmra.mxu0 %v4183
        %v4353 = vpop.f32.mrf.mxu0
        %v4354 = vadd.f32 %v4259, %v4353
        %v4355 = vpop.f32.mrf.mxu0
        %v4356 = vadd.f32 %v4259, %v4355
        %4357 = vmatmul.bf16.gmra.mxu0 %v4184
        %v4358 = vpop.f32.mrf.mxu0
        %v4359 = vadd.f32 %v4259, %v4358
        %v4360 = vpop.f32.mrf.mxu0
        %v4361 = vadd.f32 %v4259, %v4360
        %4362 = vmatmul.bf16.gmra.mxu0 %v4185
        %v4363 = vpop.f32.mrf.mxu0
        %v4364 = vadd.f32 %v4259, %v4363
        %v4365 = vpop.f32.mrf.mxu0
        %v4366 = vadd.f32 %v4259, %v4365
        %4367 = vmatmul.bf16.gmra.mxu0 %v4186
        %v4368 = vpop.f32.mrf.mxu0
        %v4369 = vadd.f32 %v4259, %v4368
        %v4370 = vpop.f32.mrf.mxu0
        %v4371 = vadd.f32 %v4259, %v4370
        %4372 = vmatmul.bf16.gmra.mxu0 %v4187
        %v4373 = vpop.f32.mrf.mxu0
        %v4374 = vadd.f32 %v4259, %v4373
        %v4375 = vpop.f32.mrf.mxu0
        %v4376 = vadd.f32 %v4259, %v4375
        %4377 = vmatmul.bf16.gmra.mxu0 %v4188
        %v4378 = vpop.f32.mrf.mxu0
        %v4379 = vadd.f32 %v4259, %v4378
        %v4380 = vpop.f32.mrf.mxu0
        %v4381 = vadd.f32 %v4259, %v4380
        %4382 = vmatmul.bf16.gmra.mxu0 %v4189
        %v4383 = vpop.f32.mrf.mxu0
        %v4384 = vadd.f32 %v4259, %v4383
        %v4385 = vpop.f32.mrf.mxu0
        %v4386 = vadd.f32 %v4259, %v4385
        %4387 = vmatmul.bf16.gmra.mxu0 %v4190
        %v4388 = vpop.f32.mrf.mxu0
        %v4389 = vadd.f32 %v4259, %v4388
        %v4390 = vpop.f32.mrf.mxu0
        %v4391 = vadd.f32 %v4259, %v4390
        %4392 = vmatmul.bf16.gmra.mxu0 %v4191
        %v4393 = vpop.f32.mrf.mxu0
        %v4394 = vadd.f32 %v4259, %v4393
        %v4395 = vpop.f32.mrf.mxu0
        %v4396 = vadd.f32 %v4259, %v4395
        %4397 = vmatmul.bf16.gmra.mxu0 %v4192
        %v4398 = vpop.f32.mrf.mxu0
        %v4399 = vadd.f32 %v4259, %v4398
        %v4400 = vpop.f32.mrf.mxu0
        %v4401 = vadd.f32 %v4259, %v4400
        %4402 = vmatmul.bf16.gmra.mxu0 %v4193
        %v4403 = vpop.f32.mrf.mxu0
        %v4404 = vadd.f32 %v4259, %v4403
        %v4405 = vpop.f32.mrf.mxu0
        %v4406 = vadd.f32 %v4259, %v4405
        %4407 = vmatmul.bf16.gmra.mxu0 %v4194
        %v4408 = vpop.f32.mrf.mxu0
        %v4409 = vadd.f32 %v4259, %v4408
        %v4410 = vpop.f32.mrf.mxu0
        %v4411 = vadd.f32 %v4259, %v4410
        %4412 = vmatmul.bf16.gmra.mxu0 %v4195
        %v4413 = vpop.f32.mrf.mxu0
        %v4414 = vadd.f32 %v4259, %v4413
        %v4415 = vpop.f32.mrf.mxu0
        %v4416 = vadd.f32 %v4259, %v4415
        %4417 = vmatmul.bf16.gmra.mxu0 %v4196
        %v4418 = vpop.f32.mrf.mxu0
        %v4419 = vadd.f32 %v4259, %v4418
        %v4420 = vpop.f32.mrf.mxu0
        %v4421 = vadd.f32 %v4259, %v4420
        %4422 = vmatmul.bf16.gmra.mxu0 %v4197
        %v4423 = vpop.f32.mrf.mxu0
        %v4424 = vadd.f32 %v4259, %v4423
        %v4425 = vpop.f32.mrf.mxu0
        %v4426 = vadd.f32 %v4259, %v4425
        %4427 = vmatmul.bf16.gmra.mxu0 %v4198
        %v4428 = vpop.f32.mrf.mxu0
        %v4429 = vadd.f32 %v4259, %v4428
        %v4430 = vpop.f32.mrf.mxu0
        %v4431 = vadd.f32 %v4259, %v4430
        %4432 = vmatmul.bf16.gmra.mxu0 %v4199
        %v4433 = vpop.f32.mrf.mxu0
        %v4434 = vadd.f32 %v4259, %v4433
        %v4435 = vpop.f32.mrf.mxu0
        %v4436 = vadd.f32 %v4259, %v4435
        %4437 = vmatmul.bf16.gmra.mxu0 %v4200
        %v4438 = vpop.f32.mrf.mxu0
        %v4439 = vadd.f32 %v4259, %v4438
        %v4440 = vpop.f32.mrf.mxu0
        %v4441 = vadd.f32 %v4259, %v4440
        %4442 = vmatmul.bf16.gmra.mxu0 %v4201
        %v4443 = vpop.f32.mrf.mxu0
        %v4444 = vadd.f32 %v4259, %v4443
        %v4445 = vpop.f32.mrf.mxu0
        %v4446 = vadd.f32 %v4259, %v4445
        %4447 = vmatmul.bf16.gmra.mxu0 %v4202
        %v4448 = vpop.f32.mrf.mxu0
        %v4449 = vadd.f32 %v4259, %v4448
        %v4450 = vpop.f32.mrf.mxu0
        %v4451 = vadd.f32 %v4259, %v4450
        %4452 = vmatmul.bf16.gmra.mxu0 %v4203
        %v4453 = vpop.f32.mrf.mxu0
        %v4454 = vadd.f32 %v4259, %v4453
        %v4455 = vpop.f32.mrf.mxu0
        %v4456 = vadd.f32 %v4259, %v4455
        %4457 = vmatmul.bf16.gmra.mxu0 %v4204
        %v4458 = vpop.f32.mrf.mxu0
        %v4459 = vadd.f32 %v4259, %v4458
        %v4460 = vpop.f32.mrf.mxu0
        %v4461 = vadd.f32 %v4259, %v4460
        %4462 = vmatmul.bf16.gmra.mxu0 %v4205
        %v4463 = vpop.f32.mrf.mxu0
        %v4464 = vadd.f32 %v4259, %v4463
        %v4465 = vpop.f32.mrf.mxu0
        %v4466 = vadd.f32 %v4259, %v4465
        %4467 = vmatmul.bf16.gmra.mxu0 %v4206
        %v4468 = vpop.f32.mrf.mxu0
        %v4469 = vadd.f32 %v4259, %v4468
        %v4470 = vpop.f32.mrf.mxu0
        %v4471 = vadd.f32 %v4259, %v4470
        %4472 = vmatmul.bf16.gmra.mxu0 %v4207
        %v4473 = vpop.f32.mrf.mxu0
        %v4474 = vadd.f32 %v4259, %v4473
        %v4475 = vpop.f32.mrf.mxu0
        %v4476 = vadd.f32 %v4259, %v4475
        %4477 = vdwg.mxu0
        %s4478 = scalar_lea.vmem [#allocation10], 192
        %v4479 = vld [vmem:[%s4478] sm:$0xf]
        %v4480 = vld [vmem:[%s4478 + $0x4] sm:$0xf]
        %v4481 = vld [vmem:[%s4478 + $0x8] sm:$0xf]
        %v4482 = vld [vmem:[%s4478 + $0xc] sm:$0xf]
        %v4483 = vld [vmem:[%s4478 + $0x10] sm:$0xf]
        %v4484 = vld [vmem:[%s4478 + $0x14] sm:$0xf]
        %v4485 = vld [vmem:[%s4478 + $0x18] sm:$0xf]
        %v4486 = vld [vmem:[%s4478 + $0x1c] sm:$0xf]
        %v4487 = vld [vmem:[%s4478 + $0x20] sm:$0xf]
        %v4488 = vld [vmem:[%s4478 + $0x24] sm:$0xf]
        %v4489 = vld [vmem:[%s4478 + $0x28] sm:$0xf]
        %v4490 = vld [vmem:[%s4478 + $0x2c] sm:$0xf]
        %v4491 = vld [vmem:[%s4478 + $0x30] sm:$0xf]
        %v4492 = vld [vmem:[%s4478 + $0x34] sm:$0xf]
        %v4493 = vld [vmem:[%s4478 + $0x38] sm:$0xf]
        %v4494 = vld [vmem:[%s4478 + $0x3c] sm:$0xf]
        %v4495 = vld [vmem:[#allocation11 + $0x3] sm:$0x1]
        %v4497 = vperm.slane %v4495, 0
        %v4515 = vunpack.c.l.b16 %v4479
        %v4516 = vunpack.c.l.b16 %v4480
        %v4517 = vunpack.c.l.b16 %v4481
        %v4518 = vunpack.c.l.b16 %v4482
        %v4519 = vunpack.c.l.b16 %v4483
        %v4520 = vunpack.c.l.b16 %v4484
        %v4521 = vunpack.c.l.b16 %v4485
        %v4522 = vunpack.c.l.b16 %v4486
        %v4523 = vunpack.c.l.b16 %v4487
        %v4524 = vunpack.c.l.b16 %v4488
        %v4525 = vunpack.c.l.b16 %v4489
        %v4526 = vunpack.c.l.b16 %v4490
        %v4527 = vunpack.c.l.b16 %v4491
        %v4528 = vunpack.c.l.b16 %v4492
        %v4529 = vunpack.c.l.b16 %v4493
        %v4530 = vunpack.c.l.b16 %v4494
        %v4531 = vpack.c.b16 %v4516, %v4515
        %v4532 = vpack.c.b16 %v4518, %v4517
        %v4533 = vpack.c.b16 %v4520, %v4519
        %v4534 = vpack.c.b16 %v4522, %v4521
        %v4535 = vpack.c.b16 %v4524, %v4523
        %v4536 = vpack.c.b16 %v4526, %v4525
        %v4537 = vpack.c.b16 %v4528, %v4527
        %v4538 = vpack.c.b16 %v4530, %v4529
        %4547 = vmatpush.bf16.msra.mxu0 %v4538
        %4548 = vmatpush.bf16.msra.mxu0 %v4537
        %4549 = vmatpush.bf16.msra.mxu0 %v4536
        %4550 = vmatpush.bf16.msra.mxu0 %v4535
        %4551 = vmatpush.bf16.msra.mxu0 %v4534
        %4552 = vmatpush.bf16.msra.mxu0 %v4533
        %4553 = vmatpush.bf16.msra.mxu0 %v4532
        %4554 = vmatpush.bf16.msra.mxu0 %v4531
        %4555 = vmatmul.bf16.gmra.mxu0 %v4208
        %v4556 = vpop.f32.mrf.mxu0
        %v4557 = vadd.f32 %v4497, %v4556
        %v4558 = vpop.f32.mrf.mxu0
        %v4559 = vadd.f32 %v4497, %v4558
        %4560 = vmatmul.bf16.gmra.mxu0 %v4209
        %v4561 = vpop.f32.mrf.mxu0
        %v4562 = vadd.f32 %v4497, %v4561
        %v4563 = vpop.f32.mrf.mxu0
        %v4564 = vadd.f32 %v4497, %v4563
        %4565 = vmatmul.bf16.gmra.mxu0 %v4210
        %v4566 = vpop.f32.mrf.mxu0
        %v4567 = vadd.f32 %v4497, %v4566
        %v4568 = vpop.f32.mrf.mxu0
        %v4569 = vadd.f32 %v4497, %v4568
        %4570 = vmatmul.bf16.gmra.mxu0 %v4211
        %v4571 = vpop.f32.mrf.mxu0
        %v4572 = vadd.f32 %v4497, %v4571
        %v4573 = vpop.f32.mrf.mxu0
        %v4574 = vadd.f32 %v4497, %v4573
        %4575 = vmatmul.bf16.gmra.mxu0 %v4212
        %v4576 = vpop.f32.mrf.mxu0
        %v4577 = vadd.f32 %v4497, %v4576
        %v4578 = vpop.f32.mrf.mxu0
        %v4579 = vadd.f32 %v4497, %v4578
        %4580 = vmatmul.bf16.gmra.mxu0 %v4213
        %v4581 = vpop.f32.mrf.mxu0
        %v4582 = vadd.f32 %v4497, %v4581
        %v4583 = vpop.f32.mrf.mxu0
        %v4584 = vadd.f32 %v4497, %v4583
        %4585 = vmatmul.bf16.gmra.mxu0 %v4214
        %v4586 = vpop.f32.mrf.mxu0
        %v4587 = vadd.f32 %v4497, %v4586
        %v4588 = vpop.f32.mrf.mxu0
        %v4589 = vadd.f32 %v4497, %v4588
        %4590 = vmatmul.bf16.gmra.mxu0 %v4215
        %v4591 = vpop.f32.mrf.mxu0
        %v4592 = vadd.f32 %v4497, %v4591
        %v4593 = vpop.f32.mrf.mxu0
        %v4594 = vadd.f32 %v4497, %v4593
        %4595 = vmatmul.bf16.gmra.mxu0 %v4216
        %v4596 = vpop.f32.mrf.mxu0
        %v4597 = vadd.f32 %v4497, %v4596
        %v4598 = vpop.f32.mrf.mxu0
        %v4599 = vadd.f32 %v4497, %v4598
        %4600 = vmatmul.bf16.gmra.mxu0 %v4217
        %v4601 = vpop.f32.mrf.mxu0
        %v4602 = vadd.f32 %v4497, %v4601
        %v4603 = vpop.f32.mrf.mxu0
        %v4604 = vadd.f32 %v4497, %v4603
        %4605 = vmatmul.bf16.gmra.mxu0 %v4218
        %v4606 = vpop.f32.mrf.mxu0
        %v4607 = vadd.f32 %v4497, %v4606
        %v4608 = vpop.f32.mrf.mxu0
        %v4609 = vadd.f32 %v4497, %v4608
        %4610 = vmatmul.bf16.gmra.mxu0 %v4219
        %v4611 = vpop.f32.mrf.mxu0
        %v4612 = vadd.f32 %v4497, %v4611
        %v4613 = vpop.f32.mrf.mxu0
        %v4614 = vadd.f32 %v4497, %v4613
        %4615 = vmatmul.bf16.gmra.mxu0 %v4220
        %v4616 = vpop.f32.mrf.mxu0
        %v4617 = vadd.f32 %v4497, %v4616
        %v4618 = vpop.f32.mrf.mxu0
        %v4619 = vadd.f32 %v4497, %v4618
        %4620 = vmatmul.bf16.gmra.mxu0 %v4221
        %v4621 = vpop.f32.mrf.mxu0
        %v4622 = vadd.f32 %v4497, %v4621
        %v4623 = vpop.f32.mrf.mxu0
        %v4624 = vadd.f32 %v4497, %v4623
        %4625 = vmatmul.bf16.gmra.mxu0 %v4222
        %v4626 = vpop.f32.mrf.mxu0
        %v4627 = vadd.f32 %v4497, %v4626
        %v4628 = vpop.f32.mrf.mxu0
        %v4629 = vadd.f32 %v4497, %v4628
        %4630 = vmatmul.bf16.gmra.mxu0 %v4223
        %v4631 = vpop.f32.mrf.mxu0
        %v4632 = vadd.f32 %v4497, %v4631
        %v4633 = vpop.f32.mrf.mxu0
        %v4634 = vadd.f32 %v4497, %v4633
        %4635 = vmatmul.bf16.gmra.mxu0 %v4224
        %v4636 = vpop.f32.mrf.mxu0
        %v4637 = vadd.f32 %v4497, %v4636
        %v4638 = vpop.f32.mrf.mxu0
        %v4639 = vadd.f32 %v4497, %v4638
        %4640 = vmatmul.bf16.gmra.mxu0 %v4225
        %v4641 = vpop.f32.mrf.mxu0
        %v4642 = vadd.f32 %v4497, %v4641
        %v4643 = vpop.f32.mrf.mxu0
        %v4644 = vadd.f32 %v4497, %v4643
        %4645 = vmatmul.bf16.gmra.mxu0 %v4226
        %v4646 = vpop.f32.mrf.mxu0
        %v4647 = vadd.f32 %v4497, %v4646
        %v4648 = vpop.f32.mrf.mxu0
        %v4649 = vadd.f32 %v4497, %v4648
        %4650 = vmatmul.bf16.gmra.mxu0 %v4227
        %v4651 = vpop.f32.mrf.mxu0
        %v4652 = vadd.f32 %v4497, %v4651
        %v4653 = vpop.f32.mrf.mxu0
        %v4654 = vadd.f32 %v4497, %v4653
        %4655 = vmatmul.bf16.gmra.mxu0 %v4228
        %v4656 = vpop.f32.mrf.mxu0
        %v4657 = vadd.f32 %v4497, %v4656
        %v4658 = vpop.f32.mrf.mxu0
        %v4659 = vadd.f32 %v4497, %v4658
        %4660 = vmatmul.bf16.gmra.mxu0 %v4229
        %v4661 = vpop.f32.mrf.mxu0
        %v4662 = vadd.f32 %v4497, %v4661
        %v4663 = vpop.f32.mrf.mxu0
        %v4664 = vadd.f32 %v4497, %v4663
        %4665 = vmatmul.bf16.gmra.mxu0 %v4230
        %v4666 = vpop.f32.mrf.mxu0
        %v4667 = vadd.f32 %v4497, %v4666
        %v4668 = vpop.f32.mrf.mxu0
        %v4669 = vadd.f32 %v4497, %v4668
        %4670 = vmatmul.bf16.gmra.mxu0 %v4231
        %v4671 = vpop.f32.mrf.mxu0
        %v4672 = vadd.f32 %v4497, %v4671
        %v4673 = vpop.f32.mrf.mxu0
        %v4674 = vadd.f32 %v4497, %v4673
        %4675 = vmatmul.bf16.gmra.mxu0 %v4232
        %v4676 = vpop.f32.mrf.mxu0
        %v4677 = vadd.f32 %v4497, %v4676
        %v4678 = vpop.f32.mrf.mxu0
        %v4679 = vadd.f32 %v4497, %v4678
        %4680 = vmatmul.bf16.gmra.mxu0 %v4233
        %v4681 = vpop.f32.mrf.mxu0
        %v4682 = vadd.f32 %v4497, %v4681
        %v4683 = vpop.f32.mrf.mxu0
        %v4684 = vadd.f32 %v4497, %v4683
        %4685 = vmatmul.bf16.gmra.mxu0 %v4234
        %v4686 = vpop.f32.mrf.mxu0
        %v4687 = vadd.f32 %v4497, %v4686
        %v4688 = vpop.f32.mrf.mxu0
        %v4689 = vadd.f32 %v4497, %v4688
        %4690 = vmatmul.bf16.gmra.mxu0 %v4235
        %v4691 = vpop.f32.mrf.mxu0
        %v4692 = vadd.f32 %v4497, %v4691
        %v4693 = vpop.f32.mrf.mxu0
        %v4694 = vadd.f32 %v4497, %v4693
        %4695 = vmatmul.bf16.gmra.mxu0 %v4236
        %v4696 = vpop.f32.mrf.mxu0
        %v4697 = vadd.f32 %v4497, %v4696
        %v4698 = vpop.f32.mrf.mxu0
        %v4699 = vadd.f32 %v4497, %v4698
        %4700 = vmatmul.bf16.gmra.mxu0 %v4237
        %v4701 = vpop.f32.mrf.mxu0
        %v4702 = vadd.f32 %v4497, %v4701
        %v4703 = vpop.f32.mrf.mxu0
        %v4704 = vadd.f32 %v4497, %v4703
        %4705 = vmatmul.bf16.gmra.mxu0 %v4238
        %v4706 = vpop.f32.mrf.mxu0
        %v4707 = vadd.f32 %v4497, %v4706
        %v4708 = vpop.f32.mrf.mxu0
        %v4709 = vadd.f32 %v4497, %v4708
        %4710 = vmatmul.bf16.gmra.mxu0 %v4239
        %v4711 = vpop.f32.mrf.mxu0
        %v4712 = vadd.f32 %v4497, %v4711
        %v4713 = vpop.f32.mrf.mxu0
        %v4714 = vadd.f32 %v4497, %v4713
        %4715 = vdwg.mxu0
        %v4716 = vmul.f32 %v4319, 0.5
        %v4717 = vmul.f32 %v4321, 0.5
        %v4718 = vmul.f32 %v4324, 0.5
        %v4719 = vmul.f32 %v4326, 0.5
        %v4720 = vmul.f32 %v4329, 0.5
        %v4721 = vmul.f32 %v4331, 0.5
        %v4722 = vmul.f32 %v4334, 0.5
        %v4723 = vmul.f32 %v4336, 0.5
        %v4724 = vmul.f32 %v4339, 0.5
        %v4725 = vmul.f32 %v4341, 0.5
        %v4726 = vmul.f32 %v4344, 0.5
        %v4727 = vmul.f32 %v4346, 0.5
        %v4728 = vmul.f32 %v4349, 0.5
        %v4729 = vmul.f32 %v4351, 0.5
        %v4730 = vmul.f32 %v4354, 0.5
        %v4731 = vmul.f32 %v4356, 0.5
        %v4732 = vmul.f32 %v4359, 0.5
        %v4733 = vmul.f32 %v4361, 0.5
        %v4734 = vmul.f32 %v4364, 0.5
        %v4735 = vmul.f32 %v4366, 0.5
        %v4736 = vmul.f32 %v4369, 0.5
        %v4737 = vmul.f32 %v4371, 0.5
        %v4738 = vmul.f32 %v4374, 0.5
        %v4739 = vmul.f32 %v4376, 0.5
        %v4740 = vmul.f32 %v4379, 0.5
        %v4741 = vmul.f32 %v4381, 0.5
        %v4742 = vmul.f32 %v4384, 0.5
        %v4743 = vmul.f32 %v4386, 0.5
        %v4744 = vmul.f32 %v4389, 0.5
        %v4745 = vmul.f32 %v4391, 0.5
        %v4746 = vmul.f32 %v4394, 0.5
        %v4747 = vmul.f32 %v4396, 0.5
        %v4748 = vmul.f32 %v4399, 0.5
        %v4749 = vmul.f32 %v4401, 0.5
        %v4750 = vmul.f32 %v4404, 0.5
        %v4751 = vmul.f32 %v4406, 0.5
        %v4752 = vmul.f32 %v4409, 0.5
        %v4753 = vmul.f32 %v4411, 0.5
        %v4754 = vmul.f32 %v4414, 0.5
        %v4755 = vmul.f32 %v4416, 0.5
        %v4756 = vmul.f32 %v4419, 0.5
        %v4757 = vmul.f32 %v4421, 0.5
        %v4758 = vmul.f32 %v4424, 0.5
        %v4759 = vmul.f32 %v4426, 0.5
        %v4760 = vmul.f32 %v4429, 0.5
        %v4761 = vmul.f32 %v4431, 0.5
        %v4762 = vmul.f32 %v4434, 0.5
        %v4763 = vmul.f32 %v4436, 0.5
        %v4764 = vmul.f32 %v4439, 0.5
        %v4765 = vmul.f32 %v4441, 0.5
        %v4766 = vmul.f32 %v4444, 0.5
        %v4767 = vmul.f32 %v4446, 0.5
        %v4768 = vmul.f32 %v4449, 0.5
        %v4769 = vmul.f32 %v4451, 0.5
        %v4770 = vmul.f32 %v4454, 0.5
        %v4771 = vmul.f32 %v4456, 0.5
        %v4772 = vmul.f32 %v4459, 0.5
        %v4773 = vmul.f32 %v4461, 0.5
        %v4774 = vmul.f32 %v4464, 0.5
        %v4775 = vmul.f32 %v4466, 0.5
        %v4776 = vmul.f32 %v4469, 0.5
        %v4777 = vmul.f32 %v4471, 0.5
        %v4778 = vmul.f32 %v4474, 0.5
        %v4779 = vmul.f32 %v4476, 0.5
        %v4780 = vtanh.pop %v4716
        %v4781 = vtanh.pop %v4717
        %v4782 = vtanh.pop %v4718
        %v4783 = vtanh.pop %v4719
        %v4784 = vtanh.pop %v4720
        %v4785 = vtanh.pop %v4721
        %v4786 = vtanh.pop %v4722
        %v4787 = vtanh.pop %v4723
        %v4788 = vtanh.pop %v4724
        %v4789 = vtanh.pop %v4725
        %v4790 = vtanh.pop %v4726
        %v4791 = vtanh.pop %v4727
        %v4792 = vtanh.pop %v4728
        %v4793 = vtanh.pop %v4729
        %v4794 = vtanh.pop %v4730
        %v4795 = vtanh.pop %v4731
        %v4796 = vtanh.pop %v4732
        %v4797 = vtanh.pop %v4733
        %v4798 = vtanh.pop %v4734
        %v4799 = vtanh.pop %v4735
        %v4800 = vtanh.pop %v4736
        %v4801 = vtanh.pop %v4737
        %v4802 = vtanh.pop %v4738
        %v4803 = vtanh.pop %v4739
        %v4804 = vtanh.pop %v4740
        %v4805 = vtanh.pop %v4741
        %v4806 = vtanh.pop %v4742
        %v4807 = vtanh.pop %v4743
        %v4808 = vtanh.pop %v4744
        %v4809 = vtanh.pop %v4745
        %v4810 = vtanh.pop %v4746
        %v4811 = vtanh.pop %v4747
        %v4812 = vtanh.pop %v4748
        %v4813 = vtanh.pop %v4749
        %v4814 = vtanh.pop %v4750
        %v4815 = vtanh.pop %v4751
        %v4816 = vtanh.pop %v4752
        %v4817 = vtanh.pop %v4753
        %v4818 = vtanh.pop %v4754
        %v4819 = vtanh.pop %v4755
        %v4820 = vtanh.pop %v4756
        %v4821 = vtanh.pop %v4757
        %v4822 = vtanh.pop %v4758
        %v4823 = vtanh.pop %v4759
        %v4824 = vtanh.pop %v4760
        %v4825 = vtanh.pop %v4761
        %v4826 = vtanh.pop %v4762
        %v4827 = vtanh.pop %v4763
        %v4828 = vtanh.pop %v4764
        %v4829 = vtanh.pop %v4765
        %v4830 = vtanh.pop %v4766
        %v4831 = vtanh.pop %v4767
        %v4832 = vtanh.pop %v4768
        %v4833 = vtanh.pop %v4769
        %v4834 = vtanh.pop %v4770
        %v4835 = vtanh.pop %v4771
        %v4836 = vtanh.pop %v4772
        %v4837 = vtanh.pop %v4773
        %v4838 = vtanh.pop %v4774
        %v4839 = vtanh.pop %v4775
        %v4840 = vtanh.pop %v4776
        %v4841 = vtanh.pop %v4777
        %v4842 = vtanh.pop %v4778
        %v4843 = vtanh.pop %v4779
        %v4844 = vmul.f32 %v4780, 2.0
        %v4845 = vmul.f32 %v4781, 2.0
        %v4846 = vmul.f32 %v4782, 2.0
        %v4847 = vmul.f32 %v4783, 2.0
        %v4848 = vmul.f32 %v4784, 2.0
        %v4849 = vmul.f32 %v4785, 2.0
        %v4850 = vmul.f32 %v4786, 2.0
        %v4851 = vmul.f32 %v4787, 2.0
        %v4852 = vmul.f32 %v4788, 2.0
        %v4853 = vmul.f32 %v4789, 2.0
        %v4854 = vmul.f32 %v4790, 2.0
        %v4855 = vmul.f32 %v4791, 2.0
        %v4856 = vmul.f32 %v4792, 2.0
        %v4857 = vmul.f32 %v4793, 2.0
        %v4858 = vmul.f32 %v4794, 2.0
        %v4859 = vmul.f32 %v4795, 2.0
        %v4860 = vmul.f32 %v4796, 2.0
        %v4861 = vmul.f32 %v4797, 2.0
        %v4862 = vmul.f32 %v4798, 2.0
        %v4863 = vmul.f32 %v4799, 2.0
        %v4864 = vmul.f32 %v4800, 2.0
        %v4865 = vmul.f32 %v4801, 2.0
        %v4866 = vmul.f32 %v4802, 2.0
        %v4867 = vmul.f32 %v4803, 2.0
        %v4868 = vmul.f32 %v4804, 2.0
        %v4869 = vmul.f32 %v4805, 2.0
        %v4870 = vmul.f32 %v4806, 2.0
        %v4871 = vmul.f32 %v4807, 2.0
        %v4872 = vmul.f32 %v4808, 2.0
        %v4873 = vmul.f32 %v4809, 2.0
        %v4874 = vmul.f32 %v4810, 2.0
        %v4875 = vmul.f32 %v4811, 2.0
        %v4876 = vmul.f32 %v4812, 2.0
        %v4877 = vmul.f32 %v4813, 2.0
        %v4878 = vmul.f32 %v4814, 2.0
        %v4879 = vmul.f32 %v4815, 2.0
        %v4880 = vmul.f32 %v4816, 2.0
        %v4881 = vmul.f32 %v4817, 2.0
        %v4882 = vmul.f32 %v4818, 2.0
        %v4883 = vmul.f32 %v4819, 2.0
        %v4884 = vmul.f32 %v4820, 2.0
        %v4885 = vmul.f32 %v4821, 2.0
        %v4886 = vmul.f32 %v4822, 2.0
        %v4887 = vmul.f32 %v4823, 2.0
        %v4888 = vmul.f32 %v4824, 2.0
        %v4889 = vmul.f32 %v4825, 2.0
        %v4890 = vmul.f32 %v4826, 2.0
        %v4891 = vmul.f32 %v4827, 2.0
        %v4892 = vmul.f32 %v4828, 2.0
        %v4893 = vmul.f32 %v4829, 2.0
        %v4894 = vmul.f32 %v4830, 2.0
        %v4895 = vmul.f32 %v4831, 2.0
        %v4896 = vmul.f32 %v4832, 2.0
        %v4897 = vmul.f32 %v4833, 2.0
        %v4898 = vmul.f32 %v4834, 2.0
        %v4899 = vmul.f32 %v4835, 2.0
        %v4900 = vmul.f32 %v4836, 2.0
        %v4901 = vmul.f32 %v4837, 2.0
        %v4902 = vmul.f32 %v4838, 2.0
        %v4903 = vmul.f32 %v4839, 2.0
        %v4904 = vmul.f32 %v4840, 2.0
        %v4905 = vmul.f32 %v4841, 2.0
        %v4906 = vmul.f32 %v4842, 2.0
        %v4907 = vmul.f32 %v4843, 2.0
        %v4908 = vmul.f32 %v4844, 1.442695
        %v4909 = vpow.pop %v4908
        %v4910 = vmul.f32 %v4845, 1.442695
        %v4911 = vpow.pop %v4910
        %v4912 = vmul.f32 %v4846, 1.442695
        %v4913 = vpow.pop %v4912
        %v4914 = vmul.f32 %v4847, 1.442695
        %v4915 = vpow.pop %v4914
        %v4916 = vmul.f32 %v4848, 1.442695
        %v4917 = vpow.pop %v4916
        %v4918 = vmul.f32 %v4849, 1.442695
        %v4919 = vpow.pop %v4918
        %v4920 = vmul.f32 %v4850, 1.442695
        %v4921 = vpow.pop %v4920
        %v4922 = vmul.f32 %v4851, 1.442695
        %v4923 = vpow.pop %v4922
        %v4924 = vmul.f32 %v4852, 1.442695
        %v4925 = vpow.pop %v4924
        %v4926 = vmul.f32 %v4853, 1.442695
        %v4927 = vpow.pop %v4926
        %v4928 = vmul.f32 %v4854, 1.442695
        %v4929 = vpow.pop %v4928
        %v4930 = vmul.f32 %v4855, 1.442695
        %v4931 = vpow.pop %v4930
        %v4932 = vmul.f32 %v4856, 1.442695
        %v4933 = vpow.pop %v4932
        %v4934 = vmul.f32 %v4857, 1.442695
        %v4935 = vpow.pop %v4934
        %v4936 = vmul.f32 %v4858, 1.442695
        %v4937 = vpow.pop %v4936
        %v4938 = vmul.f32 %v4859, 1.442695
        %v4939 = vpow.pop %v4938
        %v4940 = vmul.f32 %v4860, 1.442695
        %v4941 = vpow.pop %v4940
        %v4942 = vmul.f32 %v4861, 1.442695
        %v4943 = vpow.pop %v4942
        %v4944 = vmul.f32 %v4862, 1.442695
        %v4945 = vpow.pop %v4944
        %v4946 = vmul.f32 %v4863, 1.442695
        %v4947 = vpow.pop %v4946
        %v4948 = vmul.f32 %v4864, 1.442695
        %v4949 = vpow.pop %v4948
        %v4950 = vmul.f32 %v4865, 1.442695
        %v4951 = vpow.pop %v4950
        %v4952 = vmul.f32 %v4866, 1.442695
        %v4953 = vpow.pop %v4952
        %v4954 = vmul.f32 %v4867, 1.442695
        %v4955 = vpow.pop %v4954
        %v4956 = vmul.f32 %v4868, 1.442695
        %v4957 = vpow.pop %v4956
        %v4958 = vmul.f32 %v4869, 1.442695
        %v4959 = vpow.pop %v4958
        %v4960 = vmul.f32 %v4870, 1.442695
        %v4961 = vpow.pop %v4960
        %v4962 = vmul.f32 %v4871, 1.442695
        %v4963 = vpow.pop %v4962
        %v4964 = vmul.f32 %v4872, 1.442695
        %v4965 = vpow.pop %v4964
        %v4966 = vmul.f32 %v4873, 1.442695
        %v4967 = vpow.pop %v4966
        %v4968 = vmul.f32 %v4874, 1.442695
        %v4969 = vpow.pop %v4968
        %v4970 = vmul.f32 %v4875, 1.442695
        %v4971 = vpow.pop %v4970
        %v4972 = vmul.f32 %v4876, 1.442695
        %v4973 = vpow.pop %v4972
        %v4974 = vmul.f32 %v4877, 1.442695
        %v4975 = vpow.pop %v4974
        %v4976 = vmul.f32 %v4878, 1.442695
        %v4977 = vpow.pop %v4976
        %v4978 = vmul.f32 %v4879, 1.442695
        %v4979 = vpow.pop %v4978
        %v4980 = vmul.f32 %v4880, 1.442695
        %v4981 = vpow.pop %v4980
        %v4982 = vmul.f32 %v4881, 1.442695
        %v4983 = vpow.pop %v4982
        %v4984 = vmul.f32 %v4882, 1.442695
        %v4985 = vpow.pop %v4984
        %v4986 = vmul.f32 %v4883, 1.442695
        %v4987 = vpow.pop %v4986
        %v4988 = vmul.f32 %v4884, 1.442695
        %v4989 = vpow.pop %v4988
        %v4990 = vmul.f32 %v4885, 1.442695
        %v4991 = vpow.pop %v4990
        %v4992 = vmul.f32 %v4886, 1.442695
        %v4993 = vpow.pop %v4992
        %v4994 = vmul.f32 %v4887, 1.442695
        %v4995 = vpow.pop %v4994
        %v4996 = vmul.f32 %v4888, 1.442695
        %v4997 = vpow.pop %v4996
        %v4998 = vmul.f32 %v4889, 1.442695
        %v4999 = vpow.pop %v4998
        %v5000 = vmul.f32 %v4890, 1.442695
        %v5001 = vpow.pop %v5000
        %v5002 = vmul.f32 %v4891, 1.442695
        %v5003 = vpow.pop %v5002
        %v5004 = vmul.f32 %v4892, 1.442695
        %v5005 = vpow.pop %v5004
        %v5006 = vmul.f32 %v4893, 1.442695
        %v5007 = vpow.pop %v5006
        %v5008 = vmul.f32 %v4894, 1.442695
        %v5009 = vpow.pop %v5008
        %v5010 = vmul.f32 %v4895, 1.442695
        %v5011 = vpow.pop %v5010
        %v5012 = vmul.f32 %v4896, 1.442695
        %v5013 = vpow.pop %v5012
        %v5014 = vmul.f32 %v4897, 1.442695
        %v5015 = vpow.pop %v5014
        %v5016 = vmul.f32 %v4898, 1.442695
        %v5017 = vpow.pop %v5016
        %v5018 = vmul.f32 %v4899, 1.442695
        %v5019 = vpow.pop %v5018
        %v5020 = vmul.f32 %v4900, 1.442695
        %v5021 = vpow.pop %v5020
        %v5022 = vmul.f32 %v4901, 1.442695
        %v5023 = vpow.pop %v5022
        %v5024 = vmul.f32 %v4902, 1.442695
        %v5025 = vpow.pop %v5024
        %v5026 = vmul.f32 %v4903, 1.442695
        %v5027 = vpow.pop %v5026
        %v5028 = vmul.f32 %v4904, 1.442695
        %v5029 = vpow.pop %v5028
        %v5030 = vmul.f32 %v4905, 1.442695
        %v5031 = vpow.pop %v5030
        %v5032 = vmul.f32 %v4906, 1.442695
        %v5033 = vpow.pop %v5032
        %v5034 = vmul.f32 %v4907, 1.442695
        %v5035 = vpow.pop %v5034
        %v5036 = vmul.f32 %v3697, %v4909
        %v5037 = vmul.f32 %v3699, %v4911
        %v5038 = vmul.f32 %v3702, %v4913
        %v5039 = vmul.f32 %v3704, %v4915
        %v5040 = vmul.f32 %v3707, %v4917
        %v5041 = vmul.f32 %v3709, %v4919
        %v5042 = vmul.f32 %v3712, %v4921
        %v5043 = vmul.f32 %v3714, %v4923
        %v5044 = vmul.f32 %v3717, %v4925
        %v5045 = vmul.f32 %v3719, %v4927
        %v5046 = vmul.f32 %v3722, %v4929
        %v5047 = vmul.f32 %v3724, %v4931
        %v5048 = vmul.f32 %v3727, %v4933
        %v5049 = vmul.f32 %v3729, %v4935
        %v5050 = vmul.f32 %v3732, %v4937
        %v5051 = vmul.f32 %v3734, %v4939
        %v5052 = vmul.f32 %v3737, %v4941
        %v5053 = vmul.f32 %v3739, %v4943
        %v5054 = vmul.f32 %v3742, %v4945
        %v5055 = vmul.f32 %v3744, %v4947
        %v5056 = vmul.f32 %v3747, %v4949
        %v5057 = vmul.f32 %v3749, %v4951
        %v5058 = vmul.f32 %v3752, %v4953
        %v5059 = vmul.f32 %v3754, %v4955
        %v5060 = vmul.f32 %v3757, %v4957
        %v5061 = vmul.f32 %v3759, %v4959
        %v5062 = vmul.f32 %v3762, %v4961
        %v5063 = vmul.f32 %v3764, %v4963
        %v5064 = vmul.f32 %v3767, %v4965
        %v5065 = vmul.f32 %v3769, %v4967
        %v5066 = vmul.f32 %v3772, %v4969
        %v5067 = vmul.f32 %v3774, %v4971
        %v5068 = vmul.f32 %v3777, %v4973
        %v5069 = vmul.f32 %v3779, %v4975
        %v5070 = vmul.f32 %v3782, %v4977
        %v5071 = vmul.f32 %v3784, %v4979
        %v5072 = vmul.f32 %v3787, %v4981
        %v5073 = vmul.f32 %v3789, %v4983
        %v5074 = vmul.f32 %v3792, %v4985
        %v5075 = vmul.f32 %v3794, %v4987
        %v5076 = vmul.f32 %v3797, %v4989
        %v5077 = vmul.f32 %v3799, %v4991
        %v5078 = vmul.f32 %v3802, %v4993
        %v5079 = vmul.f32 %v3804, %v4995
        %v5080 = vmul.f32 %v3807, %v4997
        %v5081 = vmul.f32 %v3809, %v4999
        %v5082 = vmul.f32 %v3812, %v5001
        %v5083 = vmul.f32 %v3814, %v5003
        %v5084 = vmul.f32 %v3817, %v5005
        %v5085 = vmul.f32 %v3819, %v5007
        %v5086 = vmul.f32 %v3822, %v5009
        %v5087 = vmul.f32 %v3824, %v5011
        %v5088 = vmul.f32 %v3827, %v5013
        %v5089 = vmul.f32 %v3829, %v5015
        %v5090 = vmul.f32 %v3832, %v5017
        %v5091 = vmul.f32 %v3834, %v5019
        %v5092 = vmul.f32 %v3837, %v5021
        %v5093 = vmul.f32 %v3839, %v5023
        %v5094 = vmul.f32 %v3842, %v5025
        %v5095 = vmul.f32 %v3844, %v5027
        %v5096 = vmul.f32 %v3847, %v5029
        %v5097 = vmul.f32 %v3849, %v5031
        %v5098 = vmul.f32 %v3852, %v5033
        %v5099 = vmul.f32 %v3854, %v5035
        %v5100 = vadd.f32 %v5036, %v4557
        %v5101 = vadd.f32 %v5037, %v4559
        %v5102 = vadd.f32 %v5038, %v4562
        %v5103 = vadd.f32 %v5039, %v4564
        %v5104 = vadd.f32 %v5040, %v4567
        %v5105 = vadd.f32 %v5041, %v4569
        %v5106 = vadd.f32 %v5042, %v4572
        %v5107 = vadd.f32 %v5043, %v4574
        %v5108 = vadd.f32 %v5044, %v4577
        %v5109 = vadd.f32 %v5045, %v4579
        %v5110 = vadd.f32 %v5046, %v4582
        %v5111 = vadd.f32 %v5047, %v4584
        %v5112 = vadd.f32 %v5048, %v4587
        %v5113 = vadd.f32 %v5049, %v4589
        %v5114 = vadd.f32 %v5050, %v4592
        %v5115 = vadd.f32 %v5051, %v4594
        %v5116 = vadd.f32 %v5052, %v4597
        %v5117 = vadd.f32 %v5053, %v4599
        %v5118 = vadd.f32 %v5054, %v4602
        %v5119 = vadd.f32 %v5055, %v4604
        %v5120 = vadd.f32 %v5056, %v4607
        %v5121 = vadd.f32 %v5057, %v4609
        %v5122 = vadd.f32 %v5058, %v4612
        %v5123 = vadd.f32 %v5059, %v4614
        %v5124 = vadd.f32 %v5060, %v4617
        %v5125 = vadd.f32 %v5061, %v4619
        %v5126 = vadd.f32 %v5062, %v4622
        %v5127 = vadd.f32 %v5063, %v4624
        %v5128 = vadd.f32 %v5064, %v4627
        %v5129 = vadd.f32 %v5065, %v4629
        %v5130 = vadd.f32 %v5066, %v4632
        %v5131 = vadd.f32 %v5067, %v4634
        %v5132 = vadd.f32 %v5068, %v4637
        %v5133 = vadd.f32 %v5069, %v4639
        %v5134 = vadd.f32 %v5070, %v4642
        %v5135 = vadd.f32 %v5071, %v4644
        %v5136 = vadd.f32 %v5072, %v4647
        %v5137 = vadd.f32 %v5073, %v4649
        %v5138 = vadd.f32 %v5074, %v4652
        %v5139 = vadd.f32 %v5075, %v4654
        %v5140 = vadd.f32 %v5076, %v4657
        %v5141 = vadd.f32 %v5077, %v4659
        %v5142 = vadd.f32 %v5078, %v4662
        %v5143 = vadd.f32 %v5079, %v4664
        %v5144 = vadd.f32 %v5080, %v4667
        %v5145 = vadd.f32 %v5081, %v4669
        %v5146 = vadd.f32 %v5082, %v4672
        %v5147 = vadd.f32 %v5083, %v4674
        %v5148 = vadd.f32 %v5084, %v4677
        %v5149 = vadd.f32 %v5085, %v4679
        %v5150 = vadd.f32 %v5086, %v4682
        %v5151 = vadd.f32 %v5087, %v4684
        %v5152 = vadd.f32 %v5088, %v4687
        %v5153 = vadd.f32 %v5089, %v4689
        %v5154 = vadd.f32 %v5090, %v4692
        %v5155 = vadd.f32 %v5091, %v4694
        %v5156 = vadd.f32 %v5092, %v4697
        %v5157 = vadd.f32 %v5093, %v4699
        %v5158 = vadd.f32 %v5094, %v4702
        %v5159 = vadd.f32 %v5095, %v4704
        %v5160 = vadd.f32 %v5096, %v4707
        %v5161 = vadd.f32 %v5097, %v4709
        %v5162 = vadd.f32 %v5098, %v4712
        %v5163 = vadd.f32 %v5099, %v4714
        %v5164 = vmul.f32 %v4049, %v4909
        %v5165 = vmul.f32 %v4051, %v4911
        %v5166 = vmul.f32 %v4053, %v4913
        %v5167 = vmul.f32 %v4055, %v4915
        %v5168 = vmul.f32 %v4057, %v4917
        %v5169 = vmul.f32 %v4059, %v4919
        %v5170 = vmul.f32 %v4061, %v4921
        %v5171 = vmul.f32 %v4063, %v4923
        %v5172 = vmul.f32 %v4065, %v4925
        %v5173 = vmul.f32 %v4067, %v4927
        %v5174 = vmul.f32 %v4069, %v4929
        %v5175 = vmul.f32 %v4071, %v4931
        %v5176 = vmul.f32 %v4073, %v4933
        %v5177 = vmul.f32 %v4075, %v4935
        %v5178 = vmul.f32 %v4077, %v4937
        %v5179 = vmul.f32 %v4079, %v4939
        %v5180 = vmul.f32 %v4081, %v4941
        %v5181 = vmul.f32 %v4083, %v4943
        %v5182 = vmul.f32 %v4085, %v4945
        %v5183 = vmul.f32 %v4087, %v4947
        %v5184 = vmul.f32 %v4089, %v4949
        %v5185 = vmul.f32 %v4091, %v4951
        %v5186 = vmul.f32 %v4093, %v4953
        %v5187 = vmul.f32 %v4095, %v4955
        %v5188 = vmul.f32 %v4097, %v4957
        %v5189 = vmul.f32 %v4099, %v4959
        %v5190 = vmul.f32 %v4101, %v4961
        %v5191 = vmul.f32 %v4103, %v4963
        %v5192 = vmul.f32 %v4105, %v4965
        %v5193 = vmul.f32 %v4107, %v4967
        %v5194 = vmul.f32 %v4109, %v4969
        %v5195 = vmul.f32 %v4111, %v4971
        %v5196 = vmul.f32 %v4113, %v4973
        %v5197 = vmul.f32 %v4115, %v4975
        %v5198 = vmul.f32 %v4117, %v4977
        %v5199 = vmul.f32 %v4119, %v4979
        %v5200 = vmul.f32 %v4121, %v4981
        %v5201 = vmul.f32 %v4123, %v4983
        %v5202 = vmul.f32 %v4125, %v4985
        %v5203 = vmul.f32 %v4127, %v4987
        %v5204 = vmul.f32 %v4129, %v4989
        %v5205 = vmul.f32 %v4131, %v4991
        %v5206 = vmul.f32 %v4133, %v4993
        %v5207 = vmul.f32 %v4135, %v4995
        %v5208 = vmul.f32 %v4137, %v4997
        %v5209 = vmul.f32 %v4139, %v4999
        %v5210 = vmul.f32 %v4141, %v5001
        %v5211 = vmul.f32 %v4143, %v5003
        %v5212 = vmul.f32 %v4145, %v5005
        %v5213 = vmul.f32 %v4147, %v5007
        %v5214 = vmul.f32 %v4149, %v5009
        %v5215 = vmul.f32 %v4151, %v5011
        %v5216 = vmul.f32 %v4153, %v5013
        %v5217 = vmul.f32 %v4155, %v5015
        %v5218 = vmul.f32 %v4157, %v5017
        %v5219 = vmul.f32 %v4159, %v5019
        %v5220 = vmul.f32 %v4161, %v5021
        %v5221 = vmul.f32 %v4163, %v5023
        %v5222 = vmul.f32 %v4165, %v5025
        %v5223 = vmul.f32 %v4167, %v5027
        %v5224 = vmul.f32 %v4169, %v5029
        %v5225 = vmul.f32 %v4171, %v5031
        %v5226 = vmul.f32 %v4173, %v5033
        %v5227 = vmul.f32 %v4175, %v5035
        %v5228 = vpack.c.bf16 %v2817, %v2809
        %v5229 = vpack.c.bf16 %v2833, %v2825
        %v5230 = vpack.c.bf16 %v2849, %v2841
        %v5231 = vpack.c.bf16 %v2865, %v2857
        %v5232 = vpack.c.bf16 %v2881, %v2873
        %v5233 = vpack.c.bf16 %v2897, %v2889
        %v5234 = vpack.c.bf16 %v2913, %v2905
        %v5235 = vpack.c.bf16 %v2929, %v2921
        %v5236 = vpack.c.bf16 %v2945, %v2937
        %v5237 = vpack.c.bf16 %v2961, %v2953
        %v5238 = vpack.c.bf16 %v2977, %v2969
        %v5239 = vpack.c.bf16 %v2993, %v2985
        %v5240 = vpack.c.bf16 %v3009, %v3001
        %v5241 = vpack.c.bf16 %v3025, %v3017
        %v5242 = vpack.c.bf16 %v3041, %v3033
        %v5243 = vpack.c.bf16 %v3057, %v3049
        %v5244 = vpack.c.bf16 %v3073, %v3065
        %v5245 = vpack.c.bf16 %v3089, %v3081
        %v5246 = vpack.c.bf16 %v3105, %v3097
        %v5247 = vpack.c.bf16 %v3121, %v3113
        %v5248 = vpack.c.bf16 %v3137, %v3129
        %v5249 = vpack.c.bf16 %v3153, %v3145
        %v5250 = vpack.c.bf16 %v3169, %v3161
        %v5251 = vpack.c.bf16 %v3185, %v3177
        %v5252 = vpack.c.bf16 %v3201, %v3193
        %v5253 = vpack.c.bf16 %v3217, %v3209
        %v5254 = vpack.c.bf16 %v3233, %v3225
        %v5255 = vpack.c.bf16 %v3249, %v3241
        %v5256 = vpack.c.bf16 %v3265, %v3257
        %v5257 = vpack.c.bf16 %v3281, %v3273
        %v5258 = vpack.c.bf16 %v3297, %v3289
        %v5259 = vpack.c.bf16 %v3313, %v3305
        %v5260 = vpack.c.bf16 %v2818, %v2810
        %v5261 = vpack.c.bf16 %v2834, %v2826
        %v5262 = vpack.c.bf16 %v2850, %v2842
        %v5263 = vpack.c.bf16 %v2866, %v2858
        %v5264 = vpack.c.bf16 %v2882, %v2874
        %v5265 = vpack.c.bf16 %v2898, %v2890
        %v5266 = vpack.c.bf16 %v2914, %v2906
        %v5267 = vpack.c.bf16 %v2930, %v2922
        %v5268 = vpack.c.bf16 %v2946, %v2938
        %v5269 = vpack.c.bf16 %v2962, %v2954
        %v5270 = vpack.c.bf16 %v2978, %v2970
        %v5271 = vpack.c.bf16 %v2994, %v2986
        %v5272 = vpack.c.bf16 %v3010, %v3002
        %v5273 = vpack.c.bf16 %v3026, %v3018
        %v5274 = vpack.c.bf16 %v3042, %v3034
        %v5275 = vpack.c.bf16 %v3058, %v3050
        %v5276 = vpack.c.bf16 %v3074, %v3066
        %v5277 = vpack.c.bf16 %v3090, %v3082
        %v5278 = vpack.c.bf16 %v3106, %v3098
        %v5279 = vpack.c.bf16 %v3122, %v3114
        %v5280 = vpack.c.bf16 %v3138, %v3130
        %v5281 = vpack.c.bf16 %v3154, %v3146
        %v5282 = vpack.c.bf16 %v3170, %v3162
        %v5283 = vpack.c.bf16 %v3186, %v3178
        %v5284 = vpack.c.bf16 %v3202, %v3194
        %v5285 = vpack.c.bf16 %v3218, %v3210
        %v5286 = vpack.c.bf16 %v3234, %v3226
        %v5287 = vpack.c.bf16 %v3250, %v3242
        %v5288 = vpack.c.bf16 %v3266, %v3258
        %v5289 = vpack.c.bf16 %v3282, %v3274
        %v5290 = vpack.c.bf16 %v3298, %v3290
        %v5291 = vpack.c.bf16 %v3314, %v3306
        %s5292 = scalar_lea.vmem [#allocation10], 256
        %v5293 = vld [vmem:[%s5292] sm:$0xf]
        %v5294 = vld [vmem:[%s5292 + $0x4] sm:$0xf]
        %v5295 = vld [vmem:[%s5292 + $0x8] sm:$0xf]
        %v5296 = vld [vmem:[%s5292 + $0xc] sm:$0xf]
        %v5297 = vld [vmem:[%s5292 + $0x10] sm:$0xf]
        %v5298 = vld [vmem:[%s5292 + $0x14] sm:$0xf]
        %v5299 = vld [vmem:[%s5292 + $0x18] sm:$0xf]
        %v5300 = vld [vmem:[%s5292 + $0x1c] sm:$0xf]
        %v5301 = vld [vmem:[%s5292 + $0x20] sm:$0xf]
        %v5302 = vld [vmem:[%s5292 + $0x24] sm:$0xf]
        %v5303 = vld [vmem:[%s5292 + $0x28] sm:$0xf]
        %v5304 = vld [vmem:[%s5292 + $0x2c] sm:$0xf]
        %v5305 = vld [vmem:[%s5292 + $0x30] sm:$0xf]
        %v5306 = vld [vmem:[%s5292 + $0x34] sm:$0xf]
        %v5307 = vld [vmem:[%s5292 + $0x38] sm:$0xf]
        %v5308 = vld [vmem:[%s5292 + $0x3c] sm:$0xf]
        %v5309 = vld [vmem:[#allocation11 + $0x4] sm:$0x1]
        %v5311 = vperm.slane %v5309, 0
        %v5329 = vunpack.c.l.b16 %v5293
        %v5330 = vunpack.c.l.b16 %v5294
        %v5331 = vunpack.c.l.b16 %v5295
        %v5332 = vunpack.c.l.b16 %v5296
        %v5333 = vunpack.c.l.b16 %v5297
        %v5334 = vunpack.c.l.b16 %v5298
        %v5335 = vunpack.c.l.b16 %v5299
        %v5336 = vunpack.c.l.b16 %v5300
        %v5337 = vunpack.c.l.b16 %v5301
        %v5338 = vunpack.c.l.b16 %v5302
        %v5339 = vunpack.c.l.b16 %v5303
        %v5340 = vunpack.c.l.b16 %v5304
        %v5341 = vunpack.c.l.b16 %v5305
        %v5342 = vunpack.c.l.b16 %v5306
        %v5343 = vunpack.c.l.b16 %v5307
        %v5344 = vunpack.c.l.b16 %v5308
        %v5345 = vpack.c.b16 %v5330, %v5329
        %v5346 = vpack.c.b16 %v5332, %v5331
        %v5347 = vpack.c.b16 %v5334, %v5333
        %v5348 = vpack.c.b16 %v5336, %v5335
        %v5349 = vpack.c.b16 %v5338, %v5337
        %v5350 = vpack.c.b16 %v5340, %v5339
        %v5351 = vpack.c.b16 %v5342, %v5341
        %v5352 = vpack.c.b16 %v5344, %v5343
        %5361 = vmatpush.bf16.msra.mxu0 %v5352
        %5362 = vmatpush.bf16.msra.mxu0 %v5351
        %5363 = vmatpush.bf16.msra.mxu0 %v5350
        %5364 = vmatpush.bf16.msra.mxu0 %v5349
        %5365 = vmatpush.bf16.msra.mxu0 %v5348
        %5366 = vmatpush.bf16.msra.mxu0 %v5347
        %5367 = vmatpush.bf16.msra.mxu0 %v5346
        %5368 = vmatpush.bf16.msra.mxu0 %v5345
        %5369 = vmatmul.bf16.gmra.mxu0 %v5228
        %v5370 = vpop.f32.mrf.mxu0
        %v5371 = vadd.f32 %v5311, %v5370
        %v5372 = vpop.f32.mrf.mxu0
        %v5373 = vadd.f32 %v5311, %v5372
        %5374 = vmatmul.bf16.gmra.mxu0 %v5229
        %v5375 = vpop.f32.mrf.mxu0
        %v5376 = vadd.f32 %v5311, %v5375
        %v5377 = vpop.f32.mrf.mxu0
        %v5378 = vadd.f32 %v5311, %v5377
        %5379 = vmatmul.bf16.gmra.mxu0 %v5230
        %v5380 = vpop.f32.mrf.mxu0
        %v5381 = vadd.f32 %v5311, %v5380
        %v5382 = vpop.f32.mrf.mxu0
        %v5383 = vadd.f32 %v5311, %v5382
        %5384 = vmatmul.bf16.gmra.mxu0 %v5231
        %v5385 = vpop.f32.mrf.mxu0
        %v5386 = vadd.f32 %v5311, %v5385
        %v5387 = vpop.f32.mrf.mxu0
        %v5388 = vadd.f32 %v5311, %v5387
        %5389 = vmatmul.bf16.gmra.mxu0 %v5232
        %v5390 = vpop.f32.mrf.mxu0
        %v5391 = vadd.f32 %v5311, %v5390
        %v5392 = vpop.f32.mrf.mxu0
        %v5393 = vadd.f32 %v5311, %v5392
        %5394 = vmatmul.bf16.gmra.mxu0 %v5233
        %v5395 = vpop.f32.mrf.mxu0
        %v5396 = vadd.f32 %v5311, %v5395
        %v5397 = vpop.f32.mrf.mxu0
        %v5398 = vadd.f32 %v5311, %v5397
        %5399 = vmatmul.bf16.gmra.mxu0 %v5234
        %v5400 = vpop.f32.mrf.mxu0
        %v5401 = vadd.f32 %v5311, %v5400
        %v5402 = vpop.f32.mrf.mxu0
        %v5403 = vadd.f32 %v5311, %v5402
        %5404 = vmatmul.bf16.gmra.mxu0 %v5235
        %v5405 = vpop.f32.mrf.mxu0
        %v5406 = vadd.f32 %v5311, %v5405
        %v5407 = vpop.f32.mrf.mxu0
        %v5408 = vadd.f32 %v5311, %v5407
        %5409 = vmatmul.bf16.gmra.mxu0 %v5236
        %v5410 = vpop.f32.mrf.mxu0
        %v5411 = vadd.f32 %v5311, %v5410
        %v5412 = vpop.f32.mrf.mxu0
        %v5413 = vadd.f32 %v5311, %v5412
        %5414 = vmatmul.bf16.gmra.mxu0 %v5237
        %v5415 = vpop.f32.mrf.mxu0
        %v5416 = vadd.f32 %v5311, %v5415
        %v5417 = vpop.f32.mrf.mxu0
        %v5418 = vadd.f32 %v5311, %v5417
        %5419 = vmatmul.bf16.gmra.mxu0 %v5238
        %v5420 = vpop.f32.mrf.mxu0
        %v5421 = vadd.f32 %v5311, %v5420
        %v5422 = vpop.f32.mrf.mxu0
        %v5423 = vadd.f32 %v5311, %v5422
        %5424 = vmatmul.bf16.gmra.mxu0 %v5239
        %v5425 = vpop.f32.mrf.mxu0
        %v5426 = vadd.f32 %v5311, %v5425
        %v5427 = vpop.f32.mrf.mxu0
        %v5428 = vadd.f32 %v5311, %v5427
        %5429 = vmatmul.bf16.gmra.mxu0 %v5240
        %v5430 = vpop.f32.mrf.mxu0
        %v5431 = vadd.f32 %v5311, %v5430
        %v5432 = vpop.f32.mrf.mxu0
        %v5433 = vadd.f32 %v5311, %v5432
        %5434 = vmatmul.bf16.gmra.mxu0 %v5241
        %v5435 = vpop.f32.mrf.mxu0
        %v5436 = vadd.f32 %v5311, %v5435
        %v5437 = vpop.f32.mrf.mxu0
        %v5438 = vadd.f32 %v5311, %v5437
        %5439 = vmatmul.bf16.gmra.mxu0 %v5242
        %v5440 = vpop.f32.mrf.mxu0
        %v5441 = vadd.f32 %v5311, %v5440
        %v5442 = vpop.f32.mrf.mxu0
        %v5443 = vadd.f32 %v5311, %v5442
        %5444 = vmatmul.bf16.gmra.mxu0 %v5243
        %v5445 = vpop.f32.mrf.mxu0
        %v5446 = vadd.f32 %v5311, %v5445
        %v5447 = vpop.f32.mrf.mxu0
        %v5448 = vadd.f32 %v5311, %v5447
        %5449 = vmatmul.bf16.gmra.mxu0 %v5244
        %v5450 = vpop.f32.mrf.mxu0
        %v5451 = vadd.f32 %v5311, %v5450
        %v5452 = vpop.f32.mrf.mxu0
        %v5453 = vadd.f32 %v5311, %v5452
        %5454 = vmatmul.bf16.gmra.mxu0 %v5245
        %v5455 = vpop.f32.mrf.mxu0
        %v5456 = vadd.f32 %v5311, %v5455
        %v5457 = vpop.f32.mrf.mxu0
        %v5458 = vadd.f32 %v5311, %v5457
        %5459 = vmatmul.bf16.gmra.mxu0 %v5246
        %v5460 = vpop.f32.mrf.mxu0
        %v5461 = vadd.f32 %v5311, %v5460
        %v5462 = vpop.f32.mrf.mxu0
        %v5463 = vadd.f32 %v5311, %v5462
        %5464 = vmatmul.bf16.gmra.mxu0 %v5247
        %v5465 = vpop.f32.mrf.mxu0
        %v5466 = vadd.f32 %v5311, %v5465
        %v5467 = vpop.f32.mrf.mxu0
        %v5468 = vadd.f32 %v5311, %v5467
        %5469 = vmatmul.bf16.gmra.mxu0 %v5248
        %v5470 = vpop.f32.mrf.mxu0
        %v5471 = vadd.f32 %v5311, %v5470
        %v5472 = vpop.f32.mrf.mxu0
        %v5473 = vadd.f32 %v5311, %v5472
        %5474 = vmatmul.bf16.gmra.mxu0 %v5249
        %v5475 = vpop.f32.mrf.mxu0
        %v5476 = vadd.f32 %v5311, %v5475
        %v5477 = vpop.f32.mrf.mxu0
        %v5478 = vadd.f32 %v5311, %v5477
        %5479 = vmatmul.bf16.gmra.mxu0 %v5250
        %v5480 = vpop.f32.mrf.mxu0
        %v5481 = vadd.f32 %v5311, %v5480
        %v5482 = vpop.f32.mrf.mxu0
        %v5483 = vadd.f32 %v5311, %v5482
        %5484 = vmatmul.bf16.gmra.mxu0 %v5251
        %v5485 = vpop.f32.mrf.mxu0
        %v5486 = vadd.f32 %v5311, %v5485
        %v5487 = vpop.f32.mrf.mxu0
        %v5488 = vadd.f32 %v5311, %v5487
        %5489 = vmatmul.bf16.gmra.mxu0 %v5252
        %v5490 = vpop.f32.mrf.mxu0
        %v5491 = vadd.f32 %v5311, %v5490
        %v5492 = vpop.f32.mrf.mxu0
        %v5493 = vadd.f32 %v5311, %v5492
        %5494 = vmatmul.bf16.gmra.mxu0 %v5253
        %v5495 = vpop.f32.mrf.mxu0
        %v5496 = vadd.f32 %v5311, %v5495
        %v5497 = vpop.f32.mrf.mxu0
        %v5498 = vadd.f32 %v5311, %v5497
        %5499 = vmatmul.bf16.gmra.mxu0 %v5254
        %v5500 = vpop.f32.mrf.mxu0
        %v5501 = vadd.f32 %v5311, %v5500
        %v5502 = vpop.f32.mrf.mxu0
        %v5503 = vadd.f32 %v5311, %v5502
        %5504 = vmatmul.bf16.gmra.mxu0 %v5255
        %v5505 = vpop.f32.mrf.mxu0
        %v5506 = vadd.f32 %v5311, %v5505
        %v5507 = vpop.f32.mrf.mxu0
        %v5508 = vadd.f32 %v5311, %v5507
        %5509 = vmatmul.bf16.gmra.mxu0 %v5256
        %v5510 = vpop.f32.mrf.mxu0
        %v5511 = vadd.f32 %v5311, %v5510
        %v5512 = vpop.f32.mrf.mxu0
        %v5513 = vadd.f32 %v5311, %v5512
        %5514 = vmatmul.bf16.gmra.mxu0 %v5257
        %v5515 = vpop.f32.mrf.mxu0
        %v5516 = vadd.f32 %v5311, %v5515
        %v5517 = vpop.f32.mrf.mxu0
        %v5518 = vadd.f32 %v5311, %v5517
        %5519 = vmatmul.bf16.gmra.mxu0 %v5258
        %v5520 = vpop.f32.mrf.mxu0
        %v5521 = vadd.f32 %v5311, %v5520
        %v5522 = vpop.f32.mrf.mxu0
        %v5523 = vadd.f32 %v5311, %v5522
        %5524 = vmatmul.bf16.gmra.mxu0 %v5259
        %v5525 = vpop.f32.mrf.mxu0
        %v5526 = vadd.f32 %v5311, %v5525
        %v5527 = vpop.f32.mrf.mxu0
        %v5528 = vadd.f32 %v5311, %v5527
        %5529 = vdwg.mxu0
        %s5530 = scalar_lea.vmem [#allocation10], 320
        %v5531 = vld [vmem:[%s5530] sm:$0xf]
        %v5532 = vld [vmem:[%s5530 + $0x4] sm:$0xf]
        %v5533 = vld [vmem:[%s5530 + $0x8] sm:$0xf]
        %v5534 = vld [vmem:[%s5530 + $0xc] sm:$0xf]
        %v5535 = vld [vmem:[%s5530 + $0x10] sm:$0xf]
        %v5536 = vld [vmem:[%s5530 + $0x14] sm:$0xf]
        %v5537 = vld [vmem:[%s5530 + $0x18] sm:$0xf]
        %v5538 = vld [vmem:[%s5530 + $0x1c] sm:$0xf]
        %v5539 = vld [vmem:[%s5530 + $0x20] sm:$0xf]
        %v5540 = vld [vmem:[%s5530 + $0x24] sm:$0xf]
        %v5541 = vld [vmem:[%s5530 + $0x28] sm:$0xf]
        %v5542 = vld [vmem:[%s5530 + $0x2c] sm:$0xf]
        %v5543 = vld [vmem:[%s5530 + $0x30] sm:$0xf]
        %v5544 = vld [vmem:[%s5530 + $0x34] sm:$0xf]
        %v5545 = vld [vmem:[%s5530 + $0x38] sm:$0xf]
        %v5546 = vld [vmem:[%s5530 + $0x3c] sm:$0xf]
        %v5547 = vld [vmem:[#allocation11 + $0x5] sm:$0x1]
        %v5549 = vperm.slane %v5547, 0
        %v5567 = vunpack.c.l.b16 %v5531
        %v5568 = vunpack.c.l.b16 %v5532
        %v5569 = vunpack.c.l.b16 %v5533
        %v5570 = vunpack.c.l.b16 %v5534
        %v5571 = vunpack.c.l.b16 %v5535
        %v5572 = vunpack.c.l.b16 %v5536
        %v5573 = vunpack.c.l.b16 %v5537
        %v5574 = vunpack.c.l.b16 %v5538
        %v5575 = vunpack.c.l.b16 %v5539
        %v5576 = vunpack.c.l.b16 %v5540
        %v5577 = vunpack.c.l.b16 %v5541
        %v5578 = vunpack.c.l.b16 %v5542
        %v5579 = vunpack.c.l.b16 %v5543
        %v5580 = vunpack.c.l.b16 %v5544
        %v5581 = vunpack.c.l.b16 %v5545
        %v5582 = vunpack.c.l.b16 %v5546
        %v5583 = vpack.c.b16 %v5568, %v5567
        %v5584 = vpack.c.b16 %v5570, %v5569
        %v5585 = vpack.c.b16 %v5572, %v5571
        %v5586 = vpack.c.b16 %v5574, %v5573
        %v5587 = vpack.c.b16 %v5576, %v5575
        %v5588 = vpack.c.b16 %v5578, %v5577
        %v5589 = vpack.c.b16 %v5580, %v5579
        %v5590 = vpack.c.b16 %v5582, %v5581
        %5599 = vmatpush.bf16.msra.mxu0 %v5590
        %5600 = vmatpush.bf16.msra.mxu0 %v5589
        %5601 = vmatpush.bf16.msra.mxu0 %v5588
        %5602 = vmatpush.bf16.msra.mxu0 %v5587
        %5603 = vmatpush.bf16.msra.mxu0 %v5586
        %5604 = vmatpush.bf16.msra.mxu0 %v5585
        %5605 = vmatpush.bf16.msra.mxu0 %v5584
        %5606 = vmatpush.bf16.msra.mxu0 %v5583
        %5607 = vmatmul.bf16.gmra.mxu0 %v5260
        %v5608 = vpop.f32.mrf.mxu0
        %v5609 = vadd.f32 %v5549, %v5608
        %v5610 = vpop.f32.mrf.mxu0
        %v5611 = vadd.f32 %v5549, %v5610
        %5612 = vmatmul.bf16.gmra.mxu0 %v5261
        %v5613 = vpop.f32.mrf.mxu0
        %v5614 = vadd.f32 %v5549, %v5613
        %v5615 = vpop.f32.mrf.mxu0
        %v5616 = vadd.f32 %v5549, %v5615
        %5617 = vmatmul.bf16.gmra.mxu0 %v5262
        %v5618 = vpop.f32.mrf.mxu0
        %v5619 = vadd.f32 %v5549, %v5618
        %v5620 = vpop.f32.mrf.mxu0
        %v5621 = vadd.f32 %v5549, %v5620
        %5622 = vmatmul.bf16.gmra.mxu0 %v5263
        %v5623 = vpop.f32.mrf.mxu0
        %v5624 = vadd.f32 %v5549, %v5623
        %v5625 = vpop.f32.mrf.mxu0
        %v5626 = vadd.f32 %v5549, %v5625
        %5627 = vmatmul.bf16.gmra.mxu0 %v5264
        %v5628 = vpop.f32.mrf.mxu0
        %v5629 = vadd.f32 %v5549, %v5628
        %v5630 = vpop.f32.mrf.mxu0
        %v5631 = vadd.f32 %v5549, %v5630
        %5632 = vmatmul.bf16.gmra.mxu0 %v5265
        %v5633 = vpop.f32.mrf.mxu0
        %v5634 = vadd.f32 %v5549, %v5633
        %v5635 = vpop.f32.mrf.mxu0
        %v5636 = vadd.f32 %v5549, %v5635
        %5637 = vmatmul.bf16.gmra.mxu0 %v5266
        %v5638 = vpop.f32.mrf.mxu0
        %v5639 = vadd.f32 %v5549, %v5638
        %v5640 = vpop.f32.mrf.mxu0
        %v5641 = vadd.f32 %v5549, %v5640
        %5642 = vmatmul.bf16.gmra.mxu0 %v5267
        %v5643 = vpop.f32.mrf.mxu0
        %v5644 = vadd.f32 %v5549, %v5643
        %v5645 = vpop.f32.mrf.mxu0
        %v5646 = vadd.f32 %v5549, %v5645
        %5647 = vmatmul.bf16.gmra.mxu0 %v5268
        %v5648 = vpop.f32.mrf.mxu0
        %v5649 = vadd.f32 %v5549, %v5648
        %v5650 = vpop.f32.mrf.mxu0
        %v5651 = vadd.f32 %v5549, %v5650
        %5652 = vmatmul.bf16.gmra.mxu0 %v5269
        %v5653 = vpop.f32.mrf.mxu0
        %v5654 = vadd.f32 %v5549, %v5653
        %v5655 = vpop.f32.mrf.mxu0
        %v5656 = vadd.f32 %v5549, %v5655
        %5657 = vmatmul.bf16.gmra.mxu0 %v5270
        %v5658 = vpop.f32.mrf.mxu0
        %v5659 = vadd.f32 %v5549, %v5658
        %v5660 = vpop.f32.mrf.mxu0
        %v5661 = vadd.f32 %v5549, %v5660
        %5662 = vmatmul.bf16.gmra.mxu0 %v5271
        %v5663 = vpop.f32.mrf.mxu0
        %v5664 = vadd.f32 %v5549, %v5663
        %v5665 = vpop.f32.mrf.mxu0
        %v5666 = vadd.f32 %v5549, %v5665
        %5667 = vmatmul.bf16.gmra.mxu0 %v5272
        %v5668 = vpop.f32.mrf.mxu0
        %v5669 = vadd.f32 %v5549, %v5668
        %v5670 = vpop.f32.mrf.mxu0
        %v5671 = vadd.f32 %v5549, %v5670
        %5672 = vmatmul.bf16.gmra.mxu0 %v5273
        %v5673 = vpop.f32.mrf.mxu0
        %v5674 = vadd.f32 %v5549, %v5673
        %v5675 = vpop.f32.mrf.mxu0
        %v5676 = vadd.f32 %v5549, %v5675
        %5677 = vmatmul.bf16.gmra.mxu0 %v5274
        %v5678 = vpop.f32.mrf.mxu0
        %v5679 = vadd.f32 %v5549, %v5678
        %v5680 = vpop.f32.mrf.mxu0
        %v5681 = vadd.f32 %v5549, %v5680
        %5682 = vmatmul.bf16.gmra.mxu0 %v5275
        %v5683 = vpop.f32.mrf.mxu0
        %v5684 = vadd.f32 %v5549, %v5683
        %v5685 = vpop.f32.mrf.mxu0
        %v5686 = vadd.f32 %v5549, %v5685
        %5687 = vmatmul.bf16.gmra.mxu0 %v5276
        %v5688 = vpop.f32.mrf.mxu0
        %v5689 = vadd.f32 %v5549, %v5688
        %v5690 = vpop.f32.mrf.mxu0
        %v5691 = vadd.f32 %v5549, %v5690
        %5692 = vmatmul.bf16.gmra.mxu0 %v5277
        %v5693 = vpop.f32.mrf.mxu0
        %v5694 = vadd.f32 %v5549, %v5693
        %v5695 = vpop.f32.mrf.mxu0
        %v5696 = vadd.f32 %v5549, %v5695
        %5697 = vmatmul.bf16.gmra.mxu0 %v5278
        %v5698 = vpop.f32.mrf.mxu0
        %v5699 = vadd.f32 %v5549, %v5698
        %v5700 = vpop.f32.mrf.mxu0
        %v5701 = vadd.f32 %v5549, %v5700
        %5702 = vmatmul.bf16.gmra.mxu0 %v5279
        %v5703 = vpop.f32.mrf.mxu0
        %v5704 = vadd.f32 %v5549, %v5703
        %v5705 = vpop.f32.mrf.mxu0
        %v5706 = vadd.f32 %v5549, %v5705
        %5707 = vmatmul.bf16.gmra.mxu0 %v5280
        %v5708 = vpop.f32.mrf.mxu0
        %v5709 = vadd.f32 %v5549, %v5708
        %v5710 = vpop.f32.mrf.mxu0
        %v5711 = vadd.f32 %v5549, %v5710
        %5712 = vmatmul.bf16.gmra.mxu0 %v5281
        %v5713 = vpop.f32.mrf.mxu0
        %v5714 = vadd.f32 %v5549, %v5713
        %v5715 = vpop.f32.mrf.mxu0
        %v5716 = vadd.f32 %v5549, %v5715
        %5717 = vmatmul.bf16.gmra.mxu0 %v5282
        %v5718 = vpop.f32.mrf.mxu0
        %v5719 = vadd.f32 %v5549, %v5718
        %v5720 = vpop.f32.mrf.mxu0
        %v5721 = vadd.f32 %v5549, %v5720
        %5722 = vmatmul.bf16.gmra.mxu0 %v5283
        %v5723 = vpop.f32.mrf.mxu0
        %v5724 = vadd.f32 %v5549, %v5723
        %v5725 = vpop.f32.mrf.mxu0
        %v5726 = vadd.f32 %v5549, %v5725
        %5727 = vmatmul.bf16.gmra.mxu0 %v5284
        %v5728 = vpop.f32.mrf.mxu0
        %v5729 = vadd.f32 %v5549, %v5728
        %v5730 = vpop.f32.mrf.mxu0
        %v5731 = vadd.f32 %v5549, %v5730
        %5732 = vmatmul.bf16.gmra.mxu0 %v5285
        %v5733 = vpop.f32.mrf.mxu0
        %v5734 = vadd.f32 %v5549, %v5733
        %v5735 = vpop.f32.mrf.mxu0
        %v5736 = vadd.f32 %v5549, %v5735
        %5737 = vmatmul.bf16.gmra.mxu0 %v5286
        %v5738 = vpop.f32.mrf.mxu0
        %v5739 = vadd.f32 %v5549, %v5738
        %v5740 = vpop.f32.mrf.mxu0
        %v5741 = vadd.f32 %v5549, %v5740
        %5742 = vmatmul.bf16.gmra.mxu0 %v5287
        %v5743 = vpop.f32.mrf.mxu0
        %v5744 = vadd.f32 %v5549, %v5743
        %v5745 = vpop.f32.mrf.mxu0
        %v5746 = vadd.f32 %v5549, %v5745
        %5747 = vmatmul.bf16.gmra.mxu0 %v5288
        %v5748 = vpop.f32.mrf.mxu0
        %v5749 = vadd.f32 %v5549, %v5748
        %v5750 = vpop.f32.mrf.mxu0
        %v5751 = vadd.f32 %v5549, %v5750
        %5752 = vmatmul.bf16.gmra.mxu0 %v5289
        %v5753 = vpop.f32.mrf.mxu0
        %v5754 = vadd.f32 %v5549, %v5753
        %v5755 = vpop.f32.mrf.mxu0
        %v5756 = vadd.f32 %v5549, %v5755
        %5757 = vmatmul.bf16.gmra.mxu0 %v5290
        %v5758 = vpop.f32.mrf.mxu0
        %v5759 = vadd.f32 %v5549, %v5758
        %v5760 = vpop.f32.mrf.mxu0
        %v5761 = vadd.f32 %v5549, %v5760
        %5762 = vmatmul.bf16.gmra.mxu0 %v5291
        %v5763 = vpop.f32.mrf.mxu0
        %v5764 = vadd.f32 %v5549, %v5763
        %v5765 = vpop.f32.mrf.mxu0
        %v5766 = vadd.f32 %v5549, %v5765
        %5767 = vdwg.mxu0
        %v5768 = vmul.f32 %v5371, 0.5
        %v5769 = vmul.f32 %v5373, 0.5
        %v5770 = vmul.f32 %v5376, 0.5
        %v5771 = vmul.f32 %v5378, 0.5
        %v5772 = vmul.f32 %v5381, 0.5
        %v5773 = vmul.f32 %v5383, 0.5
        %v5774 = vmul.f32 %v5386, 0.5
        %v5775 = vmul.f32 %v5388, 0.5
        %v5776 = vmul.f32 %v5391, 0.5
        %v5777 = vmul.f32 %v5393, 0.5
        %v5778 = vmul.f32 %v5396, 0.5
        %v5779 = vmul.f32 %v5398, 0.5
        %v5780 = vmul.f32 %v5401, 0.5
        %v5781 = vmul.f32 %v5403, 0.5
        %v5782 = vmul.f32 %v5406, 0.5
        %v5783 = vmul.f32 %v5408, 0.5
        %v5784 = vmul.f32 %v5411, 0.5
        %v5785 = vmul.f32 %v5413, 0.5
        %v5786 = vmul.f32 %v5416, 0.5
        %v5787 = vmul.f32 %v5418, 0.5
        %v5788 = vmul.f32 %v5421, 0.5
        %v5789 = vmul.f32 %v5423, 0.5
        %v5790 = vmul.f32 %v5426, 0.5
        %v5791 = vmul.f32 %v5428, 0.5
        %v5792 = vmul.f32 %v5431, 0.5
        %v5793 = vmul.f32 %v5433, 0.5
        %v5794 = vmul.f32 %v5436, 0.5
        %v5795 = vmul.f32 %v5438, 0.5
        %v5796 = vmul.f32 %v5441, 0.5
        %v5797 = vmul.f32 %v5443, 0.5
        %v5798 = vmul.f32 %v5446, 0.5
        %v5799 = vmul.f32 %v5448, 0.5
        %v5800 = vmul.f32 %v5451, 0.5
        %v5801 = vmul.f32 %v5453, 0.5
        %v5802 = vmul.f32 %v5456, 0.5
        %v5803 = vmul.f32 %v5458, 0.5
        %v5804 = vmul.f32 %v5461, 0.5
        %v5805 = vmul.f32 %v5463, 0.5
        %v5806 = vmul.f32 %v5466, 0.5
        %v5807 = vmul.f32 %v5468, 0.5
        %v5808 = vmul.f32 %v5471, 0.5
        %v5809 = vmul.f32 %v5473, 0.5
        %v5810 = vmul.f32 %v5476, 0.5
        %v5811 = vmul.f32 %v5478, 0.5
        %v5812 = vmul.f32 %v5481, 0.5
        %v5813 = vmul.f32 %v5483, 0.5
        %v5814 = vmul.f32 %v5486, 0.5
        %v5815 = vmul.f32 %v5488, 0.5
        %v5816 = vmul.f32 %v5491, 0.5
        %v5817 = vmul.f32 %v5493, 0.5
        %v5818 = vmul.f32 %v5496, 0.5
        %v5819 = vmul.f32 %v5498, 0.5
        %v5820 = vmul.f32 %v5501, 0.5
        %v5821 = vmul.f32 %v5503, 0.5
        %v5822 = vmul.f32 %v5506, 0.5
        %v5823 = vmul.f32 %v5508, 0.5
        %v5824 = vmul.f32 %v5511, 0.5
        %v5825 = vmul.f32 %v5513, 0.5
        %v5826 = vmul.f32 %v5516, 0.5
        %v5827 = vmul.f32 %v5518, 0.5
        %v5828 = vmul.f32 %v5521, 0.5
        %v5829 = vmul.f32 %v5523, 0.5
        %v5830 = vmul.f32 %v5526, 0.5
        %v5831 = vmul.f32 %v5528, 0.5
        %v5832 = vtanh.pop %v5768
        %v5833 = vtanh.pop %v5769
        %v5834 = vtanh.pop %v5770
        %v5835 = vtanh.pop %v5771
        %v5836 = vtanh.pop %v5772
        %v5837 = vtanh.pop %v5773
        %v5838 = vtanh.pop %v5774
        %v5839 = vtanh.pop %v5775
        %v5840 = vtanh.pop %v5776
        %v5841 = vtanh.pop %v5777
        %v5842 = vtanh.pop %v5778
        %v5843 = vtanh.pop %v5779
        %v5844 = vtanh.pop %v5780
        %v5845 = vtanh.pop %v5781
        %v5846 = vtanh.pop %v5782
        %v5847 = vtanh.pop %v5783
        %v5848 = vtanh.pop %v5784
        %v5849 = vtanh.pop %v5785
        %v5850 = vtanh.pop %v5786
        %v5851 = vtanh.pop %v5787
        %v5852 = vtanh.pop %v5788
        %v5853 = vtanh.pop %v5789
        %v5854 = vtanh.pop %v5790
        %v5855 = vtanh.pop %v5791
        %v5856 = vtanh.pop %v5792
        %v5857 = vtanh.pop %v5793
        %v5858 = vtanh.pop %v5794
        %v5859 = vtanh.pop %v5795
        %v5860 = vtanh.pop %v5796
        %v5861 = vtanh.pop %v5797
        %v5862 = vtanh.pop %v5798
        %v5863 = vtanh.pop %v5799
        %v5864 = vtanh.pop %v5800
        %v5865 = vtanh.pop %v5801
        %v5866 = vtanh.pop %v5802
        %v5867 = vtanh.pop %v5803
        %v5868 = vtanh.pop %v5804
        %v5869 = vtanh.pop %v5805
        %v5870 = vtanh.pop %v5806
        %v5871 = vtanh.pop %v5807
        %v5872 = vtanh.pop %v5808
        %v5873 = vtanh.pop %v5809
        %v5874 = vtanh.pop %v5810
        %v5875 = vtanh.pop %v5811
        %v5876 = vtanh.pop %v5812
        %v5877 = vtanh.pop %v5813
        %v5878 = vtanh.pop %v5814
        %v5879 = vtanh.pop %v5815
        %v5880 = vtanh.pop %v5816
        %v5881 = vtanh.pop %v5817
        %v5882 = vtanh.pop %v5818
        %v5883 = vtanh.pop %v5819
        %v5884 = vtanh.pop %v5820
        %v5885 = vtanh.pop %v5821
        %v5886 = vtanh.pop %v5822
        %v5887 = vtanh.pop %v5823
        %v5888 = vtanh.pop %v5824
        %v5889 = vtanh.pop %v5825
        %v5890 = vtanh.pop %v5826
        %v5891 = vtanh.pop %v5827
        %v5892 = vtanh.pop %v5828
        %v5893 = vtanh.pop %v5829
        %v5894 = vtanh.pop %v5830
        %v5895 = vtanh.pop %v5831
        %v5896 = vmul.f32 %v5832, 2.0
        %v5897 = vmul.f32 %v5833, 2.0
        %v5898 = vmul.f32 %v5834, 2.0
        %v5899 = vmul.f32 %v5835, 2.0
        %v5900 = vmul.f32 %v5836, 2.0
        %v5901 = vmul.f32 %v5837, 2.0
        %v5902 = vmul.f32 %v5838, 2.0
        %v5903 = vmul.f32 %v5839, 2.0
        %v5904 = vmul.f32 %v5840, 2.0
        %v5905 = vmul.f32 %v5841, 2.0
        %v5906 = vmul.f32 %v5842, 2.0
        %v5907 = vmul.f32 %v5843, 2.0
        %v5908 = vmul.f32 %v5844, 2.0
        %v5909 = vmul.f32 %v5845, 2.0
        %v5910 = vmul.f32 %v5846, 2.0
        %v5911 = vmul.f32 %v5847, 2.0
        %v5912 = vmul.f32 %v5848, 2.0
        %v5913 = vmul.f32 %v5849, 2.0
        %v5914 = vmul.f32 %v5850, 2.0
        %v5915 = vmul.f32 %v5851, 2.0
        %v5916 = vmul.f32 %v5852, 2.0
        %v5917 = vmul.f32 %v5853, 2.0
        %v5918 = vmul.f32 %v5854, 2.0
        %v5919 = vmul.f32 %v5855, 2.0
        %v5920 = vmul.f32 %v5856, 2.0
        %v5921 = vmul.f32 %v5857, 2.0
        %v5922 = vmul.f32 %v5858, 2.0
        %v5923 = vmul.f32 %v5859, 2.0
        %v5924 = vmul.f32 %v5860, 2.0
        %v5925 = vmul.f32 %v5861, 2.0
        %v5926 = vmul.f32 %v5862, 2.0
        %v5927 = vmul.f32 %v5863, 2.0
        %v5928 = vmul.f32 %v5864, 2.0
        %v5929 = vmul.f32 %v5865, 2.0
        %v5930 = vmul.f32 %v5866, 2.0
        %v5931 = vmul.f32 %v5867, 2.0
        %v5932 = vmul.f32 %v5868, 2.0
        %v5933 = vmul.f32 %v5869, 2.0
        %v5934 = vmul.f32 %v5870, 2.0
        %v5935 = vmul.f32 %v5871, 2.0
        %v5936 = vmul.f32 %v5872, 2.0
        %v5937 = vmul.f32 %v5873, 2.0
        %v5938 = vmul.f32 %v5874, 2.0
        %v5939 = vmul.f32 %v5875, 2.0
        %v5940 = vmul.f32 %v5876, 2.0
        %v5941 = vmul.f32 %v5877, 2.0
        %v5942 = vmul.f32 %v5878, 2.0
        %v5943 = vmul.f32 %v5879, 2.0
        %v5944 = vmul.f32 %v5880, 2.0
        %v5945 = vmul.f32 %v5881, 2.0
        %v5946 = vmul.f32 %v5882, 2.0
        %v5947 = vmul.f32 %v5883, 2.0
        %v5948 = vmul.f32 %v5884, 2.0
        %v5949 = vmul.f32 %v5885, 2.0
        %v5950 = vmul.f32 %v5886, 2.0
        %v5951 = vmul.f32 %v5887, 2.0
        %v5952 = vmul.f32 %v5888, 2.0
        %v5953 = vmul.f32 %v5889, 2.0
        %v5954 = vmul.f32 %v5890, 2.0
        %v5955 = vmul.f32 %v5891, 2.0
        %v5956 = vmul.f32 %v5892, 2.0
        %v5957 = vmul.f32 %v5893, 2.0
        %v5958 = vmul.f32 %v5894, 2.0
        %v5959 = vmul.f32 %v5895, 2.0
        %v5960 = vmul.f32 %v5896, 1.442695
        %v5961 = vpow.pop %v5960
        %v5962 = vmul.f32 %v5897, 1.442695
        %v5963 = vpow.pop %v5962
        %v5964 = vmul.f32 %v5898, 1.442695
        %v5965 = vpow.pop %v5964
        %v5966 = vmul.f32 %v5899, 1.442695
        %v5967 = vpow.pop %v5966
        %v5968 = vmul.f32 %v5900, 1.442695
        %v5969 = vpow.pop %v5968
        %v5970 = vmul.f32 %v5901, 1.442695
        %v5971 = vpow.pop %v5970
        %v5972 = vmul.f32 %v5902, 1.442695
        %v5973 = vpow.pop %v5972
        %v5974 = vmul.f32 %v5903, 1.442695
        %v5975 = vpow.pop %v5974
        %v5976 = vmul.f32 %v5904, 1.442695
        %v5977 = vpow.pop %v5976
        %v5978 = vmul.f32 %v5905, 1.442695
        %v5979 = vpow.pop %v5978
        %v5980 = vmul.f32 %v5906, 1.442695
        %v5981 = vpow.pop %v5980
        %v5982 = vmul.f32 %v5907, 1.442695
        %v5983 = vpow.pop %v5982
        %v5984 = vmul.f32 %v5908, 1.442695
        %v5985 = vpow.pop %v5984
        %v5986 = vmul.f32 %v5909, 1.442695
        %v5987 = vpow.pop %v5986
        %v5988 = vmul.f32 %v5910, 1.442695
        %v5989 = vpow.pop %v5988
        %v5990 = vmul.f32 %v5911, 1.442695
        %v5991 = vpow.pop %v5990
        %v5992 = vmul.f32 %v5912, 1.442695
        %v5993 = vpow.pop %v5992
        %v5994 = vmul.f32 %v5913, 1.442695
        %v5995 = vpow.pop %v5994
        %v5996 = vmul.f32 %v5914, 1.442695
        %v5997 = vpow.pop %v5996
        %v5998 = vmul.f32 %v5915, 1.442695
        %v5999 = vpow.pop %v5998
        %v6000 = vmul.f32 %v5916, 1.442695
        %v6001 = vpow.pop %v6000
        %v6002 = vmul.f32 %v5917, 1.442695
        %v6003 = vpow.pop %v6002
        %v6004 = vmul.f32 %v5918, 1.442695
        %v6005 = vpow.pop %v6004
        %v6006 = vmul.f32 %v5919, 1.442695
        %v6007 = vpow.pop %v6006
        %v6008 = vmul.f32 %v5920, 1.442695
        %v6009 = vpow.pop %v6008
        %v6010 = vmul.f32 %v5921, 1.442695
        %v6011 = vpow.pop %v6010
        %v6012 = vmul.f32 %v5922, 1.442695
        %v6013 = vpow.pop %v6012
        %v6014 = vmul.f32 %v5923, 1.442695
        %v6015 = vpow.pop %v6014
        %v6016 = vmul.f32 %v5924, 1.442695
        %v6017 = vpow.pop %v6016
        %v6018 = vmul.f32 %v5925, 1.442695
        %v6019 = vpow.pop %v6018
        %v6020 = vmul.f32 %v5926, 1.442695
        %v6021 = vpow.pop %v6020
        %v6022 = vmul.f32 %v5927, 1.442695
        %v6023 = vpow.pop %v6022
        %v6024 = vmul.f32 %v5928, 1.442695
        %v6025 = vpow.pop %v6024
        %v6026 = vmul.f32 %v5929, 1.442695
        %v6027 = vpow.pop %v6026
        %v6028 = vmul.f32 %v5930, 1.442695
        %v6029 = vpow.pop %v6028
        %v6030 = vmul.f32 %v5931, 1.442695
        %v6031 = vpow.pop %v6030
        %v6032 = vmul.f32 %v5932, 1.442695
        %v6033 = vpow.pop %v6032
        %v6034 = vmul.f32 %v5933, 1.442695
        %v6035 = vpow.pop %v6034
        %v6036 = vmul.f32 %v5934, 1.442695
        %v6037 = vpow.pop %v6036
        %v6038 = vmul.f32 %v5935, 1.442695
        %v6039 = vpow.pop %v6038
        %v6040 = vmul.f32 %v5936, 1.442695
        %v6041 = vpow.pop %v6040
        %v6042 = vmul.f32 %v5937, 1.442695
        %v6043 = vpow.pop %v6042
        %v6044 = vmul.f32 %v5938, 1.442695
        %v6045 = vpow.pop %v6044
        %v6046 = vmul.f32 %v5939, 1.442695
        %v6047 = vpow.pop %v6046
        %v6048 = vmul.f32 %v5940, 1.442695
        %v6049 = vpow.pop %v6048
        %v6050 = vmul.f32 %v5941, 1.442695
        %v6051 = vpow.pop %v6050
        %v6052 = vmul.f32 %v5942, 1.442695
        %v6053 = vpow.pop %v6052
        %v6054 = vmul.f32 %v5943, 1.442695
        %v6055 = vpow.pop %v6054
        %v6056 = vmul.f32 %v5944, 1.442695
        %v6057 = vpow.pop %v6056
        %v6058 = vmul.f32 %v5945, 1.442695
        %v6059 = vpow.pop %v6058
        %v6060 = vmul.f32 %v5946, 1.442695
        %v6061 = vpow.pop %v6060
        %v6062 = vmul.f32 %v5947, 1.442695
        %v6063 = vpow.pop %v6062
        %v6064 = vmul.f32 %v5948, 1.442695
        %v6065 = vpow.pop %v6064
        %v6066 = vmul.f32 %v5949, 1.442695
        %v6067 = vpow.pop %v6066
        %v6068 = vmul.f32 %v5950, 1.442695
        %v6069 = vpow.pop %v6068
        %v6070 = vmul.f32 %v5951, 1.442695
        %v6071 = vpow.pop %v6070
        %v6072 = vmul.f32 %v5952, 1.442695
        %v6073 = vpow.pop %v6072
        %v6074 = vmul.f32 %v5953, 1.442695
        %v6075 = vpow.pop %v6074
        %v6076 = vmul.f32 %v5954, 1.442695
        %v6077 = vpow.pop %v6076
        %v6078 = vmul.f32 %v5955, 1.442695
        %v6079 = vpow.pop %v6078
        %v6080 = vmul.f32 %v5956, 1.442695
        %v6081 = vpow.pop %v6080
        %v6082 = vmul.f32 %v5957, 1.442695
        %v6083 = vpow.pop %v6082
        %v6084 = vmul.f32 %v5958, 1.442695
        %v6085 = vpow.pop %v6084
        %v6086 = vmul.f32 %v5959, 1.442695
        %v6087 = vpow.pop %v6086
        %v6088 = vmul.f32 %v5100, %v5961
        %v6089 = vmul.f32 %v5101, %v5963
        %v6090 = vmul.f32 %v5102, %v5965
        %v6091 = vmul.f32 %v5103, %v5967
        %v6092 = vmul.f32 %v5104, %v5969
        %v6093 = vmul.f32 %v5105, %v5971
        %v6094 = vmul.f32 %v5106, %v5973
        %v6095 = vmul.f32 %v5107, %v5975
        %v6096 = vmul.f32 %v5108, %v5977
        %v6097 = vmul.f32 %v5109, %v5979
        %v6098 = vmul.f32 %v5110, %v5981
        %v6099 = vmul.f32 %v5111, %v5983
        %v6100 = vmul.f32 %v5112, %v5985
        %v6101 = vmul.f32 %v5113, %v5987
        %v6102 = vmul.f32 %v5114, %v5989
        %v6103 = vmul.f32 %v5115, %v5991
        %v6104 = vmul.f32 %v5116, %v5993
        %v6105 = vmul.f32 %v5117, %v5995
        %v6106 = vmul.f32 %v5118, %v5997
        %v6107 = vmul.f32 %v5119, %v5999
        %v6108 = vmul.f32 %v5120, %v6001
        %v6109 = vmul.f32 %v5121, %v6003
        %v6110 = vmul.f32 %v5122, %v6005
        %v6111 = vmul.f32 %v5123, %v6007
        %v6112 = vmul.f32 %v5124, %v6009
        %v6113 = vmul.f32 %v5125, %v6011
        %v6114 = vmul.f32 %v5126, %v6013
        %v6115 = vmul.f32 %v5127, %v6015
        %v6116 = vmul.f32 %v5128, %v6017
        %v6117 = vmul.f32 %v5129, %v6019
        %v6118 = vmul.f32 %v5130, %v6021
        %v6119 = vmul.f32 %v5131, %v6023
        %v6120 = vmul.f32 %v5132, %v6025
        %v6121 = vmul.f32 %v5133, %v6027
        %v6122 = vmul.f32 %v5134, %v6029
        %v6123 = vmul.f32 %v5135, %v6031
        %v6124 = vmul.f32 %v5136, %v6033
        %v6125 = vmul.f32 %v5137, %v6035
        %v6126 = vmul.f32 %v5138, %v6037
        %v6127 = vmul.f32 %v5139, %v6039
        %v6128 = vmul.f32 %v5140, %v6041
        %v6129 = vmul.f32 %v5141, %v6043
        %v6130 = vmul.f32 %v5142, %v6045
        %v6131 = vmul.f32 %v5143, %v6047
        %v6132 = vmul.f32 %v5144, %v6049
        %v6133 = vmul.f32 %v5145, %v6051
        %v6134 = vmul.f32 %v5146, %v6053
        %v6135 = vmul.f32 %v5147, %v6055
        %v6136 = vmul.f32 %v5148, %v6057
        %v6137 = vmul.f32 %v5149, %v6059
        %v6138 = vmul.f32 %v5150, %v6061
        %v6139 = vmul.f32 %v5151, %v6063
        %v6140 = vmul.f32 %v5152, %v6065
        %v6141 = vmul.f32 %v5153, %v6067
        %v6142 = vmul.f32 %v5154, %v6069
        %v6143 = vmul.f32 %v5155, %v6071
        %v6144 = vmul.f32 %v5156, %v6073
        %v6145 = vmul.f32 %v5157, %v6075
        %v6146 = vmul.f32 %v5158, %v6077
        %v6147 = vmul.f32 %v5159, %v6079
        %v6148 = vmul.f32 %v5160, %v6081
        %v6149 = vmul.f32 %v5161, %v6083
        %v6150 = vmul.f32 %v5162, %v6085
        %v6151 = vmul.f32 %v5163, %v6087
        %v6152 = vadd.f32 %v6088, %v5609
        %v6153 = vadd.f32 %v6089, %v5611
        %v6154 = vadd.f32 %v6090, %v5614
        %v6155 = vadd.f32 %v6091, %v5616
        %v6156 = vadd.f32 %v6092, %v5619
        %v6157 = vadd.f32 %v6093, %v5621
        %v6158 = vadd.f32 %v6094, %v5624
        %v6159 = vadd.f32 %v6095, %v5626
        %v6160 = vadd.f32 %v6096, %v5629
        %v6161 = vadd.f32 %v6097, %v5631
        %v6162 = vadd.f32 %v6098, %v5634
        %v6163 = vadd.f32 %v6099, %v5636
        %v6164 = vadd.f32 %v6100, %v5639
        %v6165 = vadd.f32 %v6101, %v5641
        %v6166 = vadd.f32 %v6102, %v5644
        %v6167 = vadd.f32 %v6103, %v5646
        %v6168 = vadd.f32 %v6104, %v5649
        %v6169 = vadd.f32 %v6105, %v5651
        %v6170 = vadd.f32 %v6106, %v5654
        %v6171 = vadd.f32 %v6107, %v5656
        %v6172 = vadd.f32 %v6108, %v5659
        %v6173 = vadd.f32 %v6109, %v5661
        %v6174 = vadd.f32 %v6110, %v5664
        %v6175 = vadd.f32 %v6111, %v5666
        %v6176 = vadd.f32 %v6112, %v5669
        %v6177 = vadd.f32 %v6113, %v5671
        %v6178 = vadd.f32 %v6114, %v5674
        %v6179 = vadd.f32 %v6115, %v5676
        %v6180 = vadd.f32 %v6116, %v5679
        %v6181 = vadd.f32 %v6117, %v5681
        %v6182 = vadd.f32 %v6118, %v5684
        %v6183 = vadd.f32 %v6119, %v5686
        %v6184 = vadd.f32 %v6120, %v5689
        %v6185 = vadd.f32 %v6121, %v5691
        %v6186 = vadd.f32 %v6122, %v5694
        %v6187 = vadd.f32 %v6123, %v5696
        %v6188 = vadd.f32 %v6124, %v5699
        %v6189 = vadd.f32 %v6125, %v5701
        %v6190 = vadd.f32 %v6126, %v5704
        %v6191 = vadd.f32 %v6127, %v5706
        %v6192 = vadd.f32 %v6128, %v5709
        %v6193 = vadd.f32 %v6129, %v5711
        %v6194 = vadd.f32 %v6130, %v5714
        %v6195 = vadd.f32 %v6131, %v5716
        %v6196 = vadd.f32 %v6132, %v5719
        %v6197 = vadd.f32 %v6133, %v5721
        %v6198 = vadd.f32 %v6134, %v5724
        %v6199 = vadd.f32 %v6135, %v5726
        %v6200 = vadd.f32 %v6136, %v5729
        %v6201 = vadd.f32 %v6137, %v5731
        %v6202 = vadd.f32 %v6138, %v5734
        %v6203 = vadd.f32 %v6139, %v5736
        %v6204 = vadd.f32 %v6140, %v5739
        %v6205 = vadd.f32 %v6141, %v5741
        %v6206 = vadd.f32 %v6142, %v5744
        %v6207 = vadd.f32 %v6143, %v5746
        %v6208 = vadd.f32 %v6144, %v5749
        %v6209 = vadd.f32 %v6145, %v5751
        %v6210 = vadd.f32 %v6146, %v5754
        %v6211 = vadd.f32 %v6147, %v5756
        %v6212 = vadd.f32 %v6148, %v5759
        %v6213 = vadd.f32 %v6149, %v5761
        %v6214 = vadd.f32 %v6150, %v5764
        %v6215 = vadd.f32 %v6151, %v5766
        %v6216 = vmul.f32 %v5164, %v5961
        %v6217 = vmul.f32 %v5165, %v5963
        %v6218 = vmul.f32 %v5166, %v5965
        %v6219 = vmul.f32 %v5167, %v5967
        %v6220 = vmul.f32 %v5168, %v5969
        %v6221 = vmul.f32 %v5169, %v5971
        %v6222 = vmul.f32 %v5170, %v5973
        %v6223 = vmul.f32 %v5171, %v5975
        %v6224 = vmul.f32 %v5172, %v5977
        %v6225 = vmul.f32 %v5173, %v5979
        %v6226 = vmul.f32 %v5174, %v5981
        %v6227 = vmul.f32 %v5175, %v5983
        %v6228 = vmul.f32 %v5176, %v5985
        %v6229 = vmul.f32 %v5177, %v5987
        %v6230 = vmul.f32 %v5178, %v5989
        %v6231 = vmul.f32 %v5179, %v5991
        %v6232 = vmul.f32 %v5180, %v5993
        %v6233 = vmul.f32 %v5181, %v5995
        %v6234 = vmul.f32 %v5182, %v5997
        %v6235 = vmul.f32 %v5183, %v5999
        %v6236 = vmul.f32 %v5184, %v6001
        %v6237 = vmul.f32 %v5185, %v6003
        %v6238 = vmul.f32 %v5186, %v6005
        %v6239 = vmul.f32 %v5187, %v6007
        %v6240 = vmul.f32 %v5188, %v6009
        %v6241 = vmul.f32 %v5189, %v6011
        %v6242 = vmul.f32 %v5190, %v6013
        %v6243 = vmul.f32 %v5191, %v6015
        %v6244 = vmul.f32 %v5192, %v6017
        %v6245 = vmul.f32 %v5193, %v6019
        %v6246 = vmul.f32 %v5194, %v6021
        %v6247 = vmul.f32 %v5195, %v6023
        %v6248 = vmul.f32 %v5196, %v6025
        %v6249 = vmul.f32 %v5197, %v6027
        %v6250 = vmul.f32 %v5198, %v6029
        %v6251 = vmul.f32 %v5199, %v6031
        %v6252 = vmul.f32 %v5200, %v6033
        %v6253 = vmul.f32 %v5201, %v6035
        %v6254 = vmul.f32 %v5202, %v6037
        %v6255 = vmul.f32 %v5203, %v6039
        %v6256 = vmul.f32 %v5204, %v6041
        %v6257 = vmul.f32 %v5205, %v6043
        %v6258 = vmul.f32 %v5206, %v6045
        %v6259 = vmul.f32 %v5207, %v6047
        %v6260 = vmul.f32 %v5208, %v6049
        %v6261 = vmul.f32 %v5209, %v6051
        %v6262 = vmul.f32 %v5210, %v6053
        %v6263 = vmul.f32 %v5211, %v6055
        %v6264 = vmul.f32 %v5212, %v6057
        %v6265 = vmul.f32 %v5213, %v6059
        %v6266 = vmul.f32 %v5214, %v6061
        %v6267 = vmul.f32 %v5215, %v6063
        %v6268 = vmul.f32 %v5216, %v6065
        %v6269 = vmul.f32 %v5217, %v6067
        %v6270 = vmul.f32 %v5218, %v6069
        %v6271 = vmul.f32 %v5219, %v6071
        %v6272 = vmul.f32 %v5220, %v6073
        %v6273 = vmul.f32 %v5221, %v6075
        %v6274 = vmul.f32 %v5222, %v6077
        %v6275 = vmul.f32 %v5223, %v6079
        %v6276 = vmul.f32 %v5224, %v6081
        %v6277 = vmul.f32 %v5225, %v6083
        %v6278 = vmul.f32 %v5226, %v6085
        %v6279 = vmul.f32 %v5227, %v6087
        %v6280 = vpack.c.bf16 %v2819, %v2811
        %v6281 = vpack.c.bf16 %v2835, %v2827
        %v6282 = vpack.c.bf16 %v2851, %v2843
        %v6283 = vpack.c.bf16 %v2867, %v2859
        %v6284 = vpack.c.bf16 %v2883, %v2875
        %v6285 = vpack.c.bf16 %v2899, %v2891
        %v6286 = vpack.c.bf16 %v2915, %v2907
        %v6287 = vpack.c.bf16 %v2931, %v2923
        %v6288 = vpack.c.bf16 %v2947, %v2939
        %v6289 = vpack.c.bf16 %v2963, %v2955
        %v6290 = vpack.c.bf16 %v2979, %v2971
        %v6291 = vpack.c.bf16 %v2995, %v2987
        %v6292 = vpack.c.bf16 %v3011, %v3003
        %v6293 = vpack.c.bf16 %v3027, %v3019
        %v6294 = vpack.c.bf16 %v3043, %v3035
        %v6295 = vpack.c.bf16 %v3059, %v3051
        %v6296 = vpack.c.bf16 %v3075, %v3067
        %v6297 = vpack.c.bf16 %v3091, %v3083
        %v6298 = vpack.c.bf16 %v3107, %v3099
        %v6299 = vpack.c.bf16 %v3123, %v3115
        %v6300 = vpack.c.bf16 %v3139, %v3131
        %v6301 = vpack.c.bf16 %v3155, %v3147
        %v6302 = vpack.c.bf16 %v3171, %v3163
        %v6303 = vpack.c.bf16 %v3187, %v3179
        %v6304 = vpack.c.bf16 %v3203, %v3195
        %v6305 = vpack.c.bf16 %v3219, %v3211
        %v6306 = vpack.c.bf16 %v3235, %v3227
        %v6307 = vpack.c.bf16 %v3251, %v3243
        %v6308 = vpack.c.bf16 %v3267, %v3259
        %v6309 = vpack.c.bf16 %v3283, %v3275
        %v6310 = vpack.c.bf16 %v3299, %v3291
        %v6311 = vpack.c.bf16 %v3315, %v3307
        %v6312 = vpack.c.bf16 %v2820, %v2812
        %v6313 = vpack.c.bf16 %v2836, %v2828
        %v6314 = vpack.c.bf16 %v2852, %v2844
        %v6315 = vpack.c.bf16 %v2868, %v2860
        %v6316 = vpack.c.bf16 %v2884, %v2876
        %v6317 = vpack.c.bf16 %v2900, %v2892
        %v6318 = vpack.c.bf16 %v2916, %v2908
        %v6319 = vpack.c.bf16 %v2932, %v2924
        %v6320 = vpack.c.bf16 %v2948, %v2940
        %v6321 = vpack.c.bf16 %v2964, %v2956
        %v6322 = vpack.c.bf16 %v2980, %v2972
        %v6323 = vpack.c.bf16 %v2996, %v2988
        %v6324 = vpack.c.bf16 %v3012, %v3004
        %v6325 = vpack.c.bf16 %v3028, %v3020
        %v6326 = vpack.c.bf16 %v3044, %v3036
        %v6327 = vpack.c.bf16 %v3060, %v3052
        %v6328 = vpack.c.bf16 %v3076, %v3068
        %v6329 = vpack.c.bf16 %v3092, %v3084
        %v6330 = vpack.c.bf16 %v3108, %v3100
        %v6331 = vpack.c.bf16 %v3124, %v3116
        %v6332 = vpack.c.bf16 %v3140, %v3132
        %v6333 = vpack.c.bf16 %v3156, %v3148
        %v6334 = vpack.c.bf16 %v3172, %v3164
        %v6335 = vpack.c.bf16 %v3188, %v3180
        %v6336 = vpack.c.bf16 %v3204, %v3196
        %v6337 = vpack.c.bf16 %v3220, %v3212
        %v6338 = vpack.c.bf16 %v3236, %v3228
        %v6339 = vpack.c.bf16 %v3252, %v3244
        %v6340 = vpack.c.bf16 %v3268, %v3260
        %v6341 = vpack.c.bf16 %v3284, %v3276
        %v6342 = vpack.c.bf16 %v3300, %v3292
        %v6343 = vpack.c.bf16 %v3316, %v3308
        %s6344 = scalar_lea.vmem [#allocation10], 384
        %v6345 = vld [vmem:[%s6344] sm:$0xf]
        %v6346 = vld [vmem:[%s6344 + $0x4] sm:$0xf]
        %v6347 = vld [vmem:[%s6344 + $0x8] sm:$0xf]
        %v6348 = vld [vmem:[%s6344 + $0xc] sm:$0xf]
        %v6349 = vld [vmem:[%s6344 + $0x10] sm:$0xf]
        %v6350 = vld [vmem:[%s6344 + $0x14] sm:$0xf]
        %v6351 = vld [vmem:[%s6344 + $0x18] sm:$0xf]
        %v6352 = vld [vmem:[%s6344 + $0x1c] sm:$0xf]
        %v6353 = vld [vmem:[%s6344 + $0x20] sm:$0xf]
        %v6354 = vld [vmem:[%s6344 + $0x24] sm:$0xf]
        %v6355 = vld [vmem:[%s6344 + $0x28] sm:$0xf]
        %v6356 = vld [vmem:[%s6344 + $0x2c] sm:$0xf]
        %v6357 = vld [vmem:[%s6344 + $0x30] sm:$0xf]
        %v6358 = vld [vmem:[%s6344 + $0x34] sm:$0xf]
        %v6359 = vld [vmem:[%s6344 + $0x38] sm:$0xf]
        %v6360 = vld [vmem:[%s6344 + $0x3c] sm:$0xf]
        %v6361 = vld [vmem:[#allocation11 + $0x6] sm:$0x1]
        %v6363 = vperm.slane %v6361, 0
        %v6381 = vunpack.c.l.b16 %v6345
        %v6382 = vunpack.c.l.b16 %v6346
        %v6383 = vunpack.c.l.b16 %v6347
        %v6384 = vunpack.c.l.b16 %v6348
        %v6385 = vunpack.c.l.b16 %v6349
        %v6386 = vunpack.c.l.b16 %v6350
        %v6387 = vunpack.c.l.b16 %v6351
        %v6388 = vunpack.c.l.b16 %v6352
        %v6389 = vunpack.c.l.b16 %v6353
        %v6390 = vunpack.c.l.b16 %v6354
        %v6391 = vunpack.c.l.b16 %v6355
        %v6392 = vunpack.c.l.b16 %v6356
        %v6393 = vunpack.c.l.b16 %v6357
        %v6394 = vunpack.c.l.b16 %v6358
        %v6395 = vunpack.c.l.b16 %v6359
        %v6396 = vunpack.c.l.b16 %v6360
        %v6397 = vpack.c.b16 %v6382, %v6381
        %v6398 = vpack.c.b16 %v6384, %v6383
        %v6399 = vpack.c.b16 %v6386, %v6385
        %v6400 = vpack.c.b16 %v6388, %v6387
        %v6401 = vpack.c.b16 %v6390, %v6389
        %v6402 = vpack.c.b16 %v6392, %v6391
        %v6403 = vpack.c.b16 %v6394, %v6393
        %v6404 = vpack.c.b16 %v6396, %v6395
        %6413 = vmatpush.bf16.msra.mxu0 %v6404
        %6414 = vmatpush.bf16.msra.mxu0 %v6403
        %6415 = vmatpush.bf16.msra.mxu0 %v6402
        %6416 = vmatpush.bf16.msra.mxu0 %v6401
        %6417 = vmatpush.bf16.msra.mxu0 %v6400
        %6418 = vmatpush.bf16.msra.mxu0 %v6399
        %6419 = vmatpush.bf16.msra.mxu0 %v6398
        %6420 = vmatpush.bf16.msra.mxu0 %v6397
        %6421 = vmatmul.bf16.gmra.mxu0 %v6280
        %v6422 = vpop.f32.mrf.mxu0
        %v6423 = vadd.f32 %v6363, %v6422
        %v6424 = vpop.f32.mrf.mxu0
        %v6425 = vadd.f32 %v6363, %v6424
        %6426 = vmatmul.bf16.gmra.mxu0 %v6281
        %v6427 = vpop.f32.mrf.mxu0
        %v6428 = vadd.f32 %v6363, %v6427
        %v6429 = vpop.f32.mrf.mxu0
        %v6430 = vadd.f32 %v6363, %v6429
        %6431 = vmatmul.bf16.gmra.mxu0 %v6282
        %v6432 = vpop.f32.mrf.mxu0
        %v6433 = vadd.f32 %v6363, %v6432
        %v6434 = vpop.f32.mrf.mxu0
        %v6435 = vadd.f32 %v6363, %v6434
        %6436 = vmatmul.bf16.gmra.mxu0 %v6283
        %v6437 = vpop.f32.mrf.mxu0
        %v6438 = vadd.f32 %v6363, %v6437
        %v6439 = vpop.f32.mrf.mxu0
        %v6440 = vadd.f32 %v6363, %v6439
        %6441 = vmatmul.bf16.gmra.mxu0 %v6284
        %v6442 = vpop.f32.mrf.mxu0
        %v6443 = vadd.f32 %v6363, %v6442
        %v6444 = vpop.f32.mrf.mxu0
        %v6445 = vadd.f32 %v6363, %v6444
        %6446 = vmatmul.bf16.gmra.mxu0 %v6285
        %v6447 = vpop.f32.mrf.mxu0
        %v6448 = vadd.f32 %v6363, %v6447
        %v6449 = vpop.f32.mrf.mxu0
        %v6450 = vadd.f32 %v6363, %v6449
        %6451 = vmatmul.bf16.gmra.mxu0 %v6286
        %v6452 = vpop.f32.mrf.mxu0
        %v6453 = vadd.f32 %v6363, %v6452
        %v6454 = vpop.f32.mrf.mxu0
        %v6455 = vadd.f32 %v6363, %v6454
        %6456 = vmatmul.bf16.gmra.mxu0 %v6287
        %v6457 = vpop.f32.mrf.mxu0
        %v6458 = vadd.f32 %v6363, %v6457
        %v6459 = vpop.f32.mrf.mxu0
        %v6460 = vadd.f32 %v6363, %v6459
        %6461 = vmatmul.bf16.gmra.mxu0 %v6288
        %v6462 = vpop.f32.mrf.mxu0
        %v6463 = vadd.f32 %v6363, %v6462
        %v6464 = vpop.f32.mrf.mxu0
        %v6465 = vadd.f32 %v6363, %v6464
        %6466 = vmatmul.bf16.gmra.mxu0 %v6289
        %v6467 = vpop.f32.mrf.mxu0
        %v6468 = vadd.f32 %v6363, %v6467
        %v6469 = vpop.f32.mrf.mxu0
        %v6470 = vadd.f32 %v6363, %v6469
        %6471 = vmatmul.bf16.gmra.mxu0 %v6290
        %v6472 = vpop.f32.mrf.mxu0
        %v6473 = vadd.f32 %v6363, %v6472
        %v6474 = vpop.f32.mrf.mxu0
        %v6475 = vadd.f32 %v6363, %v6474
        %6476 = vmatmul.bf16.gmra.mxu0 %v6291
        %v6477 = vpop.f32.mrf.mxu0
        %v6478 = vadd.f32 %v6363, %v6477
        %v6479 = vpop.f32.mrf.mxu0
        %v6480 = vadd.f32 %v6363, %v6479
        %6481 = vmatmul.bf16.gmra.mxu0 %v6292
        %v6482 = vpop.f32.mrf.mxu0
        %v6483 = vadd.f32 %v6363, %v6482
        %v6484 = vpop.f32.mrf.mxu0
        %v6485 = vadd.f32 %v6363, %v6484
        %6486 = vmatmul.bf16.gmra.mxu0 %v6293
        %v6487 = vpop.f32.mrf.mxu0
        %v6488 = vadd.f32 %v6363, %v6487
        %v6489 = vpop.f32.mrf.mxu0
        %v6490 = vadd.f32 %v6363, %v6489
        %6491 = vmatmul.bf16.gmra.mxu0 %v6294
        %v6492 = vpop.f32.mrf.mxu0
        %v6493 = vadd.f32 %v6363, %v6492
        %v6494 = vpop.f32.mrf.mxu0
        %v6495 = vadd.f32 %v6363, %v6494
        %6496 = vmatmul.bf16.gmra.mxu0 %v6295
        %v6497 = vpop.f32.mrf.mxu0
        %v6498 = vadd.f32 %v6363, %v6497
        %v6499 = vpop.f32.mrf.mxu0
        %v6500 = vadd.f32 %v6363, %v6499
        %6501 = vmatmul.bf16.gmra.mxu0 %v6296
        %v6502 = vpop.f32.mrf.mxu0
        %v6503 = vadd.f32 %v6363, %v6502
        %v6504 = vpop.f32.mrf.mxu0
        %v6505 = vadd.f32 %v6363, %v6504
        %6506 = vmatmul.bf16.gmra.mxu0 %v6297
        %v6507 = vpop.f32.mrf.mxu0
        %v6508 = vadd.f32 %v6363, %v6507
        %v6509 = vpop.f32.mrf.mxu0
        %v6510 = vadd.f32 %v6363, %v6509
        %6511 = vmatmul.bf16.gmra.mxu0 %v6298
        %v6512 = vpop.f32.mrf.mxu0
        %v6513 = vadd.f32 %v6363, %v6512
        %v6514 = vpop.f32.mrf.mxu0
        %v6515 = vadd.f32 %v6363, %v6514
        %6516 = vmatmul.bf16.gmra.mxu0 %v6299
        %v6517 = vpop.f32.mrf.mxu0
        %v6518 = vadd.f32 %v6363, %v6517
        %v6519 = vpop.f32.mrf.mxu0
        %v6520 = vadd.f32 %v6363, %v6519
        %6521 = vmatmul.bf16.gmra.mxu0 %v6300
        %v6522 = vpop.f32.mrf.mxu0
        %v6523 = vadd.f32 %v6363, %v6522
        %v6524 = vpop.f32.mrf.mxu0
        %v6525 = vadd.f32 %v6363, %v6524
        %6526 = vmatmul.bf16.gmra.mxu0 %v6301
        %v6527 = vpop.f32.mrf.mxu0
        %v6528 = vadd.f32 %v6363, %v6527
        %v6529 = vpop.f32.mrf.mxu0
        %v6530 = vadd.f32 %v6363, %v6529
        %6531 = vmatmul.bf16.gmra.mxu0 %v6302
        %v6532 = vpop.f32.mrf.mxu0
        %v6533 = vadd.f32 %v6363, %v6532
        %v6534 = vpop.f32.mrf.mxu0
        %v6535 = vadd.f32 %v6363, %v6534
        %6536 = vmatmul.bf16.gmra.mxu0 %v6303
        %v6537 = vpop.f32.mrf.mxu0
        %v6538 = vadd.f32 %v6363, %v6537
        %v6539 = vpop.f32.mrf.mxu0
        %v6540 = vadd.f32 %v6363, %v6539
        %6541 = vmatmul.bf16.gmra.mxu0 %v6304
        %v6542 = vpop.f32.mrf.mxu0
        %v6543 = vadd.f32 %v6363, %v6542
        %v6544 = vpop.f32.mrf.mxu0
        %v6545 = vadd.f32 %v6363, %v6544
        %6546 = vmatmul.bf16.gmra.mxu0 %v6305
        %v6547 = vpop.f32.mrf.mxu0
        %v6548 = vadd.f32 %v6363, %v6547
        %v6549 = vpop.f32.mrf.mxu0
        %v6550 = vadd.f32 %v6363, %v6549
        %6551 = vmatmul.bf16.gmra.mxu0 %v6306
        %v6552 = vpop.f32.mrf.mxu0
        %v6553 = vadd.f32 %v6363, %v6552
        %v6554 = vpop.f32.mrf.mxu0
        %v6555 = vadd.f32 %v6363, %v6554
        %6556 = vmatmul.bf16.gmra.mxu0 %v6307
        %v6557 = vpop.f32.mrf.mxu0
        %v6558 = vadd.f32 %v6363, %v6557
        %v6559 = vpop.f32.mrf.mxu0
        %v6560 = vadd.f32 %v6363, %v6559
        %6561 = vmatmul.bf16.gmra.mxu0 %v6308
        %v6562 = vpop.f32.mrf.mxu0
        %v6563 = vadd.f32 %v6363, %v6562
        %v6564 = vpop.f32.mrf.mxu0
        %v6565 = vadd.f32 %v6363, %v6564
        %6566 = vmatmul.bf16.gmra.mxu0 %v6309
        %v6567 = vpop.f32.mrf.mxu0
        %v6568 = vadd.f32 %v6363, %v6567
        %v6569 = vpop.f32.mrf.mxu0
        %v6570 = vadd.f32 %v6363, %v6569
        %6571 = vmatmul.bf16.gmra.mxu0 %v6310
        %v6572 = vpop.f32.mrf.mxu0
        %v6573 = vadd.f32 %v6363, %v6572
        %v6574 = vpop.f32.mrf.mxu0
        %v6575 = vadd.f32 %v6363, %v6574
        %6576 = vmatmul.bf16.gmra.mxu0 %v6311
        %v6577 = vpop.f32.mrf.mxu0
        %v6578 = vadd.f32 %v6363, %v6577
        %v6579 = vpop.f32.mrf.mxu0
        %v6580 = vadd.f32 %v6363, %v6579
        %6581 = vdwg.mxu0
        %s6582 = scalar_lea.vmem [#allocation10], 448
        %v6583 = vld [vmem:[%s6582] sm:$0xf]
        %v6584 = vld [vmem:[%s6582 + $0x4] sm:$0xf]
        %v6585 = vld [vmem:[%s6582 + $0x8] sm:$0xf]
        %v6586 = vld [vmem:[%s6582 + $0xc] sm:$0xf]
        %v6587 = vld [vmem:[%s6582 + $0x10] sm:$0xf]
        %v6588 = vld [vmem:[%s6582 + $0x14] sm:$0xf]
        %v6589 = vld [vmem:[%s6582 + $0x18] sm:$0xf]
        %v6590 = vld [vmem:[%s6582 + $0x1c] sm:$0xf]
        %v6591 = vld [vmem:[%s6582 + $0x20] sm:$0xf]
        %v6592 = vld [vmem:[%s6582 + $0x24] sm:$0xf]
        %v6593 = vld [vmem:[%s6582 + $0x28] sm:$0xf]
        %v6594 = vld [vmem:[%s6582 + $0x2c] sm:$0xf]
        %v6595 = vld [vmem:[%s6582 + $0x30] sm:$0xf]
        %v6596 = vld [vmem:[%s6582 + $0x34] sm:$0xf]
        %v6597 = vld [vmem:[%s6582 + $0x38] sm:$0xf]
        %v6598 = vld [vmem:[%s6582 + $0x3c] sm:$0xf]
        %v6599 = vld [vmem:[#allocation11 + $0x7] sm:$0x1]
        %v6601 = vperm.slane %v6599, 0
        %v6619 = vunpack.c.l.b16 %v6583
        %v6620 = vunpack.c.l.b16 %v6584
        %v6621 = vunpack.c.l.b16 %v6585
        %v6622 = vunpack.c.l.b16 %v6586
        %v6623 = vunpack.c.l.b16 %v6587
        %v6624 = vunpack.c.l.b16 %v6588
        %v6625 = vunpack.c.l.b16 %v6589
        %v6626 = vunpack.c.l.b16 %v6590
        %v6627 = vunpack.c.l.b16 %v6591
        %v6628 = vunpack.c.l.b16 %v6592
        %v6629 = vunpack.c.l.b16 %v6593
        %v6630 = vunpack.c.l.b16 %v6594
        %v6631 = vunpack.c.l.b16 %v6595
        %v6632 = vunpack.c.l.b16 %v6596
        %v6633 = vunpack.c.l.b16 %v6597
        %v6634 = vunpack.c.l.b16 %v6598
        %v6635 = vpack.c.b16 %v6620, %v6619
        %v6636 = vpack.c.b16 %v6622, %v6621
        %v6637 = vpack.c.b16 %v6624, %v6623
        %v6638 = vpack.c.b16 %v6626, %v6625
        %v6639 = vpack.c.b16 %v6628, %v6627
        %v6640 = vpack.c.b16 %v6630, %v6629
        %v6641 = vpack.c.b16 %v6632, %v6631
        %v6642 = vpack.c.b16 %v6634, %v6633
        %6651 = vmatpush.bf16.msra.mxu0 %v6642
        %6652 = vmatpush.bf16.msra.mxu0 %v6641
        %6653 = vmatpush.bf16.msra.mxu0 %v6640
        %6654 = vmatpush.bf16.msra.mxu0 %v6639
        %6655 = vmatpush.bf16.msra.mxu0 %v6638
        %6656 = vmatpush.bf16.msra.mxu0 %v6637
        %6657 = vmatpush.bf16.msra.mxu0 %v6636
        %6658 = vmatpush.bf16.msra.mxu0 %v6635
        %6659 = vmatmul.bf16.gmra.mxu0 %v6312
        %v6660 = vpop.f32.mrf.mxu0
        %v6661 = vadd.f32 %v6601, %v6660
        %v6662 = vpop.f32.mrf.mxu0
        %v6663 = vadd.f32 %v6601, %v6662
        %6664 = vmatmul.bf16.gmra.mxu0 %v6313
        %v6665 = vpop.f32.mrf.mxu0
        %v6666 = vadd.f32 %v6601, %v6665
        %v6667 = vpop.f32.mrf.mxu0
        %v6668 = vadd.f32 %v6601, %v6667
        %6669 = vmatmul.bf16.gmra.mxu0 %v6314
        %v6670 = vpop.f32.mrf.mxu0
        %v6671 = vadd.f32 %v6601, %v6670
        %v6672 = vpop.f32.mrf.mxu0
        %v6673 = vadd.f32 %v6601, %v6672
        %6674 = vmatmul.bf16.gmra.mxu0 %v6315
        %v6675 = vpop.f32.mrf.mxu0
        %v6676 = vadd.f32 %v6601, %v6675
        %v6677 = vpop.f32.mrf.mxu0
        %v6678 = vadd.f32 %v6601, %v6677
        %6679 = vmatmul.bf16.gmra.mxu0 %v6316
        %v6680 = vpop.f32.mrf.mxu0
        %v6681 = vadd.f32 %v6601, %v6680
        %v6682 = vpop.f32.mrf.mxu0
        %v6683 = vadd.f32 %v6601, %v6682
        %6684 = vmatmul.bf16.gmra.mxu0 %v6317
        %v6685 = vpop.f32.mrf.mxu0
        %v6686 = vadd.f32 %v6601, %v6685
        %v6687 = vpop.f32.mrf.mxu0
        %v6688 = vadd.f32 %v6601, %v6687
        %6689 = vmatmul.bf16.gmra.mxu0 %v6318
        %v6690 = vpop.f32.mrf.mxu0
        %v6691 = vadd.f32 %v6601, %v6690
        %v6692 = vpop.f32.mrf.mxu0
        %v6693 = vadd.f32 %v6601, %v6692
        %6694 = vmatmul.bf16.gmra.mxu0 %v6319
        %v6695 = vpop.f32.mrf.mxu0
        %v6696 = vadd.f32 %v6601, %v6695
        %v6697 = vpop.f32.mrf.mxu0
        %v6698 = vadd.f32 %v6601, %v6697
        %6699 = vmatmul.bf16.gmra.mxu0 %v6320
        %v6700 = vpop.f32.mrf.mxu0
        %v6701 = vadd.f32 %v6601, %v6700
        %v6702 = vpop.f32.mrf.mxu0
        %v6703 = vadd.f32 %v6601, %v6702
        %6704 = vmatmul.bf16.gmra.mxu0 %v6321
        %v6705 = vpop.f32.mrf.mxu0
        %v6706 = vadd.f32 %v6601, %v6705
        %v6707 = vpop.f32.mrf.mxu0
        %v6708 = vadd.f32 %v6601, %v6707
        %6709 = vmatmul.bf16.gmra.mxu0 %v6322
        %v6710 = vpop.f32.mrf.mxu0
        %v6711 = vadd.f32 %v6601, %v6710
        %v6712 = vpop.f32.mrf.mxu0
        %v6713 = vadd.f32 %v6601, %v6712
        %6714 = vmatmul.bf16.gmra.mxu0 %v6323
        %v6715 = vpop.f32.mrf.mxu0
        %v6716 = vadd.f32 %v6601, %v6715
        %v6717 = vpop.f32.mrf.mxu0
        %v6718 = vadd.f32 %v6601, %v6717
        %6719 = vmatmul.bf16.gmra.mxu0 %v6324
        %v6720 = vpop.f32.mrf.mxu0
        %v6721 = vadd.f32 %v6601, %v6720
        %v6722 = vpop.f32.mrf.mxu0
        %v6723 = vadd.f32 %v6601, %v6722
        %6724 = vmatmul.bf16.gmra.mxu0 %v6325
        %v6725 = vpop.f32.mrf.mxu0
        %v6726 = vadd.f32 %v6601, %v6725
        %v6727 = vpop.f32.mrf.mxu0
        %v6728 = vadd.f32 %v6601, %v6727
        %6729 = vmatmul.bf16.gmra.mxu0 %v6326
        %v6730 = vpop.f32.mrf.mxu0
        %v6731 = vadd.f32 %v6601, %v6730
        %v6732 = vpop.f32.mrf.mxu0
        %v6733 = vadd.f32 %v6601, %v6732
        %6734 = vmatmul.bf16.gmra.mxu0 %v6327
        %v6735 = vpop.f32.mrf.mxu0
        %v6736 = vadd.f32 %v6601, %v6735
        %v6737 = vpop.f32.mrf.mxu0
        %v6738 = vadd.f32 %v6601, %v6737
        %6739 = vmatmul.bf16.gmra.mxu0 %v6328
        %v6740 = vpop.f32.mrf.mxu0
        %v6741 = vadd.f32 %v6601, %v6740
        %v6742 = vpop.f32.mrf.mxu0
        %v6743 = vadd.f32 %v6601, %v6742
        %6744 = vmatmul.bf16.gmra.mxu0 %v6329
        %v6745 = vpop.f32.mrf.mxu0
        %v6746 = vadd.f32 %v6601, %v6745
        %v6747 = vpop.f32.mrf.mxu0
        %v6748 = vadd.f32 %v6601, %v6747
        %6749 = vmatmul.bf16.gmra.mxu0 %v6330
        %v6750 = vpop.f32.mrf.mxu0
        %v6751 = vadd.f32 %v6601, %v6750
        %v6752 = vpop.f32.mrf.mxu0
        %v6753 = vadd.f32 %v6601, %v6752
        %6754 = vmatmul.bf16.gmra.mxu0 %v6331
        %v6755 = vpop.f32.mrf.mxu0
        %v6756 = vadd.f32 %v6601, %v6755
        %v6757 = vpop.f32.mrf.mxu0
        %v6758 = vadd.f32 %v6601, %v6757
        %6759 = vmatmul.bf16.gmra.mxu0 %v6332
        %v6760 = vpop.f32.mrf.mxu0
        %v6761 = vadd.f32 %v6601, %v6760
        %v6762 = vpop.f32.mrf.mxu0
        %v6763 = vadd.f32 %v6601, %v6762
        %6764 = vmatmul.bf16.gmra.mxu0 %v6333
        %v6765 = vpop.f32.mrf.mxu0
        %v6766 = vadd.f32 %v6601, %v6765
        %v6767 = vpop.f32.mrf.mxu0
        %v6768 = vadd.f32 %v6601, %v6767
        %6769 = vmatmul.bf16.gmra.mxu0 %v6334
        %v6770 = vpop.f32.mrf.mxu0
        %v6771 = vadd.f32 %v6601, %v6770
        %v6772 = vpop.f32.mrf.mxu0
        %v6773 = vadd.f32 %v6601, %v6772
        %6774 = vmatmul.bf16.gmra.mxu0 %v6335
        %v6775 = vpop.f32.mrf.mxu0
        %v6776 = vadd.f32 %v6601, %v6775
        %v6777 = vpop.f32.mrf.mxu0
        %v6778 = vadd.f32 %v6601, %v6777
        %6779 = vmatmul.bf16.gmra.mxu0 %v6336
        %v6780 = vpop.f32.mrf.mxu0
        %v6781 = vadd.f32 %v6601, %v6780
        %v6782 = vpop.f32.mrf.mxu0
        %v6783 = vadd.f32 %v6601, %v6782
        %6784 = vmatmul.bf16.gmra.mxu0 %v6337
        %v6785 = vpop.f32.mrf.mxu0
        %v6786 = vadd.f32 %v6601, %v6785
        %v6787 = vpop.f32.mrf.mxu0
        %v6788 = vadd.f32 %v6601, %v6787
        %6789 = vmatmul.bf16.gmra.mxu0 %v6338
        %v6790 = vpop.f32.mrf.mxu0
        %v6791 = vadd.f32 %v6601, %v6790
        %v6792 = vpop.f32.mrf.mxu0
        %v6793 = vadd.f32 %v6601, %v6792
        %6794 = vmatmul.bf16.gmra.mxu0 %v6339
        %v6795 = vpop.f32.mrf.mxu0
        %v6796 = vadd.f32 %v6601, %v6795
        %v6797 = vpop.f32.mrf.mxu0
        %v6798 = vadd.f32 %v6601, %v6797
        %6799 = vmatmul.bf16.gmra.mxu0 %v6340
        %v6800 = vpop.f32.mrf.mxu0
        %v6801 = vadd.f32 %v6601, %v6800
        %v6802 = vpop.f32.mrf.mxu0
        %v6803 = vadd.f32 %v6601, %v6802
        %6804 = vmatmul.bf16.gmra.mxu0 %v6341
        %v6805 = vpop.f32.mrf.mxu0
        %v6806 = vadd.f32 %v6601, %v6805
        %v6807 = vpop.f32.mrf.mxu0
        %v6808 = vadd.f32 %v6601, %v6807
        %6809 = vmatmul.bf16.gmra.mxu0 %v6342
        %v6810 = vpop.f32.mrf.mxu0
        %v6811 = vadd.f32 %v6601, %v6810
        %v6812 = vpop.f32.mrf.mxu0
        %v6813 = vadd.f32 %v6601, %v6812
        %6814 = vmatmul.bf16.gmra.mxu0 %v6343
        %v6815 = vpop.f32.mrf.mxu0
        %v6816 = vadd.f32 %v6601, %v6815
        %v6817 = vpop.f32.mrf.mxu0
        %v6818 = vadd.f32 %v6601, %v6817
        %6819 = vdwg.mxu0
        %v6820 = vmul.f32 %v6423, 0.5
        %v6821 = vmul.f32 %v6425, 0.5
        %v6822 = vmul.f32 %v6428, 0.5
        %v6823 = vmul.f32 %v6430, 0.5
        %v6824 = vmul.f32 %v6433, 0.5
        %v6825 = vmul.f32 %v6435, 0.5
        %v6826 = vmul.f32 %v6438, 0.5
        %v6827 = vmul.f32 %v6440, 0.5
        %v6828 = vmul.f32 %v6443, 0.5
        %v6829 = vmul.f32 %v6445, 0.5
        %v6830 = vmul.f32 %v6448, 0.5
        %v6831 = vmul.f32 %v6450, 0.5
        %v6832 = vmul.f32 %v6453, 0.5
        %v6833 = vmul.f32 %v6455, 0.5
        %v6834 = vmul.f32 %v6458, 0.5
        %v6835 = vmul.f32 %v6460, 0.5
        %v6836 = vmul.f32 %v6463, 0.5
        %v6837 = vmul.f32 %v6465, 0.5
        %v6838 = vmul.f32 %v6468, 0.5
        %v6839 = vmul.f32 %v6470, 0.5
        %v6840 = vmul.f32 %v6473, 0.5
        %v6841 = vmul.f32 %v6475, 0.5
        %v6842 = vmul.f32 %v6478, 0.5
        %v6843 = vmul.f32 %v6480, 0.5
        %v6844 = vmul.f32 %v6483, 0.5
        %v6845 = vmul.f32 %v6485, 0.5
        %v6846 = vmul.f32 %v6488, 0.5
        %v6847 = vmul.f32 %v6490, 0.5
        %v6848 = vmul.f32 %v6493, 0.5
        %v6849 = vmul.f32 %v6495, 0.5
        %v6850 = vmul.f32 %v6498, 0.5
        %v6851 = vmul.f32 %v6500, 0.5
        %v6852 = vmul.f32 %v6503, 0.5
        %v6853 = vmul.f32 %v6505, 0.5
        %v6854 = vmul.f32 %v6508, 0.5
        %v6855 = vmul.f32 %v6510, 0.5
        %v6856 = vmul.f32 %v6513, 0.5
        %v6857 = vmul.f32 %v6515, 0.5
        %v6858 = vmul.f32 %v6518, 0.5
        %v6859 = vmul.f32 %v6520, 0.5
        %v6860 = vmul.f32 %v6523, 0.5
        %v6861 = vmul.f32 %v6525, 0.5
        %v6862 = vmul.f32 %v6528, 0.5
        %v6863 = vmul.f32 %v6530, 0.5
        %v6864 = vmul.f32 %v6533, 0.5
        %v6865 = vmul.f32 %v6535, 0.5
        %v6866 = vmul.f32 %v6538, 0.5
        %v6867 = vmul.f32 %v6540, 0.5
        %v6868 = vmul.f32 %v6543, 0.5
        %v6869 = vmul.f32 %v6545, 0.5
        %v6870 = vmul.f32 %v6548, 0.5
        %v6871 = vmul.f32 %v6550, 0.5
        %v6872 = vmul.f32 %v6553, 0.5
        %v6873 = vmul.f32 %v6555, 0.5
        %v6874 = vmul.f32 %v6558, 0.5
        %v6875 = vmul.f32 %v6560, 0.5
        %v6876 = vmul.f32 %v6563, 0.5
        %v6877 = vmul.f32 %v6565, 0.5
        %v6878 = vmul.f32 %v6568, 0.5
        %v6879 = vmul.f32 %v6570, 0.5
        %v6880 = vmul.f32 %v6573, 0.5
        %v6881 = vmul.f32 %v6575, 0.5
        %v6882 = vmul.f32 %v6578, 0.5
        %v6883 = vmul.f32 %v6580, 0.5
        %v6884 = vtanh.pop %v6820
        %v6885 = vtanh.pop %v6821
        %v6886 = vtanh.pop %v6822
        %v6887 = vtanh.pop %v6823
        %v6888 = vtanh.pop %v6824
        %v6889 = vtanh.pop %v6825
        %v6890 = vtanh.pop %v6826
        %v6891 = vtanh.pop %v6827
        %v6892 = vtanh.pop %v6828
        %v6893 = vtanh.pop %v6829
        %v6894 = vtanh.pop %v6830
        %v6895 = vtanh.pop %v6831
        %v6896 = vtanh.pop %v6832
        %v6897 = vtanh.pop %v6833
        %v6898 = vtanh.pop %v6834
        %v6899 = vtanh.pop %v6835
        %v6900 = vtanh.pop %v6836
        %v6901 = vtanh.pop %v6837
        %v6902 = vtanh.pop %v6838
        %v6903 = vtanh.pop %v6839
        %v6904 = vtanh.pop %v6840
        %v6905 = vtanh.pop %v6841
        %v6906 = vtanh.pop %v6842
        %v6907 = vtanh.pop %v6843
        %v6908 = vtanh.pop %v6844
        %v6909 = vtanh.pop %v6845
        %v6910 = vtanh.pop %v6846
        %v6911 = vtanh.pop %v6847
        %v6912 = vtanh.pop %v6848
        %v6913 = vtanh.pop %v6849
        %v6914 = vtanh.pop %v6850
        %v6915 = vtanh.pop %v6851
        %v6916 = vtanh.pop %v6852
        %v6917 = vtanh.pop %v6853
        %v6918 = vtanh.pop %v6854
        %v6919 = vtanh.pop %v6855
        %v6920 = vtanh.pop %v6856
        %v6921 = vtanh.pop %v6857
        %v6922 = vtanh.pop %v6858
        %v6923 = vtanh.pop %v6859
        %v6924 = vtanh.pop %v6860
        %v6925 = vtanh.pop %v6861
        %v6926 = vtanh.pop %v6862
        %v6927 = vtanh.pop %v6863
        %v6928 = vtanh.pop %v6864
        %v6929 = vtanh.pop %v6865
        %v6930 = vtanh.pop %v6866
        %v6931 = vtanh.pop %v6867
        %v6932 = vtanh.pop %v6868
        %v6933 = vtanh.pop %v6869
        %v6934 = vtanh.pop %v6870
        %v6935 = vtanh.pop %v6871
        %v6936 = vtanh.pop %v6872
        %v6937 = vtanh.pop %v6873
        %v6938 = vtanh.pop %v6874
        %v6939 = vtanh.pop %v6875
        %v6940 = vtanh.pop %v6876
        %v6941 = vtanh.pop %v6877
        %v6942 = vtanh.pop %v6878
        %v6943 = vtanh.pop %v6879
        %v6944 = vtanh.pop %v6880
        %v6945 = vtanh.pop %v6881
        %v6946 = vtanh.pop %v6882
        %v6947 = vtanh.pop %v6883
        %v6948 = vmul.f32 %v6884, 2.0
        %v6949 = vmul.f32 %v6885, 2.0
        %v6950 = vmul.f32 %v6886, 2.0
        %v6951 = vmul.f32 %v6887, 2.0
        %v6952 = vmul.f32 %v6888, 2.0
        %v6953 = vmul.f32 %v6889, 2.0
        %v6954 = vmul.f32 %v6890, 2.0
        %v6955 = vmul.f32 %v6891, 2.0
        %v6956 = vmul.f32 %v6892, 2.0
        %v6957 = vmul.f32 %v6893, 2.0
        %v6958 = vmul.f32 %v6894, 2.0
        %v6959 = vmul.f32 %v6895, 2.0
        %v6960 = vmul.f32 %v6896, 2.0
        %v6961 = vmul.f32 %v6897, 2.0
        %v6962 = vmul.f32 %v6898, 2.0
        %v6963 = vmul.f32 %v6899, 2.0
        %v6964 = vmul.f32 %v6900, 2.0
        %v6965 = vmul.f32 %v6901, 2.0
        %v6966 = vmul.f32 %v6902, 2.0
        %v6967 = vmul.f32 %v6903, 2.0
        %v6968 = vmul.f32 %v6904, 2.0
        %v6969 = vmul.f32 %v6905, 2.0
        %v6970 = vmul.f32 %v6906, 2.0
        %v6971 = vmul.f32 %v6907, 2.0
        %v6972 = vmul.f32 %v6908, 2.0
        %v6973 = vmul.f32 %v6909, 2.0
        %v6974 = vmul.f32 %v6910, 2.0
        %v6975 = vmul.f32 %v6911, 2.0
        %v6976 = vmul.f32 %v6912, 2.0
        %v6977 = vmul.f32 %v6913, 2.0
        %v6978 = vmul.f32 %v6914, 2.0
        %v6979 = vmul.f32 %v6915, 2.0
        %v6980 = vmul.f32 %v6916, 2.0
        %v6981 = vmul.f32 %v6917, 2.0
        %v6982 = vmul.f32 %v6918, 2.0
        %v6983 = vmul.f32 %v6919, 2.0
        %v6984 = vmul.f32 %v6920, 2.0
        %v6985 = vmul.f32 %v6921, 2.0
        %v6986 = vmul.f32 %v6922, 2.0
        %v6987 = vmul.f32 %v6923, 2.0
        %v6988 = vmul.f32 %v6924, 2.0
        %v6989 = vmul.f32 %v6925, 2.0
        %v6990 = vmul.f32 %v6926, 2.0
        %v6991 = vmul.f32 %v6927, 2.0
        %v6992 = vmul.f32 %v6928, 2.0
        %v6993 = vmul.f32 %v6929, 2.0
        %v6994 = vmul.f32 %v6930, 2.0
        %v6995 = vmul.f32 %v6931, 2.0
        %v6996 = vmul.f32 %v6932, 2.0
        %v6997 = vmul.f32 %v6933, 2.0
        %v6998 = vmul.f32 %v6934, 2.0
        %v6999 = vmul.f32 %v6935, 2.0
        %v7000 = vmul.f32 %v6936, 2.0
        %v7001 = vmul.f32 %v6937, 2.0
        %v7002 = vmul.f32 %v6938, 2.0
        %v7003 = vmul.f32 %v6939, 2.0
        %v7004 = vmul.f32 %v6940, 2.0
        %v7005 = vmul.f32 %v6941, 2.0
        %v7006 = vmul.f32 %v6942, 2.0
        %v7007 = vmul.f32 %v6943, 2.0
        %v7008 = vmul.f32 %v6944, 2.0
        %v7009 = vmul.f32 %v6945, 2.0
        %v7010 = vmul.f32 %v6946, 2.0
        %v7011 = vmul.f32 %v6947, 2.0
        %v7012 = vmul.f32 %v6948, 1.442695
        %v7013 = vpow.pop %v7012
        %v7014 = vmul.f32 %v6949, 1.442695
        %v7015 = vpow.pop %v7014
        %v7016 = vmul.f32 %v6950, 1.442695
        %v7017 = vpow.pop %v7016
        %v7018 = vmul.f32 %v6951, 1.442695
        %v7019 = vpow.pop %v7018
        %v7020 = vmul.f32 %v6952, 1.442695
        %v7021 = vpow.pop %v7020
        %v7022 = vmul.f32 %v6953, 1.442695
        %v7023 = vpow.pop %v7022
        %v7024 = vmul.f32 %v6954, 1.442695
        %v7025 = vpow.pop %v7024
        %v7026 = vmul.f32 %v6955, 1.442695
        %v7027 = vpow.pop %v7026
        %v7028 = vmul.f32 %v6956, 1.442695
        %v7029 = vpow.pop %v7028
        %v7030 = vmul.f32 %v6957, 1.442695
        %v7031 = vpow.pop %v7030
        %v7032 = vmul.f32 %v6958, 1.442695
        %v7033 = vpow.pop %v7032
        %v7034 = vmul.f32 %v6959, 1.442695
        %v7035 = vpow.pop %v7034
        %v7036 = vmul.f32 %v6960, 1.442695
        %v7037 = vpow.pop %v7036
        %v7038 = vmul.f32 %v6961, 1.442695
        %v7039 = vpow.pop %v7038
        %v7040 = vmul.f32 %v6962, 1.442695
        %v7041 = vpow.pop %v7040
        %v7042 = vmul.f32 %v6963, 1.442695
        %v7043 = vpow.pop %v7042
        %v7044 = vmul.f32 %v6964, 1.442695
        %v7045 = vpow.pop %v7044
        %v7046 = vmul.f32 %v6965, 1.442695
        %v7047 = vpow.pop %v7046
        %v7048 = vmul.f32 %v6966, 1.442695
        %v7049 = vpow.pop %v7048
        %v7050 = vmul.f32 %v6967, 1.442695
        %v7051 = vpow.pop %v7050
        %v7052 = vmul.f32 %v6968, 1.442695
        %v7053 = vpow.pop %v7052
        %v7054 = vmul.f32 %v6969, 1.442695
        %v7055 = vpow.pop %v7054
        %v7056 = vmul.f32 %v6970, 1.442695
        %v7057 = vpow.pop %v7056
        %v7058 = vmul.f32 %v6971, 1.442695
        %v7059 = vpow.pop %v7058
        %v7060 = vmul.f32 %v6972, 1.442695
        %v7061 = vpow.pop %v7060
        %v7062 = vmul.f32 %v6973, 1.442695
        %v7063 = vpow.pop %v7062
        %v7064 = vmul.f32 %v6974, 1.442695
        %v7065 = vpow.pop %v7064
        %v7066 = vmul.f32 %v6975, 1.442695
        %v7067 = vpow.pop %v7066
        %v7068 = vmul.f32 %v6976, 1.442695
        %v7069 = vpow.pop %v7068
        %v7070 = vmul.f32 %v6977, 1.442695
        %v7071 = vpow.pop %v7070
        %v7072 = vmul.f32 %v6978, 1.442695
        %v7073 = vpow.pop %v7072
        %v7074 = vmul.f32 %v6979, 1.442695
        %v7075 = vpow.pop %v7074
        %v7076 = vmul.f32 %v6980, 1.442695
        %v7077 = vpow.pop %v7076
        %v7078 = vmul.f32 %v6981, 1.442695
        %v7079 = vpow.pop %v7078
        %v7080 = vmul.f32 %v6982, 1.442695
        %v7081 = vpow.pop %v7080
        %v7082 = vmul.f32 %v6983, 1.442695
        %v7083 = vpow.pop %v7082
        %v7084 = vmul.f32 %v6984, 1.442695
        %v7085 = vpow.pop %v7084
        %v7086 = vmul.f32 %v6985, 1.442695
        %v7087 = vpow.pop %v7086
        %v7088 = vmul.f32 %v6986, 1.442695
        %v7089 = vpow.pop %v7088
        %v7090 = vmul.f32 %v6987, 1.442695
        %v7091 = vpow.pop %v7090
        %v7092 = vmul.f32 %v6988, 1.442695
        %v7093 = vpow.pop %v7092
        %v7094 = vmul.f32 %v6989, 1.442695
        %v7095 = vpow.pop %v7094
        %v7096 = vmul.f32 %v6990, 1.442695
        %v7097 = vpow.pop %v7096
        %v7098 = vmul.f32 %v6991, 1.442695
        %v7099 = vpow.pop %v7098
        %v7100 = vmul.f32 %v6992, 1.442695
        %v7101 = vpow.pop %v7100
        %v7102 = vmul.f32 %v6993, 1.442695
        %v7103 = vpow.pop %v7102
        %v7104 = vmul.f32 %v6994, 1.442695
        %v7105 = vpow.pop %v7104
        %v7106 = vmul.f32 %v6995, 1.442695
        %v7107 = vpow.pop %v7106
        %v7108 = vmul.f32 %v6996, 1.442695
        %v7109 = vpow.pop %v7108
        %v7110 = vmul.f32 %v6997, 1.442695
        %v7111 = vpow.pop %v7110
        %v7112 = vmul.f32 %v6998, 1.442695
        %v7113 = vpow.pop %v7112
        %v7114 = vmul.f32 %v6999, 1.442695
        %v7115 = vpow.pop %v7114
        %v7116 = vmul.f32 %v7000, 1.442695
        %v7117 = vpow.pop %v7116
        %v7118 = vmul.f32 %v7001, 1.442695
        %v7119 = vpow.pop %v7118
        %v7120 = vmul.f32 %v7002, 1.442695
        %v7121 = vpow.pop %v7120
        %v7122 = vmul.f32 %v7003, 1.442695
        %v7123 = vpow.pop %v7122
        %v7124 = vmul.f32 %v7004, 1.442695
        %v7125 = vpow.pop %v7124
        %v7126 = vmul.f32 %v7005, 1.442695
        %v7127 = vpow.pop %v7126
        %v7128 = vmul.f32 %v7006, 1.442695
        %v7129 = vpow.pop %v7128
        %v7130 = vmul.f32 %v7007, 1.442695
        %v7131 = vpow.pop %v7130
        %v7132 = vmul.f32 %v7008, 1.442695
        %v7133 = vpow.pop %v7132
        %v7134 = vmul.f32 %v7009, 1.442695
        %v7135 = vpow.pop %v7134
        %v7136 = vmul.f32 %v7010, 1.442695
        %v7137 = vpow.pop %v7136
        %v7138 = vmul.f32 %v7011, 1.442695
        %v7139 = vpow.pop %v7138
        %v7140 = vmul.f32 %v6152, %v7013
        %v7141 = vmul.f32 %v6153, %v7015
        %v7142 = vmul.f32 %v6154, %v7017
        %v7143 = vmul.f32 %v6155, %v7019
        %v7144 = vmul.f32 %v6156, %v7021
        %v7145 = vmul.f32 %v6157, %v7023
        %v7146 = vmul.f32 %v6158, %v7025
        %v7147 = vmul.f32 %v6159, %v7027
        %v7148 = vmul.f32 %v6160, %v7029
        %v7149 = vmul.f32 %v6161, %v7031
        %v7150 = vmul.f32 %v6162, %v7033
        %v7151 = vmul.f32 %v6163, %v7035
        %v7152 = vmul.f32 %v6164, %v7037
        %v7153 = vmul.f32 %v6165, %v7039
        %v7154 = vmul.f32 %v6166, %v7041
        %v7155 = vmul.f32 %v6167, %v7043
        %v7156 = vmul.f32 %v6168, %v7045
        %v7157 = vmul.f32 %v6169, %v7047
        %v7158 = vmul.f32 %v6170, %v7049
        %v7159 = vmul.f32 %v6171, %v7051
        %v7160 = vmul.f32 %v6172, %v7053
        %v7161 = vmul.f32 %v6173, %v7055
        %v7162 = vmul.f32 %v6174, %v7057
        %v7163 = vmul.f32 %v6175, %v7059
        %v7164 = vmul.f32 %v6176, %v7061
        %v7165 = vmul.f32 %v6177, %v7063
        %v7166 = vmul.f32 %v6178, %v7065
        %v7167 = vmul.f32 %v6179, %v7067
        %v7168 = vmul.f32 %v6180, %v7069
        %v7169 = vmul.f32 %v6181, %v7071
        %v7170 = vmul.f32 %v6182, %v7073
        %v7171 = vmul.f32 %v6183, %v7075
        %v7172 = vmul.f32 %v6184, %v7077
        %v7173 = vmul.f32 %v6185, %v7079
        %v7174 = vmul.f32 %v6186, %v7081
        %v7175 = vmul.f32 %v6187, %v7083
        %v7176 = vmul.f32 %v6188, %v7085
        %v7177 = vmul.f32 %v6189, %v7087
        %v7178 = vmul.f32 %v6190, %v7089
        %v7179 = vmul.f32 %v6191, %v7091
        %v7180 = vmul.f32 %v6192, %v7093
        %v7181 = vmul.f32 %v6193, %v7095
        %v7182 = vmul.f32 %v6194, %v7097
        %v7183 = vmul.f32 %v6195, %v7099
        %v7184 = vmul.f32 %v6196, %v7101
        %v7185 = vmul.f32 %v6197, %v7103
        %v7186 = vmul.f32 %v6198, %v7105
        %v7187 = vmul.f32 %v6199, %v7107
        %v7188 = vmul.f32 %v6200, %v7109
        %v7189 = vmul.f32 %v6201, %v7111
        %v7190 = vmul.f32 %v6202, %v7113
        %v7191 = vmul.f32 %v6203, %v7115
        %v7192 = vmul.f32 %v6204, %v7117
        %v7193 = vmul.f32 %v6205, %v7119
        %v7194 = vmul.f32 %v6206, %v7121
        %v7195 = vmul.f32 %v6207, %v7123
        %v7196 = vmul.f32 %v6208, %v7125
        %v7197 = vmul.f32 %v6209, %v7127
        %v7198 = vmul.f32 %v6210, %v7129
        %v7199 = vmul.f32 %v6211, %v7131
        %v7200 = vmul.f32 %v6212, %v7133
        %v7201 = vmul.f32 %v6213, %v7135
        %v7202 = vmul.f32 %v6214, %v7137
        %v7203 = vmul.f32 %v6215, %v7139
        %v7204 = vadd.f32 %v7140, %v6661
        %v7205 = vadd.f32 %v7141, %v6663
        %v7206 = vadd.f32 %v7142, %v6666
        %v7207 = vadd.f32 %v7143, %v6668
        %v7208 = vadd.f32 %v7144, %v6671
        %v7209 = vadd.f32 %v7145, %v6673
        %v7210 = vadd.f32 %v7146, %v6676
        %v7211 = vadd.f32 %v7147, %v6678
        %v7212 = vadd.f32 %v7148, %v6681
        %v7213 = vadd.f32 %v7149, %v6683
        %v7214 = vadd.f32 %v7150, %v6686
        %v7215 = vadd.f32 %v7151, %v6688
        %v7216 = vadd.f32 %v7152, %v6691
        %v7217 = vadd.f32 %v7153, %v6693
        %v7218 = vadd.f32 %v7154, %v6696
        %v7219 = vadd.f32 %v7155, %v6698
        %v7220 = vadd.f32 %v7156, %v6701
        %v7221 = vadd.f32 %v7157, %v6703
        %v7222 = vadd.f32 %v7158, %v6706
        %v7223 = vadd.f32 %v7159, %v6708
        %v7224 = vadd.f32 %v7160, %v6711
        %v7225 = vadd.f32 %v7161, %v6713
        %v7226 = vadd.f32 %v7162, %v6716
        %v7227 = vadd.f32 %v7163, %v6718
        %v7228 = vadd.f32 %v7164, %v6721
        %v7229 = vadd.f32 %v7165, %v6723
        %v7230 = vadd.f32 %v7166, %v6726
        %v7231 = vadd.f32 %v7167, %v6728
        %v7232 = vadd.f32 %v7168, %v6731
        %v7233 = vadd.f32 %v7169, %v6733
        %v7234 = vadd.f32 %v7170, %v6736
        %v7235 = vadd.f32 %v7171, %v6738
        %v7236 = vadd.f32 %v7172, %v6741
        %v7237 = vadd.f32 %v7173, %v6743
        %v7238 = vadd.f32 %v7174, %v6746
        %v7239 = vadd.f32 %v7175, %v6748
        %v7240 = vadd.f32 %v7176, %v6751
        %v7241 = vadd.f32 %v7177, %v6753
        %v7242 = vadd.f32 %v7178, %v6756
        %v7243 = vadd.f32 %v7179, %v6758
        %v7244 = vadd.f32 %v7180, %v6761
        %v7245 = vadd.f32 %v7181, %v6763
        %v7246 = vadd.f32 %v7182, %v6766
        %v7247 = vadd.f32 %v7183, %v6768
        %v7248 = vadd.f32 %v7184, %v6771
        %v7249 = vadd.f32 %v7185, %v6773
        %v7250 = vadd.f32 %v7186, %v6776
        %v7251 = vadd.f32 %v7187, %v6778
        %v7252 = vadd.f32 %v7188, %v6781
        %v7253 = vadd.f32 %v7189, %v6783
        %v7254 = vadd.f32 %v7190, %v6786
        %v7255 = vadd.f32 %v7191, %v6788
        %v7256 = vadd.f32 %v7192, %v6791
        %v7257 = vadd.f32 %v7193, %v6793
        %v7258 = vadd.f32 %v7194, %v6796
        %v7259 = vadd.f32 %v7195, %v6798
        %v7260 = vadd.f32 %v7196, %v6801
        %v7261 = vadd.f32 %v7197, %v6803
        %v7262 = vadd.f32 %v7198, %v6806
        %v7263 = vadd.f32 %v7199, %v6808
        %v7264 = vadd.f32 %v7200, %v6811
        %v7265 = vadd.f32 %v7201, %v6813
        %v7266 = vadd.f32 %v7202, %v6816
        %v7267 = vadd.f32 %v7203, %v6818
        %v7268 = vmul.f32 %v6216, %v7013
        %v7269 = vmul.f32 %v6217, %v7015
        %v7270 = vmul.f32 %v6218, %v7017
        %v7271 = vmul.f32 %v6219, %v7019
        %v7272 = vmul.f32 %v6220, %v7021
        %v7273 = vmul.f32 %v6221, %v7023
        %v7274 = vmul.f32 %v6222, %v7025
        %v7275 = vmul.f32 %v6223, %v7027
        %v7276 = vmul.f32 %v6224, %v7029
        %v7277 = vmul.f32 %v6225, %v7031
        %v7278 = vmul.f32 %v6226, %v7033
        %v7279 = vmul.f32 %v6227, %v7035
        %v7280 = vmul.f32 %v6228, %v7037
        %v7281 = vmul.f32 %v6229, %v7039
        %v7282 = vmul.f32 %v6230, %v7041
        %v7283 = vmul.f32 %v6231, %v7043
        %v7284 = vmul.f32 %v6232, %v7045
        %v7285 = vmul.f32 %v6233, %v7047
        %v7286 = vmul.f32 %v6234, %v7049
        %v7287 = vmul.f32 %v6235, %v7051
        %v7288 = vmul.f32 %v6236, %v7053
        %v7289 = vmul.f32 %v6237, %v7055
        %v7290 = vmul.f32 %v6238, %v7057
        %v7291 = vmul.f32 %v6239, %v7059
        %v7292 = vmul.f32 %v6240, %v7061
        %v7293 = vmul.f32 %v6241, %v7063
        %v7294 = vmul.f32 %v6242, %v7065
        %v7295 = vmul.f32 %v6243, %v7067
        %v7296 = vmul.f32 %v6244, %v7069
        %v7297 = vmul.f32 %v6245, %v7071
        %v7298 = vmul.f32 %v6246, %v7073
        %v7299 = vmul.f32 %v6247, %v7075
        %v7300 = vmul.f32 %v6248, %v7077
        %v7301 = vmul.f32 %v6249, %v7079
        %v7302 = vmul.f32 %v6250, %v7081
        %v7303 = vmul.f32 %v6251, %v7083
        %v7304 = vmul.f32 %v6252, %v7085
        %v7305 = vmul.f32 %v6253, %v7087
        %v7306 = vmul.f32 %v6254, %v7089
        %v7307 = vmul.f32 %v6255, %v7091
        %v7308 = vmul.f32 %v6256, %v7093
        %v7309 = vmul.f32 %v6257, %v7095
        %v7310 = vmul.f32 %v6258, %v7097
        %v7311 = vmul.f32 %v6259, %v7099
        %v7312 = vmul.f32 %v6260, %v7101
        %v7313 = vmul.f32 %v6261, %v7103
        %v7314 = vmul.f32 %v6262, %v7105
        %v7315 = vmul.f32 %v6263, %v7107
        %v7316 = vmul.f32 %v6264, %v7109
        %v7317 = vmul.f32 %v6265, %v7111
        %v7318 = vmul.f32 %v6266, %v7113
        %v7319 = vmul.f32 %v6267, %v7115
        %v7320 = vmul.f32 %v6268, %v7117
        %v7321 = vmul.f32 %v6269, %v7119
        %v7322 = vmul.f32 %v6270, %v7121
        %v7323 = vmul.f32 %v6271, %v7123
        %v7324 = vmul.f32 %v6272, %v7125
        %v7325 = vmul.f32 %v6273, %v7127
        %v7326 = vmul.f32 %v6274, %v7129
        %v7327 = vmul.f32 %v6275, %v7131
        %v7328 = vmul.f32 %v6276, %v7133
        %v7329 = vmul.f32 %v6277, %v7135
        %v7330 = vmul.f32 %v6278, %v7137
        %v7331 = vmul.f32 %v6279, %v7139
        %v7332 = vmul.f32 %v379, %v7268
        %v7333 = vmul.f32 %v380, %v7269
        %v7334 = vmul.f32 %v381, %v7270
        %v7335 = vmul.f32 %v382, %v7271
        %v7336 = vmul.f32 %v383, %v7272
        %v7337 = vmul.f32 %v384, %v7273
        %v7338 = vmul.f32 %v385, %v7274
        %v7339 = vmul.f32 %v386, %v7275
        %v7340 = vmul.f32 %v387, %v7276
        %v7341 = vmul.f32 %v388, %v7277
        %v7342 = vmul.f32 %v389, %v7278
        %v7343 = vmul.f32 %v390, %v7279
        %v7344 = vmul.f32 %v391, %v7280
        %v7345 = vmul.f32 %v392, %v7281
        %v7346 = vmul.f32 %v393, %v7282
        %v7347 = vmul.f32 %v394, %v7283
        %v7348 = vmul.f32 %v395, %v7284
        %v7349 = vmul.f32 %v396, %v7285
        %v7350 = vmul.f32 %v397, %v7286
        %v7351 = vmul.f32 %v398, %v7287
        %v7352 = vmul.f32 %v399, %v7288
        %v7353 = vmul.f32 %v400, %v7289
        %v7354 = vmul.f32 %v401, %v7290
        %v7355 = vmul.f32 %v402, %v7291
        %v7356 = vmul.f32 %v403, %v7292
        %v7357 = vmul.f32 %v404, %v7293
        %v7358 = vmul.f32 %v405, %v7294
        %v7359 = vmul.f32 %v406, %v7295
        %v7360 = vmul.f32 %v407, %v7296
        %v7361 = vmul.f32 %v408, %v7297
        %v7362 = vmul.f32 %v409, %v7298
        %v7363 = vmul.f32 %v410, %v7299
        %v7364 = vmul.f32 %v411, %v7300
        %v7365 = vmul.f32 %v412, %v7301
        %v7366 = vmul.f32 %v413, %v7302
        %v7367 = vmul.f32 %v414, %v7303
        %v7368 = vmul.f32 %v415, %v7304
        %v7369 = vmul.f32 %v416, %v7305
        %v7370 = vmul.f32 %v417, %v7306
        %v7371 = vmul.f32 %v418, %v7307
        %v7372 = vmul.f32 %v419, %v7308
        %v7373 = vmul.f32 %v420, %v7309
        %v7374 = vmul.f32 %v421, %v7310
        %v7375 = vmul.f32 %v422, %v7311
        %v7376 = vmul.f32 %v423, %v7312
        %v7377 = vmul.f32 %v424, %v7313
        %v7378 = vmul.f32 %v425, %v7314
        %v7379 = vmul.f32 %v426, %v7315
        %v7380 = vmul.f32 %v427, %v7316
        %v7381 = vmul.f32 %v428, %v7317
        %v7382 = vmul.f32 %v429, %v7318
        %v7383 = vmul.f32 %v430, %v7319
        %v7384 = vmul.f32 %v431, %v7320
        %v7385 = vmul.f32 %v432, %v7321
        %v7386 = vmul.f32 %v433, %v7322
        %v7387 = vmul.f32 %v434, %v7323
        %v7388 = vmul.f32 %v435, %v7324
        %v7389 = vmul.f32 %v436, %v7325
        %v7390 = vmul.f32 %v437, %v7326
        %v7391 = vmul.f32 %v438, %v7327
        %v7392 = vmul.f32 %v439, %v7328
        %v7393 = vmul.f32 %v440, %v7329
        %v7394 = vmul.f32 %v441, %v7330
        %v7395 = vmul.f32 %v442, %v7331
        %v7396 = vadd.f32 %v7332, %v7204
        %v7397 = vadd.f32 %v7333, %v7205
        %v7398 = vadd.f32 %v7334, %v7206
        %v7399 = vadd.f32 %v7335, %v7207
        %v7400 = vadd.f32 %v7336, %v7208
        %v7401 = vadd.f32 %v7337, %v7209
        %v7402 = vadd.f32 %v7338, %v7210
        %v7403 = vadd.f32 %v7339, %v7211
        %v7404 = vadd.f32 %v7340, %v7212
        %v7405 = vadd.f32 %v7341, %v7213
        %v7406 = vadd.f32 %v7342, %v7214
        %v7407 = vadd.f32 %v7343, %v7215
        %v7408 = vadd.f32 %v7344, %v7216
        %v7409 = vadd.f32 %v7345, %v7217
        %v7410 = vadd.f32 %v7346, %v7218
        %v7411 = vadd.f32 %v7347, %v7219
        %v7412 = vadd.f32 %v7348, %v7220
        %v7413 = vadd.f32 %v7349, %v7221
        %v7414 = vadd.f32 %v7350, %v7222
        %v7415 = vadd.f32 %v7351, %v7223
        %v7416 = vadd.f32 %v7352, %v7224
        %v7417 = vadd.f32 %v7353, %v7225
        %v7418 = vadd.f32 %v7354, %v7226
        %v7419 = vadd.f32 %v7355, %v7227
        %v7420 = vadd.f32 %v7356, %v7228
        %v7421 = vadd.f32 %v7357, %v7229
        %v7422 = vadd.f32 %v7358, %v7230
        %v7423 = vadd.f32 %v7359, %v7231
        %v7424 = vadd.f32 %v7360, %v7232
        %v7425 = vadd.f32 %v7361, %v7233
        %v7426 = vadd.f32 %v7362, %v7234
        %v7427 = vadd.f32 %v7363, %v7235
        %v7428 = vadd.f32 %v7364, %v7236
        %v7429 = vadd.f32 %v7365, %v7237
        %v7430 = vadd.f32 %v7366, %v7238
        %v7431 = vadd.f32 %v7367, %v7239
        %v7432 = vadd.f32 %v7368, %v7240
        %v7433 = vadd.f32 %v7369, %v7241
        %v7434 = vadd.f32 %v7370, %v7242
        %v7435 = vadd.f32 %v7371, %v7243
        %v7436 = vadd.f32 %v7372, %v7244
        %v7437 = vadd.f32 %v7373, %v7245
        %v7438 = vadd.f32 %v7374, %v7246
        %v7439 = vadd.f32 %v7375, %v7247
        %v7440 = vadd.f32 %v7376, %v7248
        %v7441 = vadd.f32 %v7377, %v7249
        %v7442 = vadd.f32 %v7378, %v7250
        %v7443 = vadd.f32 %v7379, %v7251
        %v7444 = vadd.f32 %v7380, %v7252
        %v7445 = vadd.f32 %v7381, %v7253
        %v7446 = vadd.f32 %v7382, %v7254
        %v7447 = vadd.f32 %v7383, %v7255
        %v7448 = vadd.f32 %v7384, %v7256
        %v7449 = vadd.f32 %v7385, %v7257
        %v7450 = vadd.f32 %v7386, %v7258
        %v7451 = vadd.f32 %v7387, %v7259
        %v7452 = vadd.f32 %v7388, %v7260
        %v7453 = vadd.f32 %v7389, %v7261
        %v7454 = vadd.f32 %v7390, %v7262
        %v7455 = vadd.f32 %v7391, %v7263
        %v7456 = vadd.f32 %v7392, %v7264
        %v7457 = vadd.f32 %v7393, %v7265
        %v7458 = vadd.f32 %v7394, %v7266
        %v7459 = vadd.f32 %v7395, %v7267
        %7460 = vst [vmem:[%s375] sm:$0xff] %v7396
        %7461 = vst [vmem:[%s375 + $0x8] sm:$0xff] %v7397
        %7462 = vst [vmem:[%s375 + $0x10] sm:$0xff] %v7398
        %7463 = vst [vmem:[%s375 + $0x18] sm:$0xff] %v7399
        %7464 = vst [vmem:[%s375 + $0x20] sm:$0xff] %v7400
        %7465 = vst [vmem:[%s375 + $0x28] sm:$0xff] %v7401
        %7466 = vst [vmem:[%s375 + $0x30] sm:$0xff] %v7402
        %7467 = vst [vmem:[%s375 + $0x38] sm:$0xff] %v7403
        %7468 = vst [vmem:[%s375 + $0x40] sm:$0xff] %v7404
        %7469 = vst [vmem:[%s375 + $0x48] sm:$0xff] %v7405
        %7470 = vst [vmem:[%s375 + $0x50] sm:$0xff] %v7406
        %7471 = vst [vmem:[%s375 + $0x58] sm:$0xff] %v7407
        %7472 = vst [vmem:[%s375 + $0x60] sm:$0xff] %v7408
        %7473 = vst [vmem:[%s375 + $0x68] sm:$0xff] %v7409
        %7474 = vst [vmem:[%s375 + $0x70] sm:$0xff] %v7410
        %7475 = vst [vmem:[%s375 + $0x78] sm:$0xff] %v7411
        %7476 = vst [vmem:[%s375 + $0x80] sm:$0xff] %v7412
        %7477 = vst [vmem:[%s375 + $0x88] sm:$0xff] %v7413
        %7478 = vst [vmem:[%s375 + $0x90] sm:$0xff] %v7414
        %7479 = vst [vmem:[%s375 + $0x98] sm:$0xff] %v7415
        %7480 = vst [vmem:[%s375 + $0xa0] sm:$0xff] %v7416
        %7481 = vst [vmem:[%s375 + $0xa8] sm:$0xff] %v7417
        %7482 = vst [vmem:[%s375 + $0xb0] sm:$0xff] %v7418
        %7483 = vst [vmem:[%s375 + $0xb8] sm:$0xff] %v7419
        %7484 = vst [vmem:[%s375 + $0xc0] sm:$0xff] %v7420
        %7485 = vst [vmem:[%s375 + $0xc8] sm:$0xff] %v7421
        %7486 = vst [vmem:[%s375 + $0xd0] sm:$0xff] %v7422
        %7487 = vst [vmem:[%s375 + $0xd8] sm:$0xff] %v7423
        %7488 = vst [vmem:[%s375 + $0xe0] sm:$0xff] %v7424
        %7489 = vst [vmem:[%s375 + $0xe8] sm:$0xff] %v7425
        %7490 = vst [vmem:[%s375 + $0xf0] sm:$0xff] %v7426
        %7491 = vst [vmem:[%s375 + $0xf8] sm:$0xff] %v7427
        %7492 = vst [vmem:[%s375 + $0x100] sm:$0xff] %v7428
        %7493 = vst [vmem:[%s375 + $0x108] sm:$0xff] %v7429
        %7494 = vst [vmem:[%s375 + $0x110] sm:$0xff] %v7430
        %7495 = vst [vmem:[%s375 + $0x118] sm:$0xff] %v7431
        %7496 = vst [vmem:[%s375 + $0x120] sm:$0xff] %v7432
        %7497 = vst [vmem:[%s375 + $0x128] sm:$0xff] %v7433
        %7498 = vst [vmem:[%s375 + $0x130] sm:$0xff] %v7434
        %7499 = vst [vmem:[%s375 + $0x138] sm:$0xff] %v7435
        %7500 = vst [vmem:[%s375 + $0x140] sm:$0xff] %v7436
        %7501 = vst [vmem:[%s375 + $0x148] sm:$0xff] %v7437
        %7502 = vst [vmem:[%s375 + $0x150] sm:$0xff] %v7438
        %7503 = vst [vmem:[%s375 + $0x158] sm:$0xff] %v7439
        %7504 = vst [vmem:[%s375 + $0x160] sm:$0xff] %v7440
        %7505 = vst [vmem:[%s375 + $0x168] sm:$0xff] %v7441
        %7506 = vst [vmem:[%s375 + $0x170] sm:$0xff] %v7442
        %7507 = vst [vmem:[%s375 + $0x178] sm:$0xff] %v7443
        %7508 = vst [vmem:[%s375 + $0x180] sm:$0xff] %v7444
        %7509 = vst [vmem:[%s375 + $0x188] sm:$0xff] %v7445
        %7510 = vst [vmem:[%s375 + $0x190] sm:$0xff] %v7446
        %7511 = vst [vmem:[%s375 + $0x198] sm:$0xff] %v7447
        %7512 = vst [vmem:[%s375 + $0x1a0] sm:$0xff] %v7448
        %7513 = vst [vmem:[%s375 + $0x1a8] sm:$0xff] %v7449
        %7514 = vst [vmem:[%s375 + $0x1b0] sm:$0xff] %v7450
        %7515 = vst [vmem:[%s375 + $0x1b8] sm:$0xff] %v7451
        %7516 = vst [vmem:[%s375 + $0x1c0] sm:$0xff] %v7452
        %7517 = vst [vmem:[%s375 + $0x1c8] sm:$0xff] %v7453
        %7518 = vst [vmem:[%s375 + $0x1d0] sm:$0xff] %v7454
        %7519 = vst [vmem:[%s375 + $0x1d8] sm:$0xff] %v7455
        %7520 = vst [vmem:[%s375 + $0x1e0] sm:$0xff] %v7456
        %7521 = vst [vmem:[%s375 + $0x1e8] sm:$0xff] %v7457
        %7522 = vst [vmem:[%s375 + $0x1f0] sm:$0xff] %v7458
        %7523 = vst [vmem:[%s375 + $0x1f8] sm:$0xff] %v7459
        %s7524 = sand.u32 %s172, 1
        %s7525 = scalar_lea.sflag [#allocation4], %s7524
        %s7526 = sand.u32 %s172, 1
        %s7527 = smul.addr %s7526, 512
        %s7528 = scalar_lea.vmem [#allocation13], %s7527
        // Predicated region
        $region69: #{tpu_custom_call.1} parent=43 // pred_check
          %p7529 = pneg %p182
        $region70: #{tpu_custom_call.1} parent=43 // pred_check_branch
          %7531 = sbr.rel (%p7529) target = $region72
        $region71: #{tpu_custom_call.1} parent=43 // pred_region
          %s7532 = smul.u32 64, %s28
          %7534 = vsyncadd %s7525, 0
          %s7535 = smul.addr %s7532, 8
          %s7536 = scalar_lea.hbm %s6, %s7535
          %s7537 = sshll.u32 %s7528, 4
          %s7538 = int_to_ptr.vmem [resolvable:$true] %s7537
          %s7539 = sshll.u32 %s7536, 4
          %s7540 = int_to_ptr.hbm [resolvable:$true] %s7539
          %7545 = dma.vmem_to_hbm [thread:$0]  %s7538, 8192, %s7540, %s7525, 128, 128, 8
        $region72: #{tpu_custom_call.1} parent=43 // pred_fallthru
          _
      $region44: #{tpu_custom_call.1} parent=5 // pred_fallthru
        _
      %p7546 = scmp.le.s32.totalorder 2, %s23
      // Predicated region
      $region73: #{tpu_custom_call.1} parent=5 // pred_check
        %p7547 = pneg %p7546
      $region74: #{tpu_custom_call.1} parent=5 // pred_check_branch
        %7549 = sbr.rel (%p7547) target = $region76
      $region75: #{tpu_custom_call.1} parent=5 // pred_region
        %s7550 = ssub.s32 %s23, 2
        // Predicated region
        $region77: #{tpu_custom_call.1} parent=75 // pred_check
          %p7551 = pneg %p188
        $region78: #{tpu_custom_call.1} parent=75 // pred_check_branch
          %7553 = sbr.rel (%p7551) target = $region80
        $region79: #{tpu_custom_call.1} parent=75 // pred_region
          %s7554 = sand.u32 %s173, 1
          %s7555 = scalar_lea.sflag [#allocation4], %s7554
          %s7556 = sand.u32 %s173, 1
          %s7557 = smul.addr %s7556, 512
          %s7558 = scalar_lea.vmem [#allocation13], %s7557
          %7560 = dma.done %s7555, 8192
        $region80: #{tpu_custom_call.1} parent=75 // pred_fallthru
          _
      $region76: #{tpu_custom_call.1} parent=5 // pred_fallthru
        _
    $region6: #{tpu_custom_call.1} parent=1 // loop_footer
      %s27 = sadd.s32 1, %s23
    $region7: #{tpu_custom_call.1} parent=1 // loop_footer_branch
      %22 = sbr.rel target = $region3
    $region8: #{tpu_custom_call.1} parent=1 // loop_exit
      _
    %7561 = vsyncpa [#allocation3], 1
    %s7562 = scalar_lea.sflag [#allocation3], 1
    %7563 = vsyncpa %s7562, 1
    %7564 = vsyncpa [#allocation6], 1
    %s7565 = scalar_lea.sflag [#allocation6], 1
    %7566 = vsyncpa %s7565, 1
    %7567 = vsyncpa [#allocation9], 1
    %7568 = vsyncpa [#allocation12], 1
    %7569 = vsyncpa [#allocation4], 1
    %s7570 = scalar_lea.sflag [#allocation4], 1
    %7571 = vsyncpa %s7570, 1

</llo_original>
